<compile_context>
chip_gen: v5e
topology: v5e:2x2
jax: 0.10.0
libtpu: 0.0.40
codegen_flags: <defaults>
</compile_context>

<pallas_src>
import jax
import jax.numpy as jnp
from jax import lax
from jax.experimental import pallas as pl
from jax.experimental.pallas import tpu as pltpu

_BN_EPS = 1e-5
# ResNet-50 stage configuration: (bottleneck width, num blocks, stride of first block)
LAYER_CFG = [(64, 3, 1), (128, 4, 2), (256, 6, 2), (512, 3, 2)]


# ----------------------------------------------------------------------------
# Frozen ResNet-50 backbone (plain JAX glue, NHWC, bf16; runs under no_grad in torch)
# ----------------------------------------------------------------------------
def conv2d(x, w, stride=1, pad=0):
    return lax.conv_general_dilated(
        x, w, (stride, stride), [(pad, pad), (pad, pad)],
        dimension_numbers=("NHWC", "HWIO", "NHWC"))


def frozen_bn(x):
    # Frozen BN with default stats (mean=0, var=1, gamma=1, beta=0)
    # -> pure scale by 1/sqrt(1 + eps).
    return x * jnp.asarray((1.0 / (1.0 + _BN_EPS) ** 0.5), x.dtype)


def bottleneck(x, blk, stride):
    out = jax.nn.relu(frozen_bn(conv2d(x, blk["w1"])))                          # 1x1
    out = jax.nn.relu(frozen_bn(conv2d(out, blk["w2"], stride=stride, pad=1)))  # 3x3
    out = frozen_bn(conv2d(out, blk["w3"]))                                     # 1x1 (x4)
    if "wd" in blk:
        identity = frozen_bn(conv2d(x, blk["wd"], stride=stride))
    else:
        identity = x
    return jax.nn.relu(out + identity)


def make_resnet50_params(key):
    keys = iter(jax.random.split(key, 128))

    def he(shape):  # HWIO, stored directly in bf16 (frozen backbone -> bf16 MXU path)
        fan_in = shape[0] * shape[1] * shape[2]
        w = jax.random.normal(next(keys), shape, jnp.float32) * (2.0 / fan_in) ** 0.5
        return w.astype(jnp.bfloat16)

    params = {"stem": he((7, 7, 3, 64)), "layers": []}
    in_ch = 64
    for width, blocks, _stride in LAYER_CFG:
        stage = []
        for b in range(blocks):
            blk = {
                "w1": he((1, 1, in_ch, width)),
                "w2": he((3, 3, width, width)),
                "w3": he((1, 1, width, width * 4)),
            }
            if b == 0:
                blk["wd"] = he((1, 1, in_ch, width * 4))
            stage.append(blk)
            in_ch = width * 4
        params["layers"].append(stage)
    return params


def resnet50_pooled_features(params, images_nchw):
    # NCHW (PyTorch convention at the API boundary) -> NHWC bf16 for the TPU convs.
    x = jnp.transpose(images_nchw, (0, 2, 3, 1)).astype(jnp.bfloat16)
    y = jax.nn.relu(frozen_bn(conv2d(x, params["stem"], stride=2, pad=3)))
    y = lax.reduce_window(y, jnp.asarray(-jnp.inf, y.dtype), lax.max,
                          (1, 3, 3, 1), (1, 2, 2, 1),
                          [(0, 0), (1, 1), (1, 1), (0, 0)])
    for stage, (_width, _blocks, stride) in zip(params["layers"], LAYER_CFG):
        for b, blk in enumerate(stage):
            y = bottleneck(y, blk, stride if b == 0 else 1)
    # AdaptiveAvgPool2d((1,1)) + reshape(B, -1): channels-last -> dense (B, 2048).
    # Accumulate the mean in f32.
    return jnp.mean(y.astype(jnp.float32), axis=(1, 2))  # (B, 2048) f32


# ----------------------------------------------------------------------------
# Pallas head kernel: Linear (bias dropped; cancelled by BN mean subtraction)
# + BatchNorm1d (training-mode batch statistics).
# Grid: (E_tiles,) only, all "parallel"; the full C reduction is one MXU dot.
# ----------------------------------------------------------------------------
def encoder_head_kernel(x_ref, w_ref, gamma_ref, beta_ref, o_ref):
    # x_ref: (B, C) f32    w_ref: (C, tn) bf16    gamma/beta: (1, tn) f32
    # o_ref: (B, tn) f32
    x_bf = x_ref[...].astype(jnp.bfloat16)  # in-kernel VPU cast, hides under DMA
    y = jnp.dot(x_bf, w_ref[...], preferred_element_type=jnp.float32)
    # BatchNorm1d, training mode: batch stats over the FULL batch per feature
    # (biased variance), eps=1e-5.  The whole batch lives in the tile, so
    # per-E-tile statistics are exact.  Linear bias is omitted because the
    # mean subtraction cancels it exactly.
    mu = jnp.mean(y, axis=0, keepdims=True)
    var = jnp.mean((y - mu) ** 2, axis=0, keepdims=True)
    o_ref[...] = (y - mu) * lax.rsqrt(var + _BN_EPS) * gamma_ref[...] + beta_ref[...]


def encoder_head(pooled, w_bf16, gamma, beta, *, tn=128):
    """pooled: (B, C) f32; w_bf16: (C, E) pre-cast bf16; gamma/beta: (E,) f32."""
    B, C = pooled.shape
    E = w_bf16.shape[1]
    tn = min(tn, E)
    assert E % tn == 0, (E, tn)
    if w_bf16.dtype != jnp.bfloat16:  # no-op when pre-cast outside the forward path
        w_bf16 = w_bf16.astype(jnp.bfloat16)

    return pl.pallas_call(
        encoder_head_kernel,
        out_shape=jax.ShapeDtypeStruct((B, E), jnp.float32),
        grid_spec=pltpu.PrefetchScalarGridSpec(
            num_scalar_prefetch=0,
            grid=(E // tn,),
            in_specs=[
                pl.BlockSpec((B, C), lambda j: (0, 0)),    # full activation, f32
                pl.BlockSpec((C, tn), lambda j: (0, j)),   # weight column tile, bf16
                pl.BlockSpec((1, tn), lambda j: (0, j)),   # gamma
                pl.BlockSpec((1, tn), lambda j: (0, j)),   # beta
            ],
            out_specs=pl.BlockSpec((B, tn), lambda j: (0, j)),
        ),
        compiler_params=pltpu.CompilerParams(
            dimension_semantics=("parallel",)),
    )(pooled, w_bf16, gamma.reshape(1, E), beta.reshape(1, E))


# ----------------------------------------------------------------------------
# Full EncoderCNN forward
# ----------------------------------------------------------------------------
@jax.jit
def encoder_cnn_forward(images, backbone_params, w_bf16, gamma, beta):
    pooled = resnet50_pooled_features(backbone_params, images)  # frozen backbone (no_grad)
    return encoder_head(pooled, w_bf16, gamma, beta)            # linear + bn (Pallas)


if __name__ == "__main__":
    key = jax.random.PRNGKey(0)
    k_img, k_bb, k_w, k_b = jax.random.split(key, 4)

    B, EMBED, IN_FEAT = 2, 256, 2048
    images = jax.random.normal(k_img, (B, 3, 32, 32), jnp.float32)

    backbone_params = make_resnet50_params(k_bb)

    # nn.Linear(2048, embed_size) default init: U(-1/sqrt(fan_in), 1/sqrt(fan_in)).
    bound = 1.0 / (IN_FEAT ** 0.5)
    w = jax.random.uniform(k_w, (IN_FEAT, EMBED), jnp.float32, -bound, bound)
    # Linear bias sampled but unused: BatchNorm1d batch-mean subtraction cancels it.
    _b_unused = jax.random.uniform(k_b, (EMBED,), jnp.float32, -bound, bound)
    # Pre-cast the linear weight to bf16 ONCE, outside the jitted forward path.
    w_bf16 = w.astype(jnp.bfloat16)
    # nn.BatchNorm1d(embed_size) default init.
    gamma = jnp.ones((EMBED,), jnp.float32)
    beta = jnp.zeros((EMBED,), jnp.float32)

    out = encoder_cnn_forward(images, backbone_params, w_bf16, gamma, beta)
    out = jax.block_until_ready(out)
    assert out.shape == (B, EMBED) and out.dtype == jnp.float32
    assert bool(jnp.all(jnp.isfinite(out)))
    print("KERNEL_OK")
</pallas_src>

<mosaic_0001>
module attributes {stable_mosaic.version = 11 : i64} {
  func.func @encoder_head_kernel(%arg0: i32, %arg1: memref<2x2048xf32, #tpu.memory_space<vmem>>, %arg2: memref<2048x128xbf16, #tpu.memory_space<vmem>>, %arg3: memref<1x128xf32, #tpu.memory_space<vmem>>, %arg4: memref<1x128xf32, #tpu.memory_space<vmem>>, %arg5: memref<2x128xf32, #tpu.memory_space<vmem>>) attributes {dimension_semantics = [#tpu.dimension_semantics<parallel>], iteration_bounds = array<i64: 2>, scalar_prefetch = 0 : i64, scratch_operands = 0 : i64, tpu.core_type = #tpu.core_type<tc>, window_params = [{pipeline_mode = #tpu.pipeline_mode<synchronous>, transform_indices = @transform_0, window_bounds = array<i64: 2, 2048>}, {transform_indices = @transform_1, window_bounds = array<i64: 2048, 128>}, {transform_indices = @transform_2, window_bounds = array<i64: 1, 128>}, {transform_indices = @transform_3, window_bounds = array<i64: 1, 128>}, {transform_indices = @transform_4, window_bounds = array<i64: 2, 128>}]} {
    %c0 = arith.constant 0 : index
    %c0_0 = arith.constant 0 : index
    %0 = vector.load %arg1[%c0, %c0_0] : memref<2x2048xf32, #tpu.memory_space<vmem>>, vector<2x2048xf32>
    %1 = arith.truncf %0 : vector<2x2048xf32> to vector<2x2048xbf16>
    %c0_1 = arith.constant 0 : index
    %c0_2 = arith.constant 0 : index
    %2 = vector.load %arg2[%c0_1, %c0_2] : memref<2048x128xbf16, #tpu.memory_space<vmem>>, vector<2048x128xbf16>
    %cst = arith.constant dense<0.000000e+00> : vector<2x128xf32>
    %3 = tpu.matmul %1, %2, %cst {dimension_numbers = #tpu.dot_dimension_numbers<[1], [0], [0], [1], [0, 0, 1, 1], [], []>} : vector<2x2048xbf16>, vector<2048x128xbf16>, vector<2x128xf32> -> vector<2x128xf32>
    %cst_3 = arith.constant dense<0.000000e+00> : vector<128xf32>
    %4 = vector.multi_reduction <add>, %3, %cst_3 [0] : vector<2x128xf32> to vector<128xf32>
    %5 = vector.shape_cast %4 : vector<128xf32> to vector<1x128xf32>
    %cst_4 = arith.constant 2.000000e+00 : f32
    %6 = vector.broadcast %cst_4 : f32 to vector<1x128xf32>
    %7 = arith.divf %5, %6 : vector<1x128xf32>
    %8 = vector.broadcast %7 : vector<1x128xf32> to vector<2x128xf32>
    %9 = arith.subf %3, %8 : vector<2x128xf32>
    %10 = arith.mulf %9, %9 : vector<2x128xf32>
    %cst_5 = arith.constant dense<0.000000e+00> : vector<128xf32>
    %11 = vector.multi_reduction <add>, %10, %cst_5 [0] : vector<2x128xf32> to vector<128xf32>
    %12 = vector.shape_cast %11 : vector<128xf32> to vector<1x128xf32>
    %cst_6 = arith.constant 2.000000e+00 : f32
    %13 = vector.broadcast %cst_6 : f32 to vector<1x128xf32>
    %14 = arith.divf %12, %13 : vector<1x128xf32>
    %15 = vector.broadcast %7 : vector<1x128xf32> to vector<2x128xf32>
    %16 = arith.subf %3, %15 : vector<2x128xf32>
    %cst_7 = arith.constant 9.99999974E-6 : f32
    %17 = vector.broadcast %cst_7 : f32 to vector<1x128xf32>
    %18 = arith.addf %14, %17 : vector<1x128xf32>
    %19 = math.rsqrt %18 : vector<1x128xf32>
    %20 = vector.broadcast %19 : vector<1x128xf32> to vector<2x128xf32>
    %21 = arith.mulf %16, %20 : vector<2x128xf32>
    %c0_8 = arith.constant 0 : index
    %c0_9 = arith.constant 0 : index
    %22 = vector.load %arg3[%c0_8, %c0_9] : memref<1x128xf32, #tpu.memory_space<vmem>>, vector<1x128xf32>
    %23 = vector.broadcast %22 : vector<1x128xf32> to vector<2x128xf32>
    %24 = arith.mulf %21, %23 : vector<2x128xf32>
    %c0_10 = arith.constant 0 : index
    %c0_11 = arith.constant 0 : index
    %25 = vector.load %arg4[%c0_10, %c0_11] : memref<1x128xf32, #tpu.memory_space<vmem>>, vector<1x128xf32>
    %26 = vector.broadcast %25 : vector<1x128xf32> to vector<2x128xf32>
    %27 = arith.addf %24, %26 : vector<2x128xf32>
    %c0_12 = arith.constant 0 : index
    %c0_13 = arith.constant 0 : index
    %28 = vector.load %arg5[%c0_12, %c0_13] : memref<2x128xf32, #tpu.memory_space<vmem>>, vector<2x128xf32>
    tpu.vector_store %arg5[%c0_12, %c0_13], %27 {strides = array<i32>} : memref<2x128xf32, #tpu.memory_space<vmem>>, vector<2x128xf32>,
    return
  }
  func.func @transform_0(%arg0: i32) -> (i32, i32) {
    %c0_i32 = arith.constant 0 : i32
    %c0_i32_0 = arith.constant 0 : i32
    %c0_i32_1 = arith.constant 0 : i32
    return %c0_i32, %c0_i32_0 : i32, i32
  }
  func.func @transform_1(%arg0: i32) -> (i32, i32) {
    %c0_i32 = arith.constant 0 : i32
    %c0_i32_0 = arith.constant 0 : i32
    return %c0_i32, %arg0 : i32, i32
  }
  func.func @transform_2(%arg0: i32) -> (i32, i32) {
    %c0_i32 = arith.constant 0 : i32
    %c0_i32_0 = arith.constant 0 : i32
    return %c0_i32, %arg0 : i32, i32
  }
  func.func @transform_3(%arg0: i32) -> (i32, i32) {
    %c0_i32 = arith.constant 0 : i32
    %c0_i32_0 = arith.constant 0 : i32
    return %c0_i32, %arg0 : i32, i32
  }
  func.func @transform_4(%arg0: i32) -> (i32, i32) {
    %c0_i32 = arith.constant 0 : i32
    %c0_i32_0 = arith.constant 0 : i32
    return %c0_i32, %arg0 : i32, i32
  }
}

</mosaic_0001>

<llo_original>
// kernel: reverse
$region0: #{reverse}
  #allocation0 [shape = 's32[1]{0}', space=sflag, size = 0x4, scoped, tag = 'scoped memory for reverse']
  %s0 = inlined_call_operand.vmem [shape: bf16[3,3,256,256], index: 0, kind: input, shape index: {}]
  %s1 = inlined_call_operand.vmem [shape: bf16[3,3,256,256], index: 1, kind: output, shape index: {}]
  %s2 = scalar_lea.vmem %s0, 2048
  %v3 = vld [vmem:[%s2] sm:$0xf]
  %v4 = vunpack.c.l.bf16 %v3
  %v5 = vunpack.c.h.bf16 %v3
  %s6 = scalar_lea.vmem %s0, 1280
  %v7 = vld [vmem:[%s6] sm:$0xf]
  %v8 = vunpack.c.l.bf16 %v7
  %v9 = vunpack.c.h.bf16 %v7
  %s10 = scalar_lea.vmem %s1, 768
  %s11 = scalar_lea.vmem %s0, 512
  %v12 = vld [vmem:[%s11] sm:$0xf]
  %v13 = vunpack.c.l.bf16 %v12
  %v14 = vunpack.c.h.bf16 %v12
  %s15 = scalar_lea.vmem %s1, 1536
  %s16 = scalar_lea.vmem %s0, 1792
  %v17 = vld [vmem:[%s16] sm:$0xf]
  %v18 = vunpack.c.l.bf16 %v17
  %v19 = vunpack.c.h.bf16 %v17
  %s20 = scalar_lea.vmem %s1, 256
  %s21 = scalar_lea.vmem %s0, 1024
  %v22 = vld [vmem:[%s21] sm:$0xf]
  %v23 = vunpack.c.l.bf16 %v22
  %v24 = vunpack.c.h.bf16 %v22
  %s25 = scalar_lea.vmem %s1, 1024
  %s26 = scalar_lea.vmem %s0, 256
  %v27 = vld [vmem:[%s26] sm:$0xf]
  %v28 = vunpack.c.l.bf16 %v27
  %v29 = vunpack.c.h.bf16 %v27
  %s30 = scalar_lea.vmem %s1, 1792
  %s31 = scalar_lea.vmem %s0, 1536
  %v32 = vld [vmem:[%s31] sm:$0xf]
  %v33 = vunpack.c.l.bf16 %v32
  %v34 = vunpack.c.h.bf16 %v32
  %s35 = scalar_lea.vmem %s1, 512
  %s36 = scalar_lea.vmem %s0, 768
  %v37 = vld [vmem:[%s36] sm:$0xf]
  %v38 = vunpack.c.l.bf16 %v37
  %v39 = vunpack.c.h.bf16 %v37
  %s40 = scalar_lea.vmem %s1, 1280
  %v41 = vld [vmem:[%s0] sm:$0xf]
  %v42 = vunpack.c.l.bf16 %v41
  %v43 = vunpack.c.h.bf16 %v41
  %s44 = scalar_lea.vmem %s1, 2048
  %s45 = scalar_lea.vmem %s0, 2056
  %v46 = vld [vmem:[%s45] sm:$0xf]
  %v47 = vunpack.c.l.bf16 %v46
  %v48 = vunpack.c.h.bf16 %v46
  %s49 = scalar_lea.vmem %s1, 8
  %s50 = scalar_lea.vmem %s0, 1288
  %v51 = vld [vmem:[%s50] sm:$0xf]
  %v52 = vunpack.c.l.bf16 %v51
  %v53 = vunpack.c.h.bf16 %v51
  %s54 = scalar_lea.vmem %s1, 776
  %s55 = scalar_lea.vmem %s0, 520
  %v56 = vld [vmem:[%s55] sm:$0xf]
  %v57 = vunpack.c.l.bf16 %v56
  %v58 = vunpack.c.h.bf16 %v56
  %s59 = scalar_lea.vmem %s1, 1544
  %s60 = scalar_lea.vmem %s0, 1800
  %v61 = vld [vmem:[%s60] sm:$0xf]
  %v62 = vunpack.c.l.bf16 %v61
  %v63 = vunpack.c.h.bf16 %v61
  %s64 = scalar_lea.vmem %s1, 264
  %s65 = scalar_lea.vmem %s0, 1032
  %v66 = vld [vmem:[%s65] sm:$0xf]
  %v67 = vunpack.c.l.bf16 %v66
  %v68 = vunpack.c.h.bf16 %v66
  %s69 = scalar_lea.vmem %s1, 1032
  %s70 = scalar_lea.vmem %s0, 264
  %v71 = vld [vmem:[%s70] sm:$0xf]
  %v72 = vunpack.c.l.bf16 %v71
  %v73 = vunpack.c.h.bf16 %v71
  %s74 = scalar_lea.vmem %s1, 1800
  %s75 = scalar_lea.vmem %s0, 1544
  %v76 = vld [vmem:[%s75] sm:$0xf]
  %v77 = vunpack.c.l.bf16 %v76
  %v78 = vunpack.c.h.bf16 %v76
  %s79 = scalar_lea.vmem %s1, 520
  %s80 = scalar_lea.vmem %s0, 776
  %v81 = vld [vmem:[%s80] sm:$0xf]
  %v82 = vunpack.c.l.bf16 %v81
  %v83 = vunpack.c.h.bf16 %v81
  %s84 = scalar_lea.vmem %s1, 1288
  %s85 = scalar_lea.vmem %s0, 8
  %v86 = vld [vmem:[%s85] sm:$0xf]
  %v87 = vunpack.c.l.bf16 %v86
  %v88 = vunpack.c.h.bf16 %v86
  %s89 = scalar_lea.vmem %s1, 2056
  %s90 = scalar_lea.vmem %s0, 2064
  %v91 = vld [vmem:[%s90] sm:$0xf]
  %v92 = vunpack.c.l.bf16 %v91
  %v93 = vunpack.c.h.bf16 %v91
  %s94 = scalar_lea.vmem %s1, 16
  %s95 = scalar_lea.vmem %s0, 1296
  %v96 = vld [vmem:[%s95] sm:$0xf]
  %v97 = vunpack.c.l.bf16 %v96
  %v98 = vunpack.c.h.bf16 %v96
  %s99 = scalar_lea.vmem %s1, 784
  %s100 = scalar_lea.vmem %s0, 528
  %v101 = vld [vmem:[%s100] sm:$0xf]
  %v102 = vunpack.c.l.bf16 %v101
  %v103 = vunpack.c.h.bf16 %v101
  %s104 = scalar_lea.vmem %s1, 1552
  %s105 = scalar_lea.vmem %s0, 1808
  %v106 = vld [vmem:[%s105] sm:$0xf]
  %v107 = vunpack.c.l.bf16 %v106
  %v108 = vunpack.c.h.bf16 %v106
  %s109 = scalar_lea.vmem %s1, 272
  %s110 = scalar_lea.vmem %s0, 1040
  %v111 = vld [vmem:[%s110] sm:$0xf]
  %v112 = vunpack.c.l.bf16 %v111
  %v113 = vunpack.c.h.bf16 %v111
  %s114 = scalar_lea.vmem %s1, 1040
  %s115 = scalar_lea.vmem %s0, 272
  %v116 = vld [vmem:[%s115] sm:$0xf]
  %v117 = vunpack.c.l.bf16 %v116
  %v118 = vunpack.c.h.bf16 %v116
  %s119 = scalar_lea.vmem %s1, 1808
  %s120 = scalar_lea.vmem %s0, 1552
  %v121 = vld [vmem:[%s120] sm:$0xf]
  %v122 = vunpack.c.l.bf16 %v121
  %v123 = vunpack.c.h.bf16 %v121
  %s124 = scalar_lea.vmem %s1, 528
  %s125 = scalar_lea.vmem %s0, 784
  %v126 = vld [vmem:[%s125] sm:$0xf]
  %v127 = vunpack.c.l.bf16 %v126
  %v128 = vunpack.c.h.bf16 %v126
  %s129 = scalar_lea.vmem %s1, 1296
  %s130 = scalar_lea.vmem %s0, 16
  %v131 = vld [vmem:[%s130] sm:$0xf]
  %v132 = vunpack.c.l.bf16 %v131
  %v133 = vunpack.c.h.bf16 %v131
  %s134 = scalar_lea.vmem %s1, 2064
  %s135 = scalar_lea.vmem %s0, 2072
  %v136 = vld [vmem:[%s135] sm:$0xf]
  %v137 = vunpack.c.l.bf16 %v136
  %v138 = vunpack.c.h.bf16 %v136
  %s139 = scalar_lea.vmem %s1, 24
  %s140 = scalar_lea.vmem %s0, 1304
  %v141 = vld [vmem:[%s140] sm:$0xf]
  %v142 = vunpack.c.l.bf16 %v141
  %v143 = vunpack.c.h.bf16 %v141
  %s144 = scalar_lea.vmem %s1, 792
  %s145 = scalar_lea.vmem %s0, 536
  %v146 = vld [vmem:[%s145] sm:$0xf]
  %v147 = vunpack.c.l.bf16 %v146
  %v148 = vunpack.c.h.bf16 %v146
  %s149 = scalar_lea.vmem %s1, 1560
  %s150 = scalar_lea.vmem %s0, 1816
  %v151 = vld [vmem:[%s150] sm:$0xf]
  %v152 = vunpack.c.l.bf16 %v151
  %v153 = vunpack.c.h.bf16 %v151
  %s154 = scalar_lea.vmem %s1, 280
  %s155 = scalar_lea.vmem %s0, 1048
  %v156 = vld [vmem:[%s155] sm:$0xf]
  %v157 = vunpack.c.l.bf16 %v156
  %v158 = vunpack.c.h.bf16 %v156
  %s159 = scalar_lea.vmem %s1, 1048
  %s160 = scalar_lea.vmem %s0, 280
  %v161 = vld [vmem:[%s160] sm:$0xf]
  %v162 = vunpack.c.l.bf16 %v161
  %v163 = vunpack.c.h.bf16 %v161
  %s164 = scalar_lea.vmem %s1, 1816
  %s165 = scalar_lea.vmem %s0, 1560
  %v166 = vld [vmem:[%s165] sm:$0xf]
  %v167 = vunpack.c.l.bf16 %v166
  %v168 = vunpack.c.h.bf16 %v166
  %s169 = scalar_lea.vmem %s1, 536
  %s170 = scalar_lea.vmem %s0, 792
  %v171 = vld [vmem:[%s170] sm:$0xf]
  %v172 = vunpack.c.l.bf16 %v171
  %v173 = vunpack.c.h.bf16 %v171
  %s174 = scalar_lea.vmem %s1, 1304
  %s175 = scalar_lea.vmem %s0, 24
  %v176 = vld [vmem:[%s175] sm:$0xf]
  %v177 = vunpack.c.l.bf16 %v176
  %v178 = vunpack.c.h.bf16 %v176
  %s179 = scalar_lea.vmem %s1, 2072
  %s180 = scalar_lea.vmem %s0, 2080
  %v181 = vld [vmem:[%s180] sm:$0xf]
  %v182 = vunpack.c.l.bf16 %v181
  %v183 = vunpack.c.h.bf16 %v181
  %s184 = scalar_lea.vmem %s1, 32
  %s185 = scalar_lea.vmem %s0, 1312
  %v186 = vld [vmem:[%s185] sm:$0xf]
  %v187 = vunpack.c.l.bf16 %v186
  %v188 = vunpack.c.h.bf16 %v186
  %s189 = scalar_lea.vmem %s1, 800
  %s190 = scalar_lea.vmem %s0, 544
  %v191 = vld [vmem:[%s190] sm:$0xf]
  %v192 = vunpack.c.l.bf16 %v191
  %v193 = vunpack.c.h.bf16 %v191
  %s194 = scalar_lea.vmem %s1, 1568
  %s195 = scalar_lea.vmem %s0, 1824
  %v196 = vld [vmem:[%s195] sm:$0xf]
  %v197 = vunpack.c.l.bf16 %v196
  %v198 = vunpack.c.h.bf16 %v196
  %s199 = scalar_lea.vmem %s1, 288
  %s200 = scalar_lea.vmem %s0, 1056
  %v201 = vld [vmem:[%s200] sm:$0xf]
  %v202 = vunpack.c.l.bf16 %v201
  %v203 = vunpack.c.h.bf16 %v201
  %s204 = scalar_lea.vmem %s1, 1056
  %s205 = scalar_lea.vmem %s0, 288
  %v206 = vld [vmem:[%s205] sm:$0xf]
  %v207 = vunpack.c.l.bf16 %v206
  %v208 = vunpack.c.h.bf16 %v206
  %s209 = scalar_lea.vmem %s1, 1824
  %s210 = scalar_lea.vmem %s0, 1568
  %v211 = vld [vmem:[%s210] sm:$0xf]
  %v212 = vunpack.c.l.bf16 %v211
  %v213 = vunpack.c.h.bf16 %v211
  %s214 = scalar_lea.vmem %s1, 544
  %s215 = scalar_lea.vmem %s0, 800
  %v216 = vld [vmem:[%s215] sm:$0xf]
  %v217 = vunpack.c.l.bf16 %v216
  %v218 = vunpack.c.h.bf16 %v216
  %s219 = scalar_lea.vmem %s1, 1312
  %s220 = scalar_lea.vmem %s0, 32
  %v221 = vld [vmem:[%s220] sm:$0xf]
  %v222 = vunpack.c.l.bf16 %v221
  %v223 = vunpack.c.h.bf16 %v221
  %s224 = scalar_lea.vmem %s1, 2080
  %s225 = scalar_lea.vmem %s0, 2088
  %v226 = vld [vmem:[%s225] sm:$0xf]
  %v227 = vunpack.c.l.bf16 %v226
  %v228 = vunpack.c.h.bf16 %v226
  %s229 = scalar_lea.vmem %s1, 40
  %s230 = scalar_lea.vmem %s0, 1320
  %v231 = vld [vmem:[%s230] sm:$0xf]
  %v232 = vunpack.c.l.bf16 %v231
  %v233 = vunpack.c.h.bf16 %v231
  %s234 = scalar_lea.vmem %s1, 808
  %s235 = scalar_lea.vmem %s0, 552
  %v236 = vld [vmem:[%s235] sm:$0xf]
  %v237 = vunpack.c.l.bf16 %v236
  %v238 = vunpack.c.h.bf16 %v236
  %s239 = scalar_lea.vmem %s1, 1576
  %s240 = scalar_lea.vmem %s0, 1832
  %v241 = vld [vmem:[%s240] sm:$0xf]
  %v242 = vunpack.c.l.bf16 %v241
  %v243 = vunpack.c.h.bf16 %v241
  %s244 = scalar_lea.vmem %s1, 296
  %s245 = scalar_lea.vmem %s0, 1064
  %v246 = vld [vmem:[%s245] sm:$0xf]
  %v247 = vunpack.c.l.bf16 %v246
  %v248 = vunpack.c.h.bf16 %v246
  %s249 = scalar_lea.vmem %s1, 1064
  %s250 = scalar_lea.vmem %s0, 296
  %v251 = vld [vmem:[%s250] sm:$0xf]
  %v252 = vunpack.c.l.bf16 %v251
  %v253 = vunpack.c.h.bf16 %v251
  %s254 = scalar_lea.vmem %s1, 1832
  %s255 = scalar_lea.vmem %s0, 1576
  %v256 = vld [vmem:[%s255] sm:$0xf]
  %v257 = vunpack.c.l.bf16 %v256
  %v258 = vunpack.c.h.bf16 %v256
  %s259 = scalar_lea.vmem %s1, 552
  %s260 = scalar_lea.vmem %s0, 808
  %v261 = vld [vmem:[%s260] sm:$0xf]
  %v262 = vunpack.c.l.bf16 %v261
  %v263 = vunpack.c.h.bf16 %v261
  %s264 = scalar_lea.vmem %s1, 1320
  %s265 = scalar_lea.vmem %s0, 40
  %v266 = vld [vmem:[%s265] sm:$0xf]
  %v267 = vunpack.c.l.bf16 %v266
  %v268 = vunpack.c.h.bf16 %v266
  %s269 = scalar_lea.vmem %s1, 2088
  %s270 = scalar_lea.vmem %s0, 2096
  %v271 = vld [vmem:[%s270] sm:$0xf]
  %v272 = vunpack.c.l.bf16 %v271
  %v273 = vunpack.c.h.bf16 %v271
  %s274 = scalar_lea.vmem %s1, 48
  %s275 = scalar_lea.vmem %s0, 1328
  %v276 = vld [vmem:[%s275] sm:$0xf]
  %v277 = vunpack.c.l.bf16 %v276
  %v278 = vunpack.c.h.bf16 %v276
  %s279 = scalar_lea.vmem %s1, 816
  %s280 = scalar_lea.vmem %s0, 560
  %v281 = vld [vmem:[%s280] sm:$0xf]
  %v282 = vunpack.c.l.bf16 %v281
  %v283 = vunpack.c.h.bf16 %v281
  %s284 = scalar_lea.vmem %s1, 1584
  %s285 = scalar_lea.vmem %s0, 1840
  %v286 = vld [vmem:[%s285] sm:$0xf]
  %v287 = vunpack.c.l.bf16 %v286
  %v288 = vunpack.c.h.bf16 %v286
  %s289 = scalar_lea.vmem %s1, 304
  %s290 = scalar_lea.vmem %s0, 1072
  %v291 = vld [vmem:[%s290] sm:$0xf]
  %v292 = vunpack.c.l.bf16 %v291
  %v293 = vunpack.c.h.bf16 %v291
  %s294 = scalar_lea.vmem %s1, 1072
  %s295 = scalar_lea.vmem %s0, 304
  %v296 = vld [vmem:[%s295] sm:$0xf]
  %v297 = vunpack.c.l.bf16 %v296
  %v298 = vunpack.c.h.bf16 %v296
  %s299 = scalar_lea.vmem %s1, 1840
  %s300 = scalar_lea.vmem %s0, 1584
  %v301 = vld [vmem:[%s300] sm:$0xf]
  %v302 = vunpack.c.l.bf16 %v301
  %v303 = vunpack.c.h.bf16 %v301
  %s304 = scalar_lea.vmem %s1, 560
  %s305 = scalar_lea.vmem %s0, 816
  %v306 = vld [vmem:[%s305] sm:$0xf]
  %v307 = vunpack.c.l.bf16 %v306
  %v308 = vunpack.c.h.bf16 %v306
  %s309 = scalar_lea.vmem %s1, 1328
  %s310 = scalar_lea.vmem %s0, 48
  %v311 = vld [vmem:[%s310] sm:$0xf]
  %v312 = vunpack.c.l.bf16 %v311
  %v313 = vunpack.c.h.bf16 %v311
  %s314 = scalar_lea.vmem %s1, 2096
  %s315 = scalar_lea.vmem %s0, 2104
  %v316 = vld [vmem:[%s315] sm:$0xf]
  %v317 = vunpack.c.l.bf16 %v316
  %v318 = vunpack.c.h.bf16 %v316
  %s319 = scalar_lea.vmem %s1, 56
  %s320 = scalar_lea.vmem %s0, 1336
  %v321 = vld [vmem:[%s320] sm:$0xf]
  %v322 = vunpack.c.l.bf16 %v321
  %v323 = vunpack.c.h.bf16 %v321
  %s324 = scalar_lea.vmem %s1, 824
  %s325 = scalar_lea.vmem %s0, 568
  %v326 = vld [vmem:[%s325] sm:$0xf]
  %v327 = vunpack.c.l.bf16 %v326
  %v328 = vunpack.c.h.bf16 %v326
  %s329 = scalar_lea.vmem %s1, 1592
  %s330 = scalar_lea.vmem %s0, 1848
  %v331 = vld [vmem:[%s330] sm:$0xf]
  %v332 = vunpack.c.l.bf16 %v331
  %v333 = vunpack.c.h.bf16 %v331
  %s334 = scalar_lea.vmem %s1, 312
  %s335 = scalar_lea.vmem %s0, 1080
  %v336 = vld [vmem:[%s335] sm:$0xf]
  %v337 = vunpack.c.l.bf16 %v336
  %v338 = vunpack.c.h.bf16 %v336
  %s339 = scalar_lea.vmem %s1, 1080
  %s340 = scalar_lea.vmem %s0, 312
  %v341 = vld [vmem:[%s340] sm:$0xf]
  %v342 = vunpack.c.l.bf16 %v341
  %v343 = vunpack.c.h.bf16 %v341
  %s344 = scalar_lea.vmem %s1, 1848
  %s345 = scalar_lea.vmem %s0, 1592
  %v346 = vld [vmem:[%s345] sm:$0xf]
  %v347 = vunpack.c.l.bf16 %v346
  %v348 = vunpack.c.h.bf16 %v346
  %s349 = scalar_lea.vmem %s1, 568
  %s350 = scalar_lea.vmem %s0, 824
  %v351 = vld [vmem:[%s350] sm:$0xf]
  %v352 = vunpack.c.l.bf16 %v351
  %v353 = vunpack.c.h.bf16 %v351
  %s354 = scalar_lea.vmem %s1, 1336
  %s355 = scalar_lea.vmem %s0, 56
  %v356 = vld [vmem:[%s355] sm:$0xf]
  %v357 = vunpack.c.l.bf16 %v356
  %v358 = vunpack.c.h.bf16 %v356
  %s359 = scalar_lea.vmem %s1, 2104
  %s360 = scalar_lea.vmem %s0, 2112
  %v361 = vld [vmem:[%s360] sm:$0xf]
  %v362 = vunpack.c.l.bf16 %v361
  %v363 = vunpack.c.h.bf16 %v361
  %s364 = scalar_lea.vmem %s1, 64
  %s365 = scalar_lea.vmem %s0, 1344
  %v366 = vld [vmem:[%s365] sm:$0xf]
  %v367 = vunpack.c.l.bf16 %v366
  %v368 = vunpack.c.h.bf16 %v366
  %s369 = scalar_lea.vmem %s1, 832
  %s370 = scalar_lea.vmem %s0, 576
  %v371 = vld [vmem:[%s370] sm:$0xf]
  %v372 = vunpack.c.l.bf16 %v371
  %v373 = vunpack.c.h.bf16 %v371
  %s374 = scalar_lea.vmem %s1, 1600
  %s375 = scalar_lea.vmem %s0, 1856
  %v376 = vld [vmem:[%s375] sm:$0xf]
  %v377 = vunpack.c.l.bf16 %v376
  %v378 = vunpack.c.h.bf16 %v376
  %s379 = scalar_lea.vmem %s1, 320
  %s380 = scalar_lea.vmem %s0, 1088
  %v381 = vld [vmem:[%s380] sm:$0xf]
  %v382 = vunpack.c.l.bf16 %v381
  %v383 = vunpack.c.h.bf16 %v381
  %s384 = scalar_lea.vmem %s1, 1088
  %s385 = scalar_lea.vmem %s0, 320
  %v386 = vld [vmem:[%s385] sm:$0xf]
  %v387 = vunpack.c.l.bf16 %v386
  %v388 = vunpack.c.h.bf16 %v386
  %s389 = scalar_lea.vmem %s1, 1856
  %s390 = scalar_lea.vmem %s0, 1600
  %v391 = vld [vmem:[%s390] sm:$0xf]
  %v392 = vunpack.c.l.bf16 %v391
  %v393 = vunpack.c.h.bf16 %v391
  %s394 = scalar_lea.vmem %s1, 576
  %s395 = scalar_lea.vmem %s0, 832
  %v396 = vld [vmem:[%s395] sm:$0xf]
  %v397 = vunpack.c.l.bf16 %v396
  %v398 = vunpack.c.h.bf16 %v396
  %s399 = scalar_lea.vmem %s1, 1344
  %s400 = scalar_lea.vmem %s0, 64
  %v401 = vld [vmem:[%s400] sm:$0xf]
  %v402 = vunpack.c.l.bf16 %v401
  %v403 = vunpack.c.h.bf16 %v401
  %s404 = scalar_lea.vmem %s1, 2112
  %s405 = scalar_lea.vmem %s0, 2120
  %v406 = vld [vmem:[%s405] sm:$0xf]
  %v407 = vunpack.c.l.bf16 %v406
  %v408 = vunpack.c.h.bf16 %v406
  %s409 = scalar_lea.vmem %s1, 72
  %s410 = scalar_lea.vmem %s0, 1352
  %v411 = vld [vmem:[%s410] sm:$0xf]
  %v412 = vunpack.c.l.bf16 %v411
  %v413 = vunpack.c.h.bf16 %v411
  %s414 = scalar_lea.vmem %s1, 840
  %s415 = scalar_lea.vmem %s0, 584
  %v416 = vld [vmem:[%s415] sm:$0xf]
  %v417 = vunpack.c.l.bf16 %v416
  %v418 = vunpack.c.h.bf16 %v416
  %s419 = scalar_lea.vmem %s1, 1608
  %s420 = scalar_lea.vmem %s0, 1864
  %v421 = vld [vmem:[%s420] sm:$0xf]
  %v422 = vunpack.c.l.bf16 %v421
  %v423 = vunpack.c.h.bf16 %v421
  %s424 = scalar_lea.vmem %s1, 328
  %s425 = scalar_lea.vmem %s0, 1096
  %v426 = vld [vmem:[%s425] sm:$0xf]
  %v427 = vunpack.c.l.bf16 %v426
  %v428 = vunpack.c.h.bf16 %v426
  %s429 = scalar_lea.vmem %s1, 1096
  %s430 = scalar_lea.vmem %s0, 328
  %v431 = vld [vmem:[%s430] sm:$0xf]
  %v432 = vunpack.c.l.bf16 %v431
  %v433 = vunpack.c.h.bf16 %v431
  %s434 = scalar_lea.vmem %s1, 1864
  %s435 = scalar_lea.vmem %s0, 1608
  %v436 = vld [vmem:[%s435] sm:$0xf]
  %v437 = vunpack.c.l.bf16 %v436
  %v438 = vunpack.c.h.bf16 %v436
  %s439 = scalar_lea.vmem %s1, 584
  %s440 = scalar_lea.vmem %s0, 840
  %v441 = vld [vmem:[%s440] sm:$0xf]
  %v442 = vunpack.c.l.bf16 %v441
  %v443 = vunpack.c.h.bf16 %v441
  %s444 = scalar_lea.vmem %s1, 1352
  %s445 = scalar_lea.vmem %s0, 72
  %v446 = vld [vmem:[%s445] sm:$0xf]
  %v447 = vunpack.c.l.bf16 %v446
  %v448 = vunpack.c.h.bf16 %v446
  %s449 = scalar_lea.vmem %s1, 2120
  %s450 = scalar_lea.vmem %s0, 2128
  %v451 = vld [vmem:[%s450] sm:$0xf]
  %v452 = vunpack.c.l.bf16 %v451
  %v453 = vunpack.c.h.bf16 %v451
  %s454 = scalar_lea.vmem %s1, 80
  %s455 = scalar_lea.vmem %s0, 1360
  %v456 = vld [vmem:[%s455] sm:$0xf]
  %v457 = vunpack.c.l.bf16 %v456
  %v458 = vunpack.c.h.bf16 %v456
  %s459 = scalar_lea.vmem %s1, 848
  %s460 = scalar_lea.vmem %s0, 592
  %v461 = vld [vmem:[%s460] sm:$0xf]
  %v462 = vunpack.c.l.bf16 %v461
  %v463 = vunpack.c.h.bf16 %v461
  %s464 = scalar_lea.vmem %s1, 1616
  %s465 = scalar_lea.vmem %s0, 1872
  %v466 = vld [vmem:[%s465] sm:$0xf]
  %v467 = vunpack.c.l.bf16 %v466
  %v468 = vunpack.c.h.bf16 %v466
  %s469 = scalar_lea.vmem %s1, 336
  %s470 = scalar_lea.vmem %s0, 1104
  %v471 = vld [vmem:[%s470] sm:$0xf]
  %v472 = vunpack.c.l.bf16 %v471
  %v473 = vunpack.c.h.bf16 %v471
  %s474 = scalar_lea.vmem %s1, 1104
  %s475 = scalar_lea.vmem %s0, 336
  %v476 = vld [vmem:[%s475] sm:$0xf]
  %v477 = vunpack.c.l.bf16 %v476
  %v478 = vunpack.c.h.bf16 %v476
  %s479 = scalar_lea.vmem %s1, 1872
  %s480 = scalar_lea.vmem %s0, 1616
  %v481 = vld [vmem:[%s480] sm:$0xf]
  %v482 = vunpack.c.l.bf16 %v481
  %v483 = vunpack.c.h.bf16 %v481
  %s484 = scalar_lea.vmem %s1, 592
  %s485 = scalar_lea.vmem %s0, 848
  %v486 = vld [vmem:[%s485] sm:$0xf]
  %v487 = vunpack.c.l.bf16 %v486
  %v488 = vunpack.c.h.bf16 %v486
  %s489 = scalar_lea.vmem %s1, 1360
  %s490 = scalar_lea.vmem %s0, 80
  %v491 = vld [vmem:[%s490] sm:$0xf]
  %v492 = vunpack.c.l.bf16 %v491
  %v493 = vunpack.c.h.bf16 %v491
  %s494 = scalar_lea.vmem %s1, 2128
  %s495 = scalar_lea.vmem %s0, 2136
  %v496 = vld [vmem:[%s495] sm:$0xf]
  %v497 = vunpack.c.l.bf16 %v496
  %v498 = vunpack.c.h.bf16 %v496
  %s499 = scalar_lea.vmem %s1, 88
  %s500 = scalar_lea.vmem %s0, 1368
  %v501 = vld [vmem:[%s500] sm:$0xf]
  %v502 = vunpack.c.l.bf16 %v501
  %v503 = vunpack.c.h.bf16 %v501
  %s504 = scalar_lea.vmem %s1, 856
  %s505 = scalar_lea.vmem %s0, 600
  %v506 = vld [vmem:[%s505] sm:$0xf]
  %v507 = vunpack.c.l.bf16 %v506
  %v508 = vunpack.c.h.bf16 %v506
  %s509 = scalar_lea.vmem %s1, 1624
  %s510 = scalar_lea.vmem %s0, 1880
  %v511 = vld [vmem:[%s510] sm:$0xf]
  %v512 = vunpack.c.l.bf16 %v511
  %v513 = vunpack.c.h.bf16 %v511
  %s514 = scalar_lea.vmem %s1, 344
  %s515 = scalar_lea.vmem %s0, 1112
  %v516 = vld [vmem:[%s515] sm:$0xf]
  %v517 = vunpack.c.l.bf16 %v516
  %v518 = vunpack.c.h.bf16 %v516
  %s519 = scalar_lea.vmem %s1, 1112
  %s520 = scalar_lea.vmem %s0, 344
  %v521 = vld [vmem:[%s520] sm:$0xf]
  %v522 = vunpack.c.l.bf16 %v521
  %v523 = vunpack.c.h.bf16 %v521
  %s524 = scalar_lea.vmem %s1, 1880
  %s525 = scalar_lea.vmem %s0, 1624
  %v526 = vld [vmem:[%s525] sm:$0xf]
  %v527 = vunpack.c.l.bf16 %v526
  %v528 = vunpack.c.h.bf16 %v526
  %s529 = scalar_lea.vmem %s1, 600
  %s530 = scalar_lea.vmem %s0, 856
  %v531 = vld [vmem:[%s530] sm:$0xf]
  %v532 = vunpack.c.l.bf16 %v531
  %v533 = vunpack.c.h.bf16 %v531
  %s534 = scalar_lea.vmem %s1, 1368
  %s535 = scalar_lea.vmem %s0, 88
  %v536 = vld [vmem:[%s535] sm:$0xf]
  %v537 = vunpack.c.l.bf16 %v536
  %v538 = vunpack.c.h.bf16 %v536
  %s539 = scalar_lea.vmem %s1, 2136
  %s540 = scalar_lea.vmem %s0, 2144
  %v541 = vld [vmem:[%s540] sm:$0xf]
  %v542 = vunpack.c.l.bf16 %v541
  %v543 = vunpack.c.h.bf16 %v541
  %s544 = scalar_lea.vmem %s1, 96
  %s545 = scalar_lea.vmem %s0, 1376
  %v546 = vld [vmem:[%s545] sm:$0xf]
  %v547 = vunpack.c.l.bf16 %v546
  %v548 = vunpack.c.h.bf16 %v546
  %s549 = scalar_lea.vmem %s1, 864
  %s550 = scalar_lea.vmem %s0, 608
  %v551 = vld [vmem:[%s550] sm:$0xf]
  %v552 = vunpack.c.l.bf16 %v551
  %v553 = vunpack.c.h.bf16 %v551
  %s554 = scalar_lea.vmem %s1, 1632
  %s555 = scalar_lea.vmem %s0, 1888
  %v556 = vld [vmem:[%s555] sm:$0xf]
  %v557 = vunpack.c.l.bf16 %v556
  %v558 = vunpack.c.h.bf16 %v556
  %s559 = scalar_lea.vmem %s1, 352
  %s560 = scalar_lea.vmem %s0, 1120
  %v561 = vld [vmem:[%s560] sm:$0xf]
  %v562 = vunpack.c.l.bf16 %v561
  %v563 = vunpack.c.h.bf16 %v561
  %s564 = scalar_lea.vmem %s1, 1120
  %s565 = scalar_lea.vmem %s0, 352
  %v566 = vld [vmem:[%s565] sm:$0xf]
  %v567 = vunpack.c.l.bf16 %v566
  %v568 = vunpack.c.h.bf16 %v566
  %s569 = scalar_lea.vmem %s1, 1888
  %s570 = scalar_lea.vmem %s0, 1632
  %v571 = vld [vmem:[%s570] sm:$0xf]
  %v572 = vunpack.c.l.bf16 %v571
  %v573 = vunpack.c.h.bf16 %v571
  %s574 = scalar_lea.vmem %s1, 608
  %s575 = scalar_lea.vmem %s0, 864
  %v576 = vld [vmem:[%s575] sm:$0xf]
  %v577 = vunpack.c.l.bf16 %v576
  %v578 = vunpack.c.h.bf16 %v576
  %s579 = scalar_lea.vmem %s1, 1376
  %s580 = scalar_lea.vmem %s0, 96
  %v581 = vld [vmem:[%s580] sm:$0xf]
  %v582 = vunpack.c.l.bf16 %v581
  %v583 = vunpack.c.h.bf16 %v581
  %s584 = scalar_lea.vmem %s1, 2144
  %s585 = scalar_lea.vmem %s0, 2152
  %v586 = vld [vmem:[%s585] sm:$0xf]
  %v587 = vunpack.c.l.bf16 %v586
  %v588 = vunpack.c.h.bf16 %v586
  %s589 = scalar_lea.vmem %s1, 104
  %s590 = scalar_lea.vmem %s0, 1384
  %v591 = vld [vmem:[%s590] sm:$0xf]
  %v592 = vunpack.c.l.bf16 %v591
  %v593 = vunpack.c.h.bf16 %v591
  %s594 = scalar_lea.vmem %s1, 872
  %s595 = scalar_lea.vmem %s0, 616
  %v596 = vld [vmem:[%s595] sm:$0xf]
  %v597 = vunpack.c.l.bf16 %v596
  %v598 = vunpack.c.h.bf16 %v596
  %s599 = scalar_lea.vmem %s1, 1640
  %s600 = scalar_lea.vmem %s0, 1896
  %v601 = vld [vmem:[%s600] sm:$0xf]
  %v602 = vunpack.c.l.bf16 %v601
  %v603 = vunpack.c.h.bf16 %v601
  %s604 = scalar_lea.vmem %s1, 360
  %s605 = scalar_lea.vmem %s0, 1128
  %v606 = vld [vmem:[%s605] sm:$0xf]
  %v607 = vunpack.c.l.bf16 %v606
  %v608 = vunpack.c.h.bf16 %v606
  %s609 = scalar_lea.vmem %s1, 1128
  %s610 = scalar_lea.vmem %s0, 360
  %v611 = vld [vmem:[%s610] sm:$0xf]
  %v612 = vunpack.c.l.bf16 %v611
  %v613 = vunpack.c.h.bf16 %v611
  %s614 = scalar_lea.vmem %s1, 1896
  %s615 = scalar_lea.vmem %s0, 1640
  %v616 = vld [vmem:[%s615] sm:$0xf]
  %v617 = vunpack.c.l.bf16 %v616
  %v618 = vunpack.c.h.bf16 %v616
  %s619 = scalar_lea.vmem %s1, 616
  %s620 = scalar_lea.vmem %s0, 872
  %v621 = vld [vmem:[%s620] sm:$0xf]
  %v622 = vunpack.c.l.bf16 %v621
  %v623 = vunpack.c.h.bf16 %v621
  %s624 = scalar_lea.vmem %s1, 1384
  %s625 = scalar_lea.vmem %s0, 104
  %v626 = vld [vmem:[%s625] sm:$0xf]
  %v627 = vunpack.c.l.bf16 %v626
  %v628 = vunpack.c.h.bf16 %v626
  %s629 = scalar_lea.vmem %s1, 2152
  %s630 = scalar_lea.vmem %s0, 2160
  %v631 = vld [vmem:[%s630] sm:$0xf]
  %v632 = vunpack.c.l.bf16 %v631
  %v633 = vunpack.c.h.bf16 %v631
  %s634 = scalar_lea.vmem %s1, 112
  %s635 = scalar_lea.vmem %s0, 1392
  %v636 = vld [vmem:[%s635] sm:$0xf]
  %v637 = vunpack.c.l.bf16 %v636
  %v638 = vunpack.c.h.bf16 %v636
  %s639 = scalar_lea.vmem %s1, 880
  %s640 = scalar_lea.vmem %s0, 624
  %v641 = vld [vmem:[%s640] sm:$0xf]
  %v642 = vunpack.c.l.bf16 %v641
  %v643 = vunpack.c.h.bf16 %v641
  %s644 = scalar_lea.vmem %s1, 1648
  %s645 = scalar_lea.vmem %s0, 1904
  %v646 = vld [vmem:[%s645] sm:$0xf]
  %v647 = vunpack.c.l.bf16 %v646
  %v648 = vunpack.c.h.bf16 %v646
  %s649 = scalar_lea.vmem %s1, 368
  %s650 = scalar_lea.vmem %s0, 1136
  %v651 = vld [vmem:[%s650] sm:$0xf]
  %v652 = vunpack.c.l.bf16 %v651
  %v653 = vunpack.c.h.bf16 %v651
  %s654 = scalar_lea.vmem %s1, 1136
  %s655 = scalar_lea.vmem %s0, 368
  %v656 = vld [vmem:[%s655] sm:$0xf]
  %v657 = vunpack.c.l.bf16 %v656
  %v658 = vunpack.c.h.bf16 %v656
  %s659 = scalar_lea.vmem %s1, 1904
  %s660 = scalar_lea.vmem %s0, 1648
  %v661 = vld [vmem:[%s660] sm:$0xf]
  %v662 = vunpack.c.l.bf16 %v661
  %v663 = vunpack.c.h.bf16 %v661
  %s664 = scalar_lea.vmem %s1, 624
  %s665 = scalar_lea.vmem %s0, 880
  %v666 = vld [vmem:[%s665] sm:$0xf]
  %v667 = vunpack.c.l.bf16 %v666
  %v668 = vunpack.c.h.bf16 %v666
  %s669 = scalar_lea.vmem %s1, 1392
  %s670 = scalar_lea.vmem %s0, 112
  %v671 = vld [vmem:[%s670] sm:$0xf]
  %v672 = vunpack.c.l.bf16 %v671
  %v673 = vunpack.c.h.bf16 %v671
  %s674 = scalar_lea.vmem %s1, 2160
  %s675 = scalar_lea.vmem %s0, 2168
  %v676 = vld [vmem:[%s675] sm:$0xf]
  %v677 = vunpack.c.l.bf16 %v676
  %v678 = vunpack.c.h.bf16 %v676
  %s679 = scalar_lea.vmem %s1, 120
  %s680 = scalar_lea.vmem %s0, 1400
  %v681 = vld [vmem:[%s680] sm:$0xf]
  %v682 = vunpack.c.l.bf16 %v681
  %v683 = vunpack.c.h.bf16 %v681
  %s684 = scalar_lea.vmem %s1, 888
  %s685 = scalar_lea.vmem %s0, 632
  %v686 = vld [vmem:[%s685] sm:$0xf]
  %v687 = vunpack.c.l.bf16 %v686
  %v688 = vunpack.c.h.bf16 %v686
  %s689 = scalar_lea.vmem %s1, 1656
  %s690 = scalar_lea.vmem %s0, 1912
  %v691 = vld [vmem:[%s690] sm:$0xf]
  %v692 = vunpack.c.l.bf16 %v691
  %v693 = vunpack.c.h.bf16 %v691
  %s694 = scalar_lea.vmem %s1, 376
  %s695 = scalar_lea.vmem %s0, 1144
  %v696 = vld [vmem:[%s695] sm:$0xf]
  %v697 = vunpack.c.l.bf16 %v696
  %v698 = vunpack.c.h.bf16 %v696
  %s699 = scalar_lea.vmem %s1, 1144
  %s700 = scalar_lea.vmem %s0, 376
  %v701 = vld [vmem:[%s700] sm:$0xf]
  %v702 = vunpack.c.l.bf16 %v701
  %v703 = vunpack.c.h.bf16 %v701
  %s704 = scalar_lea.vmem %s1, 1912
  %s705 = scalar_lea.vmem %s0, 1656
  %v706 = vld [vmem:[%s705] sm:$0xf]
  %v707 = vunpack.c.l.bf16 %v706
  %v708 = vunpack.c.h.bf16 %v706
  %s709 = scalar_lea.vmem %s1, 632
  %s710 = scalar_lea.vmem %s0, 888
  %v711 = vld [vmem:[%s710] sm:$0xf]
  %v712 = vunpack.c.l.bf16 %v711
  %v713 = vunpack.c.h.bf16 %v711
  %s714 = scalar_lea.vmem %s1, 1400
  %s715 = scalar_lea.vmem %s0, 120
  %v716 = vld [vmem:[%s715] sm:$0xf]
  %v717 = vunpack.c.l.bf16 %v716
  %v718 = vunpack.c.h.bf16 %v716
  %s719 = scalar_lea.vmem %s1, 2168
  %s720 = scalar_lea.vmem %s0, 2176
  %v721 = vld [vmem:[%s720] sm:$0xf]
  %v722 = vunpack.c.l.bf16 %v721
  %v723 = vunpack.c.h.bf16 %v721
  %s724 = scalar_lea.vmem %s1, 128
  %s725 = scalar_lea.vmem %s0, 1408
  %v726 = vld [vmem:[%s725] sm:$0xf]
  %v727 = vunpack.c.l.bf16 %v726
  %v728 = vunpack.c.h.bf16 %v726
  %s729 = scalar_lea.vmem %s1, 896
  %s730 = scalar_lea.vmem %s0, 640
  %v731 = vld [vmem:[%s730] sm:$0xf]
  %v732 = vunpack.c.l.bf16 %v731
  %v733 = vunpack.c.h.bf16 %v731
  %s734 = scalar_lea.vmem %s1, 1664
  %s735 = scalar_lea.vmem %s0, 1920
  %v736 = vld [vmem:[%s735] sm:$0xf]
  %v737 = vunpack.c.l.bf16 %v736
  %v738 = vunpack.c.h.bf16 %v736
  %s739 = scalar_lea.vmem %s1, 384
  %s740 = scalar_lea.vmem %s0, 1152
  %v741 = vld [vmem:[%s740] sm:$0xf]
  %v742 = vunpack.c.l.bf16 %v741
  %v743 = vunpack.c.h.bf16 %v741
  %s744 = scalar_lea.vmem %s1, 1152
  %s745 = scalar_lea.vmem %s0, 384
  %v746 = vld [vmem:[%s745] sm:$0xf]
  %v747 = vunpack.c.l.bf16 %v746
  %v748 = vunpack.c.h.bf16 %v746
  %s749 = scalar_lea.vmem %s1, 1920
  %s750 = scalar_lea.vmem %s0, 1664
  %v751 = vld [vmem:[%s750] sm:$0xf]
  %v752 = vunpack.c.l.bf16 %v751
  %v753 = vunpack.c.h.bf16 %v751
  %s754 = scalar_lea.vmem %s1, 640
  %s755 = scalar_lea.vmem %s0, 896
  %v756 = vld [vmem:[%s755] sm:$0xf]
  %v757 = vunpack.c.l.bf16 %v756
  %v758 = vunpack.c.h.bf16 %v756
  %s759 = scalar_lea.vmem %s1, 1408
  %s760 = scalar_lea.vmem %s0, 128
  %v761 = vld [vmem:[%s760] sm:$0xf]
  %v762 = vunpack.c.l.bf16 %v761
  %v763 = vunpack.c.h.bf16 %v761
  %s764 = scalar_lea.vmem %s1, 2176
  %s765 = scalar_lea.vmem %s0, 2184
  %v766 = vld [vmem:[%s765] sm:$0xf]
  %v767 = vunpack.c.l.bf16 %v766
  %v768 = vunpack.c.h.bf16 %v766
  %s769 = scalar_lea.vmem %s1, 136
  %s770 = scalar_lea.vmem %s0, 1416
  %v771 = vld [vmem:[%s770] sm:$0xf]
  %v772 = vunpack.c.l.bf16 %v771
  %v773 = vunpack.c.h.bf16 %v771
  %s774 = scalar_lea.vmem %s1, 904
  %s775 = scalar_lea.vmem %s0, 648
  %v776 = vld [vmem:[%s775] sm:$0xf]
  %v777 = vunpack.c.l.bf16 %v776
  %v778 = vunpack.c.h.bf16 %v776
  %s779 = scalar_lea.vmem %s1, 1672
  %s780 = scalar_lea.vmem %s0, 1928
  %v781 = vld [vmem:[%s780] sm:$0xf]
  %v782 = vunpack.c.l.bf16 %v781
  %v783 = vunpack.c.h.bf16 %v781
  %s784 = scalar_lea.vmem %s1, 392
  %s785 = scalar_lea.vmem %s0, 1160
  %v786 = vld [vmem:[%s785] sm:$0xf]
  %v787 = vunpack.c.l.bf16 %v786
  %v788 = vunpack.c.h.bf16 %v786
  %s789 = scalar_lea.vmem %s1, 1160
  %s790 = scalar_lea.vmem %s0, 392
  %v791 = vld [vmem:[%s790] sm:$0xf]
  %v792 = vunpack.c.l.bf16 %v791
  %v793 = vunpack.c.h.bf16 %v791
  %s794 = scalar_lea.vmem %s1, 1928
  %s795 = scalar_lea.vmem %s0, 1672
  %v796 = vld [vmem:[%s795] sm:$0xf]
  %v797 = vunpack.c.l.bf16 %v796
  %v798 = vunpack.c.h.bf16 %v796
  %s799 = scalar_lea.vmem %s1, 648
  %s800 = scalar_lea.vmem %s0, 904
  %v801 = vld [vmem:[%s800] sm:$0xf]
  %v802 = vunpack.c.l.bf16 %v801
  %v803 = vunpack.c.h.bf16 %v801
  %s804 = scalar_lea.vmem %s1, 1416
  %s805 = scalar_lea.vmem %s0, 136
  %v806 = vld [vmem:[%s805] sm:$0xf]
  %v807 = vunpack.c.l.bf16 %v806
  %v808 = vunpack.c.h.bf16 %v806
  %s809 = scalar_lea.vmem %s1, 2184
  %s810 = scalar_lea.vmem %s0, 2192
  %v811 = vld [vmem:[%s810] sm:$0xf]
  %v812 = vunpack.c.l.bf16 %v811
  %v813 = vunpack.c.h.bf16 %v811
  %s814 = scalar_lea.vmem %s1, 144
  %s815 = scalar_lea.vmem %s0, 1424
  %v816 = vld [vmem:[%s815] sm:$0xf]
  %v817 = vunpack.c.l.bf16 %v816
  %v818 = vunpack.c.h.bf16 %v816
  %s819 = scalar_lea.vmem %s1, 912
  %s820 = scalar_lea.vmem %s0, 656
  %v821 = vld [vmem:[%s820] sm:$0xf]
  %v822 = vunpack.c.l.bf16 %v821
  %v823 = vunpack.c.h.bf16 %v821
  %s824 = scalar_lea.vmem %s1, 1680
  %s825 = scalar_lea.vmem %s0, 1936
  %v826 = vld [vmem:[%s825] sm:$0xf]
  %v827 = vunpack.c.l.bf16 %v826
  %v828 = vunpack.c.h.bf16 %v826
  %s829 = scalar_lea.vmem %s1, 400
  %s830 = scalar_lea.vmem %s0, 1168
  %v831 = vld [vmem:[%s830] sm:$0xf]
  %v832 = vunpack.c.l.bf16 %v831
  %v833 = vunpack.c.h.bf16 %v831
  %s834 = scalar_lea.vmem %s1, 1168
  %s835 = scalar_lea.vmem %s0, 400
  %v836 = vld [vmem:[%s835] sm:$0xf]
  %v837 = vunpack.c.l.bf16 %v836
  %v838 = vunpack.c.h.bf16 %v836
  %s839 = scalar_lea.vmem %s1, 1936
  %s840 = scalar_lea.vmem %s0, 1680
  %v841 = vld [vmem:[%s840] sm:$0xf]
  %v842 = vunpack.c.l.bf16 %v841
  %v843 = vunpack.c.h.bf16 %v841
  %s844 = scalar_lea.vmem %s1, 656
  %s845 = scalar_lea.vmem %s0, 912
  %v846 = vld [vmem:[%s845] sm:$0xf]
  %v847 = vunpack.c.l.bf16 %v846
  %v848 = vunpack.c.h.bf16 %v846
  %s849 = scalar_lea.vmem %s1, 1424
  %s850 = scalar_lea.vmem %s0, 144
  %v851 = vld [vmem:[%s850] sm:$0xf]
  %v852 = vunpack.c.l.bf16 %v851
  %v853 = vunpack.c.h.bf16 %v851
  %s854 = scalar_lea.vmem %s1, 2192
  %s855 = scalar_lea.vmem %s0, 2200
  %v856 = vld [vmem:[%s855] sm:$0xf]
  %v857 = vunpack.c.l.bf16 %v856
  %v858 = vunpack.c.h.bf16 %v856
  %s859 = scalar_lea.vmem %s1, 152
  %s860 = scalar_lea.vmem %s0, 1432
  %v861 = vld [vmem:[%s860] sm:$0xf]
  %v862 = vunpack.c.l.bf16 %v861
  %v863 = vunpack.c.h.bf16 %v861
  %s864 = scalar_lea.vmem %s1, 920
  %s865 = scalar_lea.vmem %s0, 664
  %v866 = vld [vmem:[%s865] sm:$0xf]
  %v867 = vunpack.c.l.bf16 %v866
  %v868 = vunpack.c.h.bf16 %v866
  %s869 = scalar_lea.vmem %s1, 1688
  %s870 = scalar_lea.vmem %s0, 1944
  %v871 = vld [vmem:[%s870] sm:$0xf]
  %v872 = vunpack.c.l.bf16 %v871
  %v873 = vunpack.c.h.bf16 %v871
  %s874 = scalar_lea.vmem %s1, 408
  %s875 = scalar_lea.vmem %s0, 1176
  %v876 = vld [vmem:[%s875] sm:$0xf]
  %v877 = vunpack.c.l.bf16 %v876
  %v878 = vunpack.c.h.bf16 %v876
  %s879 = scalar_lea.vmem %s1, 1176
  %s880 = scalar_lea.vmem %s0, 408
  %v881 = vld [vmem:[%s880] sm:$0xf]
  %v882 = vunpack.c.l.bf16 %v881
  %v883 = vunpack.c.h.bf16 %v881
  %s884 = scalar_lea.vmem %s1, 1944
  %s885 = scalar_lea.vmem %s0, 1688
  %v886 = vld [vmem:[%s885] sm:$0xf]
  %v887 = vunpack.c.l.bf16 %v886
  %v888 = vunpack.c.h.bf16 %v886
  %s889 = scalar_lea.vmem %s1, 664
  %s890 = scalar_lea.vmem %s0, 920
  %v891 = vld [vmem:[%s890] sm:$0xf]
  %v892 = vunpack.c.l.bf16 %v891
  %v893 = vunpack.c.h.bf16 %v891
  %s894 = scalar_lea.vmem %s1, 1432
  %s895 = scalar_lea.vmem %s0, 152
  %v896 = vld [vmem:[%s895] sm:$0xf]
  %v897 = vunpack.c.l.bf16 %v896
  %v898 = vunpack.c.h.bf16 %v896
  %s899 = scalar_lea.vmem %s1, 2200
  %s900 = scalar_lea.vmem %s0, 2208
  %v901 = vld [vmem:[%s900] sm:$0xf]
  %v902 = vunpack.c.l.bf16 %v901
  %v903 = vunpack.c.h.bf16 %v901
  %s904 = scalar_lea.vmem %s1, 160
  %s905 = scalar_lea.vmem %s0, 1440
  %v906 = vld [vmem:[%s905] sm:$0xf]
  %v907 = vunpack.c.l.bf16 %v906
  %v908 = vunpack.c.h.bf16 %v906
  %s909 = scalar_lea.vmem %s1, 928
  %s910 = scalar_lea.vmem %s0, 672
  %v911 = vld [vmem:[%s910] sm:$0xf]
  %v912 = vunpack.c.l.bf16 %v911
  %v913 = vunpack.c.h.bf16 %v911
  %s914 = scalar_lea.vmem %s1, 1696
  %s915 = scalar_lea.vmem %s0, 1952
  %v916 = vld [vmem:[%s915] sm:$0xf]
  %v917 = vunpack.c.l.bf16 %v916
  %v918 = vunpack.c.h.bf16 %v916
  %s919 = scalar_lea.vmem %s1, 416
  %s920 = scalar_lea.vmem %s0, 1184
  %v921 = vld [vmem:[%s920] sm:$0xf]
  %v922 = vunpack.c.l.bf16 %v921
  %v923 = vunpack.c.h.bf16 %v921
  %s924 = scalar_lea.vmem %s1, 1184
  %s925 = scalar_lea.vmem %s0, 416
  %v926 = vld [vmem:[%s925] sm:$0xf]
  %v927 = vunpack.c.l.bf16 %v926
  %v928 = vunpack.c.h.bf16 %v926
  %s929 = scalar_lea.vmem %s1, 1952
  %s930 = scalar_lea.vmem %s0, 1696
  %v931 = vld [vmem:[%s930] sm:$0xf]
  %v932 = vunpack.c.l.bf16 %v931
  %v933 = vunpack.c.h.bf16 %v931
  %s934 = scalar_lea.vmem %s1, 672
  %s935 = scalar_lea.vmem %s0, 928
  %v936 = vld [vmem:[%s935] sm:$0xf]
  %v937 = vunpack.c.l.bf16 %v936
  %v938 = vunpack.c.h.bf16 %v936
  %s939 = scalar_lea.vmem %s1, 1440
  %s940 = scalar_lea.vmem %s0, 160
  %v941 = vld [vmem:[%s940] sm:$0xf]
  %v942 = vunpack.c.l.bf16 %v941
  %v943 = vunpack.c.h.bf16 %v941
  %s944 = scalar_lea.vmem %s1, 2208
  %s945 = scalar_lea.vmem %s0, 2216
  %v946 = vld [vmem:[%s945] sm:$0xf]
  %v947 = vunpack.c.l.bf16 %v946
  %v948 = vunpack.c.h.bf16 %v946
  %s949 = scalar_lea.vmem %s1, 168
  %s950 = scalar_lea.vmem %s0, 1448
  %v951 = vld [vmem:[%s950] sm:$0xf]
  %v952 = vunpack.c.l.bf16 %v951
  %v953 = vunpack.c.h.bf16 %v951
  %s954 = scalar_lea.vmem %s1, 936
  %s955 = scalar_lea.vmem %s0, 680
  %v956 = vld [vmem:[%s955] sm:$0xf]
  %v957 = vunpack.c.l.bf16 %v956
  %v958 = vunpack.c.h.bf16 %v956
  %s959 = scalar_lea.vmem %s1, 1704
  %s960 = scalar_lea.vmem %s0, 1960
  %v961 = vld [vmem:[%s960] sm:$0xf]
  %v962 = vunpack.c.l.bf16 %v961
  %v963 = vunpack.c.h.bf16 %v961
  %s964 = scalar_lea.vmem %s1, 424
  %s965 = scalar_lea.vmem %s0, 1192
  %v966 = vld [vmem:[%s965] sm:$0xf]
  %v967 = vunpack.c.l.bf16 %v966
  %v968 = vunpack.c.h.bf16 %v966
  %s969 = scalar_lea.vmem %s1, 1192
  %s970 = scalar_lea.vmem %s0, 424
  %v971 = vld [vmem:[%s970] sm:$0xf]
  %v972 = vunpack.c.l.bf16 %v971
  %v973 = vunpack.c.h.bf16 %v971
  %s974 = scalar_lea.vmem %s1, 1960
  %s975 = scalar_lea.vmem %s0, 1704
  %v976 = vld [vmem:[%s975] sm:$0xf]
  %v977 = vunpack.c.l.bf16 %v976
  %v978 = vunpack.c.h.bf16 %v976
  %s979 = scalar_lea.vmem %s1, 680
  %s980 = scalar_lea.vmem %s0, 936
  %v981 = vld [vmem:[%s980] sm:$0xf]
  %v982 = vunpack.c.l.bf16 %v981
  %v983 = vunpack.c.h.bf16 %v981
  %s984 = scalar_lea.vmem %s1, 1448
  %s985 = scalar_lea.vmem %s0, 168
  %v986 = vld [vmem:[%s985] sm:$0xf]
  %v987 = vunpack.c.l.bf16 %v986
  %v988 = vunpack.c.h.bf16 %v986
  %s989 = scalar_lea.vmem %s1, 2216
  %s990 = scalar_lea.vmem %s0, 2224
  %v991 = vld [vmem:[%s990] sm:$0xf]
  %v992 = vunpack.c.l.bf16 %v991
  %v993 = vunpack.c.h.bf16 %v991
  %s994 = scalar_lea.vmem %s1, 176
  %s995 = scalar_lea.vmem %s0, 1456
  %v996 = vld [vmem:[%s995] sm:$0xf]
  %v997 = vunpack.c.l.bf16 %v996
  %v998 = vunpack.c.h.bf16 %v996
  %s999 = scalar_lea.vmem %s1, 944
  %s1000 = scalar_lea.vmem %s0, 688
  %v1001 = vld [vmem:[%s1000] sm:$0xf]
  %v1002 = vunpack.c.l.bf16 %v1001
  %v1003 = vunpack.c.h.bf16 %v1001
  %s1004 = scalar_lea.vmem %s1, 1712
  %s1005 = scalar_lea.vmem %s0, 1968
  %v1006 = vld [vmem:[%s1005] sm:$0xf]
  %v1007 = vunpack.c.l.bf16 %v1006
  %v1008 = vunpack.c.h.bf16 %v1006
  %s1009 = scalar_lea.vmem %s1, 432
  %s1010 = scalar_lea.vmem %s0, 1200
  %v1011 = vld [vmem:[%s1010] sm:$0xf]
  %v1012 = vunpack.c.l.bf16 %v1011
  %v1013 = vunpack.c.h.bf16 %v1011
  %s1014 = scalar_lea.vmem %s1, 1200
  %s1015 = scalar_lea.vmem %s0, 432
  %v1016 = vld [vmem:[%s1015] sm:$0xf]
  %v1017 = vunpack.c.l.bf16 %v1016
  %v1018 = vunpack.c.h.bf16 %v1016
  %s1019 = scalar_lea.vmem %s1, 1968
  %s1020 = scalar_lea.vmem %s0, 1712
  %v1021 = vld [vmem:[%s1020] sm:$0xf]
  %v1022 = vunpack.c.l.bf16 %v1021
  %v1023 = vunpack.c.h.bf16 %v1021
  %s1024 = scalar_lea.vmem %s1, 688
  %s1025 = scalar_lea.vmem %s0, 944
  %v1026 = vld [vmem:[%s1025] sm:$0xf]
  %v1027 = vunpack.c.l.bf16 %v1026
  %v1028 = vunpack.c.h.bf16 %v1026
  %s1029 = scalar_lea.vmem %s1, 1456
  %s1030 = scalar_lea.vmem %s0, 176
  %v1031 = vld [vmem:[%s1030] sm:$0xf]
  %v1032 = vunpack.c.l.bf16 %v1031
  %v1033 = vunpack.c.h.bf16 %v1031
  %s1034 = scalar_lea.vmem %s1, 2224
  %s1035 = scalar_lea.vmem %s0, 2232
  %v1036 = vld [vmem:[%s1035] sm:$0xf]
  %v1037 = vunpack.c.l.bf16 %v1036
  %v1038 = vunpack.c.h.bf16 %v1036
  %s1039 = scalar_lea.vmem %s1, 184
  %s1040 = scalar_lea.vmem %s0, 1464
  %v1041 = vld [vmem:[%s1040] sm:$0xf]
  %v1042 = vunpack.c.l.bf16 %v1041
  %v1043 = vunpack.c.h.bf16 %v1041
  %s1044 = scalar_lea.vmem %s1, 952
  %s1045 = scalar_lea.vmem %s0, 696
  %v1046 = vld [vmem:[%s1045] sm:$0xf]
  %v1047 = vunpack.c.l.bf16 %v1046
  %v1048 = vunpack.c.h.bf16 %v1046
  %s1049 = scalar_lea.vmem %s1, 1720
  %s1050 = scalar_lea.vmem %s0, 1976
  %v1051 = vld [vmem:[%s1050] sm:$0xf]
  %v1052 = vunpack.c.l.bf16 %v1051
  %v1053 = vunpack.c.h.bf16 %v1051
  %s1054 = scalar_lea.vmem %s1, 440
  %s1055 = scalar_lea.vmem %s0, 1208
  %v1056 = vld [vmem:[%s1055] sm:$0xf]
  %v1057 = vunpack.c.l.bf16 %v1056
  %v1058 = vunpack.c.h.bf16 %v1056
  %s1059 = scalar_lea.vmem %s1, 1208
  %s1060 = scalar_lea.vmem %s0, 440
  %v1061 = vld [vmem:[%s1060] sm:$0xf]
  %v1062 = vunpack.c.l.bf16 %v1061
  %v1063 = vunpack.c.h.bf16 %v1061
  %s1064 = scalar_lea.vmem %s1, 1976
  %s1065 = scalar_lea.vmem %s0, 1720
  %v1066 = vld [vmem:[%s1065] sm:$0xf]
  %v1067 = vunpack.c.l.bf16 %v1066
  %v1068 = vunpack.c.h.bf16 %v1066
  %s1069 = scalar_lea.vmem %s1, 696
  %s1070 = scalar_lea.vmem %s0, 952
  %v1071 = vld [vmem:[%s1070] sm:$0xf]
  %v1072 = vunpack.c.l.bf16 %v1071
  %v1073 = vunpack.c.h.bf16 %v1071
  %s1074 = scalar_lea.vmem %s1, 1464
  %s1075 = scalar_lea.vmem %s0, 184
  %v1076 = vld [vmem:[%s1075] sm:$0xf]
  %v1077 = vunpack.c.l.bf16 %v1076
  %v1078 = vunpack.c.h.bf16 %v1076
  %s1079 = scalar_lea.vmem %s1, 2232
  %s1080 = scalar_lea.vmem %s0, 2240
  %v1081 = vld [vmem:[%s1080] sm:$0xf]
  %v1082 = vunpack.c.l.bf16 %v1081
  %v1083 = vunpack.c.h.bf16 %v1081
  %s1084 = scalar_lea.vmem %s1, 192
  %s1085 = scalar_lea.vmem %s0, 1472
  %v1086 = vld [vmem:[%s1085] sm:$0xf]
  %v1087 = vunpack.c.l.bf16 %v1086
  %v1088 = vunpack.c.h.bf16 %v1086
  %s1089 = scalar_lea.vmem %s1, 960
  %s1090 = scalar_lea.vmem %s0, 704
  %v1091 = vld [vmem:[%s1090] sm:$0xf]
  %v1092 = vunpack.c.l.bf16 %v1091
  %v1093 = vunpack.c.h.bf16 %v1091
  %s1094 = scalar_lea.vmem %s1, 1728
  %s1095 = scalar_lea.vmem %s0, 1984
  %v1096 = vld [vmem:[%s1095] sm:$0xf]
  %v1097 = vunpack.c.l.bf16 %v1096
  %v1098 = vunpack.c.h.bf16 %v1096
  %s1099 = scalar_lea.vmem %s1, 448
  %s1100 = scalar_lea.vmem %s0, 1216
  %v1101 = vld [vmem:[%s1100] sm:$0xf]
  %v1102 = vunpack.c.l.bf16 %v1101
  %v1103 = vunpack.c.h.bf16 %v1101
  %s1104 = scalar_lea.vmem %s1, 1216
  %s1105 = scalar_lea.vmem %s0, 448
  %v1106 = vld [vmem:[%s1105] sm:$0xf]
  %v1107 = vunpack.c.l.bf16 %v1106
  %v1108 = vunpack.c.h.bf16 %v1106
  %s1109 = scalar_lea.vmem %s1, 1984
  %s1110 = scalar_lea.vmem %s0, 1728
  %v1111 = vld [vmem:[%s1110] sm:$0xf]
  %v1112 = vunpack.c.l.bf16 %v1111
  %v1113 = vunpack.c.h.bf16 %v1111
  %s1114 = scalar_lea.vmem %s1, 704
  %s1115 = scalar_lea.vmem %s0, 960
  %v1116 = vld [vmem:[%s1115] sm:$0xf]
  %v1117 = vunpack.c.l.bf16 %v1116
  %v1118 = vunpack.c.h.bf16 %v1116
  %s1119 = scalar_lea.vmem %s1, 1472
  %s1120 = scalar_lea.vmem %s0, 192
  %v1121 = vld [vmem:[%s1120] sm:$0xf]
  %v1122 = vunpack.c.l.bf16 %v1121
  %v1123 = vunpack.c.h.bf16 %v1121
  %s1124 = scalar_lea.vmem %s1, 2240
  %s1125 = scalar_lea.vmem %s0, 2248
  %v1126 = vld [vmem:[%s1125] sm:$0xf]
  %v1127 = vunpack.c.l.bf16 %v1126
  %v1128 = vunpack.c.h.bf16 %v1126
  %s1129 = scalar_lea.vmem %s1, 200
  %s1130 = scalar_lea.vmem %s0, 1480
  %v1131 = vld [vmem:[%s1130] sm:$0xf]
  %v1132 = vunpack.c.l.bf16 %v1131
  %v1133 = vunpack.c.h.bf16 %v1131
  %s1134 = scalar_lea.vmem %s1, 968
  %s1135 = scalar_lea.vmem %s0, 712
  %v1136 = vld [vmem:[%s1135] sm:$0xf]
  %v1137 = vunpack.c.l.bf16 %v1136
  %v1138 = vunpack.c.h.bf16 %v1136
  %s1139 = scalar_lea.vmem %s1, 1736
  %s1140 = scalar_lea.vmem %s0, 1992
  %v1141 = vld [vmem:[%s1140] sm:$0xf]
  %v1142 = vunpack.c.l.bf16 %v1141
  %v1143 = vunpack.c.h.bf16 %v1141
  %s1144 = scalar_lea.vmem %s1, 456
  %s1145 = scalar_lea.vmem %s0, 1224
  %v1146 = vld [vmem:[%s1145] sm:$0xf]
  %v1147 = vunpack.c.l.bf16 %v1146
  %v1148 = vunpack.c.h.bf16 %v1146
  %s1149 = scalar_lea.vmem %s1, 1224
  %s1150 = scalar_lea.vmem %s0, 456
  %v1151 = vld [vmem:[%s1150] sm:$0xf]
  %v1152 = vunpack.c.l.bf16 %v1151
  %v1153 = vunpack.c.h.bf16 %v1151
  %s1154 = scalar_lea.vmem %s1, 1992
  %s1155 = scalar_lea.vmem %s0, 1736
  %v1156 = vld [vmem:[%s1155] sm:$0xf]
  %v1157 = vunpack.c.l.bf16 %v1156
  %v1158 = vunpack.c.h.bf16 %v1156
  %s1159 = scalar_lea.vmem %s1, 712
  %s1160 = scalar_lea.vmem %s0, 968
  %v1161 = vld [vmem:[%s1160] sm:$0xf]
  %v1162 = vunpack.c.l.bf16 %v1161
  %v1163 = vunpack.c.h.bf16 %v1161
  %s1164 = scalar_lea.vmem %s1, 1480
  %s1165 = scalar_lea.vmem %s0, 200
  %v1166 = vld [vmem:[%s1165] sm:$0xf]
  %v1167 = vunpack.c.l.bf16 %v1166
  %v1168 = vunpack.c.h.bf16 %v1166
  %s1169 = scalar_lea.vmem %s1, 2248
  %s1170 = scalar_lea.vmem %s0, 2256
  %v1171 = vld [vmem:[%s1170] sm:$0xf]
  %v1172 = vunpack.c.l.bf16 %v1171
  %v1173 = vunpack.c.h.bf16 %v1171
  %s1174 = scalar_lea.vmem %s1, 208
  %s1175 = scalar_lea.vmem %s0, 1488
  %v1176 = vld [vmem:[%s1175] sm:$0xf]
  %v1177 = vunpack.c.l.bf16 %v1176
  %v1178 = vunpack.c.h.bf16 %v1176
  %s1179 = scalar_lea.vmem %s1, 976
  %s1180 = scalar_lea.vmem %s0, 720
  %v1181 = vld [vmem:[%s1180] sm:$0xf]
  %v1182 = vunpack.c.l.bf16 %v1181
  %v1183 = vunpack.c.h.bf16 %v1181
  %s1184 = scalar_lea.vmem %s1, 1744
  %s1185 = scalar_lea.vmem %s0, 2000
  %v1186 = vld [vmem:[%s1185] sm:$0xf]
  %v1187 = vunpack.c.l.bf16 %v1186
  %v1188 = vunpack.c.h.bf16 %v1186
  %s1189 = scalar_lea.vmem %s1, 464
  %s1190 = scalar_lea.vmem %s0, 1232
  %v1191 = vld [vmem:[%s1190] sm:$0xf]
  %v1192 = vunpack.c.l.bf16 %v1191
  %v1193 = vunpack.c.h.bf16 %v1191
  %s1194 = scalar_lea.vmem %s1, 1232
  %s1195 = scalar_lea.vmem %s0, 464
  %v1196 = vld [vmem:[%s1195] sm:$0xf]
  %v1197 = vunpack.c.l.bf16 %v1196
  %v1198 = vunpack.c.h.bf16 %v1196
  %s1199 = scalar_lea.vmem %s1, 2000
  %s1200 = scalar_lea.vmem %s0, 1744
  %v1201 = vld [vmem:[%s1200] sm:$0xf]
  %v1202 = vunpack.c.l.bf16 %v1201
  %v1203 = vunpack.c.h.bf16 %v1201
  %s1204 = scalar_lea.vmem %s1, 720
  %s1205 = scalar_lea.vmem %s0, 976
  %v1206 = vld [vmem:[%s1205] sm:$0xf]
  %v1207 = vunpack.c.l.bf16 %v1206
  %v1208 = vunpack.c.h.bf16 %v1206
  %s1209 = scalar_lea.vmem %s1, 1488
  %s1210 = scalar_lea.vmem %s0, 208
  %v1211 = vld [vmem:[%s1210] sm:$0xf]
  %v1212 = vunpack.c.l.bf16 %v1211
  %v1213 = vunpack.c.h.bf16 %v1211
  %s1214 = scalar_lea.vmem %s1, 2256
  %s1215 = scalar_lea.vmem %s0, 2264
  %v1216 = vld [vmem:[%s1215] sm:$0xf]
  %v1217 = vunpack.c.l.bf16 %v1216
  %v1218 = vunpack.c.h.bf16 %v1216
  %s1219 = scalar_lea.vmem %s1, 216
  %s1220 = scalar_lea.vmem %s0, 1496
  %v1221 = vld [vmem:[%s1220] sm:$0xf]
  %v1222 = vunpack.c.l.bf16 %v1221
  %v1223 = vunpack.c.h.bf16 %v1221
  %s1224 = scalar_lea.vmem %s1, 984
  %s1225 = scalar_lea.vmem %s0, 728
  %v1226 = vld [vmem:[%s1225] sm:$0xf]
  %v1227 = vunpack.c.l.bf16 %v1226
  %v1228 = vunpack.c.h.bf16 %v1226
  %s1229 = scalar_lea.vmem %s1, 1752
  %s1230 = scalar_lea.vmem %s0, 2008
  %v1231 = vld [vmem:[%s1230] sm:$0xf]
  %v1232 = vunpack.c.l.bf16 %v1231
  %v1233 = vunpack.c.h.bf16 %v1231
  %s1234 = scalar_lea.vmem %s1, 472
  %s1235 = scalar_lea.vmem %s0, 1240
  %v1236 = vld [vmem:[%s1235] sm:$0xf]
  %v1237 = vunpack.c.l.bf16 %v1236
  %v1238 = vunpack.c.h.bf16 %v1236
  %s1239 = scalar_lea.vmem %s1, 1240
  %s1240 = scalar_lea.vmem %s0, 472
  %v1241 = vld [vmem:[%s1240] sm:$0xf]
  %v1242 = vunpack.c.l.bf16 %v1241
  %v1243 = vunpack.c.h.bf16 %v1241
  %s1244 = scalar_lea.vmem %s1, 2008
  %s1245 = scalar_lea.vmem %s0, 1752
  %v1246 = vld [vmem:[%s1245] sm:$0xf]
  %v1247 = vunpack.c.l.bf16 %v1246
  %v1248 = vunpack.c.h.bf16 %v1246
  %s1249 = scalar_lea.vmem %s1, 728
  %s1250 = scalar_lea.vmem %s0, 984
  %v1251 = vld [vmem:[%s1250] sm:$0xf]
  %v1252 = vunpack.c.l.bf16 %v1251
  %v1253 = vunpack.c.h.bf16 %v1251
  %s1254 = scalar_lea.vmem %s1, 1496
  %s1255 = scalar_lea.vmem %s0, 216
  %v1256 = vld [vmem:[%s1255] sm:$0xf]
  %v1257 = vunpack.c.l.bf16 %v1256
  %v1258 = vunpack.c.h.bf16 %v1256
  %s1259 = scalar_lea.vmem %s1, 2264
  %s1260 = scalar_lea.vmem %s0, 2272
  %v1261 = vld [vmem:[%s1260] sm:$0xf]
  %v1262 = vunpack.c.l.bf16 %v1261
  %v1263 = vunpack.c.h.bf16 %v1261
  %s1264 = scalar_lea.vmem %s1, 224
  %s1265 = scalar_lea.vmem %s0, 1504
  %v1266 = vld [vmem:[%s1265] sm:$0xf]
  %v1267 = vunpack.c.l.bf16 %v1266
  %v1268 = vunpack.c.h.bf16 %v1266
  %s1269 = scalar_lea.vmem %s1, 992
  %s1270 = scalar_lea.vmem %s0, 736
  %v1271 = vld [vmem:[%s1270] sm:$0xf]
  %v1272 = vunpack.c.l.bf16 %v1271
  %v1273 = vunpack.c.h.bf16 %v1271
  %s1274 = scalar_lea.vmem %s1, 1760
  %s1275 = scalar_lea.vmem %s0, 2016
  %v1276 = vld [vmem:[%s1275] sm:$0xf]
  %v1277 = vunpack.c.l.bf16 %v1276
  %v1278 = vunpack.c.h.bf16 %v1276
  %s1279 = scalar_lea.vmem %s1, 480
  %s1280 = scalar_lea.vmem %s0, 1248
  %v1281 = vld [vmem:[%s1280] sm:$0xf]
  %v1282 = vunpack.c.l.bf16 %v1281
  %v1283 = vunpack.c.h.bf16 %v1281
  %s1284 = scalar_lea.vmem %s1, 1248
  %s1285 = scalar_lea.vmem %s0, 480
  %v1286 = vld [vmem:[%s1285] sm:$0xf]
  %v1287 = vunpack.c.l.bf16 %v1286
  %v1288 = vunpack.c.h.bf16 %v1286
  %s1289 = scalar_lea.vmem %s1, 2016
  %s1290 = scalar_lea.vmem %s0, 1760
  %v1291 = vld [vmem:[%s1290] sm:$0xf]
  %v1292 = vunpack.c.l.bf16 %v1291
  %v1293 = vunpack.c.h.bf16 %v1291
  %s1294 = scalar_lea.vmem %s1, 736
  %s1295 = scalar_lea.vmem %s0, 992
  %v1296 = vld [vmem:[%s1295] sm:$0xf]
  %v1297 = vunpack.c.l.bf16 %v1296
  %v1298 = vunpack.c.h.bf16 %v1296
  %s1299 = scalar_lea.vmem %s1, 1504
  %s1300 = scalar_lea.vmem %s0, 224
  %v1301 = vld [vmem:[%s1300] sm:$0xf]
  %v1302 = vunpack.c.l.bf16 %v1301
  %v1303 = vunpack.c.h.bf16 %v1301
  %s1304 = scalar_lea.vmem %s1, 2272
  %s1305 = scalar_lea.vmem %s0, 2280
  %v1306 = vld [vmem:[%s1305] sm:$0xf]
  %v1307 = vunpack.c.l.bf16 %v1306
  %v1308 = vunpack.c.h.bf16 %v1306
  %s1309 = scalar_lea.vmem %s1, 232
  %s1310 = scalar_lea.vmem %s0, 1512
  %v1311 = vld [vmem:[%s1310] sm:$0xf]
  %v1312 = vunpack.c.l.bf16 %v1311
  %v1313 = vunpack.c.h.bf16 %v1311
  %s1314 = scalar_lea.vmem %s1, 1000
  %s1315 = scalar_lea.vmem %s0, 744
  %v1316 = vld [vmem:[%s1315] sm:$0xf]
  %v1317 = vunpack.c.l.bf16 %v1316
  %v1318 = vunpack.c.h.bf16 %v1316
  %s1319 = scalar_lea.vmem %s1, 1768
  %s1320 = scalar_lea.vmem %s0, 2024
  %v1321 = vld [vmem:[%s1320] sm:$0xf]
  %v1322 = vunpack.c.l.bf16 %v1321
  %v1323 = vunpack.c.h.bf16 %v1321
  %s1324 = scalar_lea.vmem %s1, 488
  %s1325 = scalar_lea.vmem %s0, 1256
  %v1326 = vld [vmem:[%s1325] sm:$0xf]
  %v1327 = vunpack.c.l.bf16 %v1326
  %v1328 = vunpack.c.h.bf16 %v1326
  %s1329 = scalar_lea.vmem %s1, 1256
  %s1330 = scalar_lea.vmem %s0, 488
  %v1331 = vld [vmem:[%s1330] sm:$0xf]
  %v1332 = vunpack.c.l.bf16 %v1331
  %v1333 = vunpack.c.h.bf16 %v1331
  %s1334 = scalar_lea.vmem %s1, 2024
  %s1335 = scalar_lea.vmem %s0, 1768
  %v1336 = vld [vmem:[%s1335] sm:$0xf]
  %v1337 = vunpack.c.l.bf16 %v1336
  %v1338 = vunpack.c.h.bf16 %v1336
  %s1339 = scalar_lea.vmem %s1, 744
  %s1340 = scalar_lea.vmem %s0, 1000
  %v1341 = vld [vmem:[%s1340] sm:$0xf]
  %v1342 = vunpack.c.l.bf16 %v1341
  %v1343 = vunpack.c.h.bf16 %v1341
  %s1344 = scalar_lea.vmem %s1, 1512
  %s1345 = scalar_lea.vmem %s0, 232
  %v1346 = vld [vmem:[%s1345] sm:$0xf]
  %v1347 = vunpack.c.l.bf16 %v1346
  %v1348 = vunpack.c.h.bf16 %v1346
  %s1349 = scalar_lea.vmem %s1, 2280
  %s1350 = scalar_lea.vmem %s0, 2288
  %v1351 = vld [vmem:[%s1350] sm:$0xf]
  %v1352 = vunpack.c.l.bf16 %v1351
  %v1353 = vunpack.c.h.bf16 %v1351
  %s1354 = scalar_lea.vmem %s1, 240
  %s1355 = scalar_lea.vmem %s0, 1520
  %v1356 = vld [vmem:[%s1355] sm:$0xf]
  %v1357 = vunpack.c.l.bf16 %v1356
  %v1358 = vunpack.c.h.bf16 %v1356
  %s1359 = scalar_lea.vmem %s1, 1008
  %s1360 = scalar_lea.vmem %s0, 752
  %v1361 = vld [vmem:[%s1360] sm:$0xf]
  %v1362 = vunpack.c.l.bf16 %v1361
  %v1363 = vunpack.c.h.bf16 %v1361
  %s1364 = scalar_lea.vmem %s1, 1776
  %s1365 = scalar_lea.vmem %s0, 2032
  %v1366 = vld [vmem:[%s1365] sm:$0xf]
  %v1367 = vunpack.c.l.bf16 %v1366
  %v1368 = vunpack.c.h.bf16 %v1366
  %s1369 = scalar_lea.vmem %s1, 496
  %s1370 = scalar_lea.vmem %s0, 1264
  %v1371 = vld [vmem:[%s1370] sm:$0xf]
  %v1372 = vunpack.c.l.bf16 %v1371
  %v1373 = vunpack.c.h.bf16 %v1371
  %s1374 = scalar_lea.vmem %s1, 1264
  %s1375 = scalar_lea.vmem %s0, 496
  %v1376 = vld [vmem:[%s1375] sm:$0xf]
  %v1377 = vunpack.c.l.bf16 %v1376
  %v1378 = vunpack.c.h.bf16 %v1376
  %s1379 = scalar_lea.vmem %s1, 2032
  %s1380 = scalar_lea.vmem %s0, 1776
  %v1381 = vld [vmem:[%s1380] sm:$0xf]
  %v1382 = vunpack.c.l.bf16 %v1381
  %v1383 = vunpack.c.h.bf16 %v1381
  %s1384 = scalar_lea.vmem %s1, 752
  %s1385 = scalar_lea.vmem %s0, 1008
  %v1386 = vld [vmem:[%s1385] sm:$0xf]
  %v1387 = vunpack.c.l.bf16 %v1386
  %v1388 = vunpack.c.h.bf16 %v1386
  %s1389 = scalar_lea.vmem %s1, 1520
  %s1390 = scalar_lea.vmem %s0, 240
  %v1391 = vld [vmem:[%s1390] sm:$0xf]
  %v1392 = vunpack.c.l.bf16 %v1391
  %v1393 = vunpack.c.h.bf16 %v1391
  %s1394 = scalar_lea.vmem %s1, 2288
  %s1395 = scalar_lea.vmem %s0, 2296
  %v1396 = vld [vmem:[%s1395] sm:$0xf]
  %v1397 = vunpack.c.l.bf16 %v1396
  %v1398 = vunpack.c.h.bf16 %v1396
  %s1399 = scalar_lea.vmem %s1, 248
  %s1400 = scalar_lea.vmem %s0, 1528
  %v1401 = vld [vmem:[%s1400] sm:$0xf]
  %v1402 = vunpack.c.l.bf16 %v1401
  %v1403 = vunpack.c.h.bf16 %v1401
  %s1404 = scalar_lea.vmem %s1, 1016
  %s1405 = scalar_lea.vmem %s0, 760
  %v1406 = vld [vmem:[%s1405] sm:$0xf]
  %v1407 = vunpack.c.l.bf16 %v1406
  %v1408 = vunpack.c.h.bf16 %v1406
  %s1409 = scalar_lea.vmem %s1, 1784
  %s1410 = scalar_lea.vmem %s0, 2040
  %v1411 = vld [vmem:[%s1410] sm:$0xf]
  %v1412 = vunpack.c.l.bf16 %v1411
  %v1413 = vunpack.c.h.bf16 %v1411
  %s1414 = scalar_lea.vmem %s1, 504
  %s1415 = scalar_lea.vmem %s0, 1272
  %v1416 = vld [vmem:[%s1415] sm:$0xf]
  %v1417 = vunpack.c.l.bf16 %v1416
  %v1418 = vunpack.c.h.bf16 %v1416
  %s1419 = scalar_lea.vmem %s1, 1272
  %s1420 = scalar_lea.vmem %s0, 504
  %v1421 = vld [vmem:[%s1420] sm:$0xf]
  %v1422 = vunpack.c.l.bf16 %v1421
  %v1423 = vunpack.c.h.bf16 %v1421
  %s1424 = scalar_lea.vmem %s1, 2040
  %s1425 = scalar_lea.vmem %s0, 1784
  %v1426 = vld [vmem:[%s1425] sm:$0xf]
  %v1427 = vunpack.c.l.bf16 %v1426
  %v1428 = vunpack.c.h.bf16 %v1426
  %s1429 = scalar_lea.vmem %s1, 760
  %s1430 = scalar_lea.vmem %s0, 1016
  %v1431 = vld [vmem:[%s1430] sm:$0xf]
  %v1432 = vunpack.c.l.bf16 %v1431
  %v1433 = vunpack.c.h.bf16 %v1431
  %s1434 = scalar_lea.vmem %s1, 1528
  %s1435 = scalar_lea.vmem %s0, 248
  %v1436 = vld [vmem:[%s1435] sm:$0xf]
  %v1437 = vunpack.c.l.bf16 %v1436
  %v1438 = vunpack.c.h.bf16 %v1436
  %s1439 = scalar_lea.vmem %s1, 2296
  %s1440 = scalar_lea.vmem %s0, 2052
  %v1441 = vld [vmem:[%s1440] sm:$0xf]
  %v1442 = vunpack.c.l.bf16 %v1441
  %v1443 = vunpack.c.h.bf16 %v1441
  %s1444 = scalar_lea.vmem %s1, 4
  %s1445 = scalar_lea.vmem %s1444, 4294967292
  %v1446 = vpack.c.bf16 %v1442, %v4
  %1447 = vst [vmem:[%s1445] sm:$0xff] %v1446
  %s1448 = scalar_lea.vmem %s0, 1284
  %v1449 = vld [vmem:[%s1448] sm:$0xf]
  %v1450 = vunpack.c.l.bf16 %v1449
  %v1451 = vunpack.c.h.bf16 %v1449
  %s1452 = scalar_lea.vmem %s1, 772
  %s1453 = scalar_lea.vmem %s1452, 4294967292
  %v1454 = vpack.c.bf16 %v1450, %v8
  %1455 = vst [vmem:[%s1453] sm:$0xff] %v1454
  %s1456 = scalar_lea.vmem %s0, 516
  %v1457 = vld [vmem:[%s1456] sm:$0xf]
  %v1458 = vunpack.c.l.bf16 %v1457
  %v1459 = vunpack.c.h.bf16 %v1457
  %s1460 = scalar_lea.vmem %s1, 1540
  %s1461 = scalar_lea.vmem %s1460, 4294967292
  %v1462 = vpack.c.bf16 %v1458, %v13
  %1463 = vst [vmem:[%s1461] sm:$0xff] %v1462
  %s1464 = scalar_lea.vmem %s0, 1796
  %v1465 = vld [vmem:[%s1464] sm:$0xf]
  %v1466 = vunpack.c.l.bf16 %v1465
  %v1467 = vunpack.c.h.bf16 %v1465
  %s1468 = scalar_lea.vmem %s1, 260
  %s1469 = scalar_lea.vmem %s1468, 4294967292
  %v1470 = vpack.c.bf16 %v1466, %v18
  %1471 = vst [vmem:[%s1469] sm:$0xff] %v1470
  %s1472 = scalar_lea.vmem %s0, 1028
  %v1473 = vld [vmem:[%s1472] sm:$0xf]
  %v1474 = vunpack.c.l.bf16 %v1473
  %v1475 = vunpack.c.h.bf16 %v1473
  %s1476 = scalar_lea.vmem %s1, 1028
  %s1477 = scalar_lea.vmem %s1476, 4294967292
  %v1478 = vpack.c.bf16 %v1474, %v23
  %1479 = vst [vmem:[%s1477] sm:$0xff] %v1478
  %s1480 = scalar_lea.vmem %s0, 260
  %v1481 = vld [vmem:[%s1480] sm:$0xf]
  %v1482 = vunpack.c.l.bf16 %v1481
  %v1483 = vunpack.c.h.bf16 %v1481
  %s1484 = scalar_lea.vmem %s1, 1796
  %s1485 = scalar_lea.vmem %s1484, 4294967292
  %v1486 = vpack.c.bf16 %v1482, %v28
  %1487 = vst [vmem:[%s1485] sm:$0xff] %v1486
  %s1488 = scalar_lea.vmem %s0, 1540
  %v1489 = vld [vmem:[%s1488] sm:$0xf]
  %v1490 = vunpack.c.l.bf16 %v1489
  %v1491 = vunpack.c.h.bf16 %v1489
  %s1492 = scalar_lea.vmem %s1, 516
  %s1493 = scalar_lea.vmem %s1492, 4294967292
  %v1494 = vpack.c.bf16 %v1490, %v33
  %1495 = vst [vmem:[%s1493] sm:$0xff] %v1494
  %s1496 = scalar_lea.vmem %s0, 772
  %v1497 = vld [vmem:[%s1496] sm:$0xf]
  %v1498 = vunpack.c.l.bf16 %v1497
  %v1499 = vunpack.c.h.bf16 %v1497
  %s1500 = scalar_lea.vmem %s1, 1284
  %s1501 = scalar_lea.vmem %s1500, 4294967292
  %v1502 = vpack.c.bf16 %v1498, %v38
  %1503 = vst [vmem:[%s1501] sm:$0xff] %v1502
  %s1504 = scalar_lea.vmem %s0, 4
  %v1505 = vld [vmem:[%s1504] sm:$0xf]
  %v1506 = vunpack.c.l.bf16 %v1505
  %v1507 = vunpack.c.h.bf16 %v1505
  %s1508 = scalar_lea.vmem %s1, 2052
  %s1509 = scalar_lea.vmem %s1508, 4294967292
  %v1510 = vpack.c.bf16 %v1506, %v42
  %1511 = vst [vmem:[%s1509] sm:$0xff] %v1510
  %s1512 = scalar_lea.vmem %s0, 2060
  %v1513 = vld [vmem:[%s1512] sm:$0xf]
  %v1514 = vunpack.c.l.bf16 %v1513
  %v1515 = vunpack.c.h.bf16 %v1513
  %s1516 = scalar_lea.vmem %s1, 12
  %s1517 = scalar_lea.vmem %s1516, 4294967292
  %v1518 = vpack.c.bf16 %v1514, %v47
  %1519 = vst [vmem:[%s1517] sm:$0xff] %v1518
  %s1520 = scalar_lea.vmem %s0, 1292
  %v1521 = vld [vmem:[%s1520] sm:$0xf]
  %v1522 = vunpack.c.l.bf16 %v1521
  %v1523 = vunpack.c.h.bf16 %v1521
  %s1524 = scalar_lea.vmem %s1, 780
  %s1525 = scalar_lea.vmem %s1524, 4294967292
  %v1526 = vpack.c.bf16 %v1522, %v52
  %1527 = vst [vmem:[%s1525] sm:$0xff] %v1526
  %s1528 = scalar_lea.vmem %s0, 524
  %v1529 = vld [vmem:[%s1528] sm:$0xf]
  %v1530 = vunpack.c.l.bf16 %v1529
  %v1531 = vunpack.c.h.bf16 %v1529
  %s1532 = scalar_lea.vmem %s1, 1548
  %s1533 = scalar_lea.vmem %s1532, 4294967292
  %v1534 = vpack.c.bf16 %v1530, %v57
  %1535 = vst [vmem:[%s1533] sm:$0xff] %v1534
  %s1536 = scalar_lea.vmem %s0, 1804
  %v1537 = vld [vmem:[%s1536] sm:$0xf]
  %v1538 = vunpack.c.l.bf16 %v1537
  %v1539 = vunpack.c.h.bf16 %v1537
  %s1540 = scalar_lea.vmem %s1, 268
  %s1541 = scalar_lea.vmem %s1540, 4294967292
  %v1542 = vpack.c.bf16 %v1538, %v62
  %1543 = vst [vmem:[%s1541] sm:$0xff] %v1542
  %s1544 = scalar_lea.vmem %s0, 1036
  %v1545 = vld [vmem:[%s1544] sm:$0xf]
  %v1546 = vunpack.c.l.bf16 %v1545
  %v1547 = vunpack.c.h.bf16 %v1545
  %s1548 = scalar_lea.vmem %s1, 1036
  %s1549 = scalar_lea.vmem %s1548, 4294967292
  %v1550 = vpack.c.bf16 %v1546, %v67
  %1551 = vst [vmem:[%s1549] sm:$0xff] %v1550
  %s1552 = scalar_lea.vmem %s0, 268
  %v1553 = vld [vmem:[%s1552] sm:$0xf]
  %v1554 = vunpack.c.l.bf16 %v1553
  %v1555 = vunpack.c.h.bf16 %v1553
  %s1556 = scalar_lea.vmem %s1, 1804
  %s1557 = scalar_lea.vmem %s1556, 4294967292
  %v1558 = vpack.c.bf16 %v1554, %v72
  %1559 = vst [vmem:[%s1557] sm:$0xff] %v1558
  %s1560 = scalar_lea.vmem %s0, 1548
  %v1561 = vld [vmem:[%s1560] sm:$0xf]
  %v1562 = vunpack.c.l.bf16 %v1561
  %v1563 = vunpack.c.h.bf16 %v1561
  %s1564 = scalar_lea.vmem %s1, 524
  %s1565 = scalar_lea.vmem %s1564, 4294967292
  %v1566 = vpack.c.bf16 %v1562, %v77
  %1567 = vst [vmem:[%s1565] sm:$0xff] %v1566
  %s1568 = scalar_lea.vmem %s0, 780
  %v1569 = vld [vmem:[%s1568] sm:$0xf]
  %v1570 = vunpack.c.l.bf16 %v1569
  %v1571 = vunpack.c.h.bf16 %v1569
  %s1572 = scalar_lea.vmem %s1, 1292
  %s1573 = scalar_lea.vmem %s1572, 4294967292
  %v1574 = vpack.c.bf16 %v1570, %v82
  %1575 = vst [vmem:[%s1573] sm:$0xff] %v1574
  %s1576 = scalar_lea.vmem %s0, 12
  %v1577 = vld [vmem:[%s1576] sm:$0xf]
  %v1578 = vunpack.c.l.bf16 %v1577
  %v1579 = vunpack.c.h.bf16 %v1577
  %s1580 = scalar_lea.vmem %s1, 2060
  %s1581 = scalar_lea.vmem %s1580, 4294967292
  %v1582 = vpack.c.bf16 %v1578, %v87
  %1583 = vst [vmem:[%s1581] sm:$0xff] %v1582
  %s1584 = scalar_lea.vmem %s0, 2068
  %v1585 = vld [vmem:[%s1584] sm:$0xf]
  %v1586 = vunpack.c.l.bf16 %v1585
  %v1587 = vunpack.c.h.bf16 %v1585
  %s1588 = scalar_lea.vmem %s1, 20
  %s1589 = scalar_lea.vmem %s1588, 4294967292
  %v1590 = vpack.c.bf16 %v1586, %v92
  %1591 = vst [vmem:[%s1589] sm:$0xff] %v1590
  %s1592 = scalar_lea.vmem %s0, 1300
  %v1593 = vld [vmem:[%s1592] sm:$0xf]
  %v1594 = vunpack.c.l.bf16 %v1593
  %v1595 = vunpack.c.h.bf16 %v1593
  %s1596 = scalar_lea.vmem %s1, 788
  %s1597 = scalar_lea.vmem %s1596, 4294967292
  %v1598 = vpack.c.bf16 %v1594, %v97
  %1599 = vst [vmem:[%s1597] sm:$0xff] %v1598
  %s1600 = scalar_lea.vmem %s0, 532
  %v1601 = vld [vmem:[%s1600] sm:$0xf]
  %v1602 = vunpack.c.l.bf16 %v1601
  %v1603 = vunpack.c.h.bf16 %v1601
  %s1604 = scalar_lea.vmem %s1, 1556
  %s1605 = scalar_lea.vmem %s1604, 4294967292
  %v1606 = vpack.c.bf16 %v1602, %v102
  %1607 = vst [vmem:[%s1605] sm:$0xff] %v1606
  %s1608 = scalar_lea.vmem %s0, 1812
  %v1609 = vld [vmem:[%s1608] sm:$0xf]
  %v1610 = vunpack.c.l.bf16 %v1609
  %v1611 = vunpack.c.h.bf16 %v1609
  %s1612 = scalar_lea.vmem %s1, 276
  %s1613 = scalar_lea.vmem %s1612, 4294967292
  %v1614 = vpack.c.bf16 %v1610, %v107
  %1615 = vst [vmem:[%s1613] sm:$0xff] %v1614
  %s1616 = scalar_lea.vmem %s0, 1044
  %v1617 = vld [vmem:[%s1616] sm:$0xf]
  %v1618 = vunpack.c.l.bf16 %v1617
  %v1619 = vunpack.c.h.bf16 %v1617
  %s1620 = scalar_lea.vmem %s1, 1044
  %s1621 = scalar_lea.vmem %s1620, 4294967292
  %v1622 = vpack.c.bf16 %v1618, %v112
  %1623 = vst [vmem:[%s1621] sm:$0xff] %v1622
  %s1624 = scalar_lea.vmem %s0, 276
  %v1625 = vld [vmem:[%s1624] sm:$0xf]
  %v1626 = vunpack.c.l.bf16 %v1625
  %v1627 = vunpack.c.h.bf16 %v1625
  %s1628 = scalar_lea.vmem %s1, 1812
  %s1629 = scalar_lea.vmem %s1628, 4294967292
  %v1630 = vpack.c.bf16 %v1626, %v117
  %1631 = vst [vmem:[%s1629] sm:$0xff] %v1630
  %s1632 = scalar_lea.vmem %s0, 1556
  %v1633 = vld [vmem:[%s1632] sm:$0xf]
  %v1634 = vunpack.c.l.bf16 %v1633
  %v1635 = vunpack.c.h.bf16 %v1633
  %s1636 = scalar_lea.vmem %s1, 532
  %s1637 = scalar_lea.vmem %s1636, 4294967292
  %v1638 = vpack.c.bf16 %v1634, %v122
  %1639 = vst [vmem:[%s1637] sm:$0xff] %v1638
  %s1640 = scalar_lea.vmem %s0, 788
  %v1641 = vld [vmem:[%s1640] sm:$0xf]
  %v1642 = vunpack.c.l.bf16 %v1641
  %v1643 = vunpack.c.h.bf16 %v1641
  %s1644 = scalar_lea.vmem %s1, 1300
  %s1645 = scalar_lea.vmem %s1644, 4294967292
  %v1646 = vpack.c.bf16 %v1642, %v127
  %1647 = vst [vmem:[%s1645] sm:$0xff] %v1646
  %s1648 = scalar_lea.vmem %s0, 20
  %v1649 = vld [vmem:[%s1648] sm:$0xf]
  %v1650 = vunpack.c.l.bf16 %v1649
  %v1651 = vunpack.c.h.bf16 %v1649
  %s1652 = scalar_lea.vmem %s1, 2068
  %s1653 = scalar_lea.vmem %s1652, 4294967292
  %v1654 = vpack.c.bf16 %v1650, %v132
  %1655 = vst [vmem:[%s1653] sm:$0xff] %v1654
  %s1656 = scalar_lea.vmem %s0, 2076
  %v1657 = vld [vmem:[%s1656] sm:$0xf]
  %v1658 = vunpack.c.l.bf16 %v1657
  %v1659 = vunpack.c.h.bf16 %v1657
  %s1660 = scalar_lea.vmem %s1, 28
  %s1661 = scalar_lea.vmem %s1660, 4294967292
  %v1662 = vpack.c.bf16 %v1658, %v137
  %1663 = vst [vmem:[%s1661] sm:$0xff] %v1662
  %s1664 = scalar_lea.vmem %s0, 1308
  %v1665 = vld [vmem:[%s1664] sm:$0xf]
  %v1666 = vunpack.c.l.bf16 %v1665
  %v1667 = vunpack.c.h.bf16 %v1665
  %s1668 = scalar_lea.vmem %s1, 796
  %s1669 = scalar_lea.vmem %s1668, 4294967292
  %v1670 = vpack.c.bf16 %v1666, %v142
  %1671 = vst [vmem:[%s1669] sm:$0xff] %v1670
  %s1672 = scalar_lea.vmem %s0, 540
  %v1673 = vld [vmem:[%s1672] sm:$0xf]
  %v1674 = vunpack.c.l.bf16 %v1673
  %v1675 = vunpack.c.h.bf16 %v1673
  %s1676 = scalar_lea.vmem %s1, 1564
  %s1677 = scalar_lea.vmem %s1676, 4294967292
  %v1678 = vpack.c.bf16 %v1674, %v147
  %1679 = vst [vmem:[%s1677] sm:$0xff] %v1678
  %s1680 = scalar_lea.vmem %s0, 1820
  %v1681 = vld [vmem:[%s1680] sm:$0xf]
  %v1682 = vunpack.c.l.bf16 %v1681
  %v1683 = vunpack.c.h.bf16 %v1681
  %s1684 = scalar_lea.vmem %s1, 284
  %s1685 = scalar_lea.vmem %s1684, 4294967292
  %v1686 = vpack.c.bf16 %v1682, %v152
  %1687 = vst [vmem:[%s1685] sm:$0xff] %v1686
  %s1688 = scalar_lea.vmem %s0, 1052
  %v1689 = vld [vmem:[%s1688] sm:$0xf]
  %v1690 = vunpack.c.l.bf16 %v1689
  %v1691 = vunpack.c.h.bf16 %v1689
  %s1692 = scalar_lea.vmem %s1, 1052
  %s1693 = scalar_lea.vmem %s1692, 4294967292
  %v1694 = vpack.c.bf16 %v1690, %v157
  %1695 = vst [vmem:[%s1693] sm:$0xff] %v1694
  %s1696 = scalar_lea.vmem %s0, 284
  %v1697 = vld [vmem:[%s1696] sm:$0xf]
  %v1698 = vunpack.c.l.bf16 %v1697
  %v1699 = vunpack.c.h.bf16 %v1697
  %s1700 = scalar_lea.vmem %s1, 1820
  %s1701 = scalar_lea.vmem %s1700, 4294967292
  %v1702 = vpack.c.bf16 %v1698, %v162
  %1703 = vst [vmem:[%s1701] sm:$0xff] %v1702
  %s1704 = scalar_lea.vmem %s0, 1564
  %v1705 = vld [vmem:[%s1704] sm:$0xf]
  %v1706 = vunpack.c.l.bf16 %v1705
  %v1707 = vunpack.c.h.bf16 %v1705
  %s1708 = scalar_lea.vmem %s1, 540
  %s1709 = scalar_lea.vmem %s1708, 4294967292
  %v1710 = vpack.c.bf16 %v1706, %v167
  %1711 = vst [vmem:[%s1709] sm:$0xff] %v1710
  %s1712 = scalar_lea.vmem %s0, 796
  %v1713 = vld [vmem:[%s1712] sm:$0xf]
  %v1714 = vunpack.c.l.bf16 %v1713
  %v1715 = vunpack.c.h.bf16 %v1713
  %s1716 = scalar_lea.vmem %s1, 1308
  %s1717 = scalar_lea.vmem %s1716, 4294967292
  %v1718 = vpack.c.bf16 %v1714, %v172
  %1719 = vst [vmem:[%s1717] sm:$0xff] %v1718
  %s1720 = scalar_lea.vmem %s0, 28
  %v1721 = vld [vmem:[%s1720] sm:$0xf]
  %v1722 = vunpack.c.l.bf16 %v1721
  %v1723 = vunpack.c.h.bf16 %v1721
  %s1724 = scalar_lea.vmem %s1, 2076
  %s1725 = scalar_lea.vmem %s1724, 4294967292
  %v1726 = vpack.c.bf16 %v1722, %v177
  %1727 = vst [vmem:[%s1725] sm:$0xff] %v1726
  %s1728 = scalar_lea.vmem %s0, 2084
  %v1729 = vld [vmem:[%s1728] sm:$0xf]
  %v1730 = vunpack.c.l.bf16 %v1729
  %v1731 = vunpack.c.h.bf16 %v1729
  %s1732 = scalar_lea.vmem %s1, 36
  %s1733 = scalar_lea.vmem %s1732, 4294967292
  %v1734 = vpack.c.bf16 %v1730, %v182
  %1735 = vst [vmem:[%s1733] sm:$0xff] %v1734
  %s1736 = scalar_lea.vmem %s0, 1316
  %v1737 = vld [vmem:[%s1736] sm:$0xf]
  %v1738 = vunpack.c.l.bf16 %v1737
  %v1739 = vunpack.c.h.bf16 %v1737
  %s1740 = scalar_lea.vmem %s1, 804
  %s1741 = scalar_lea.vmem %s1740, 4294967292
  %v1742 = vpack.c.bf16 %v1738, %v187
  %1743 = vst [vmem:[%s1741] sm:$0xff] %v1742
  %s1744 = scalar_lea.vmem %s0, 548
  %v1745 = vld [vmem:[%s1744] sm:$0xf]
  %v1746 = vunpack.c.l.bf16 %v1745
  %v1747 = vunpack.c.h.bf16 %v1745
  %s1748 = scalar_lea.vmem %s1, 1572
  %s1749 = scalar_lea.vmem %s1748, 4294967292
  %v1750 = vpack.c.bf16 %v1746, %v192
  %1751 = vst [vmem:[%s1749] sm:$0xff] %v1750
  %s1752 = scalar_lea.vmem %s0, 1828
  %v1753 = vld [vmem:[%s1752] sm:$0xf]
  %v1754 = vunpack.c.l.bf16 %v1753
  %v1755 = vunpack.c.h.bf16 %v1753
  %s1756 = scalar_lea.vmem %s1, 292
  %s1757 = scalar_lea.vmem %s1756, 4294967292
  %v1758 = vpack.c.bf16 %v1754, %v197
  %1759 = vst [vmem:[%s1757] sm:$0xff] %v1758
  %s1760 = scalar_lea.vmem %s0, 1060
  %v1761 = vld [vmem:[%s1760] sm:$0xf]
  %v1762 = vunpack.c.l.bf16 %v1761
  %v1763 = vunpack.c.h.bf16 %v1761
  %s1764 = scalar_lea.vmem %s1, 1060
  %s1765 = scalar_lea.vmem %s1764, 4294967292
  %v1766 = vpack.c.bf16 %v1762, %v202
  %1767 = vst [vmem:[%s1765] sm:$0xff] %v1766
  %s1768 = scalar_lea.vmem %s0, 292
  %v1769 = vld [vmem:[%s1768] sm:$0xf]
  %v1770 = vunpack.c.l.bf16 %v1769
  %v1771 = vunpack.c.h.bf16 %v1769
  %s1772 = scalar_lea.vmem %s1, 1828
  %s1773 = scalar_lea.vmem %s1772, 4294967292
  %v1774 = vpack.c.bf16 %v1770, %v207
  %1775 = vst [vmem:[%s1773] sm:$0xff] %v1774
  %s1776 = scalar_lea.vmem %s0, 1572
  %v1777 = vld [vmem:[%s1776] sm:$0xf]
  %v1778 = vunpack.c.l.bf16 %v1777
  %v1779 = vunpack.c.h.bf16 %v1777
  %s1780 = scalar_lea.vmem %s1, 548
  %s1781 = scalar_lea.vmem %s1780, 4294967292
  %v1782 = vpack.c.bf16 %v1778, %v212
  %1783 = vst [vmem:[%s1781] sm:$0xff] %v1782
  %s1784 = scalar_lea.vmem %s0, 804
  %v1785 = vld [vmem:[%s1784] sm:$0xf]
  %v1786 = vunpack.c.l.bf16 %v1785
  %v1787 = vunpack.c.h.bf16 %v1785
  %s1788 = scalar_lea.vmem %s1, 1316
  %s1789 = scalar_lea.vmem %s1788, 4294967292
  %v1790 = vpack.c.bf16 %v1786, %v217
  %1791 = vst [vmem:[%s1789] sm:$0xff] %v1790
  %s1792 = scalar_lea.vmem %s0, 36
  %v1793 = vld [vmem:[%s1792] sm:$0xf]
  %v1794 = vunpack.c.l.bf16 %v1793
  %v1795 = vunpack.c.h.bf16 %v1793
  %s1796 = scalar_lea.vmem %s1, 2084
  %s1797 = scalar_lea.vmem %s1796, 4294967292
  %v1798 = vpack.c.bf16 %v1794, %v222
  %1799 = vst [vmem:[%s1797] sm:$0xff] %v1798
  %s1800 = scalar_lea.vmem %s0, 2092
  %v1801 = vld [vmem:[%s1800] sm:$0xf]
  %v1802 = vunpack.c.l.bf16 %v1801
  %v1803 = vunpack.c.h.bf16 %v1801
  %s1804 = scalar_lea.vmem %s1, 44
  %s1805 = scalar_lea.vmem %s1804, 4294967292
  %v1806 = vpack.c.bf16 %v1802, %v227
  %1807 = vst [vmem:[%s1805] sm:$0xff] %v1806
  %s1808 = scalar_lea.vmem %s0, 1324
  %v1809 = vld [vmem:[%s1808] sm:$0xf]
  %v1810 = vunpack.c.l.bf16 %v1809
  %v1811 = vunpack.c.h.bf16 %v1809
  %s1812 = scalar_lea.vmem %s1, 812
  %s1813 = scalar_lea.vmem %s1812, 4294967292
  %v1814 = vpack.c.bf16 %v1810, %v232
  %1815 = vst [vmem:[%s1813] sm:$0xff] %v1814
  %s1816 = scalar_lea.vmem %s0, 556
  %v1817 = vld [vmem:[%s1816] sm:$0xf]
  %v1818 = vunpack.c.l.bf16 %v1817
  %v1819 = vunpack.c.h.bf16 %v1817
  %s1820 = scalar_lea.vmem %s1, 1580
  %s1821 = scalar_lea.vmem %s1820, 4294967292
  %v1822 = vpack.c.bf16 %v1818, %v237
  %1823 = vst [vmem:[%s1821] sm:$0xff] %v1822
  %s1824 = scalar_lea.vmem %s0, 1836
  %v1825 = vld [vmem:[%s1824] sm:$0xf]
  %v1826 = vunpack.c.l.bf16 %v1825
  %v1827 = vunpack.c.h.bf16 %v1825
  %s1828 = scalar_lea.vmem %s1, 300
  %s1829 = scalar_lea.vmem %s1828, 4294967292
  %v1830 = vpack.c.bf16 %v1826, %v242
  %1831 = vst [vmem:[%s1829] sm:$0xff] %v1830
  %s1832 = scalar_lea.vmem %s0, 1068
  %v1833 = vld [vmem:[%s1832] sm:$0xf]
  %v1834 = vunpack.c.l.bf16 %v1833
  %v1835 = vunpack.c.h.bf16 %v1833
  %s1836 = scalar_lea.vmem %s1, 1068
  %s1837 = scalar_lea.vmem %s1836, 4294967292
  %v1838 = vpack.c.bf16 %v1834, %v247
  %1839 = vst [vmem:[%s1837] sm:$0xff] %v1838
  %s1840 = scalar_lea.vmem %s0, 300
  %v1841 = vld [vmem:[%s1840] sm:$0xf]
  %v1842 = vunpack.c.l.bf16 %v1841
  %v1843 = vunpack.c.h.bf16 %v1841
  %s1844 = scalar_lea.vmem %s1, 1836
  %s1845 = scalar_lea.vmem %s1844, 4294967292
  %v1846 = vpack.c.bf16 %v1842, %v252
  %1847 = vst [vmem:[%s1845] sm:$0xff] %v1846
  %s1848 = scalar_lea.vmem %s0, 1580
  %v1849 = vld [vmem:[%s1848] sm:$0xf]
  %v1850 = vunpack.c.l.bf16 %v1849
  %v1851 = vunpack.c.h.bf16 %v1849
  %s1852 = scalar_lea.vmem %s1, 556
  %s1853 = scalar_lea.vmem %s1852, 4294967292
  %v1854 = vpack.c.bf16 %v1850, %v257
  %1855 = vst [vmem:[%s1853] sm:$0xff] %v1854
  %s1856 = scalar_lea.vmem %s0, 812
  %v1857 = vld [vmem:[%s1856] sm:$0xf]
  %v1858 = vunpack.c.l.bf16 %v1857
  %v1859 = vunpack.c.h.bf16 %v1857
  %s1860 = scalar_lea.vmem %s1, 1324
  %s1861 = scalar_lea.vmem %s1860, 4294967292
  %v1862 = vpack.c.bf16 %v1858, %v262
  %1863 = vst [vmem:[%s1861] sm:$0xff] %v1862
  %s1864 = scalar_lea.vmem %s0, 44
  %v1865 = vld [vmem:[%s1864] sm:$0xf]
  %v1866 = vunpack.c.l.bf16 %v1865
  %v1867 = vunpack.c.h.bf16 %v1865
  %s1868 = scalar_lea.vmem %s1, 2092
  %s1869 = scalar_lea.vmem %s1868, 4294967292
  %v1870 = vpack.c.bf16 %v1866, %v267
  %1871 = vst [vmem:[%s1869] sm:$0xff] %v1870
  %s1872 = scalar_lea.vmem %s0, 2100
  %v1873 = vld [vmem:[%s1872] sm:$0xf]
  %v1874 = vunpack.c.l.bf16 %v1873
  %v1875 = vunpack.c.h.bf16 %v1873
  %s1876 = scalar_lea.vmem %s1, 52
  %s1877 = scalar_lea.vmem %s1876, 4294967292
  %v1878 = vpack.c.bf16 %v1874, %v272
  %1879 = vst [vmem:[%s1877] sm:$0xff] %v1878
  %s1880 = scalar_lea.vmem %s0, 1332
  %v1881 = vld [vmem:[%s1880] sm:$0xf]
  %v1882 = vunpack.c.l.bf16 %v1881
  %v1883 = vunpack.c.h.bf16 %v1881
  %s1884 = scalar_lea.vmem %s1, 820
  %s1885 = scalar_lea.vmem %s1884, 4294967292
  %v1886 = vpack.c.bf16 %v1882, %v277
  %1887 = vst [vmem:[%s1885] sm:$0xff] %v1886
  %s1888 = scalar_lea.vmem %s0, 564
  %v1889 = vld [vmem:[%s1888] sm:$0xf]
  %v1890 = vunpack.c.l.bf16 %v1889
  %v1891 = vunpack.c.h.bf16 %v1889
  %s1892 = scalar_lea.vmem %s1, 1588
  %s1893 = scalar_lea.vmem %s1892, 4294967292
  %v1894 = vpack.c.bf16 %v1890, %v282
  %1895 = vst [vmem:[%s1893] sm:$0xff] %v1894
  %s1896 = scalar_lea.vmem %s0, 1844
  %v1897 = vld [vmem:[%s1896] sm:$0xf]
  %v1898 = vunpack.c.l.bf16 %v1897
  %v1899 = vunpack.c.h.bf16 %v1897
  %s1900 = scalar_lea.vmem %s1, 308
  %s1901 = scalar_lea.vmem %s1900, 4294967292
  %v1902 = vpack.c.bf16 %v1898, %v287
  %1903 = vst [vmem:[%s1901] sm:$0xff] %v1902
  %s1904 = scalar_lea.vmem %s0, 1076
  %v1905 = vld [vmem:[%s1904] sm:$0xf]
  %v1906 = vunpack.c.l.bf16 %v1905
  %v1907 = vunpack.c.h.bf16 %v1905
  %s1908 = scalar_lea.vmem %s1, 1076
  %s1909 = scalar_lea.vmem %s1908, 4294967292
  %v1910 = vpack.c.bf16 %v1906, %v292
  %1911 = vst [vmem:[%s1909] sm:$0xff] %v1910
  %s1912 = scalar_lea.vmem %s0, 308
  %v1913 = vld [vmem:[%s1912] sm:$0xf]
  %v1914 = vunpack.c.l.bf16 %v1913
  %v1915 = vunpack.c.h.bf16 %v1913
  %s1916 = scalar_lea.vmem %s1, 1844
  %s1917 = scalar_lea.vmem %s1916, 4294967292
  %v1918 = vpack.c.bf16 %v1914, %v297
  %1919 = vst [vmem:[%s1917] sm:$0xff] %v1918
  %s1920 = scalar_lea.vmem %s0, 1588
  %v1921 = vld [vmem:[%s1920] sm:$0xf]
  %v1922 = vunpack.c.l.bf16 %v1921
  %v1923 = vunpack.c.h.bf16 %v1921
  %s1924 = scalar_lea.vmem %s1, 564
  %s1925 = scalar_lea.vmem %s1924, 4294967292
  %v1926 = vpack.c.bf16 %v1922, %v302
  %1927 = vst [vmem:[%s1925] sm:$0xff] %v1926
  %s1928 = scalar_lea.vmem %s0, 820
  %v1929 = vld [vmem:[%s1928] sm:$0xf]
  %v1930 = vunpack.c.l.bf16 %v1929
  %v1931 = vunpack.c.h.bf16 %v1929
  %s1932 = scalar_lea.vmem %s1, 1332
  %s1933 = scalar_lea.vmem %s1932, 4294967292
  %v1934 = vpack.c.bf16 %v1930, %v307
  %1935 = vst [vmem:[%s1933] sm:$0xff] %v1934
  %s1936 = scalar_lea.vmem %s0, 52
  %v1937 = vld [vmem:[%s1936] sm:$0xf]
  %v1938 = vunpack.c.l.bf16 %v1937
  %v1939 = vunpack.c.h.bf16 %v1937
  %s1940 = scalar_lea.vmem %s1, 2100
  %s1941 = scalar_lea.vmem %s1940, 4294967292
  %v1942 = vpack.c.bf16 %v1938, %v312
  %1943 = vst [vmem:[%s1941] sm:$0xff] %v1942
  %s1944 = scalar_lea.vmem %s0, 2108
  %v1945 = vld [vmem:[%s1944] sm:$0xf]
  %v1946 = vunpack.c.l.bf16 %v1945
  %v1947 = vunpack.c.h.bf16 %v1945
  %s1948 = scalar_lea.vmem %s1, 60
  %s1949 = scalar_lea.vmem %s1948, 4294967292
  %v1950 = vpack.c.bf16 %v1946, %v317
  %1951 = vst [vmem:[%s1949] sm:$0xff] %v1950
  %s1952 = scalar_lea.vmem %s0, 1340
  %v1953 = vld [vmem:[%s1952] sm:$0xf]
  %v1954 = vunpack.c.l.bf16 %v1953
  %v1955 = vunpack.c.h.bf16 %v1953
  %s1956 = scalar_lea.vmem %s1, 828
  %s1957 = scalar_lea.vmem %s1956, 4294967292
  %v1958 = vpack.c.bf16 %v1954, %v322
  %1959 = vst [vmem:[%s1957] sm:$0xff] %v1958
  %s1960 = scalar_lea.vmem %s0, 572
  %v1961 = vld [vmem:[%s1960] sm:$0xf]
  %v1962 = vunpack.c.l.bf16 %v1961
  %v1963 = vunpack.c.h.bf16 %v1961
  %s1964 = scalar_lea.vmem %s1, 1596
  %s1965 = scalar_lea.vmem %s1964, 4294967292
  %v1966 = vpack.c.bf16 %v1962, %v327
  %1967 = vst [vmem:[%s1965] sm:$0xff] %v1966
  %s1968 = scalar_lea.vmem %s0, 1852
  %v1969 = vld [vmem:[%s1968] sm:$0xf]
  %v1970 = vunpack.c.l.bf16 %v1969
  %v1971 = vunpack.c.h.bf16 %v1969
  %s1972 = scalar_lea.vmem %s1, 316
  %s1973 = scalar_lea.vmem %s1972, 4294967292
  %v1974 = vpack.c.bf16 %v1970, %v332
  %1975 = vst [vmem:[%s1973] sm:$0xff] %v1974
  %s1976 = scalar_lea.vmem %s0, 1084
  %v1977 = vld [vmem:[%s1976] sm:$0xf]
  %v1978 = vunpack.c.l.bf16 %v1977
  %v1979 = vunpack.c.h.bf16 %v1977
  %s1980 = scalar_lea.vmem %s1, 1084
  %s1981 = scalar_lea.vmem %s1980, 4294967292
  %v1982 = vpack.c.bf16 %v1978, %v337
  %1983 = vst [vmem:[%s1981] sm:$0xff] %v1982
  %s1984 = scalar_lea.vmem %s0, 316
  %v1985 = vld [vmem:[%s1984] sm:$0xf]
  %v1986 = vunpack.c.l.bf16 %v1985
  %v1987 = vunpack.c.h.bf16 %v1985
  %s1988 = scalar_lea.vmem %s1, 1852
  %s1989 = scalar_lea.vmem %s1988, 4294967292
  %v1990 = vpack.c.bf16 %v1986, %v342
  %1991 = vst [vmem:[%s1989] sm:$0xff] %v1990
  %s1992 = scalar_lea.vmem %s0, 1596
  %v1993 = vld [vmem:[%s1992] sm:$0xf]
  %v1994 = vunpack.c.l.bf16 %v1993
  %v1995 = vunpack.c.h.bf16 %v1993
  %s1996 = scalar_lea.vmem %s1, 572
  %s1997 = scalar_lea.vmem %s1996, 4294967292
  %v1998 = vpack.c.bf16 %v1994, %v347
  %1999 = vst [vmem:[%s1997] sm:$0xff] %v1998
  %s2000 = scalar_lea.vmem %s0, 828
  %v2001 = vld [vmem:[%s2000] sm:$0xf]
  %v2002 = vunpack.c.l.bf16 %v2001
  %v2003 = vunpack.c.h.bf16 %v2001
  %s2004 = scalar_lea.vmem %s1, 1340
  %s2005 = scalar_lea.vmem %s2004, 4294967292
  %v2006 = vpack.c.bf16 %v2002, %v352
  %2007 = vst [vmem:[%s2005] sm:$0xff] %v2006
  %s2008 = scalar_lea.vmem %s0, 60
  %v2009 = vld [vmem:[%s2008] sm:$0xf]
  %v2010 = vunpack.c.l.bf16 %v2009
  %v2011 = vunpack.c.h.bf16 %v2009
  %s2012 = scalar_lea.vmem %s1, 2108
  %s2013 = scalar_lea.vmem %s2012, 4294967292
  %v2014 = vpack.c.bf16 %v2010, %v357
  %2015 = vst [vmem:[%s2013] sm:$0xff] %v2014
  %s2016 = scalar_lea.vmem %s0, 2116
  %v2017 = vld [vmem:[%s2016] sm:$0xf]
  %v2018 = vunpack.c.l.bf16 %v2017
  %v2019 = vunpack.c.h.bf16 %v2017
  %s2020 = scalar_lea.vmem %s1, 68
  %s2021 = scalar_lea.vmem %s2020, 4294967292
  %v2022 = vpack.c.bf16 %v2018, %v362
  %2023 = vst [vmem:[%s2021] sm:$0xff] %v2022
  %s2024 = scalar_lea.vmem %s0, 1348
  %v2025 = vld [vmem:[%s2024] sm:$0xf]
  %v2026 = vunpack.c.l.bf16 %v2025
  %v2027 = vunpack.c.h.bf16 %v2025
  %s2028 = scalar_lea.vmem %s1, 836
  %s2029 = scalar_lea.vmem %s2028, 4294967292
  %v2030 = vpack.c.bf16 %v2026, %v367
  %2031 = vst [vmem:[%s2029] sm:$0xff] %v2030
  %s2032 = scalar_lea.vmem %s0, 580
  %v2033 = vld [vmem:[%s2032] sm:$0xf]
  %v2034 = vunpack.c.l.bf16 %v2033
  %v2035 = vunpack.c.h.bf16 %v2033
  %s2036 = scalar_lea.vmem %s1, 1604
  %s2037 = scalar_lea.vmem %s2036, 4294967292
  %v2038 = vpack.c.bf16 %v2034, %v372
  %2039 = vst [vmem:[%s2037] sm:$0xff] %v2038
  %s2040 = scalar_lea.vmem %s0, 1860
  %v2041 = vld [vmem:[%s2040] sm:$0xf]
  %v2042 = vunpack.c.l.bf16 %v2041
  %v2043 = vunpack.c.h.bf16 %v2041
  %s2044 = scalar_lea.vmem %s1, 324
  %s2045 = scalar_lea.vmem %s2044, 4294967292
  %v2046 = vpack.c.bf16 %v2042, %v377
  %2047 = vst [vmem:[%s2045] sm:$0xff] %v2046
  %s2048 = scalar_lea.vmem %s0, 1092
  %v2049 = vld [vmem:[%s2048] sm:$0xf]
  %v2050 = vunpack.c.l.bf16 %v2049
  %v2051 = vunpack.c.h.bf16 %v2049
  %s2052 = scalar_lea.vmem %s1, 1092
  %s2053 = scalar_lea.vmem %s2052, 4294967292
  %v2054 = vpack.c.bf16 %v2050, %v382
  %2055 = vst [vmem:[%s2053] sm:$0xff] %v2054
  %s2056 = scalar_lea.vmem %s0, 324
  %v2057 = vld [vmem:[%s2056] sm:$0xf]
  %v2058 = vunpack.c.l.bf16 %v2057
  %v2059 = vunpack.c.h.bf16 %v2057
  %s2060 = scalar_lea.vmem %s1, 1860
  %s2061 = scalar_lea.vmem %s2060, 4294967292
  %v2062 = vpack.c.bf16 %v2058, %v387
  %2063 = vst [vmem:[%s2061] sm:$0xff] %v2062
  %s2064 = scalar_lea.vmem %s0, 1604
  %v2065 = vld [vmem:[%s2064] sm:$0xf]
  %v2066 = vunpack.c.l.bf16 %v2065
  %v2067 = vunpack.c.h.bf16 %v2065
  %s2068 = scalar_lea.vmem %s1, 580
  %s2069 = scalar_lea.vmem %s2068, 4294967292
  %v2070 = vpack.c.bf16 %v2066, %v392
  %2071 = vst [vmem:[%s2069] sm:$0xff] %v2070
  %s2072 = scalar_lea.vmem %s0, 836
  %v2073 = vld [vmem:[%s2072] sm:$0xf]
  %v2074 = vunpack.c.l.bf16 %v2073
  %v2075 = vunpack.c.h.bf16 %v2073
  %s2076 = scalar_lea.vmem %s1, 1348
  %s2077 = scalar_lea.vmem %s2076, 4294967292
  %v2078 = vpack.c.bf16 %v2074, %v397
  %2079 = vst [vmem:[%s2077] sm:$0xff] %v2078
  %s2080 = scalar_lea.vmem %s0, 68
  %v2081 = vld [vmem:[%s2080] sm:$0xf]
  %v2082 = vunpack.c.l.bf16 %v2081
  %v2083 = vunpack.c.h.bf16 %v2081
  %s2084 = scalar_lea.vmem %s1, 2116
  %s2085 = scalar_lea.vmem %s2084, 4294967292
  %v2086 = vpack.c.bf16 %v2082, %v402
  %2087 = vst [vmem:[%s2085] sm:$0xff] %v2086
  %s2088 = scalar_lea.vmem %s0, 2124
  %v2089 = vld [vmem:[%s2088] sm:$0xf]
  %v2090 = vunpack.c.l.bf16 %v2089
  %v2091 = vunpack.c.h.bf16 %v2089
  %s2092 = scalar_lea.vmem %s1, 76
  %s2093 = scalar_lea.vmem %s2092, 4294967292
  %v2094 = vpack.c.bf16 %v2090, %v407
  %2095 = vst [vmem:[%s2093] sm:$0xff] %v2094
  %s2096 = scalar_lea.vmem %s0, 1356
  %v2097 = vld [vmem:[%s2096] sm:$0xf]
  %v2098 = vunpack.c.l.bf16 %v2097
  %v2099 = vunpack.c.h.bf16 %v2097
  %s2100 = scalar_lea.vmem %s1, 844
  %s2101 = scalar_lea.vmem %s2100, 4294967292
  %v2102 = vpack.c.bf16 %v2098, %v412
  %2103 = vst [vmem:[%s2101] sm:$0xff] %v2102
  %s2104 = scalar_lea.vmem %s0, 588
  %v2105 = vld [vmem:[%s2104] sm:$0xf]
  %v2106 = vunpack.c.l.bf16 %v2105
  %v2107 = vunpack.c.h.bf16 %v2105
  %s2108 = scalar_lea.vmem %s1, 1612
  %s2109 = scalar_lea.vmem %s2108, 4294967292
  %v2110 = vpack.c.bf16 %v2106, %v417
  %2111 = vst [vmem:[%s2109] sm:$0xff] %v2110
  %s2112 = scalar_lea.vmem %s0, 1868
  %v2113 = vld [vmem:[%s2112] sm:$0xf]
  %v2114 = vunpack.c.l.bf16 %v2113
  %v2115 = vunpack.c.h.bf16 %v2113
  %s2116 = scalar_lea.vmem %s1, 332
  %s2117 = scalar_lea.vmem %s2116, 4294967292
  %v2118 = vpack.c.bf16 %v2114, %v422
  %2119 = vst [vmem:[%s2117] sm:$0xff] %v2118
  %s2120 = scalar_lea.vmem %s0, 1100
  %v2121 = vld [vmem:[%s2120] sm:$0xf]
  %v2122 = vunpack.c.l.bf16 %v2121
  %v2123 = vunpack.c.h.bf16 %v2121
  %s2124 = scalar_lea.vmem %s1, 1100
  %s2125 = scalar_lea.vmem %s2124, 4294967292
  %v2126 = vpack.c.bf16 %v2122, %v427
  %2127 = vst [vmem:[%s2125] sm:$0xff] %v2126
  %s2128 = scalar_lea.vmem %s0, 332
  %v2129 = vld [vmem:[%s2128] sm:$0xf]
  %v2130 = vunpack.c.l.bf16 %v2129
  %v2131 = vunpack.c.h.bf16 %v2129
  %s2132 = scalar_lea.vmem %s1, 1868
  %s2133 = scalar_lea.vmem %s2132, 4294967292
  %v2134 = vpack.c.bf16 %v2130, %v432
  %2135 = vst [vmem:[%s2133] sm:$0xff] %v2134
  %s2136 = scalar_lea.vmem %s0, 1612
  %v2137 = vld [vmem:[%s2136] sm:$0xf]
  %v2138 = vunpack.c.l.bf16 %v2137
  %v2139 = vunpack.c.h.bf16 %v2137
  %s2140 = scalar_lea.vmem %s1, 588
  %s2141 = scalar_lea.vmem %s2140, 4294967292
  %v2142 = vpack.c.bf16 %v2138, %v437
  %2143 = vst [vmem:[%s2141] sm:$0xff] %v2142
  %s2144 = scalar_lea.vmem %s0, 844
  %v2145 = vld [vmem:[%s2144] sm:$0xf]
  %v2146 = vunpack.c.l.bf16 %v2145
  %v2147 = vunpack.c.h.bf16 %v2145
  %s2148 = scalar_lea.vmem %s1, 1356
  %s2149 = scalar_lea.vmem %s2148, 4294967292
  %v2150 = vpack.c.bf16 %v2146, %v442
  %2151 = vst [vmem:[%s2149] sm:$0xff] %v2150
  %s2152 = scalar_lea.vmem %s0, 76
  %v2153 = vld [vmem:[%s2152] sm:$0xf]
  %v2154 = vunpack.c.l.bf16 %v2153
  %v2155 = vunpack.c.h.bf16 %v2153
  %s2156 = scalar_lea.vmem %s1, 2124
  %s2157 = scalar_lea.vmem %s2156, 4294967292
  %v2158 = vpack.c.bf16 %v2154, %v447
  %2159 = vst [vmem:[%s2157] sm:$0xff] %v2158
  %s2160 = scalar_lea.vmem %s0, 2132
  %v2161 = vld [vmem:[%s2160] sm:$0xf]
  %v2162 = vunpack.c.l.bf16 %v2161
  %v2163 = vunpack.c.h.bf16 %v2161
  %s2164 = scalar_lea.vmem %s1, 84
  %s2165 = scalar_lea.vmem %s2164, 4294967292
  %v2166 = vpack.c.bf16 %v2162, %v452
  %2167 = vst [vmem:[%s2165] sm:$0xff] %v2166
  %s2168 = scalar_lea.vmem %s0, 1364
  %v2169 = vld [vmem:[%s2168] sm:$0xf]
  %v2170 = vunpack.c.l.bf16 %v2169
  %v2171 = vunpack.c.h.bf16 %v2169
  %s2172 = scalar_lea.vmem %s1, 852
  %s2173 = scalar_lea.vmem %s2172, 4294967292
  %v2174 = vpack.c.bf16 %v2170, %v457
  %2175 = vst [vmem:[%s2173] sm:$0xff] %v2174
  %s2176 = scalar_lea.vmem %s0, 596
  %v2177 = vld [vmem:[%s2176] sm:$0xf]
  %v2178 = vunpack.c.l.bf16 %v2177
  %v2179 = vunpack.c.h.bf16 %v2177
  %s2180 = scalar_lea.vmem %s1, 1620
  %s2181 = scalar_lea.vmem %s2180, 4294967292
  %v2182 = vpack.c.bf16 %v2178, %v462
  %2183 = vst [vmem:[%s2181] sm:$0xff] %v2182
  %s2184 = scalar_lea.vmem %s0, 1876
  %v2185 = vld [vmem:[%s2184] sm:$0xf]
  %v2186 = vunpack.c.l.bf16 %v2185
  %v2187 = vunpack.c.h.bf16 %v2185
  %s2188 = scalar_lea.vmem %s1, 340
  %s2189 = scalar_lea.vmem %s2188, 4294967292
  %v2190 = vpack.c.bf16 %v2186, %v467
  %2191 = vst [vmem:[%s2189] sm:$0xff] %v2190
  %s2192 = scalar_lea.vmem %s0, 1108
  %v2193 = vld [vmem:[%s2192] sm:$0xf]
  %v2194 = vunpack.c.l.bf16 %v2193
  %v2195 = vunpack.c.h.bf16 %v2193
  %s2196 = scalar_lea.vmem %s1, 1108
  %s2197 = scalar_lea.vmem %s2196, 4294967292
  %v2198 = vpack.c.bf16 %v2194, %v472
  %2199 = vst [vmem:[%s2197] sm:$0xff] %v2198
  %s2200 = scalar_lea.vmem %s0, 340
  %v2201 = vld [vmem:[%s2200] sm:$0xf]
  %v2202 = vunpack.c.l.bf16 %v2201
  %v2203 = vunpack.c.h.bf16 %v2201
  %s2204 = scalar_lea.vmem %s1, 1876
  %s2205 = scalar_lea.vmem %s2204, 4294967292
  %v2206 = vpack.c.bf16 %v2202, %v477
  %2207 = vst [vmem:[%s2205] sm:$0xff] %v2206
  %s2208 = scalar_lea.vmem %s0, 1620
  %v2209 = vld [vmem:[%s2208] sm:$0xf]
  %v2210 = vunpack.c.l.bf16 %v2209
  %v2211 = vunpack.c.h.bf16 %v2209
  %s2212 = scalar_lea.vmem %s1, 596
  %s2213 = scalar_lea.vmem %s2212, 4294967292
  %v2214 = vpack.c.bf16 %v2210, %v482
  %2215 = vst [vmem:[%s2213] sm:$0xff] %v2214
  %s2216 = scalar_lea.vmem %s0, 852
  %v2217 = vld [vmem:[%s2216] sm:$0xf]
  %v2218 = vunpack.c.l.bf16 %v2217
  %v2219 = vunpack.c.h.bf16 %v2217
  %s2220 = scalar_lea.vmem %s1, 1364
  %s2221 = scalar_lea.vmem %s2220, 4294967292
  %v2222 = vpack.c.bf16 %v2218, %v487
  %2223 = vst [vmem:[%s2221] sm:$0xff] %v2222
  %s2224 = scalar_lea.vmem %s0, 84
  %v2225 = vld [vmem:[%s2224] sm:$0xf]
  %v2226 = vunpack.c.l.bf16 %v2225
  %v2227 = vunpack.c.h.bf16 %v2225
  %s2228 = scalar_lea.vmem %s1, 2132
  %s2229 = scalar_lea.vmem %s2228, 4294967292
  %v2230 = vpack.c.bf16 %v2226, %v492
  %2231 = vst [vmem:[%s2229] sm:$0xff] %v2230
  %s2232 = scalar_lea.vmem %s0, 2140
  %v2233 = vld [vmem:[%s2232] sm:$0xf]
  %v2234 = vunpack.c.l.bf16 %v2233
  %v2235 = vunpack.c.h.bf16 %v2233
  %s2236 = scalar_lea.vmem %s1, 92
  %s2237 = scalar_lea.vmem %s2236, 4294967292
  %v2238 = vpack.c.bf16 %v2234, %v497
  %2239 = vst [vmem:[%s2237] sm:$0xff] %v2238
  %s2240 = scalar_lea.vmem %s0, 1372
  %v2241 = vld [vmem:[%s2240] sm:$0xf]
  %v2242 = vunpack.c.l.bf16 %v2241
  %v2243 = vunpack.c.h.bf16 %v2241
  %s2244 = scalar_lea.vmem %s1, 860
  %s2245 = scalar_lea.vmem %s2244, 4294967292
  %v2246 = vpack.c.bf16 %v2242, %v502
  %2247 = vst [vmem:[%s2245] sm:$0xff] %v2246
  %s2248 = scalar_lea.vmem %s0, 604
  %v2249 = vld [vmem:[%s2248] sm:$0xf]
  %v2250 = vunpack.c.l.bf16 %v2249
  %v2251 = vunpack.c.h.bf16 %v2249
  %s2252 = scalar_lea.vmem %s1, 1628
  %s2253 = scalar_lea.vmem %s2252, 4294967292
  %v2254 = vpack.c.bf16 %v2250, %v507
  %2255 = vst [vmem:[%s2253] sm:$0xff] %v2254
  %s2256 = scalar_lea.vmem %s0, 1884
  %v2257 = vld [vmem:[%s2256] sm:$0xf]
  %v2258 = vunpack.c.l.bf16 %v2257
  %v2259 = vunpack.c.h.bf16 %v2257
  %s2260 = scalar_lea.vmem %s1, 348
  %s2261 = scalar_lea.vmem %s2260, 4294967292
  %v2262 = vpack.c.bf16 %v2258, %v512
  %2263 = vst [vmem:[%s2261] sm:$0xff] %v2262
  %s2264 = scalar_lea.vmem %s0, 1116
  %v2265 = vld [vmem:[%s2264] sm:$0xf]
  %v2266 = vunpack.c.l.bf16 %v2265
  %v2267 = vunpack.c.h.bf16 %v2265
  %s2268 = scalar_lea.vmem %s1, 1116
  %s2269 = scalar_lea.vmem %s2268, 4294967292
  %v2270 = vpack.c.bf16 %v2266, %v517
  %2271 = vst [vmem:[%s2269] sm:$0xff] %v2270
  %s2272 = scalar_lea.vmem %s0, 348
  %v2273 = vld [vmem:[%s2272] sm:$0xf]
  %v2274 = vunpack.c.l.bf16 %v2273
  %v2275 = vunpack.c.h.bf16 %v2273
  %s2276 = scalar_lea.vmem %s1, 1884
  %s2277 = scalar_lea.vmem %s2276, 4294967292
  %v2278 = vpack.c.bf16 %v2274, %v522
  %2279 = vst [vmem:[%s2277] sm:$0xff] %v2278
  %s2280 = scalar_lea.vmem %s0, 1628
  %v2281 = vld [vmem:[%s2280] sm:$0xf]
  %v2282 = vunpack.c.l.bf16 %v2281
  %v2283 = vunpack.c.h.bf16 %v2281
  %s2284 = scalar_lea.vmem %s1, 604
  %s2285 = scalar_lea.vmem %s2284, 4294967292
  %v2286 = vpack.c.bf16 %v2282, %v527
  %2287 = vst [vmem:[%s2285] sm:$0xff] %v2286
  %s2288 = scalar_lea.vmem %s0, 860
  %v2289 = vld [vmem:[%s2288] sm:$0xf]
  %v2290 = vunpack.c.l.bf16 %v2289
  %v2291 = vunpack.c.h.bf16 %v2289
  %s2292 = scalar_lea.vmem %s1, 1372
  %s2293 = scalar_lea.vmem %s2292, 4294967292
  %v2294 = vpack.c.bf16 %v2290, %v532
  %2295 = vst [vmem:[%s2293] sm:$0xff] %v2294
  %s2296 = scalar_lea.vmem %s0, 92
  %v2297 = vld [vmem:[%s2296] sm:$0xf]
  %v2298 = vunpack.c.l.bf16 %v2297
  %v2299 = vunpack.c.h.bf16 %v2297
  %s2300 = scalar_lea.vmem %s1, 2140
  %s2301 = scalar_lea.vmem %s2300, 4294967292
  %v2302 = vpack.c.bf16 %v2298, %v537
  %2303 = vst [vmem:[%s2301] sm:$0xff] %v2302
  %s2304 = scalar_lea.vmem %s0, 2148
  %v2305 = vld [vmem:[%s2304] sm:$0xf]
  %v2306 = vunpack.c.l.bf16 %v2305
  %v2307 = vunpack.c.h.bf16 %v2305
  %s2308 = scalar_lea.vmem %s1, 100
  %s2309 = scalar_lea.vmem %s2308, 4294967292
  %v2310 = vpack.c.bf16 %v2306, %v542
  %2311 = vst [vmem:[%s2309] sm:$0xff] %v2310
  %s2312 = scalar_lea.vmem %s0, 1380
  %v2313 = vld [vmem:[%s2312] sm:$0xf]
  %v2314 = vunpack.c.l.bf16 %v2313
  %v2315 = vunpack.c.h.bf16 %v2313
  %s2316 = scalar_lea.vmem %s1, 868
  %s2317 = scalar_lea.vmem %s2316, 4294967292
  %v2318 = vpack.c.bf16 %v2314, %v547
  %2319 = vst [vmem:[%s2317] sm:$0xff] %v2318
  %s2320 = scalar_lea.vmem %s0, 612
  %v2321 = vld [vmem:[%s2320] sm:$0xf]
  %v2322 = vunpack.c.l.bf16 %v2321
  %v2323 = vunpack.c.h.bf16 %v2321
  %s2324 = scalar_lea.vmem %s1, 1636
  %s2325 = scalar_lea.vmem %s2324, 4294967292
  %v2326 = vpack.c.bf16 %v2322, %v552
  %2327 = vst [vmem:[%s2325] sm:$0xff] %v2326
  %s2328 = scalar_lea.vmem %s0, 1892
  %v2329 = vld [vmem:[%s2328] sm:$0xf]
  %v2330 = vunpack.c.l.bf16 %v2329
  %v2331 = vunpack.c.h.bf16 %v2329
  %s2332 = scalar_lea.vmem %s1, 356
  %s2333 = scalar_lea.vmem %s2332, 4294967292
  %v2334 = vpack.c.bf16 %v2330, %v557
  %2335 = vst [vmem:[%s2333] sm:$0xff] %v2334
  %s2336 = scalar_lea.vmem %s0, 1124
  %v2337 = vld [vmem:[%s2336] sm:$0xf]
  %v2338 = vunpack.c.l.bf16 %v2337
  %v2339 = vunpack.c.h.bf16 %v2337
  %s2340 = scalar_lea.vmem %s1, 1124
  %s2341 = scalar_lea.vmem %s2340, 4294967292
  %v2342 = vpack.c.bf16 %v2338, %v562
  %2343 = vst [vmem:[%s2341] sm:$0xff] %v2342
  %s2344 = scalar_lea.vmem %s0, 356
  %v2345 = vld [vmem:[%s2344] sm:$0xf]
  %v2346 = vunpack.c.l.bf16 %v2345
  %v2347 = vunpack.c.h.bf16 %v2345
  %s2348 = scalar_lea.vmem %s1, 1892
  %s2349 = scalar_lea.vmem %s2348, 4294967292
  %v2350 = vpack.c.bf16 %v2346, %v567
  %2351 = vst [vmem:[%s2349] sm:$0xff] %v2350
  %s2352 = scalar_lea.vmem %s0, 1636
  %v2353 = vld [vmem:[%s2352] sm:$0xf]
  %v2354 = vunpack.c.l.bf16 %v2353
  %v2355 = vunpack.c.h.bf16 %v2353
  %s2356 = scalar_lea.vmem %s1, 612
  %s2357 = scalar_lea.vmem %s2356, 4294967292
  %v2358 = vpack.c.bf16 %v2354, %v572
  %2359 = vst [vmem:[%s2357] sm:$0xff] %v2358
  %s2360 = scalar_lea.vmem %s0, 868
  %v2361 = vld [vmem:[%s2360] sm:$0xf]
  %v2362 = vunpack.c.l.bf16 %v2361
  %v2363 = vunpack.c.h.bf16 %v2361
  %s2364 = scalar_lea.vmem %s1, 1380
  %s2365 = scalar_lea.vmem %s2364, 4294967292
  %v2366 = vpack.c.bf16 %v2362, %v577
  %2367 = vst [vmem:[%s2365] sm:$0xff] %v2366
  %s2368 = scalar_lea.vmem %s0, 100
  %v2369 = vld [vmem:[%s2368] sm:$0xf]
  %v2370 = vunpack.c.l.bf16 %v2369
  %v2371 = vunpack.c.h.bf16 %v2369
  %s2372 = scalar_lea.vmem %s1, 2148
  %s2373 = scalar_lea.vmem %s2372, 4294967292
  %v2374 = vpack.c.bf16 %v2370, %v582
  %2375 = vst [vmem:[%s2373] sm:$0xff] %v2374
  %s2376 = scalar_lea.vmem %s0, 2156
  %v2377 = vld [vmem:[%s2376] sm:$0xf]
  %v2378 = vunpack.c.l.bf16 %v2377
  %v2379 = vunpack.c.h.bf16 %v2377
  %s2380 = scalar_lea.vmem %s1, 108
  %s2381 = scalar_lea.vmem %s2380, 4294967292
  %v2382 = vpack.c.bf16 %v2378, %v587
  %2383 = vst [vmem:[%s2381] sm:$0xff] %v2382
  %s2384 = scalar_lea.vmem %s0, 1388
  %v2385 = vld [vmem:[%s2384] sm:$0xf]
  %v2386 = vunpack.c.l.bf16 %v2385
  %v2387 = vunpack.c.h.bf16 %v2385
  %s2388 = scalar_lea.vmem %s1, 876
  %s2389 = scalar_lea.vmem %s2388, 4294967292
  %v2390 = vpack.c.bf16 %v2386, %v592
  %2391 = vst [vmem:[%s2389] sm:$0xff] %v2390
  %s2392 = scalar_lea.vmem %s0, 620
  %v2393 = vld [vmem:[%s2392] sm:$0xf]
  %v2394 = vunpack.c.l.bf16 %v2393
  %v2395 = vunpack.c.h.bf16 %v2393
  %s2396 = scalar_lea.vmem %s1, 1644
  %s2397 = scalar_lea.vmem %s2396, 4294967292
  %v2398 = vpack.c.bf16 %v2394, %v597
  %2399 = vst [vmem:[%s2397] sm:$0xff] %v2398
  %s2400 = scalar_lea.vmem %s0, 1900
  %v2401 = vld [vmem:[%s2400] sm:$0xf]
  %v2402 = vunpack.c.l.bf16 %v2401
  %v2403 = vunpack.c.h.bf16 %v2401
  %s2404 = scalar_lea.vmem %s1, 364
  %s2405 = scalar_lea.vmem %s2404, 4294967292
  %v2406 = vpack.c.bf16 %v2402, %v602
  %2407 = vst [vmem:[%s2405] sm:$0xff] %v2406
  %s2408 = scalar_lea.vmem %s0, 1132
  %v2409 = vld [vmem:[%s2408] sm:$0xf]
  %v2410 = vunpack.c.l.bf16 %v2409
  %v2411 = vunpack.c.h.bf16 %v2409
  %s2412 = scalar_lea.vmem %s1, 1132
  %s2413 = scalar_lea.vmem %s2412, 4294967292
  %v2414 = vpack.c.bf16 %v2410, %v607
  %2415 = vst [vmem:[%s2413] sm:$0xff] %v2414
  %s2416 = scalar_lea.vmem %s0, 364
  %v2417 = vld [vmem:[%s2416] sm:$0xf]
  %v2418 = vunpack.c.l.bf16 %v2417
  %v2419 = vunpack.c.h.bf16 %v2417
  %s2420 = scalar_lea.vmem %s1, 1900
  %s2421 = scalar_lea.vmem %s2420, 4294967292
  %v2422 = vpack.c.bf16 %v2418, %v612
  %2423 = vst [vmem:[%s2421] sm:$0xff] %v2422
  %s2424 = scalar_lea.vmem %s0, 1644
  %v2425 = vld [vmem:[%s2424] sm:$0xf]
  %v2426 = vunpack.c.l.bf16 %v2425
  %v2427 = vunpack.c.h.bf16 %v2425
  %s2428 = scalar_lea.vmem %s1, 620
  %s2429 = scalar_lea.vmem %s2428, 4294967292
  %v2430 = vpack.c.bf16 %v2426, %v617
  %2431 = vst [vmem:[%s2429] sm:$0xff] %v2430
  %s2432 = scalar_lea.vmem %s0, 876
  %v2433 = vld [vmem:[%s2432] sm:$0xf]
  %v2434 = vunpack.c.l.bf16 %v2433
  %v2435 = vunpack.c.h.bf16 %v2433
  %s2436 = scalar_lea.vmem %s1, 1388
  %s2437 = scalar_lea.vmem %s2436, 4294967292
  %v2438 = vpack.c.bf16 %v2434, %v622
  %2439 = vst [vmem:[%s2437] sm:$0xff] %v2438
  %s2440 = scalar_lea.vmem %s0, 108
  %v2441 = vld [vmem:[%s2440] sm:$0xf]
  %v2442 = vunpack.c.l.bf16 %v2441
  %v2443 = vunpack.c.h.bf16 %v2441
  %s2444 = scalar_lea.vmem %s1, 2156
  %s2445 = scalar_lea.vmem %s2444, 4294967292
  %v2446 = vpack.c.bf16 %v2442, %v627
  %2447 = vst [vmem:[%s2445] sm:$0xff] %v2446
  %s2448 = scalar_lea.vmem %s0, 2164
  %v2449 = vld [vmem:[%s2448] sm:$0xf]
  %v2450 = vunpack.c.l.bf16 %v2449
  %v2451 = vunpack.c.h.bf16 %v2449
  %s2452 = scalar_lea.vmem %s1, 116
  %s2453 = scalar_lea.vmem %s2452, 4294967292
  %v2454 = vpack.c.bf16 %v2450, %v632
  %2455 = vst [vmem:[%s2453] sm:$0xff] %v2454
  %s2456 = scalar_lea.vmem %s0, 1396
  %v2457 = vld [vmem:[%s2456] sm:$0xf]
  %v2458 = vunpack.c.l.bf16 %v2457
  %v2459 = vunpack.c.h.bf16 %v2457
  %s2460 = scalar_lea.vmem %s1, 884
  %s2461 = scalar_lea.vmem %s2460, 4294967292
  %v2462 = vpack.c.bf16 %v2458, %v637
  %2463 = vst [vmem:[%s2461] sm:$0xff] %v2462
  %s2464 = scalar_lea.vmem %s0, 628
  %v2465 = vld [vmem:[%s2464] sm:$0xf]
  %v2466 = vunpack.c.l.bf16 %v2465
  %v2467 = vunpack.c.h.bf16 %v2465
  %s2468 = scalar_lea.vmem %s1, 1652
  %s2469 = scalar_lea.vmem %s2468, 4294967292
  %v2470 = vpack.c.bf16 %v2466, %v642
  %2471 = vst [vmem:[%s2469] sm:$0xff] %v2470
  %s2472 = scalar_lea.vmem %s0, 1908
  %v2473 = vld [vmem:[%s2472] sm:$0xf]
  %v2474 = vunpack.c.l.bf16 %v2473
  %v2475 = vunpack.c.h.bf16 %v2473
  %s2476 = scalar_lea.vmem %s1, 372
  %s2477 = scalar_lea.vmem %s2476, 4294967292
  %v2478 = vpack.c.bf16 %v2474, %v647
  %2479 = vst [vmem:[%s2477] sm:$0xff] %v2478
  %s2480 = scalar_lea.vmem %s0, 1140
  %v2481 = vld [vmem:[%s2480] sm:$0xf]
  %v2482 = vunpack.c.l.bf16 %v2481
  %v2483 = vunpack.c.h.bf16 %v2481
  %s2484 = scalar_lea.vmem %s1, 1140
  %s2485 = scalar_lea.vmem %s2484, 4294967292
  %v2486 = vpack.c.bf16 %v2482, %v652
  %2487 = vst [vmem:[%s2485] sm:$0xff] %v2486
  %s2488 = scalar_lea.vmem %s0, 372
  %v2489 = vld [vmem:[%s2488] sm:$0xf]
  %v2490 = vunpack.c.l.bf16 %v2489
  %v2491 = vunpack.c.h.bf16 %v2489
  %s2492 = scalar_lea.vmem %s1, 1908
  %s2493 = scalar_lea.vmem %s2492, 4294967292
  %v2494 = vpack.c.bf16 %v2490, %v657
  %2495 = vst [vmem:[%s2493] sm:$0xff] %v2494
  %s2496 = scalar_lea.vmem %s0, 1652
  %v2497 = vld [vmem:[%s2496] sm:$0xf]
  %v2498 = vunpack.c.l.bf16 %v2497
  %v2499 = vunpack.c.h.bf16 %v2497
  %s2500 = scalar_lea.vmem %s1, 628
  %s2501 = scalar_lea.vmem %s2500, 4294967292
  %v2502 = vpack.c.bf16 %v2498, %v662
  %2503 = vst [vmem:[%s2501] sm:$0xff] %v2502
  %s2504 = scalar_lea.vmem %s0, 884
  %v2505 = vld [vmem:[%s2504] sm:$0xf]
  %v2506 = vunpack.c.l.bf16 %v2505
  %v2507 = vunpack.c.h.bf16 %v2505
  %s2508 = scalar_lea.vmem %s1, 1396
  %s2509 = scalar_lea.vmem %s2508, 4294967292
  %v2510 = vpack.c.bf16 %v2506, %v667
  %2511 = vst [vmem:[%s2509] sm:$0xff] %v2510
  %s2512 = scalar_lea.vmem %s0, 116
  %v2513 = vld [vmem:[%s2512] sm:$0xf]
  %v2514 = vunpack.c.l.bf16 %v2513
  %v2515 = vunpack.c.h.bf16 %v2513
  %s2516 = scalar_lea.vmem %s1, 2164
  %s2517 = scalar_lea.vmem %s2516, 4294967292
  %v2518 = vpack.c.bf16 %v2514, %v672
  %2519 = vst [vmem:[%s2517] sm:$0xff] %v2518
  %s2520 = scalar_lea.vmem %s0, 2172
  %v2521 = vld [vmem:[%s2520] sm:$0xf]
  %v2522 = vunpack.c.l.bf16 %v2521
  %v2523 = vunpack.c.h.bf16 %v2521
  %s2524 = scalar_lea.vmem %s1, 124
  %s2525 = scalar_lea.vmem %s2524, 4294967292
  %v2526 = vpack.c.bf16 %v2522, %v677
  %2527 = vst [vmem:[%s2525] sm:$0xff] %v2526
  %s2528 = scalar_lea.vmem %s0, 1404
  %v2529 = vld [vmem:[%s2528] sm:$0xf]
  %v2530 = vunpack.c.l.bf16 %v2529
  %v2531 = vunpack.c.h.bf16 %v2529
  %s2532 = scalar_lea.vmem %s1, 892
  %s2533 = scalar_lea.vmem %s2532, 4294967292
  %v2534 = vpack.c.bf16 %v2530, %v682
  %2535 = vst [vmem:[%s2533] sm:$0xff] %v2534
  %s2536 = scalar_lea.vmem %s0, 636
  %v2537 = vld [vmem:[%s2536] sm:$0xf]
  %v2538 = vunpack.c.l.bf16 %v2537
  %v2539 = vunpack.c.h.bf16 %v2537
  %s2540 = scalar_lea.vmem %s1, 1660
  %s2541 = scalar_lea.vmem %s2540, 4294967292
  %v2542 = vpack.c.bf16 %v2538, %v687
  %2543 = vst [vmem:[%s2541] sm:$0xff] %v2542
  %s2544 = scalar_lea.vmem %s0, 1916
  %v2545 = vld [vmem:[%s2544] sm:$0xf]
  %v2546 = vunpack.c.l.bf16 %v2545
  %v2547 = vunpack.c.h.bf16 %v2545
  %s2548 = scalar_lea.vmem %s1, 380
  %s2549 = scalar_lea.vmem %s2548, 4294967292
  %v2550 = vpack.c.bf16 %v2546, %v692
  %2551 = vst [vmem:[%s2549] sm:$0xff] %v2550
  %s2552 = scalar_lea.vmem %s0, 1148
  %v2553 = vld [vmem:[%s2552] sm:$0xf]
  %v2554 = vunpack.c.l.bf16 %v2553
  %v2555 = vunpack.c.h.bf16 %v2553
  %s2556 = scalar_lea.vmem %s1, 1148
  %s2557 = scalar_lea.vmem %s2556, 4294967292
  %v2558 = vpack.c.bf16 %v2554, %v697
  %2559 = vst [vmem:[%s2557] sm:$0xff] %v2558
  %s2560 = scalar_lea.vmem %s0, 380
  %v2561 = vld [vmem:[%s2560] sm:$0xf]
  %v2562 = vunpack.c.l.bf16 %v2561
  %v2563 = vunpack.c.h.bf16 %v2561
  %s2564 = scalar_lea.vmem %s1, 1916
  %s2565 = scalar_lea.vmem %s2564, 4294967292
  %v2566 = vpack.c.bf16 %v2562, %v702
  %2567 = vst [vmem:[%s2565] sm:$0xff] %v2566
  %s2568 = scalar_lea.vmem %s0, 1660
  %v2569 = vld [vmem:[%s2568] sm:$0xf]
  %v2570 = vunpack.c.l.bf16 %v2569
  %v2571 = vunpack.c.h.bf16 %v2569
  %s2572 = scalar_lea.vmem %s1, 636
  %s2573 = scalar_lea.vmem %s2572, 4294967292
  %v2574 = vpack.c.bf16 %v2570, %v707
  %2575 = vst [vmem:[%s2573] sm:$0xff] %v2574
  %s2576 = scalar_lea.vmem %s0, 892
  %v2577 = vld [vmem:[%s2576] sm:$0xf]
  %v2578 = vunpack.c.l.bf16 %v2577
  %v2579 = vunpack.c.h.bf16 %v2577
  %s2580 = scalar_lea.vmem %s1, 1404
  %s2581 = scalar_lea.vmem %s2580, 4294967292
  %v2582 = vpack.c.bf16 %v2578, %v712
  %2583 = vst [vmem:[%s2581] sm:$0xff] %v2582
  %s2584 = scalar_lea.vmem %s0, 124
  %v2585 = vld [vmem:[%s2584] sm:$0xf]
  %v2586 = vunpack.c.l.bf16 %v2585
  %v2587 = vunpack.c.h.bf16 %v2585
  %s2588 = scalar_lea.vmem %s1, 2172
  %s2589 = scalar_lea.vmem %s2588, 4294967292
  %v2590 = vpack.c.bf16 %v2586, %v717
  %2591 = vst [vmem:[%s2589] sm:$0xff] %v2590
  %s2592 = scalar_lea.vmem %s0, 2180
  %v2593 = vld [vmem:[%s2592] sm:$0xf]
  %v2594 = vunpack.c.l.bf16 %v2593
  %v2595 = vunpack.c.h.bf16 %v2593
  %s2596 = scalar_lea.vmem %s1, 132
  %s2597 = scalar_lea.vmem %s2596, 4294967292
  %v2598 = vpack.c.bf16 %v2594, %v722
  %2599 = vst [vmem:[%s2597] sm:$0xff] %v2598
  %s2600 = scalar_lea.vmem %s0, 1412
  %v2601 = vld [vmem:[%s2600] sm:$0xf]
  %v2602 = vunpack.c.l.bf16 %v2601
  %v2603 = vunpack.c.h.bf16 %v2601
  %s2604 = scalar_lea.vmem %s1, 900
  %s2605 = scalar_lea.vmem %s2604, 4294967292
  %v2606 = vpack.c.bf16 %v2602, %v727
  %2607 = vst [vmem:[%s2605] sm:$0xff] %v2606
  %s2608 = scalar_lea.vmem %s0, 644
  %v2609 = vld [vmem:[%s2608] sm:$0xf]
  %v2610 = vunpack.c.l.bf16 %v2609
  %v2611 = vunpack.c.h.bf16 %v2609
  %s2612 = scalar_lea.vmem %s1, 1668
  %s2613 = scalar_lea.vmem %s2612, 4294967292
  %v2614 = vpack.c.bf16 %v2610, %v732
  %2615 = vst [vmem:[%s2613] sm:$0xff] %v2614
  %s2616 = scalar_lea.vmem %s0, 1924
  %v2617 = vld [vmem:[%s2616] sm:$0xf]
  %v2618 = vunpack.c.l.bf16 %v2617
  %v2619 = vunpack.c.h.bf16 %v2617
  %s2620 = scalar_lea.vmem %s1, 388
  %s2621 = scalar_lea.vmem %s2620, 4294967292
  %v2622 = vpack.c.bf16 %v2618, %v737
  %2623 = vst [vmem:[%s2621] sm:$0xff] %v2622
  %s2624 = scalar_lea.vmem %s0, 1156
  %v2625 = vld [vmem:[%s2624] sm:$0xf]
  %v2626 = vunpack.c.l.bf16 %v2625
  %v2627 = vunpack.c.h.bf16 %v2625
  %s2628 = scalar_lea.vmem %s1, 1156
  %s2629 = scalar_lea.vmem %s2628, 4294967292
  %v2630 = vpack.c.bf16 %v2626, %v742
  %2631 = vst [vmem:[%s2629] sm:$0xff] %v2630
  %s2632 = scalar_lea.vmem %s0, 388
  %v2633 = vld [vmem:[%s2632] sm:$0xf]
  %v2634 = vunpack.c.l.bf16 %v2633
  %v2635 = vunpack.c.h.bf16 %v2633
  %s2636 = scalar_lea.vmem %s1, 1924
  %s2637 = scalar_lea.vmem %s2636, 4294967292
  %v2638 = vpack.c.bf16 %v2634, %v747
  %2639 = vst [vmem:[%s2637] sm:$0xff] %v2638
  %s2640 = scalar_lea.vmem %s0, 1668
  %v2641 = vld [vmem:[%s2640] sm:$0xf]
  %v2642 = vunpack.c.l.bf16 %v2641
  %v2643 = vunpack.c.h.bf16 %v2641
  %s2644 = scalar_lea.vmem %s1, 644
  %s2645 = scalar_lea.vmem %s2644, 4294967292
  %v2646 = vpack.c.bf16 %v2642, %v752
  %2647 = vst [vmem:[%s2645] sm:$0xff] %v2646
  %s2648 = scalar_lea.vmem %s0, 900
  %v2649 = vld [vmem:[%s2648] sm:$0xf]
  %v2650 = vunpack.c.l.bf16 %v2649
  %v2651 = vunpack.c.h.bf16 %v2649
  %s2652 = scalar_lea.vmem %s1, 1412
  %s2653 = scalar_lea.vmem %s2652, 4294967292
  %v2654 = vpack.c.bf16 %v2650, %v757
  %2655 = vst [vmem:[%s2653] sm:$0xff] %v2654
  %s2656 = scalar_lea.vmem %s0, 132
  %v2657 = vld [vmem:[%s2656] sm:$0xf]
  %v2658 = vunpack.c.l.bf16 %v2657
  %v2659 = vunpack.c.h.bf16 %v2657
  %s2660 = scalar_lea.vmem %s1, 2180
  %s2661 = scalar_lea.vmem %s2660, 4294967292
  %v2662 = vpack.c.bf16 %v2658, %v762
  %2663 = vst [vmem:[%s2661] sm:$0xff] %v2662
  %s2664 = scalar_lea.vmem %s0, 2188
  %v2665 = vld [vmem:[%s2664] sm:$0xf]
  %v2666 = vunpack.c.l.bf16 %v2665
  %v2667 = vunpack.c.h.bf16 %v2665
  %s2668 = scalar_lea.vmem %s1, 140
  %s2669 = scalar_lea.vmem %s2668, 4294967292
  %v2670 = vpack.c.bf16 %v2666, %v767
  %2671 = vst [vmem:[%s2669] sm:$0xff] %v2670
  %s2672 = scalar_lea.vmem %s0, 1420
  %v2673 = vld [vmem:[%s2672] sm:$0xf]
  %v2674 = vunpack.c.l.bf16 %v2673
  %v2675 = vunpack.c.h.bf16 %v2673
  %s2676 = scalar_lea.vmem %s1, 908
  %s2677 = scalar_lea.vmem %s2676, 4294967292
  %v2678 = vpack.c.bf16 %v2674, %v772
  %2679 = vst [vmem:[%s2677] sm:$0xff] %v2678
  %s2680 = scalar_lea.vmem %s0, 652
  %v2681 = vld [vmem:[%s2680] sm:$0xf]
  %v2682 = vunpack.c.l.bf16 %v2681
  %v2683 = vunpack.c.h.bf16 %v2681
  %s2684 = scalar_lea.vmem %s1, 1676
  %s2685 = scalar_lea.vmem %s2684, 4294967292
  %v2686 = vpack.c.bf16 %v2682, %v777
  %2687 = vst [vmem:[%s2685] sm:$0xff] %v2686
  %s2688 = scalar_lea.vmem %s0, 1932
  %v2689 = vld [vmem:[%s2688] sm:$0xf]
  %v2690 = vunpack.c.l.bf16 %v2689
  %v2691 = vunpack.c.h.bf16 %v2689
  %s2692 = scalar_lea.vmem %s1, 396
  %s2693 = scalar_lea.vmem %s2692, 4294967292
  %v2694 = vpack.c.bf16 %v2690, %v782
  %2695 = vst [vmem:[%s2693] sm:$0xff] %v2694
  %s2696 = scalar_lea.vmem %s0, 1164
  %v2697 = vld [vmem:[%s2696] sm:$0xf]
  %v2698 = vunpack.c.l.bf16 %v2697
  %v2699 = vunpack.c.h.bf16 %v2697
  %s2700 = scalar_lea.vmem %s1, 1164
  %s2701 = scalar_lea.vmem %s2700, 4294967292
  %v2702 = vpack.c.bf16 %v2698, %v787
  %2703 = vst [vmem:[%s2701] sm:$0xff] %v2702
  %s2704 = scalar_lea.vmem %s0, 396
  %v2705 = vld [vmem:[%s2704] sm:$0xf]
  %v2706 = vunpack.c.l.bf16 %v2705
  %v2707 = vunpack.c.h.bf16 %v2705
  %s2708 = scalar_lea.vmem %s1, 1932
  %s2709 = scalar_lea.vmem %s2708, 4294967292
  %v2710 = vpack.c.bf16 %v2706, %v792
  %2711 = vst [vmem:[%s2709] sm:$0xff] %v2710
  %s2712 = scalar_lea.vmem %s0, 1676
  %v2713 = vld [vmem:[%s2712] sm:$0xf]
  %v2714 = vunpack.c.l.bf16 %v2713
  %v2715 = vunpack.c.h.bf16 %v2713
  %s2716 = scalar_lea.vmem %s1, 652
  %s2717 = scalar_lea.vmem %s2716, 4294967292
  %v2718 = vpack.c.bf16 %v2714, %v797
  %2719 = vst [vmem:[%s2717] sm:$0xff] %v2718
  %s2720 = scalar_lea.vmem %s0, 908
  %v2721 = vld [vmem:[%s2720] sm:$0xf]
  %v2722 = vunpack.c.l.bf16 %v2721
  %v2723 = vunpack.c.h.bf16 %v2721
  %s2724 = scalar_lea.vmem %s1, 1420
  %s2725 = scalar_lea.vmem %s2724, 4294967292
  %v2726 = vpack.c.bf16 %v2722, %v802
  %2727 = vst [vmem:[%s2725] sm:$0xff] %v2726
  %s2728 = scalar_lea.vmem %s0, 140
  %v2729 = vld [vmem:[%s2728] sm:$0xf]
  %v2730 = vunpack.c.l.bf16 %v2729
  %v2731 = vunpack.c.h.bf16 %v2729
  %s2732 = scalar_lea.vmem %s1, 2188
  %s2733 = scalar_lea.vmem %s2732, 4294967292
  %v2734 = vpack.c.bf16 %v2730, %v807
  %2735 = vst [vmem:[%s2733] sm:$0xff] %v2734
  %s2736 = scalar_lea.vmem %s0, 2196
  %v2737 = vld [vmem:[%s2736] sm:$0xf]
  %v2738 = vunpack.c.l.bf16 %v2737
  %v2739 = vunpack.c.h.bf16 %v2737
  %s2740 = scalar_lea.vmem %s1, 148
  %s2741 = scalar_lea.vmem %s2740, 4294967292
  %v2742 = vpack.c.bf16 %v2738, %v812
  %2743 = vst [vmem:[%s2741] sm:$0xff] %v2742
  %s2744 = scalar_lea.vmem %s0, 1428
  %v2745 = vld [vmem:[%s2744] sm:$0xf]
  %v2746 = vunpack.c.l.bf16 %v2745
  %v2747 = vunpack.c.h.bf16 %v2745
  %s2748 = scalar_lea.vmem %s1, 916
  %s2749 = scalar_lea.vmem %s2748, 4294967292
  %v2750 = vpack.c.bf16 %v2746, %v817
  %2751 = vst [vmem:[%s2749] sm:$0xff] %v2750
  %s2752 = scalar_lea.vmem %s0, 660
  %v2753 = vld [vmem:[%s2752] sm:$0xf]
  %v2754 = vunpack.c.l.bf16 %v2753
  %v2755 = vunpack.c.h.bf16 %v2753
  %s2756 = scalar_lea.vmem %s1, 1684
  %s2757 = scalar_lea.vmem %s2756, 4294967292
  %v2758 = vpack.c.bf16 %v2754, %v822
  %2759 = vst [vmem:[%s2757] sm:$0xff] %v2758
  %s2760 = scalar_lea.vmem %s0, 1940
  %v2761 = vld [vmem:[%s2760] sm:$0xf]
  %v2762 = vunpack.c.l.bf16 %v2761
  %v2763 = vunpack.c.h.bf16 %v2761
  %s2764 = scalar_lea.vmem %s1, 404
  %s2765 = scalar_lea.vmem %s2764, 4294967292
  %v2766 = vpack.c.bf16 %v2762, %v827
  %2767 = vst [vmem:[%s2765] sm:$0xff] %v2766
  %s2768 = scalar_lea.vmem %s0, 1172
  %v2769 = vld [vmem:[%s2768] sm:$0xf]
  %v2770 = vunpack.c.l.bf16 %v2769
  %v2771 = vunpack.c.h.bf16 %v2769
  %s2772 = scalar_lea.vmem %s1, 1172
  %s2773 = scalar_lea.vmem %s2772, 4294967292
  %v2774 = vpack.c.bf16 %v2770, %v832
  %2775 = vst [vmem:[%s2773] sm:$0xff] %v2774
  %s2776 = scalar_lea.vmem %s0, 404
  %v2777 = vld [vmem:[%s2776] sm:$0xf]
  %v2778 = vunpack.c.l.bf16 %v2777
  %v2779 = vunpack.c.h.bf16 %v2777
  %s2780 = scalar_lea.vmem %s1, 1940
  %s2781 = scalar_lea.vmem %s2780, 4294967292
  %v2782 = vpack.c.bf16 %v2778, %v837
  %2783 = vst [vmem:[%s2781] sm:$0xff] %v2782
  %s2784 = scalar_lea.vmem %s0, 1684
  %v2785 = vld [vmem:[%s2784] sm:$0xf]
  %v2786 = vunpack.c.l.bf16 %v2785
  %v2787 = vunpack.c.h.bf16 %v2785
  %s2788 = scalar_lea.vmem %s1, 660
  %s2789 = scalar_lea.vmem %s2788, 4294967292
  %v2790 = vpack.c.bf16 %v2786, %v842
  %2791 = vst [vmem:[%s2789] sm:$0xff] %v2790
  %s2792 = scalar_lea.vmem %s0, 916
  %v2793 = vld [vmem:[%s2792] sm:$0xf]
  %v2794 = vunpack.c.l.bf16 %v2793
  %v2795 = vunpack.c.h.bf16 %v2793
  %s2796 = scalar_lea.vmem %s1, 1428
  %s2797 = scalar_lea.vmem %s2796, 4294967292
  %v2798 = vpack.c.bf16 %v2794, %v847
  %2799 = vst [vmem:[%s2797] sm:$0xff] %v2798
  %s2800 = scalar_lea.vmem %s0, 148
  %v2801 = vld [vmem:[%s2800] sm:$0xf]
  %v2802 = vunpack.c.l.bf16 %v2801
  %v2803 = vunpack.c.h.bf16 %v2801
  %s2804 = scalar_lea.vmem %s1, 2196
  %s2805 = scalar_lea.vmem %s2804, 4294967292
  %v2806 = vpack.c.bf16 %v2802, %v852
  %2807 = vst [vmem:[%s2805] sm:$0xff] %v2806
  %s2808 = scalar_lea.vmem %s0, 2204
  %v2809 = vld [vmem:[%s2808] sm:$0xf]
  %v2810 = vunpack.c.l.bf16 %v2809
  %v2811 = vunpack.c.h.bf16 %v2809
  %s2812 = scalar_lea.vmem %s1, 156
  %s2813 = scalar_lea.vmem %s2812, 4294967292
  %v2814 = vpack.c.bf16 %v2810, %v857
  %2815 = vst [vmem:[%s2813] sm:$0xff] %v2814
  %s2816 = scalar_lea.vmem %s0, 1436
  %v2817 = vld [vmem:[%s2816] sm:$0xf]
  %v2818 = vunpack.c.l.bf16 %v2817
  %v2819 = vunpack.c.h.bf16 %v2817
  %s2820 = scalar_lea.vmem %s1, 924
  %s2821 = scalar_lea.vmem %s2820, 4294967292
  %v2822 = vpack.c.bf16 %v2818, %v862
  %2823 = vst [vmem:[%s2821] sm:$0xff] %v2822
  %s2824 = scalar_lea.vmem %s0, 668
  %v2825 = vld [vmem:[%s2824] sm:$0xf]
  %v2826 = vunpack.c.l.bf16 %v2825
  %v2827 = vunpack.c.h.bf16 %v2825
  %s2828 = scalar_lea.vmem %s1, 1692
  %s2829 = scalar_lea.vmem %s2828, 4294967292
  %v2830 = vpack.c.bf16 %v2826, %v867
  %2831 = vst [vmem:[%s2829] sm:$0xff] %v2830
  %s2832 = scalar_lea.vmem %s0, 1948
  %v2833 = vld [vmem:[%s2832] sm:$0xf]
  %v2834 = vunpack.c.l.bf16 %v2833
  %v2835 = vunpack.c.h.bf16 %v2833
  %s2836 = scalar_lea.vmem %s1, 412
  %s2837 = scalar_lea.vmem %s2836, 4294967292
  %v2838 = vpack.c.bf16 %v2834, %v872
  %2839 = vst [vmem:[%s2837] sm:$0xff] %v2838
  %s2840 = scalar_lea.vmem %s0, 1180
  %v2841 = vld [vmem:[%s2840] sm:$0xf]
  %v2842 = vunpack.c.l.bf16 %v2841
  %v2843 = vunpack.c.h.bf16 %v2841
  %s2844 = scalar_lea.vmem %s1, 1180
  %s2845 = scalar_lea.vmem %s2844, 4294967292
  %v2846 = vpack.c.bf16 %v2842, %v877
  %2847 = vst [vmem:[%s2845] sm:$0xff] %v2846
  %s2848 = scalar_lea.vmem %s0, 412
  %v2849 = vld [vmem:[%s2848] sm:$0xf]
  %v2850 = vunpack.c.l.bf16 %v2849
  %v2851 = vunpack.c.h.bf16 %v2849
  %s2852 = scalar_lea.vmem %s1, 1948
  %s2853 = scalar_lea.vmem %s2852, 4294967292
  %v2854 = vpack.c.bf16 %v2850, %v882
  %2855 = vst [vmem:[%s2853] sm:$0xff] %v2854
  %s2856 = scalar_lea.vmem %s0, 1692
  %v2857 = vld [vmem:[%s2856] sm:$0xf]
  %v2858 = vunpack.c.l.bf16 %v2857
  %v2859 = vunpack.c.h.bf16 %v2857
  %s2860 = scalar_lea.vmem %s1, 668
  %s2861 = scalar_lea.vmem %s2860, 4294967292
  %v2862 = vpack.c.bf16 %v2858, %v887
  %2863 = vst [vmem:[%s2861] sm:$0xff] %v2862
  %s2864 = scalar_lea.vmem %s0, 924
  %v2865 = vld [vmem:[%s2864] sm:$0xf]
  %v2866 = vunpack.c.l.bf16 %v2865
  %v2867 = vunpack.c.h.bf16 %v2865
  %s2868 = scalar_lea.vmem %s1, 1436
  %s2869 = scalar_lea.vmem %s2868, 4294967292
  %v2870 = vpack.c.bf16 %v2866, %v892
  %2871 = vst [vmem:[%s2869] sm:$0xff] %v2870
  %s2872 = scalar_lea.vmem %s0, 156
  %v2873 = vld [vmem:[%s2872] sm:$0xf]
  %v2874 = vunpack.c.l.bf16 %v2873
  %v2875 = vunpack.c.h.bf16 %v2873
  %s2876 = scalar_lea.vmem %s1, 2204
  %s2877 = scalar_lea.vmem %s2876, 4294967292
  %v2878 = vpack.c.bf16 %v2874, %v897
  %2879 = vst [vmem:[%s2877] sm:$0xff] %v2878
  %s2880 = scalar_lea.vmem %s0, 2212
  %v2881 = vld [vmem:[%s2880] sm:$0xf]
  %v2882 = vunpack.c.l.bf16 %v2881
  %v2883 = vunpack.c.h.bf16 %v2881
  %s2884 = scalar_lea.vmem %s1, 164
  %s2885 = scalar_lea.vmem %s2884, 4294967292
  %v2886 = vpack.c.bf16 %v2882, %v902
  %2887 = vst [vmem:[%s2885] sm:$0xff] %v2886
  %s2888 = scalar_lea.vmem %s0, 1444
  %v2889 = vld [vmem:[%s2888] sm:$0xf]
  %v2890 = vunpack.c.l.bf16 %v2889
  %v2891 = vunpack.c.h.bf16 %v2889
  %s2892 = scalar_lea.vmem %s1, 932
  %s2893 = scalar_lea.vmem %s2892, 4294967292
  %v2894 = vpack.c.bf16 %v2890, %v907
  %2895 = vst [vmem:[%s2893] sm:$0xff] %v2894
  %s2896 = scalar_lea.vmem %s0, 676
  %v2897 = vld [vmem:[%s2896] sm:$0xf]
  %v2898 = vunpack.c.l.bf16 %v2897
  %v2899 = vunpack.c.h.bf16 %v2897
  %s2900 = scalar_lea.vmem %s1, 1700
  %s2901 = scalar_lea.vmem %s2900, 4294967292
  %v2902 = vpack.c.bf16 %v2898, %v912
  %2903 = vst [vmem:[%s2901] sm:$0xff] %v2902
  %s2904 = scalar_lea.vmem %s0, 1956
  %v2905 = vld [vmem:[%s2904] sm:$0xf]
  %v2906 = vunpack.c.l.bf16 %v2905
  %v2907 = vunpack.c.h.bf16 %v2905
  %s2908 = scalar_lea.vmem %s1, 420
  %s2909 = scalar_lea.vmem %s2908, 4294967292
  %v2910 = vpack.c.bf16 %v2906, %v917
  %2911 = vst [vmem:[%s2909] sm:$0xff] %v2910
  %s2912 = scalar_lea.vmem %s0, 1188
  %v2913 = vld [vmem:[%s2912] sm:$0xf]
  %v2914 = vunpack.c.l.bf16 %v2913
  %v2915 = vunpack.c.h.bf16 %v2913
  %s2916 = scalar_lea.vmem %s1, 1188
  %s2917 = scalar_lea.vmem %s2916, 4294967292
  %v2918 = vpack.c.bf16 %v2914, %v922
  %2919 = vst [vmem:[%s2917] sm:$0xff] %v2918
  %s2920 = scalar_lea.vmem %s0, 420
  %v2921 = vld [vmem:[%s2920] sm:$0xf]
  %v2922 = vunpack.c.l.bf16 %v2921
  %v2923 = vunpack.c.h.bf16 %v2921
  %s2924 = scalar_lea.vmem %s1, 1956
  %s2925 = scalar_lea.vmem %s2924, 4294967292
  %v2926 = vpack.c.bf16 %v2922, %v927
  %2927 = vst [vmem:[%s2925] sm:$0xff] %v2926
  %s2928 = scalar_lea.vmem %s0, 1700
  %v2929 = vld [vmem:[%s2928] sm:$0xf]
  %v2930 = vunpack.c.l.bf16 %v2929
  %v2931 = vunpack.c.h.bf16 %v2929
  %s2932 = scalar_lea.vmem %s1, 676
  %s2933 = scalar_lea.vmem %s2932, 4294967292
  %v2934 = vpack.c.bf16 %v2930, %v932
  %2935 = vst [vmem:[%s2933] sm:$0xff] %v2934
  %s2936 = scalar_lea.vmem %s0, 932
  %v2937 = vld [vmem:[%s2936] sm:$0xf]
  %v2938 = vunpack.c.l.bf16 %v2937
  %v2939 = vunpack.c.h.bf16 %v2937
  %s2940 = scalar_lea.vmem %s1, 1444
  %s2941 = scalar_lea.vmem %s2940, 4294967292
  %v2942 = vpack.c.bf16 %v2938, %v937
  %2943 = vst [vmem:[%s2941] sm:$0xff] %v2942
  %s2944 = scalar_lea.vmem %s0, 164
  %v2945 = vld [vmem:[%s2944] sm:$0xf]
  %v2946 = vunpack.c.l.bf16 %v2945
  %v2947 = vunpack.c.h.bf16 %v2945
  %s2948 = scalar_lea.vmem %s1, 2212
  %s2949 = scalar_lea.vmem %s2948, 4294967292
  %v2950 = vpack.c.bf16 %v2946, %v942
  %2951 = vst [vmem:[%s2949] sm:$0xff] %v2950
  %s2952 = scalar_lea.vmem %s0, 2220
  %v2953 = vld [vmem:[%s2952] sm:$0xf]
  %v2954 = vunpack.c.l.bf16 %v2953
  %v2955 = vunpack.c.h.bf16 %v2953
  %s2956 = scalar_lea.vmem %s1, 172
  %s2957 = scalar_lea.vmem %s2956, 4294967292
  %v2958 = vpack.c.bf16 %v2954, %v947
  %2959 = vst [vmem:[%s2957] sm:$0xff] %v2958
  %s2960 = scalar_lea.vmem %s0, 1452
  %v2961 = vld [vmem:[%s2960] sm:$0xf]
  %v2962 = vunpack.c.l.bf16 %v2961
  %v2963 = vunpack.c.h.bf16 %v2961
  %s2964 = scalar_lea.vmem %s1, 940
  %s2965 = scalar_lea.vmem %s2964, 4294967292
  %v2966 = vpack.c.bf16 %v2962, %v952
  %2967 = vst [vmem:[%s2965] sm:$0xff] %v2966
  %s2968 = scalar_lea.vmem %s0, 684
  %v2969 = vld [vmem:[%s2968] sm:$0xf]
  %v2970 = vunpack.c.l.bf16 %v2969
  %v2971 = vunpack.c.h.bf16 %v2969
  %s2972 = scalar_lea.vmem %s1, 1708
  %s2973 = scalar_lea.vmem %s2972, 4294967292
  %v2974 = vpack.c.bf16 %v2970, %v957
  %2975 = vst [vmem:[%s2973] sm:$0xff] %v2974
  %s2976 = scalar_lea.vmem %s0, 1964
  %v2977 = vld [vmem:[%s2976] sm:$0xf]
  %v2978 = vunpack.c.l.bf16 %v2977
  %v2979 = vunpack.c.h.bf16 %v2977
  %s2980 = scalar_lea.vmem %s1, 428
  %s2981 = scalar_lea.vmem %s2980, 4294967292
  %v2982 = vpack.c.bf16 %v2978, %v962
  %2983 = vst [vmem:[%s2981] sm:$0xff] %v2982
  %s2984 = scalar_lea.vmem %s0, 1196
  %v2985 = vld [vmem:[%s2984] sm:$0xf]
  %v2986 = vunpack.c.l.bf16 %v2985
  %v2987 = vunpack.c.h.bf16 %v2985
  %s2988 = scalar_lea.vmem %s1, 1196
  %s2989 = scalar_lea.vmem %s2988, 4294967292
  %v2990 = vpack.c.bf16 %v2986, %v967
  %2991 = vst [vmem:[%s2989] sm:$0xff] %v2990
  %s2992 = scalar_lea.vmem %s0, 428
  %v2993 = vld [vmem:[%s2992] sm:$0xf]
  %v2994 = vunpack.c.l.bf16 %v2993
  %v2995 = vunpack.c.h.bf16 %v2993
  %s2996 = scalar_lea.vmem %s1, 1964
  %s2997 = scalar_lea.vmem %s2996, 4294967292
  %v2998 = vpack.c.bf16 %v2994, %v972
  %2999 = vst [vmem:[%s2997] sm:$0xff] %v2998
  %s3000 = scalar_lea.vmem %s0, 1708
  %v3001 = vld [vmem:[%s3000] sm:$0xf]
  %v3002 = vunpack.c.l.bf16 %v3001
  %v3003 = vunpack.c.h.bf16 %v3001
  %s3004 = scalar_lea.vmem %s1, 684
  %s3005 = scalar_lea.vmem %s3004, 4294967292
  %v3006 = vpack.c.bf16 %v3002, %v977
  %3007 = vst [vmem:[%s3005] sm:$0xff] %v3006
  %s3008 = scalar_lea.vmem %s0, 940
  %v3009 = vld [vmem:[%s3008] sm:$0xf]
  %v3010 = vunpack.c.l.bf16 %v3009
  %v3011 = vunpack.c.h.bf16 %v3009
  %s3012 = scalar_lea.vmem %s1, 1452
  %s3013 = scalar_lea.vmem %s3012, 4294967292
  %v3014 = vpack.c.bf16 %v3010, %v982
  %3015 = vst [vmem:[%s3013] sm:$0xff] %v3014
  %s3016 = scalar_lea.vmem %s0, 172
  %v3017 = vld [vmem:[%s3016] sm:$0xf]
  %v3018 = vunpack.c.l.bf16 %v3017
  %v3019 = vunpack.c.h.bf16 %v3017
  %s3020 = scalar_lea.vmem %s1, 2220
  %s3021 = scalar_lea.vmem %s3020, 4294967292
  %v3022 = vpack.c.bf16 %v3018, %v987
  %3023 = vst [vmem:[%s3021] sm:$0xff] %v3022
  %s3024 = scalar_lea.vmem %s0, 2228
  %v3025 = vld [vmem:[%s3024] sm:$0xf]
  %v3026 = vunpack.c.l.bf16 %v3025
  %v3027 = vunpack.c.h.bf16 %v3025
  %s3028 = scalar_lea.vmem %s1, 180
  %s3029 = scalar_lea.vmem %s3028, 4294967292
  %v3030 = vpack.c.bf16 %v3026, %v992
  %3031 = vst [vmem:[%s3029] sm:$0xff] %v3030
  %s3032 = scalar_lea.vmem %s0, 1460
  %v3033 = vld [vmem:[%s3032] sm:$0xf]
  %v3034 = vunpack.c.l.bf16 %v3033
  %v3035 = vunpack.c.h.bf16 %v3033
  %s3036 = scalar_lea.vmem %s1, 948
  %s3037 = scalar_lea.vmem %s3036, 4294967292
  %v3038 = vpack.c.bf16 %v3034, %v997
  %3039 = vst [vmem:[%s3037] sm:$0xff] %v3038
  %s3040 = scalar_lea.vmem %s0, 692
  %v3041 = vld [vmem:[%s3040] sm:$0xf]
  %v3042 = vunpack.c.l.bf16 %v3041
  %v3043 = vunpack.c.h.bf16 %v3041
  %s3044 = scalar_lea.vmem %s1, 1716
  %s3045 = scalar_lea.vmem %s3044, 4294967292
  %v3046 = vpack.c.bf16 %v3042, %v1002
  %3047 = vst [vmem:[%s3045] sm:$0xff] %v3046
  %s3048 = scalar_lea.vmem %s0, 1972
  %v3049 = vld [vmem:[%s3048] sm:$0xf]
  %v3050 = vunpack.c.l.bf16 %v3049
  %v3051 = vunpack.c.h.bf16 %v3049
  %s3052 = scalar_lea.vmem %s1, 436
  %s3053 = scalar_lea.vmem %s3052, 4294967292
  %v3054 = vpack.c.bf16 %v3050, %v1007
  %3055 = vst [vmem:[%s3053] sm:$0xff] %v3054
  %s3056 = scalar_lea.vmem %s0, 1204
  %v3057 = vld [vmem:[%s3056] sm:$0xf]
  %v3058 = vunpack.c.l.bf16 %v3057
  %v3059 = vunpack.c.h.bf16 %v3057
  %s3060 = scalar_lea.vmem %s1, 1204
  %s3061 = scalar_lea.vmem %s3060, 4294967292
  %v3062 = vpack.c.bf16 %v3058, %v1012
  %3063 = vst [vmem:[%s3061] sm:$0xff] %v3062
  %s3064 = scalar_lea.vmem %s0, 436
  %v3065 = vld [vmem:[%s3064] sm:$0xf]
  %v3066 = vunpack.c.l.bf16 %v3065
  %v3067 = vunpack.c.h.bf16 %v3065
  %s3068 = scalar_lea.vmem %s1, 1972
  %s3069 = scalar_lea.vmem %s3068, 4294967292
  %v3070 = vpack.c.bf16 %v3066, %v1017
  %3071 = vst [vmem:[%s3069] sm:$0xff] %v3070
  %s3072 = scalar_lea.vmem %s0, 1716
  %v3073 = vld [vmem:[%s3072] sm:$0xf]
  %v3074 = vunpack.c.l.bf16 %v3073
  %v3075 = vunpack.c.h.bf16 %v3073
  %s3076 = scalar_lea.vmem %s1, 692
  %s3077 = scalar_lea.vmem %s3076, 4294967292
  %v3078 = vpack.c.bf16 %v3074, %v1022
  %3079 = vst [vmem:[%s3077] sm:$0xff] %v3078
  %s3080 = scalar_lea.vmem %s0, 948
  %v3081 = vld [vmem:[%s3080] sm:$0xf]
  %v3082 = vunpack.c.l.bf16 %v3081
  %v3083 = vunpack.c.h.bf16 %v3081
  %s3084 = scalar_lea.vmem %s1, 1460
  %s3085 = scalar_lea.vmem %s3084, 4294967292
  %v3086 = vpack.c.bf16 %v3082, %v1027
  %3087 = vst [vmem:[%s3085] sm:$0xff] %v3086
  %s3088 = scalar_lea.vmem %s0, 180
  %v3089 = vld [vmem:[%s3088] sm:$0xf]
  %v3090 = vunpack.c.l.bf16 %v3089
  %v3091 = vunpack.c.h.bf16 %v3089
  %s3092 = scalar_lea.vmem %s1, 2228
  %s3093 = scalar_lea.vmem %s3092, 4294967292
  %v3094 = vpack.c.bf16 %v3090, %v1032
  %3095 = vst [vmem:[%s3093] sm:$0xff] %v3094
  %s3096 = scalar_lea.vmem %s0, 2236
  %v3097 = vld [vmem:[%s3096] sm:$0xf]
  %v3098 = vunpack.c.l.bf16 %v3097
  %v3099 = vunpack.c.h.bf16 %v3097
  %s3100 = scalar_lea.vmem %s1, 188
  %s3101 = scalar_lea.vmem %s3100, 4294967292
  %v3102 = vpack.c.bf16 %v3098, %v1037
  %3103 = vst [vmem:[%s3101] sm:$0xff] %v3102
  %s3104 = scalar_lea.vmem %s0, 1468
  %v3105 = vld [vmem:[%s3104] sm:$0xf]
  %v3106 = vunpack.c.l.bf16 %v3105
  %v3107 = vunpack.c.h.bf16 %v3105
  %s3108 = scalar_lea.vmem %s1, 956
  %s3109 = scalar_lea.vmem %s3108, 4294967292
  %v3110 = vpack.c.bf16 %v3106, %v1042
  %3111 = vst [vmem:[%s3109] sm:$0xff] %v3110
  %s3112 = scalar_lea.vmem %s0, 700
  %v3113 = vld [vmem:[%s3112] sm:$0xf]
  %v3114 = vunpack.c.l.bf16 %v3113
  %v3115 = vunpack.c.h.bf16 %v3113
  %s3116 = scalar_lea.vmem %s1, 1724
  %s3117 = scalar_lea.vmem %s3116, 4294967292
  %v3118 = vpack.c.bf16 %v3114, %v1047
  %3119 = vst [vmem:[%s3117] sm:$0xff] %v3118
  %s3120 = scalar_lea.vmem %s0, 1980
  %v3121 = vld [vmem:[%s3120] sm:$0xf]
  %v3122 = vunpack.c.l.bf16 %v3121
  %v3123 = vunpack.c.h.bf16 %v3121
  %s3124 = scalar_lea.vmem %s1, 444
  %s3125 = scalar_lea.vmem %s3124, 4294967292
  %v3126 = vpack.c.bf16 %v3122, %v1052
  %3127 = vst [vmem:[%s3125] sm:$0xff] %v3126
  %s3128 = scalar_lea.vmem %s0, 1212
  %v3129 = vld [vmem:[%s3128] sm:$0xf]
  %v3130 = vunpack.c.l.bf16 %v3129
  %v3131 = vunpack.c.h.bf16 %v3129
  %s3132 = scalar_lea.vmem %s1, 1212
  %s3133 = scalar_lea.vmem %s3132, 4294967292
  %v3134 = vpack.c.bf16 %v3130, %v1057
  %3135 = vst [vmem:[%s3133] sm:$0xff] %v3134
  %s3136 = scalar_lea.vmem %s0, 444
  %v3137 = vld [vmem:[%s3136] sm:$0xf]
  %v3138 = vunpack.c.l.bf16 %v3137
  %v3139 = vunpack.c.h.bf16 %v3137
  %s3140 = scalar_lea.vmem %s1, 1980
  %s3141 = scalar_lea.vmem %s3140, 4294967292
  %v3142 = vpack.c.bf16 %v3138, %v1062
  %3143 = vst [vmem:[%s3141] sm:$0xff] %v3142
  %s3144 = scalar_lea.vmem %s0, 1724
  %v3145 = vld [vmem:[%s3144] sm:$0xf]
  %v3146 = vunpack.c.l.bf16 %v3145
  %v3147 = vunpack.c.h.bf16 %v3145
  %s3148 = scalar_lea.vmem %s1, 700
  %s3149 = scalar_lea.vmem %s3148, 4294967292
  %v3150 = vpack.c.bf16 %v3146, %v1067
  %3151 = vst [vmem:[%s3149] sm:$0xff] %v3150
  %s3152 = scalar_lea.vmem %s0, 956
  %v3153 = vld [vmem:[%s3152] sm:$0xf]
  %v3154 = vunpack.c.l.bf16 %v3153
  %v3155 = vunpack.c.h.bf16 %v3153
  %s3156 = scalar_lea.vmem %s1, 1468
  %s3157 = scalar_lea.vmem %s3156, 4294967292
  %v3158 = vpack.c.bf16 %v3154, %v1072
  %3159 = vst [vmem:[%s3157] sm:$0xff] %v3158
  %s3160 = scalar_lea.vmem %s0, 188
  %v3161 = vld [vmem:[%s3160] sm:$0xf]
  %v3162 = vunpack.c.l.bf16 %v3161
  %v3163 = vunpack.c.h.bf16 %v3161
  %s3164 = scalar_lea.vmem %s1, 2236
  %s3165 = scalar_lea.vmem %s3164, 4294967292
  %v3166 = vpack.c.bf16 %v3162, %v1077
  %3167 = vst [vmem:[%s3165] sm:$0xff] %v3166
  %s3168 = scalar_lea.vmem %s0, 2244
  %v3169 = vld [vmem:[%s3168] sm:$0xf]
  %v3170 = vunpack.c.l.bf16 %v3169
  %v3171 = vunpack.c.h.bf16 %v3169
  %s3172 = scalar_lea.vmem %s1, 196
  %s3173 = scalar_lea.vmem %s3172, 4294967292
  %v3174 = vpack.c.bf16 %v3170, %v1082
  %3175 = vst [vmem:[%s3173] sm:$0xff] %v3174
  %s3176 = scalar_lea.vmem %s0, 1476
  %v3177 = vld [vmem:[%s3176] sm:$0xf]
  %v3178 = vunpack.c.l.bf16 %v3177
  %v3179 = vunpack.c.h.bf16 %v3177
  %s3180 = scalar_lea.vmem %s1, 964
  %s3181 = scalar_lea.vmem %s3180, 4294967292
  %v3182 = vpack.c.bf16 %v3178, %v1087
  %3183 = vst [vmem:[%s3181] sm:$0xff] %v3182
  %s3184 = scalar_lea.vmem %s0, 708
  %v3185 = vld [vmem:[%s3184] sm:$0xf]
  %v3186 = vunpack.c.l.bf16 %v3185
  %v3187 = vunpack.c.h.bf16 %v3185
  %s3188 = scalar_lea.vmem %s1, 1732
  %s3189 = scalar_lea.vmem %s3188, 4294967292
  %v3190 = vpack.c.bf16 %v3186, %v1092
  %3191 = vst [vmem:[%s3189] sm:$0xff] %v3190
  %s3192 = scalar_lea.vmem %s0, 1988
  %v3193 = vld [vmem:[%s3192] sm:$0xf]
  %v3194 = vunpack.c.l.bf16 %v3193
  %v3195 = vunpack.c.h.bf16 %v3193
  %s3196 = scalar_lea.vmem %s1, 452
  %s3197 = scalar_lea.vmem %s3196, 4294967292
  %v3198 = vpack.c.bf16 %v3194, %v1097
  %3199 = vst [vmem:[%s3197] sm:$0xff] %v3198
  %s3200 = scalar_lea.vmem %s0, 1220
  %v3201 = vld [vmem:[%s3200] sm:$0xf]
  %v3202 = vunpack.c.l.bf16 %v3201
  %v3203 = vunpack.c.h.bf16 %v3201
  %s3204 = scalar_lea.vmem %s1, 1220
  %s3205 = scalar_lea.vmem %s3204, 4294967292
  %v3206 = vpack.c.bf16 %v3202, %v1102
  %3207 = vst [vmem:[%s3205] sm:$0xff] %v3206
  %s3208 = scalar_lea.vmem %s0, 452
  %v3209 = vld [vmem:[%s3208] sm:$0xf]
  %v3210 = vunpack.c.l.bf16 %v3209
  %v3211 = vunpack.c.h.bf16 %v3209
  %s3212 = scalar_lea.vmem %s1, 1988
  %s3213 = scalar_lea.vmem %s3212, 4294967292
  %v3214 = vpack.c.bf16 %v3210, %v1107
  %3215 = vst [vmem:[%s3213] sm:$0xff] %v3214
  %s3216 = scalar_lea.vmem %s0, 1732
  %v3217 = vld [vmem:[%s3216] sm:$0xf]
  %v3218 = vunpack.c.l.bf16 %v3217
  %v3219 = vunpack.c.h.bf16 %v3217
  %s3220 = scalar_lea.vmem %s1, 708
  %s3221 = scalar_lea.vmem %s3220, 4294967292
  %v3222 = vpack.c.bf16 %v3218, %v1112
  %3223 = vst [vmem:[%s3221] sm:$0xff] %v3222
  %s3224 = scalar_lea.vmem %s0, 964
  %v3225 = vld [vmem:[%s3224] sm:$0xf]
  %v3226 = vunpack.c.l.bf16 %v3225
  %v3227 = vunpack.c.h.bf16 %v3225
  %s3228 = scalar_lea.vmem %s1, 1476
  %s3229 = scalar_lea.vmem %s3228, 4294967292
  %v3230 = vpack.c.bf16 %v3226, %v1117
  %3231 = vst [vmem:[%s3229] sm:$0xff] %v3230
  %s3232 = scalar_lea.vmem %s0, 196
  %v3233 = vld [vmem:[%s3232] sm:$0xf]
  %v3234 = vunpack.c.l.bf16 %v3233
  %v3235 = vunpack.c.h.bf16 %v3233
  %s3236 = scalar_lea.vmem %s1, 2244
  %s3237 = scalar_lea.vmem %s3236, 4294967292
  %v3238 = vpack.c.bf16 %v3234, %v1122
  %3239 = vst [vmem:[%s3237] sm:$0xff] %v3238
  %s3240 = scalar_lea.vmem %s0, 2252
  %v3241 = vld [vmem:[%s3240] sm:$0xf]
  %v3242 = vunpack.c.l.bf16 %v3241
  %v3243 = vunpack.c.h.bf16 %v3241
  %s3244 = scalar_lea.vmem %s1, 204
  %s3245 = scalar_lea.vmem %s3244, 4294967292
  %v3246 = vpack.c.bf16 %v3242, %v1127
  %3247 = vst [vmem:[%s3245] sm:$0xff] %v3246
  %s3248 = scalar_lea.vmem %s0, 1484
  %v3249 = vld [vmem:[%s3248] sm:$0xf]
  %v3250 = vunpack.c.l.bf16 %v3249
  %v3251 = vunpack.c.h.bf16 %v3249
  %s3252 = scalar_lea.vmem %s1, 972
  %s3253 = scalar_lea.vmem %s3252, 4294967292
  %v3254 = vpack.c.bf16 %v3250, %v1132
  %3255 = vst [vmem:[%s3253] sm:$0xff] %v3254
  %s3256 = scalar_lea.vmem %s0, 716
  %v3257 = vld [vmem:[%s3256] sm:$0xf]
  %v3258 = vunpack.c.l.bf16 %v3257
  %v3259 = vunpack.c.h.bf16 %v3257
  %s3260 = scalar_lea.vmem %s1, 1740
  %s3261 = scalar_lea.vmem %s3260, 4294967292
  %v3262 = vpack.c.bf16 %v3258, %v1137
  %3263 = vst [vmem:[%s3261] sm:$0xff] %v3262
  %s3264 = scalar_lea.vmem %s0, 1996
  %v3265 = vld [vmem:[%s3264] sm:$0xf]
  %v3266 = vunpack.c.l.bf16 %v3265
  %v3267 = vunpack.c.h.bf16 %v3265
  %s3268 = scalar_lea.vmem %s1, 460
  %s3269 = scalar_lea.vmem %s3268, 4294967292
  %v3270 = vpack.c.bf16 %v3266, %v1142
  %3271 = vst [vmem:[%s3269] sm:$0xff] %v3270
  %s3272 = scalar_lea.vmem %s0, 1228
  %v3273 = vld [vmem:[%s3272] sm:$0xf]
  %v3274 = vunpack.c.l.bf16 %v3273
  %v3275 = vunpack.c.h.bf16 %v3273
  %s3276 = scalar_lea.vmem %s1, 1228
  %s3277 = scalar_lea.vmem %s3276, 4294967292
  %v3278 = vpack.c.bf16 %v3274, %v1147
  %3279 = vst [vmem:[%s3277] sm:$0xff] %v3278
  %s3280 = scalar_lea.vmem %s0, 460
  %v3281 = vld [vmem:[%s3280] sm:$0xf]
  %v3282 = vunpack.c.l.bf16 %v3281
  %v3283 = vunpack.c.h.bf16 %v3281
  %s3284 = scalar_lea.vmem %s1, 1996
  %s3285 = scalar_lea.vmem %s3284, 4294967292
  %v3286 = vpack.c.bf16 %v3282, %v1152
  %3287 = vst [vmem:[%s3285] sm:$0xff] %v3286
  %s3288 = scalar_lea.vmem %s0, 1740
  %v3289 = vld [vmem:[%s3288] sm:$0xf]
  %v3290 = vunpack.c.l.bf16 %v3289
  %v3291 = vunpack.c.h.bf16 %v3289
  %s3292 = scalar_lea.vmem %s1, 716
  %s3293 = scalar_lea.vmem %s3292, 4294967292
  %v3294 = vpack.c.bf16 %v3290, %v1157
  %3295 = vst [vmem:[%s3293] sm:$0xff] %v3294
  %s3296 = scalar_lea.vmem %s0, 972
  %v3297 = vld [vmem:[%s3296] sm:$0xf]
  %v3298 = vunpack.c.l.bf16 %v3297
  %v3299 = vunpack.c.h.bf16 %v3297
  %s3300 = scalar_lea.vmem %s1, 1484
  %s3301 = scalar_lea.vmem %s3300, 4294967292
  %v3302 = vpack.c.bf16 %v3298, %v1162
  %3303 = vst [vmem:[%s3301] sm:$0xff] %v3302
  %s3304 = scalar_lea.vmem %s0, 204
  %v3305 = vld [vmem:[%s3304] sm:$0xf]
  %v3306 = vunpack.c.l.bf16 %v3305
  %v3307 = vunpack.c.h.bf16 %v3305
  %s3308 = scalar_lea.vmem %s1, 2252
  %s3309 = scalar_lea.vmem %s3308, 4294967292
  %v3310 = vpack.c.bf16 %v3306, %v1167
  %3311 = vst [vmem:[%s3309] sm:$0xff] %v3310
  %s3312 = scalar_lea.vmem %s0, 2260
  %v3313 = vld [vmem:[%s3312] sm:$0xf]
  %v3314 = vunpack.c.l.bf16 %v3313
  %v3315 = vunpack.c.h.bf16 %v3313
  %s3316 = scalar_lea.vmem %s1, 212
  %s3317 = scalar_lea.vmem %s3316, 4294967292
  %v3318 = vpack.c.bf16 %v3314, %v1172
  %3319 = vst [vmem:[%s3317] sm:$0xff] %v3318
  %s3320 = scalar_lea.vmem %s0, 1492
  %v3321 = vld [vmem:[%s3320] sm:$0xf]
  %v3322 = vunpack.c.l.bf16 %v3321
  %v3323 = vunpack.c.h.bf16 %v3321
  %s3324 = scalar_lea.vmem %s1, 980
  %s3325 = scalar_lea.vmem %s3324, 4294967292
  %v3326 = vpack.c.bf16 %v3322, %v1177
  %3327 = vst [vmem:[%s3325] sm:$0xff] %v3326
  %s3328 = scalar_lea.vmem %s0, 724
  %v3329 = vld [vmem:[%s3328] sm:$0xf]
  %v3330 = vunpack.c.l.bf16 %v3329
  %v3331 = vunpack.c.h.bf16 %v3329
  %s3332 = scalar_lea.vmem %s1, 1748
  %s3333 = scalar_lea.vmem %s3332, 4294967292
  %v3334 = vpack.c.bf16 %v3330, %v1182
  %3335 = vst [vmem:[%s3333] sm:$0xff] %v3334
  %s3336 = scalar_lea.vmem %s0, 2004
  %v3337 = vld [vmem:[%s3336] sm:$0xf]
  %v3338 = vunpack.c.l.bf16 %v3337
  %v3339 = vunpack.c.h.bf16 %v3337
  %s3340 = scalar_lea.vmem %s1, 468
  %s3341 = scalar_lea.vmem %s3340, 4294967292
  %v3342 = vpack.c.bf16 %v3338, %v1187
  %3343 = vst [vmem:[%s3341] sm:$0xff] %v3342
  %s3344 = scalar_lea.vmem %s0, 1236
  %v3345 = vld [vmem:[%s3344] sm:$0xf]
  %v3346 = vunpack.c.l.bf16 %v3345
  %v3347 = vunpack.c.h.bf16 %v3345
  %s3348 = scalar_lea.vmem %s1, 1236
  %s3349 = scalar_lea.vmem %s3348, 4294967292
  %v3350 = vpack.c.bf16 %v3346, %v1192
  %3351 = vst [vmem:[%s3349] sm:$0xff] %v3350
  %s3352 = scalar_lea.vmem %s0, 468
  %v3353 = vld [vmem:[%s3352] sm:$0xf]
  %v3354 = vunpack.c.l.bf16 %v3353
  %v3355 = vunpack.c.h.bf16 %v3353
  %s3356 = scalar_lea.vmem %s1, 2004
  %s3357 = scalar_lea.vmem %s3356, 4294967292
  %v3358 = vpack.c.bf16 %v3354, %v1197
  %3359 = vst [vmem:[%s3357] sm:$0xff] %v3358
  %s3360 = scalar_lea.vmem %s0, 1748
  %v3361 = vld [vmem:[%s3360] sm:$0xf]
  %v3362 = vunpack.c.l.bf16 %v3361
  %v3363 = vunpack.c.h.bf16 %v3361
  %s3364 = scalar_lea.vmem %s1, 724
  %s3365 = scalar_lea.vmem %s3364, 4294967292
  %v3366 = vpack.c.bf16 %v3362, %v1202
  %3367 = vst [vmem:[%s3365] sm:$0xff] %v3366
  %s3368 = scalar_lea.vmem %s0, 980
  %v3369 = vld [vmem:[%s3368] sm:$0xf]
  %v3370 = vunpack.c.l.bf16 %v3369
  %v3371 = vunpack.c.h.bf16 %v3369
  %s3372 = scalar_lea.vmem %s1, 1492
  %s3373 = scalar_lea.vmem %s3372, 4294967292
  %v3374 = vpack.c.bf16 %v3370, %v1207
  %3375 = vst [vmem:[%s3373] sm:$0xff] %v3374
  %s3376 = scalar_lea.vmem %s0, 212
  %v3377 = vld [vmem:[%s3376] sm:$0xf]
  %v3378 = vunpack.c.l.bf16 %v3377
  %v3379 = vunpack.c.h.bf16 %v3377
  %s3380 = scalar_lea.vmem %s1, 2260
  %s3381 = scalar_lea.vmem %s3380, 4294967292
  %v3382 = vpack.c.bf16 %v3378, %v1212
  %3383 = vst [vmem:[%s3381] sm:$0xff] %v3382
  %s3384 = scalar_lea.vmem %s0, 2268
  %v3385 = vld [vmem:[%s3384] sm:$0xf]
  %v3386 = vunpack.c.l.bf16 %v3385
  %v3387 = vunpack.c.h.bf16 %v3385
  %s3388 = scalar_lea.vmem %s1, 220
  %s3389 = scalar_lea.vmem %s3388, 4294967292
  %v3390 = vpack.c.bf16 %v3386, %v1217
  %3391 = vst [vmem:[%s3389] sm:$0xff] %v3390
  %s3392 = scalar_lea.vmem %s0, 1500
  %v3393 = vld [vmem:[%s3392] sm:$0xf]
  %v3394 = vunpack.c.l.bf16 %v3393
  %v3395 = vunpack.c.h.bf16 %v3393
  %s3396 = scalar_lea.vmem %s1, 988
  %s3397 = scalar_lea.vmem %s3396, 4294967292
  %v3398 = vpack.c.bf16 %v3394, %v1222
  %3399 = vst [vmem:[%s3397] sm:$0xff] %v3398
  %s3400 = scalar_lea.vmem %s0, 732
  %v3401 = vld [vmem:[%s3400] sm:$0xf]
  %v3402 = vunpack.c.l.bf16 %v3401
  %v3403 = vunpack.c.h.bf16 %v3401
  %s3404 = scalar_lea.vmem %s1, 1756
  %s3405 = scalar_lea.vmem %s3404, 4294967292
  %v3406 = vpack.c.bf16 %v3402, %v1227
  %3407 = vst [vmem:[%s3405] sm:$0xff] %v3406
  %s3408 = scalar_lea.vmem %s0, 2012
  %v3409 = vld [vmem:[%s3408] sm:$0xf]
  %v3410 = vunpack.c.l.bf16 %v3409
  %v3411 = vunpack.c.h.bf16 %v3409
  %s3412 = scalar_lea.vmem %s1, 476
  %s3413 = scalar_lea.vmem %s3412, 4294967292
  %v3414 = vpack.c.bf16 %v3410, %v1232
  %3415 = vst [vmem:[%s3413] sm:$0xff] %v3414
  %s3416 = scalar_lea.vmem %s0, 1244
  %v3417 = vld [vmem:[%s3416] sm:$0xf]
  %v3418 = vunpack.c.l.bf16 %v3417
  %v3419 = vunpack.c.h.bf16 %v3417
  %s3420 = scalar_lea.vmem %s1, 1244
  %s3421 = scalar_lea.vmem %s3420, 4294967292
  %v3422 = vpack.c.bf16 %v3418, %v1237
  %3423 = vst [vmem:[%s3421] sm:$0xff] %v3422
  %s3424 = scalar_lea.vmem %s0, 476
  %v3425 = vld [vmem:[%s3424] sm:$0xf]
  %v3426 = vunpack.c.l.bf16 %v3425
  %v3427 = vunpack.c.h.bf16 %v3425
  %s3428 = scalar_lea.vmem %s1, 2012
  %s3429 = scalar_lea.vmem %s3428, 4294967292
  %v3430 = vpack.c.bf16 %v3426, %v1242
  %3431 = vst [vmem:[%s3429] sm:$0xff] %v3430
  %s3432 = scalar_lea.vmem %s0, 1756
  %v3433 = vld [vmem:[%s3432] sm:$0xf]
  %v3434 = vunpack.c.l.bf16 %v3433
  %v3435 = vunpack.c.h.bf16 %v3433
  %s3436 = scalar_lea.vmem %s1, 732
  %s3437 = scalar_lea.vmem %s3436, 4294967292
  %v3438 = vpack.c.bf16 %v3434, %v1247
  %3439 = vst [vmem:[%s3437] sm:$0xff] %v3438
  %s3440 = scalar_lea.vmem %s0, 988
  %v3441 = vld [vmem:[%s3440] sm:$0xf]
  %v3442 = vunpack.c.l.bf16 %v3441
  %v3443 = vunpack.c.h.bf16 %v3441
  %s3444 = scalar_lea.vmem %s1, 1500
  %s3445 = scalar_lea.vmem %s3444, 4294967292
  %v3446 = vpack.c.bf16 %v3442, %v1252
  %3447 = vst [vmem:[%s3445] sm:$0xff] %v3446
  %s3448 = scalar_lea.vmem %s0, 220
  %v3449 = vld [vmem:[%s3448] sm:$0xf]
  %v3450 = vunpack.c.l.bf16 %v3449
  %v3451 = vunpack.c.h.bf16 %v3449
  %s3452 = scalar_lea.vmem %s1, 2268
  %s3453 = scalar_lea.vmem %s3452, 4294967292
  %v3454 = vpack.c.bf16 %v3450, %v1257
  %3455 = vst [vmem:[%s3453] sm:$0xff] %v3454
  %s3456 = scalar_lea.vmem %s0, 2276
  %v3457 = vld [vmem:[%s3456] sm:$0xf]
  %v3458 = vunpack.c.l.bf16 %v3457
  %v3459 = vunpack.c.h.bf16 %v3457
  %s3460 = scalar_lea.vmem %s1, 228
  %s3461 = scalar_lea.vmem %s3460, 4294967292
  %v3462 = vpack.c.bf16 %v3458, %v1262
  %3463 = vst [vmem:[%s3461] sm:$0xff] %v3462
  %s3464 = scalar_lea.vmem %s0, 1508
  %v3465 = vld [vmem:[%s3464] sm:$0xf]
  %v3466 = vunpack.c.l.bf16 %v3465
  %v3467 = vunpack.c.h.bf16 %v3465
  %s3468 = scalar_lea.vmem %s1, 996
  %s3469 = scalar_lea.vmem %s3468, 4294967292
  %v3470 = vpack.c.bf16 %v3466, %v1267
  %3471 = vst [vmem:[%s3469] sm:$0xff] %v3470
  %s3472 = scalar_lea.vmem %s0, 740
  %v3473 = vld [vmem:[%s3472] sm:$0xf]
  %v3474 = vunpack.c.l.bf16 %v3473
  %v3475 = vunpack.c.h.bf16 %v3473
  %s3476 = scalar_lea.vmem %s1, 1764
  %s3477 = scalar_lea.vmem %s3476, 4294967292
  %v3478 = vpack.c.bf16 %v3474, %v1272
  %3479 = vst [vmem:[%s3477] sm:$0xff] %v3478
  %s3480 = scalar_lea.vmem %s0, 2020
  %v3481 = vld [vmem:[%s3480] sm:$0xf]
  %v3482 = vunpack.c.l.bf16 %v3481
  %v3483 = vunpack.c.h.bf16 %v3481
  %s3484 = scalar_lea.vmem %s1, 484
  %s3485 = scalar_lea.vmem %s3484, 4294967292
  %v3486 = vpack.c.bf16 %v3482, %v1277
  %3487 = vst [vmem:[%s3485] sm:$0xff] %v3486
  %s3488 = scalar_lea.vmem %s0, 1252
  %v3489 = vld [vmem:[%s3488] sm:$0xf]
  %v3490 = vunpack.c.l.bf16 %v3489
  %v3491 = vunpack.c.h.bf16 %v3489
  %s3492 = scalar_lea.vmem %s1, 1252
  %s3493 = scalar_lea.vmem %s3492, 4294967292
  %v3494 = vpack.c.bf16 %v3490, %v1282
  %3495 = vst [vmem:[%s3493] sm:$0xff] %v3494
  %s3496 = scalar_lea.vmem %s0, 484
  %v3497 = vld [vmem:[%s3496] sm:$0xf]
  %v3498 = vunpack.c.l.bf16 %v3497
  %v3499 = vunpack.c.h.bf16 %v3497
  %s3500 = scalar_lea.vmem %s1, 2020
  %s3501 = scalar_lea.vmem %s3500, 4294967292
  %v3502 = vpack.c.bf16 %v3498, %v1287
  %3503 = vst [vmem:[%s3501] sm:$0xff] %v3502
  %s3504 = scalar_lea.vmem %s0, 1764
  %v3505 = vld [vmem:[%s3504] sm:$0xf]
  %v3506 = vunpack.c.l.bf16 %v3505
  %v3507 = vunpack.c.h.bf16 %v3505
  %s3508 = scalar_lea.vmem %s1, 740
  %s3509 = scalar_lea.vmem %s3508, 4294967292
  %v3510 = vpack.c.bf16 %v3506, %v1292
  %3511 = vst [vmem:[%s3509] sm:$0xff] %v3510
  %s3512 = scalar_lea.vmem %s0, 996
  %v3513 = vld [vmem:[%s3512] sm:$0xf]
  %v3514 = vunpack.c.l.bf16 %v3513
  %v3515 = vunpack.c.h.bf16 %v3513
  %s3516 = scalar_lea.vmem %s1, 1508
  %s3517 = scalar_lea.vmem %s3516, 4294967292
  %v3518 = vpack.c.bf16 %v3514, %v1297
  %3519 = vst [vmem:[%s3517] sm:$0xff] %v3518
  %s3520 = scalar_lea.vmem %s0, 228
  %v3521 = vld [vmem:[%s3520] sm:$0xf]
  %v3522 = vunpack.c.l.bf16 %v3521
  %v3523 = vunpack.c.h.bf16 %v3521
  %s3524 = scalar_lea.vmem %s1, 2276
  %s3525 = scalar_lea.vmem %s3524, 4294967292
  %v3526 = vpack.c.bf16 %v3522, %v1302
  %3527 = vst [vmem:[%s3525] sm:$0xff] %v3526
  %s3528 = scalar_lea.vmem %s0, 2284
  %v3529 = vld [vmem:[%s3528] sm:$0xf]
  %v3530 = vunpack.c.l.bf16 %v3529
  %v3531 = vunpack.c.h.bf16 %v3529
  %s3532 = scalar_lea.vmem %s1, 236
  %s3533 = scalar_lea.vmem %s3532, 4294967292
  %v3534 = vpack.c.bf16 %v3530, %v1307
  %3535 = vst [vmem:[%s3533] sm:$0xff] %v3534
  %s3536 = scalar_lea.vmem %s0, 1516
  %v3537 = vld [vmem:[%s3536] sm:$0xf]
  %v3538 = vunpack.c.l.bf16 %v3537
  %v3539 = vunpack.c.h.bf16 %v3537
  %s3540 = scalar_lea.vmem %s1, 1004
  %s3541 = scalar_lea.vmem %s3540, 4294967292
  %v3542 = vpack.c.bf16 %v3538, %v1312
  %3543 = vst [vmem:[%s3541] sm:$0xff] %v3542
  %s3544 = scalar_lea.vmem %s0, 748
  %v3545 = vld [vmem:[%s3544] sm:$0xf]
  %v3546 = vunpack.c.l.bf16 %v3545
  %v3547 = vunpack.c.h.bf16 %v3545
  %s3548 = scalar_lea.vmem %s1, 1772
  %s3549 = scalar_lea.vmem %s3548, 4294967292
  %v3550 = vpack.c.bf16 %v3546, %v1317
  %3551 = vst [vmem:[%s3549] sm:$0xff] %v3550
  %s3552 = scalar_lea.vmem %s0, 2028
  %v3553 = vld [vmem:[%s3552] sm:$0xf]
  %v3554 = vunpack.c.l.bf16 %v3553
  %v3555 = vunpack.c.h.bf16 %v3553
  %s3556 = scalar_lea.vmem %s1, 492
  %s3557 = scalar_lea.vmem %s3556, 4294967292
  %v3558 = vpack.c.bf16 %v3554, %v1322
  %3559 = vst [vmem:[%s3557] sm:$0xff] %v3558
  %s3560 = scalar_lea.vmem %s0, 1260
  %v3561 = vld [vmem:[%s3560] sm:$0xf]
  %v3562 = vunpack.c.l.bf16 %v3561
  %v3563 = vunpack.c.h.bf16 %v3561
  %s3564 = scalar_lea.vmem %s1, 1260
  %s3565 = scalar_lea.vmem %s3564, 4294967292
  %v3566 = vpack.c.bf16 %v3562, %v1327
  %3567 = vst [vmem:[%s3565] sm:$0xff] %v3566
  %s3568 = scalar_lea.vmem %s0, 492
  %v3569 = vld [vmem:[%s3568] sm:$0xf]
  %v3570 = vunpack.c.l.bf16 %v3569
  %v3571 = vunpack.c.h.bf16 %v3569
  %s3572 = scalar_lea.vmem %s1, 2028
  %s3573 = scalar_lea.vmem %s3572, 4294967292
  %v3574 = vpack.c.bf16 %v3570, %v1332
  %3575 = vst [vmem:[%s3573] sm:$0xff] %v3574
  %s3576 = scalar_lea.vmem %s0, 1772
  %v3577 = vld [vmem:[%s3576] sm:$0xf]
  %v3578 = vunpack.c.l.bf16 %v3577
  %v3579 = vunpack.c.h.bf16 %v3577
  %s3580 = scalar_lea.vmem %s1, 748
  %s3581 = scalar_lea.vmem %s3580, 4294967292
  %v3582 = vpack.c.bf16 %v3578, %v1337
  %3583 = vst [vmem:[%s3581] sm:$0xff] %v3582
  %s3584 = scalar_lea.vmem %s0, 1004
  %v3585 = vld [vmem:[%s3584] sm:$0xf]
  %v3586 = vunpack.c.l.bf16 %v3585
  %v3587 = vunpack.c.h.bf16 %v3585
  %s3588 = scalar_lea.vmem %s1, 1516
  %s3589 = scalar_lea.vmem %s3588, 4294967292
  %v3590 = vpack.c.bf16 %v3586, %v1342
  %3591 = vst [vmem:[%s3589] sm:$0xff] %v3590
  %s3592 = scalar_lea.vmem %s0, 236
  %v3593 = vld [vmem:[%s3592] sm:$0xf]
  %v3594 = vunpack.c.l.bf16 %v3593
  %v3595 = vunpack.c.h.bf16 %v3593
  %s3596 = scalar_lea.vmem %s1, 2284
  %s3597 = scalar_lea.vmem %s3596, 4294967292
  %v3598 = vpack.c.bf16 %v3594, %v1347
  %3599 = vst [vmem:[%s3597] sm:$0xff] %v3598
  %s3600 = scalar_lea.vmem %s0, 2292
  %v3601 = vld [vmem:[%s3600] sm:$0xf]
  %v3602 = vunpack.c.l.bf16 %v3601
  %v3603 = vunpack.c.h.bf16 %v3601
  %s3604 = scalar_lea.vmem %s1, 244
  %s3605 = scalar_lea.vmem %s3604, 4294967292
  %v3606 = vpack.c.bf16 %v3602, %v1352
  %3607 = vst [vmem:[%s3605] sm:$0xff] %v3606
  %s3608 = scalar_lea.vmem %s0, 1524
  %v3609 = vld [vmem:[%s3608] sm:$0xf]
  %v3610 = vunpack.c.l.bf16 %v3609
  %v3611 = vunpack.c.h.bf16 %v3609
  %s3612 = scalar_lea.vmem %s1, 1012
  %s3613 = scalar_lea.vmem %s3612, 4294967292
  %v3614 = vpack.c.bf16 %v3610, %v1357
  %3615 = vst [vmem:[%s3613] sm:$0xff] %v3614
  %s3616 = scalar_lea.vmem %s0, 756
  %v3617 = vld [vmem:[%s3616] sm:$0xf]
  %v3618 = vunpack.c.l.bf16 %v3617
  %v3619 = vunpack.c.h.bf16 %v3617
  %s3620 = scalar_lea.vmem %s1, 1780
  %s3621 = scalar_lea.vmem %s3620, 4294967292
  %v3622 = vpack.c.bf16 %v3618, %v1362
  %3623 = vst [vmem:[%s3621] sm:$0xff] %v3622
  %s3624 = scalar_lea.vmem %s0, 2036
  %v3625 = vld [vmem:[%s3624] sm:$0xf]
  %v3626 = vunpack.c.l.bf16 %v3625
  %v3627 = vunpack.c.h.bf16 %v3625
  %s3628 = scalar_lea.vmem %s1, 500
  %s3629 = scalar_lea.vmem %s3628, 4294967292
  %v3630 = vpack.c.bf16 %v3626, %v1367
  %3631 = vst [vmem:[%s3629] sm:$0xff] %v3630
  %s3632 = scalar_lea.vmem %s0, 1268
  %v3633 = vld [vmem:[%s3632] sm:$0xf]
  %v3634 = vunpack.c.l.bf16 %v3633
  %v3635 = vunpack.c.h.bf16 %v3633
  %s3636 = scalar_lea.vmem %s1, 1268
  %s3637 = scalar_lea.vmem %s3636, 4294967292
  %v3638 = vpack.c.bf16 %v3634, %v1372
  %3639 = vst [vmem:[%s3637] sm:$0xff] %v3638
  %s3640 = scalar_lea.vmem %s0, 500
  %v3641 = vld [vmem:[%s3640] sm:$0xf]
  %v3642 = vunpack.c.l.bf16 %v3641
  %v3643 = vunpack.c.h.bf16 %v3641
  %s3644 = scalar_lea.vmem %s1, 2036
  %s3645 = scalar_lea.vmem %s3644, 4294967292
  %v3646 = vpack.c.bf16 %v3642, %v1377
  %3647 = vst [vmem:[%s3645] sm:$0xff] %v3646
  %s3648 = scalar_lea.vmem %s0, 1780
  %v3649 = vld [vmem:[%s3648] sm:$0xf]
  %v3650 = vunpack.c.l.bf16 %v3649
  %v3651 = vunpack.c.h.bf16 %v3649
  %s3652 = scalar_lea.vmem %s1, 756
  %s3653 = scalar_lea.vmem %s3652, 4294967292
  %v3654 = vpack.c.bf16 %v3650, %v1382
  %3655 = vst [vmem:[%s3653] sm:$0xff] %v3654
  %s3656 = scalar_lea.vmem %s0, 1012
  %v3657 = vld [vmem:[%s3656] sm:$0xf]
  %v3658 = vunpack.c.l.bf16 %v3657
  %v3659 = vunpack.c.h.bf16 %v3657
  %s3660 = scalar_lea.vmem %s1, 1524
  %s3661 = scalar_lea.vmem %s3660, 4294967292
  %v3662 = vpack.c.bf16 %v3658, %v1387
  %3663 = vst [vmem:[%s3661] sm:$0xff] %v3662
  %s3664 = scalar_lea.vmem %s0, 244
  %v3665 = vld [vmem:[%s3664] sm:$0xf]
  %v3666 = vunpack.c.l.bf16 %v3665
  %v3667 = vunpack.c.h.bf16 %v3665
  %s3668 = scalar_lea.vmem %s1, 2292
  %s3669 = scalar_lea.vmem %s3668, 4294967292
  %v3670 = vpack.c.bf16 %v3666, %v1392
  %3671 = vst [vmem:[%s3669] sm:$0xff] %v3670
  %s3672 = scalar_lea.vmem %s0, 2300
  %v3673 = vld [vmem:[%s3672] sm:$0xf]
  %v3674 = vunpack.c.l.bf16 %v3673
  %v3675 = vunpack.c.h.bf16 %v3673
  %s3676 = scalar_lea.vmem %s1, 252
  %s3677 = scalar_lea.vmem %s3676, 4294967292
  %v3678 = vpack.c.bf16 %v3674, %v1397
  %3679 = vst [vmem:[%s3677] sm:$0xff] %v3678
  %s3680 = scalar_lea.vmem %s0, 1532
  %v3681 = vld [vmem:[%s3680] sm:$0xf]
  %v3682 = vunpack.c.l.bf16 %v3681
  %v3683 = vunpack.c.h.bf16 %v3681
  %s3684 = scalar_lea.vmem %s1, 1020
  %s3685 = scalar_lea.vmem %s3684, 4294967292
  %v3686 = vpack.c.bf16 %v3682, %v1402
  %3687 = vst [vmem:[%s3685] sm:$0xff] %v3686
  %s3688 = scalar_lea.vmem %s0, 764
  %v3689 = vld [vmem:[%s3688] sm:$0xf]
  %v3690 = vunpack.c.l.bf16 %v3689
  %v3691 = vunpack.c.h.bf16 %v3689
  %s3692 = scalar_lea.vmem %s1, 1788
  %s3693 = scalar_lea.vmem %s3692, 4294967292
  %v3694 = vpack.c.bf16 %v3690, %v1407
  %3695 = vst [vmem:[%s3693] sm:$0xff] %v3694
  %s3696 = scalar_lea.vmem %s0, 2044
  %v3697 = vld [vmem:[%s3696] sm:$0xf]
  %v3698 = vunpack.c.l.bf16 %v3697
  %v3699 = vunpack.c.h.bf16 %v3697
  %s3700 = scalar_lea.vmem %s1, 508
  %s3701 = scalar_lea.vmem %s3700, 4294967292
  %v3702 = vpack.c.bf16 %v3698, %v1412
  %3703 = vst [vmem:[%s3701] sm:$0xff] %v3702
  %s3704 = scalar_lea.vmem %s0, 1276
  %v3705 = vld [vmem:[%s3704] sm:$0xf]
  %v3706 = vunpack.c.l.bf16 %v3705
  %v3707 = vunpack.c.h.bf16 %v3705
  %s3708 = scalar_lea.vmem %s1, 1276
  %s3709 = scalar_lea.vmem %s3708, 4294967292
  %v3710 = vpack.c.bf16 %v3706, %v1417
  %3711 = vst [vmem:[%s3709] sm:$0xff] %v3710
  %s3712 = scalar_lea.vmem %s0, 508
  %v3713 = vld [vmem:[%s3712] sm:$0xf]
  %v3714 = vunpack.c.l.bf16 %v3713
  %v3715 = vunpack.c.h.bf16 %v3713
  %s3716 = scalar_lea.vmem %s1, 2044
  %s3717 = scalar_lea.vmem %s3716, 4294967292
  %v3718 = vpack.c.bf16 %v3714, %v1422
  %3719 = vst [vmem:[%s3717] sm:$0xff] %v3718
  %s3720 = scalar_lea.vmem %s0, 1788
  %v3721 = vld [vmem:[%s3720] sm:$0xf]
  %v3722 = vunpack.c.l.bf16 %v3721
  %v3723 = vunpack.c.h.bf16 %v3721
  %s3724 = scalar_lea.vmem %s1, 764
  %s3725 = scalar_lea.vmem %s3724, 4294967292
  %v3726 = vpack.c.bf16 %v3722, %v1427
  %3727 = vst [vmem:[%s3725] sm:$0xff] %v3726
  %s3728 = scalar_lea.vmem %s0, 1020
  %v3729 = vld [vmem:[%s3728] sm:$0xf]
  %v3730 = vunpack.c.l.bf16 %v3729
  %v3731 = vunpack.c.h.bf16 %v3729
  %s3732 = scalar_lea.vmem %s1, 1532
  %s3733 = scalar_lea.vmem %s3732, 4294967292
  %v3734 = vpack.c.bf16 %v3730, %v1432
  %3735 = vst [vmem:[%s3733] sm:$0xff] %v3734
  %s3736 = scalar_lea.vmem %s0, 252
  %v3737 = vld [vmem:[%s3736] sm:$0xf]
  %v3738 = vunpack.c.l.bf16 %v3737
  %v3739 = vunpack.c.h.bf16 %v3737
  %s3740 = scalar_lea.vmem %s1, 2300
  %s3741 = scalar_lea.vmem %s3740, 4294967292
  %v3742 = vpack.c.bf16 %v3738, %v1437
  %3743 = vst [vmem:[%s3741] sm:$0xff] %v3742

// kernel: reverse.5
$region0: #{reverse.5}
  #allocation0 [shape = 's32[1]{0}', space=sflag, size = 0x4, scoped, tag = 'scoped memory for reverse.5']
  %s0 = inlined_call_operand.vmem [shape: bf16[3,3,512,512], index: 0, kind: input, shape index: {}]
  %s1 = inlined_call_operand.vmem [shape: bf16[3,3,512,512], index: 1, kind: output, shape index: {}]
  loop: start=0, step=1, limit=28
  $region2: #{reverse.5} parent=0 // loop_pre_header
    _
  $region3: #{reverse.5} parent=0 // loop_header
    %s3 = sphi 0, %s7
    %p4 = scmp.ge.s32.totalorder %s3, 28
    %s18 = sphi 0, %s76
    %s19 = sphi 0, %s72
    %s20 = sphi 0, %s68
    %s21 = sphi 0, %s64
    %s22 = sphi 0, %s18
    %s23 = sphi 0, %s19
    %s24 = sphi 0, %s20
    %s25 = sphi 0, %s21
    %s26 = sphi 0, %s22
    %s27 = sphi 0, %s23
    %s28 = sphi 0, %s24
    %s29 = sphi 0, %s25
    %s30 = sphi 0, %s26
    %s31 = sphi 0, %s27
    %s32 = sphi 0, %s28
    %s33 = sphi 0, %s29
    %s34 = sphi 0, %s30
    %s35 = sphi 0, %s31
    %s36 = sphi 0, %s32
    %s37 = sphi 0, %s33
    %s38 = sphi 0, %s34
    %s39 = sphi 0, %s35
    %s40 = sphi 0, %s36
    %s41 = sphi 0, %s37
    %s42 = sphi 0, %s38
    %s43 = sphi 0, %s39
    %s44 = sphi 0, %s40
    %s45 = sphi 0, %s41
    %s46 = sphi 0, %s42
    %s47 = sphi 0, %s43
    %s48 = sphi 0, %s44
    %s49 = sphi 0, %s45
    %s50 = sphi 0, %s46
    %s51 = sphi 0, %s47
    %s52 = sphi 0, %s48
    %s53 = sphi 0, %s49
    %s54 = sphi 0, %s50
    %s55 = sphi 0, %s51
    %s56 = sphi 0, %s52
    %s57 = sphi 0, %s53
    %s58 = sphi 0, %s54
    %s59 = sphi 0, %s55
    %s60 = sphi 0, %s56
    %s61 = sphi 0, %s57
  $region4: #{reverse.5} parent=0 // loop_header_branch
    %6 = sbr.rel (%p4) target = $region8
  $region5: #{reverse.5} parent=0 // loop_body
    %s8 = ssub.s32 %s3, 1
    %s9 = ssub.s32 %s3, 2
    %s10 = ssub.s32 %s3, 3
    %s11 = ssub.s32 %s3, 4
    %s12 = ssub.s32 %s3, 5
    %s13 = ssub.s32 %s3, 6
    %s14 = ssub.s32 %s3, 7
    %s15 = ssub.s32 %s3, 8
    %s16 = ssub.s32 %s3, 9
    %s17 = ssub.s32 %s3, 10
    %s62 = sadd.s32 1, %s21
    %p63 = scmp.ge.s32.totalorder %s62, 1
    %s64 = scalar_select %p63, 0, %s62
    %s65 = sadd.s32 1, %s20
    %s66 = scalar_select %p63, %s65, %s20
    %p67 = scmp.ge.s32.totalorder %s66, 2
    %s68 = scalar_select %p67, 0, %s66
    %s69 = sadd.s32 1, %s19
    %s70 = scalar_select %p67, %s69, %s19
    %p71 = scmp.ge.s32.totalorder %s70, 3
    %s72 = scalar_select %p71, 0, %s70
    %s73 = sadd.s32 1, %s18
    %s74 = scalar_select %p71, %s73, %s18
    %p75 = scmp.ge.s32.totalorder %s74, 3
    %s76 = scalar_select %p75, 0, %s74
    %p77 = scmp.le.s32.totalorder 5, %s3
    %p78 = scmp.lt.s32.totalorder %s3, 23
    %p79 = pnand %p77, %p78
    %p80 = pneg %p79
    // Predicated region
    $region9: #{reverse.5} parent=5 // pred_check
      _
    $region10: #{reverse.5} parent=5 // pred_check_branch
      %82 = sbr.rel (%p79) target = $region12
    $region11: #{reverse.5} parent=5 // pred_region
      %s83 = ssub.s32 %s3, 5
    $region12: #{reverse.5} parent=5 // pred_fallthru
      _
    %p84 = scmp.lt.s32.totalorder %s3, 18
    // Predicated region
    $region13: #{reverse.5} parent=5 // pred_check
      %p85 = pneg %p84
    $region14: #{reverse.5} parent=5 // pred_check_branch
      %87 = sbr.rel (%p85) target = $region16
    $region15: #{reverse.5} parent=5 // pred_region
      %s88 = ssub.s32 2, %s18
      %s89 = ssub.s32 2, %s19
      %s90 = smul.u32 32, %s20
      %s91 = smul.u32 4, %s21
      %p92 = scmp.lt.s32.totalorder %s88, 2
      %s93 = scalar_select %p92, %s88, 2
      %p94 = scmp.lt.s32.totalorder %s89, 2
      %s95 = scalar_select %p94, %s89, 2
      %p96 = scmp.lt.s32.totalorder %s90, 63
      %s97 = scalar_select %p96, %s90, 63
      %p98 = scmp.lt.s32.totalorder %s91, 3
      %s99 = scalar_select %p98, %s91, 3
      %s100 = smul.addr %s97, 4
      %s101 = sadd.s32 %s99, %s100
      %s102 = smul.addr %s95, 256
      %s103 = sadd.s32 %s101, %s102
      %s104 = smul.addr %s93, 768
      %s105 = sadd.s32 %s103, %s104
      %s106 = smul.addr %s105, 4
      %s107 = scalar_lea.vmem %s0, %s106
      %s108 = ssub.s32 2, %s18
      %s109 = ssub.s32 2, %s19
      %s110 = smul.u32 32, %s20
      %s111 = smul.u32 4, %s21
    $region16: #{reverse.5} parent=5 // pred_fallthru
      _
    %p112 = scmp.le.s32.totalorder 5, %s3
    %p113 = scmp.lt.s32.totalorder %s3, 23
    %p114 = pnand %p112, %p113
    %p115 = pneg %p114
    // Predicated region
    $region17: #{reverse.5} parent=5 // pred_check
      _
    $region18: #{reverse.5} parent=5 // pred_check_branch
      %117 = sbr.rel (%p114) target = $region20
    $region19: #{reverse.5} parent=5 // pred_region
      %s118 = ssub.s32 %s3, 5
      %s119 = ssub.s32 2, %s38
      %s120 = ssub.s32 2, %s39
      %s121 = smul.u32 32, %s40
      %s122 = smul.u32 4, %s41
      %p123 = scmp.lt.s32.totalorder %s119, 2
      %s124 = scalar_select %p123, %s119, 2
      %p125 = scmp.lt.s32.totalorder %s120, 2
      %s126 = scalar_select %p125, %s120, 2
      %p127 = scmp.lt.s32.totalorder %s121, 63
      %s128 = scalar_select %p127, %s121, 63
      %p129 = scmp.lt.s32.totalorder %s122, 3
      %s130 = scalar_select %p129, %s122, 3
      %s131 = smul.addr %s128, 4
      %s132 = sadd.s32 %s130, %s131
      %s133 = smul.addr %s126, 256
      %s134 = sadd.s32 %s132, %s133
      %s135 = smul.addr %s124, 768
      %s136 = sadd.s32 %s134, %s135
      %s137 = smul.addr %s136, 4
      %s138 = scalar_lea.vmem %s0, %s137
      %s139 = smul.u32 32, %s40
      %s140 = smul.u32 4, %s41
      %p141 = scmp.lt.s32.totalorder %s38, 2
      %s142 = scalar_select %p141, %s38, 2
      %p143 = scmp.lt.s32.totalorder %s39, 2
      %s144 = scalar_select %p143, %s39, 2
      %p145 = scmp.lt.s32.totalorder %s139, 63
      %s146 = scalar_select %p145, %s139, 63
      %p147 = scmp.lt.s32.totalorder %s140, 3
      %s148 = scalar_select %p147, %s140, 3
      %s149 = smul.addr %s146, 4
      %s150 = sadd.s32 %s148, %s149
      %s151 = smul.addr %s144, 256
      %s152 = sadd.s32 %s150, %s151
      %s153 = smul.addr %s142, 768
      %s154 = sadd.s32 %s152, %s153
      %s155 = smul.addr %s154, 4
      %s156 = scalar_lea.vmem %s1, %s155
      %s157 = smul.u32 32, %s40
      %s158 = smul.u32 4, %s41
      %s159 = ssub.s32 2, %s38
      %s160 = ssub.s32 2, %s39
      %s161 = smul.u32 32, %s40
      %s162 = smul.u32 4, %s41
      %p163 = scmp.lt.s32.totalorder %s159, 2
      %s164 = scalar_select %p163, %s159, 2
      %p165 = scmp.lt.s32.totalorder %s160, 2
      %s166 = scalar_select %p165, %s160, 2
      %p167 = scmp.lt.s32.totalorder %s161, 63
      %s168 = scalar_select %p167, %s161, 63
      %p169 = scmp.lt.s32.totalorder %s162, 3
      %s170 = scalar_select %p169, %s162, 3
      %s171 = smul.addr %s168, 4
      %s172 = sadd.s32 %s170, %s171
      %s173 = smul.addr %s166, 256
      %s174 = sadd.s32 %s172, %s173
      %s175 = smul.addr %s164, 768
      %s176 = sadd.s32 %s174, %s175
      %s177 = smul.addr %s176, 4
      %s178 = scalar_lea.vmem %s0, %s177
      %s179 = ssub.s32 2, %s38
      %s180 = ssub.s32 2, %s39
      %s181 = smul.u32 32, %s40
      %s182 = smul.u32 4, %s41
      %s183 = smul.u32 32, %s40
      %s184 = smul.u32 4, %s41
      %p185 = scmp.lt.s32.totalorder %s38, 2
      %s186 = scalar_select %p185, %s38, 2
      %p187 = scmp.lt.s32.totalorder %s39, 2
      %s188 = scalar_select %p187, %s39, 2
      %p189 = scmp.lt.s32.totalorder %s183, 63
      %s190 = scalar_select %p189, %s183, 63
      %p191 = scmp.lt.s32.totalorder %s184, 3
      %s192 = scalar_select %p191, %s184, 3
      %s193 = smul.addr %s190, 4
      %s194 = sadd.s32 %s192, %s193
      %s195 = smul.addr %s188, 256
      %s196 = sadd.s32 %s194, %s195
      %s197 = smul.addr %s186, 768
      %s198 = sadd.s32 %s196, %s197
      %s199 = smul.addr %s198, 4
      %s200 = scalar_lea.vmem %s1, %s199
      %s201 = smul.u32 32, %s40
      %s202 = smul.u32 4, %s41
      %v203 = vld [vmem:[%s178] sm:$0xf]
      %v204 = vunpack.c.l.bf16 %v203
      %v205 = vunpack.c.h.bf16 %v203
      %s206 = scalar_lea.vmem %s178, 16
      %v207 = vld [vmem:[%s206] sm:$0xf]
      %v208 = vunpack.c.l.bf16 %v207
      %v209 = vunpack.c.h.bf16 %v207
      %s210 = scalar_lea.vmem %s200, 16
      %s211 = scalar_lea.vmem %s178, 32
      %v212 = vld [vmem:[%s211] sm:$0xf]
      %v213 = vunpack.c.l.bf16 %v212
      %v214 = vunpack.c.h.bf16 %v212
      %s215 = scalar_lea.vmem %s200, 32
      %s216 = scalar_lea.vmem %s178, 48
      %v217 = vld [vmem:[%s216] sm:$0xf]
      %v218 = vunpack.c.l.bf16 %v217
      %v219 = vunpack.c.h.bf16 %v217
      %s220 = scalar_lea.vmem %s200, 48
      %s221 = scalar_lea.vmem %s178, 64
      %v222 = vld [vmem:[%s221] sm:$0xf]
      %v223 = vunpack.c.l.bf16 %v222
      %v224 = vunpack.c.h.bf16 %v222
      %s225 = scalar_lea.vmem %s200, 64
      %s226 = scalar_lea.vmem %s178, 80
      %v227 = vld [vmem:[%s226] sm:$0xf]
      %v228 = vunpack.c.l.bf16 %v227
      %v229 = vunpack.c.h.bf16 %v227
      %s230 = scalar_lea.vmem %s200, 80
      %s231 = scalar_lea.vmem %s178, 96
      %v232 = vld [vmem:[%s231] sm:$0xf]
      %v233 = vunpack.c.l.bf16 %v232
      %v234 = vunpack.c.h.bf16 %v232
      %s235 = scalar_lea.vmem %s200, 96
      %s236 = scalar_lea.vmem %s178, 112
      %v237 = vld [vmem:[%s236] sm:$0xf]
      %v238 = vunpack.c.l.bf16 %v237
      %v239 = vunpack.c.h.bf16 %v237
      %s240 = scalar_lea.vmem %s200, 112
      %s241 = scalar_lea.vmem %s178, 128
      %v242 = vld [vmem:[%s241] sm:$0xf]
      %v243 = vunpack.c.l.bf16 %v242
      %v244 = vunpack.c.h.bf16 %v242
      %s245 = scalar_lea.vmem %s200, 128
      %s246 = scalar_lea.vmem %s178, 144
      %v247 = vld [vmem:[%s246] sm:$0xf]
      %v248 = vunpack.c.l.bf16 %v247
      %v249 = vunpack.c.h.bf16 %v247
      %s250 = scalar_lea.vmem %s200, 144
      %s251 = scalar_lea.vmem %s178, 160
      %v252 = vld [vmem:[%s251] sm:$0xf]
      %v253 = vunpack.c.l.bf16 %v252
      %v254 = vunpack.c.h.bf16 %v252
      %s255 = scalar_lea.vmem %s200, 160
      %s256 = scalar_lea.vmem %s178, 176
      %v257 = vld [vmem:[%s256] sm:$0xf]
      %v258 = vunpack.c.l.bf16 %v257
      %v259 = vunpack.c.h.bf16 %v257
      %s260 = scalar_lea.vmem %s200, 176
      %s261 = scalar_lea.vmem %s178, 192
      %v262 = vld [vmem:[%s261] sm:$0xf]
      %v263 = vunpack.c.l.bf16 %v262
      %v264 = vunpack.c.h.bf16 %v262
      %s265 = scalar_lea.vmem %s200, 192
      %s266 = scalar_lea.vmem %s178, 208
      %v267 = vld [vmem:[%s266] sm:$0xf]
      %v268 = vunpack.c.l.bf16 %v267
      %v269 = vunpack.c.h.bf16 %v267
      %s270 = scalar_lea.vmem %s200, 208
      %s271 = scalar_lea.vmem %s178, 224
      %v272 = vld [vmem:[%s271] sm:$0xf]
      %v273 = vunpack.c.l.bf16 %v272
      %v274 = vunpack.c.h.bf16 %v272
      %s275 = scalar_lea.vmem %s200, 224
      %s276 = scalar_lea.vmem %s178, 240
      %v277 = vld [vmem:[%s276] sm:$0xf]
      %v278 = vunpack.c.l.bf16 %v277
      %v279 = vunpack.c.h.bf16 %v277
      %s280 = scalar_lea.vmem %s200, 240
      %s281 = scalar_lea.vmem %s178, 256
      %v282 = vld [vmem:[%s281] sm:$0xf]
      %v283 = vunpack.c.l.bf16 %v282
      %v284 = vunpack.c.h.bf16 %v282
      %s285 = scalar_lea.vmem %s200, 256
      %s286 = scalar_lea.vmem %s178, 272
      %v287 = vld [vmem:[%s286] sm:$0xf]
      %v288 = vunpack.c.l.bf16 %v287
      %v289 = vunpack.c.h.bf16 %v287
      %s290 = scalar_lea.vmem %s200, 272
      %s291 = scalar_lea.vmem %s178, 288
      %v292 = vld [vmem:[%s291] sm:$0xf]
      %v293 = vunpack.c.l.bf16 %v292
      %v294 = vunpack.c.h.bf16 %v292
      %s295 = scalar_lea.vmem %s200, 288
      %s296 = scalar_lea.vmem %s178, 304
      %v297 = vld [vmem:[%s296] sm:$0xf]
      %v298 = vunpack.c.l.bf16 %v297
      %v299 = vunpack.c.h.bf16 %v297
      %s300 = scalar_lea.vmem %s200, 304
      %s301 = scalar_lea.vmem %s178, 320
      %v302 = vld [vmem:[%s301] sm:$0xf]
      %v303 = vunpack.c.l.bf16 %v302
      %v304 = vunpack.c.h.bf16 %v302
      %s305 = scalar_lea.vmem %s200, 320
      %s306 = scalar_lea.vmem %s178, 336
      %v307 = vld [vmem:[%s306] sm:$0xf]
      %v308 = vunpack.c.l.bf16 %v307
      %v309 = vunpack.c.h.bf16 %v307
      %s310 = scalar_lea.vmem %s200, 336
      %s311 = scalar_lea.vmem %s178, 352
      %v312 = vld [vmem:[%s311] sm:$0xf]
      %v313 = vunpack.c.l.bf16 %v312
      %v314 = vunpack.c.h.bf16 %v312
      %s315 = scalar_lea.vmem %s200, 352
      %s316 = scalar_lea.vmem %s178, 368
      %v317 = vld [vmem:[%s316] sm:$0xf]
      %v318 = vunpack.c.l.bf16 %v317
      %v319 = vunpack.c.h.bf16 %v317
      %s320 = scalar_lea.vmem %s200, 368
      %s321 = scalar_lea.vmem %s178, 384
      %v322 = vld [vmem:[%s321] sm:$0xf]
      %v323 = vunpack.c.l.bf16 %v322
      %v324 = vunpack.c.h.bf16 %v322
      %s325 = scalar_lea.vmem %s200, 384
      %s326 = scalar_lea.vmem %s178, 400
      %v327 = vld [vmem:[%s326] sm:$0xf]
      %v328 = vunpack.c.l.bf16 %v327
      %v329 = vunpack.c.h.bf16 %v327
      %s330 = scalar_lea.vmem %s200, 400
      %s331 = scalar_lea.vmem %s178, 416
      %v332 = vld [vmem:[%s331] sm:$0xf]
      %v333 = vunpack.c.l.bf16 %v332
      %v334 = vunpack.c.h.bf16 %v332
      %s335 = scalar_lea.vmem %s200, 416
      %s336 = scalar_lea.vmem %s178, 432
      %v337 = vld [vmem:[%s336] sm:$0xf]
      %v338 = vunpack.c.l.bf16 %v337
      %v339 = vunpack.c.h.bf16 %v337
      %s340 = scalar_lea.vmem %s200, 432
      %s341 = scalar_lea.vmem %s178, 448
      %v342 = vld [vmem:[%s341] sm:$0xf]
      %v343 = vunpack.c.l.bf16 %v342
      %v344 = vunpack.c.h.bf16 %v342
      %s345 = scalar_lea.vmem %s200, 448
      %s346 = scalar_lea.vmem %s178, 464
      %v347 = vld [vmem:[%s346] sm:$0xf]
      %v348 = vunpack.c.l.bf16 %v347
      %v349 = vunpack.c.h.bf16 %v347
      %s350 = scalar_lea.vmem %s200, 464
      %s351 = scalar_lea.vmem %s178, 480
      %v352 = vld [vmem:[%s351] sm:$0xf]
      %v353 = vunpack.c.l.bf16 %v352
      %v354 = vunpack.c.h.bf16 %v352
      %s355 = scalar_lea.vmem %s200, 480
      %s356 = scalar_lea.vmem %s178, 496
      %v357 = vld [vmem:[%s356] sm:$0xf]
      %v358 = vunpack.c.l.bf16 %v357
      %v359 = vunpack.c.h.bf16 %v357
      %s360 = scalar_lea.vmem %s200, 496
      %s361 = scalar_lea.vmem %s178, 4
      %v362 = vld [vmem:[%s361] sm:$0xf]
      %v363 = vunpack.c.l.bf16 %v362
      %v364 = vunpack.c.h.bf16 %v362
      %s365 = scalar_lea.vmem %s200, 4
      %s366 = scalar_lea.vmem %s365, 4294967292
      %v367 = vpack.c.bf16 %v363, %v204
      %368 = vst [vmem:[%s366] sm:$0xff] %v367
      %s369 = scalar_lea.vmem %s178, 20
      %v370 = vld [vmem:[%s369] sm:$0xf]
      %v371 = vunpack.c.l.bf16 %v370
      %v372 = vunpack.c.h.bf16 %v370
      %s373 = scalar_lea.vmem %s200, 20
      %s374 = scalar_lea.vmem %s373, 4294967292
      %v375 = vpack.c.bf16 %v371, %v208
      %376 = vst [vmem:[%s374] sm:$0xff] %v375
      %s377 = scalar_lea.vmem %s178, 36
      %v378 = vld [vmem:[%s377] sm:$0xf]
      %v379 = vunpack.c.l.bf16 %v378
      %v380 = vunpack.c.h.bf16 %v378
      %s381 = scalar_lea.vmem %s200, 36
      %s382 = scalar_lea.vmem %s381, 4294967292
      %v383 = vpack.c.bf16 %v379, %v213
      %384 = vst [vmem:[%s382] sm:$0xff] %v383
      %s385 = scalar_lea.vmem %s178, 52
      %v386 = vld [vmem:[%s385] sm:$0xf]
      %v387 = vunpack.c.l.bf16 %v386
      %v388 = vunpack.c.h.bf16 %v386
      %s389 = scalar_lea.vmem %s200, 52
      %s390 = scalar_lea.vmem %s389, 4294967292
      %v391 = vpack.c.bf16 %v387, %v218
      %392 = vst [vmem:[%s390] sm:$0xff] %v391
      %s393 = scalar_lea.vmem %s178, 68
      %v394 = vld [vmem:[%s393] sm:$0xf]
      %v395 = vunpack.c.l.bf16 %v394
      %v396 = vunpack.c.h.bf16 %v394
      %s397 = scalar_lea.vmem %s200, 68
      %s398 = scalar_lea.vmem %s397, 4294967292
      %v399 = vpack.c.bf16 %v395, %v223
      %400 = vst [vmem:[%s398] sm:$0xff] %v399
      %s401 = scalar_lea.vmem %s178, 84
      %v402 = vld [vmem:[%s401] sm:$0xf]
      %v403 = vunpack.c.l.bf16 %v402
      %v404 = vunpack.c.h.bf16 %v402
      %s405 = scalar_lea.vmem %s200, 84
      %s406 = scalar_lea.vmem %s405, 4294967292
      %v407 = vpack.c.bf16 %v403, %v228
      %408 = vst [vmem:[%s406] sm:$0xff] %v407
      %s409 = scalar_lea.vmem %s178, 100
      %v410 = vld [vmem:[%s409] sm:$0xf]
      %v411 = vunpack.c.l.bf16 %v410
      %v412 = vunpack.c.h.bf16 %v410
      %s413 = scalar_lea.vmem %s200, 100
      %s414 = scalar_lea.vmem %s413, 4294967292
      %v415 = vpack.c.bf16 %v411, %v233
      %416 = vst [vmem:[%s414] sm:$0xff] %v415
      %s417 = scalar_lea.vmem %s178, 116
      %v418 = vld [vmem:[%s417] sm:$0xf]
      %v419 = vunpack.c.l.bf16 %v418
      %v420 = vunpack.c.h.bf16 %v418
      %s421 = scalar_lea.vmem %s200, 116
      %s422 = scalar_lea.vmem %s421, 4294967292
      %v423 = vpack.c.bf16 %v419, %v238
      %424 = vst [vmem:[%s422] sm:$0xff] %v423
      %s425 = scalar_lea.vmem %s178, 132
      %v426 = vld [vmem:[%s425] sm:$0xf]
      %v427 = vunpack.c.l.bf16 %v426
      %v428 = vunpack.c.h.bf16 %v426
      %s429 = scalar_lea.vmem %s200, 132
      %s430 = scalar_lea.vmem %s429, 4294967292
      %v431 = vpack.c.bf16 %v427, %v243
      %432 = vst [vmem:[%s430] sm:$0xff] %v431
      %s433 = scalar_lea.vmem %s178, 148
      %v434 = vld [vmem:[%s433] sm:$0xf]
      %v435 = vunpack.c.l.bf16 %v434
      %v436 = vunpack.c.h.bf16 %v434
      %s437 = scalar_lea.vmem %s200, 148
      %s438 = scalar_lea.vmem %s437, 4294967292
      %v439 = vpack.c.bf16 %v435, %v248
      %440 = vst [vmem:[%s438] sm:$0xff] %v439
      %s441 = scalar_lea.vmem %s178, 164
      %v442 = vld [vmem:[%s441] sm:$0xf]
      %v443 = vunpack.c.l.bf16 %v442
      %v444 = vunpack.c.h.bf16 %v442
      %s445 = scalar_lea.vmem %s200, 164
      %s446 = scalar_lea.vmem %s445, 4294967292
      %v447 = vpack.c.bf16 %v443, %v253
      %448 = vst [vmem:[%s446] sm:$0xff] %v447
      %s449 = scalar_lea.vmem %s178, 180
      %v450 = vld [vmem:[%s449] sm:$0xf]
      %v451 = vunpack.c.l.bf16 %v450
      %v452 = vunpack.c.h.bf16 %v450
      %s453 = scalar_lea.vmem %s200, 180
      %s454 = scalar_lea.vmem %s453, 4294967292
      %v455 = vpack.c.bf16 %v451, %v258
      %456 = vst [vmem:[%s454] sm:$0xff] %v455
      %s457 = scalar_lea.vmem %s178, 196
      %v458 = vld [vmem:[%s457] sm:$0xf]
      %v459 = vunpack.c.l.bf16 %v458
      %v460 = vunpack.c.h.bf16 %v458
      %s461 = scalar_lea.vmem %s200, 196
      %s462 = scalar_lea.vmem %s461, 4294967292
      %v463 = vpack.c.bf16 %v459, %v263
      %464 = vst [vmem:[%s462] sm:$0xff] %v463
      %s465 = scalar_lea.vmem %s178, 212
      %v466 = vld [vmem:[%s465] sm:$0xf]
      %v467 = vunpack.c.l.bf16 %v466
      %v468 = vunpack.c.h.bf16 %v466
      %s469 = scalar_lea.vmem %s200, 212
      %s470 = scalar_lea.vmem %s469, 4294967292
      %v471 = vpack.c.bf16 %v467, %v268
      %472 = vst [vmem:[%s470] sm:$0xff] %v471
      %s473 = scalar_lea.vmem %s178, 228
      %v474 = vld [vmem:[%s473] sm:$0xf]
      %v475 = vunpack.c.l.bf16 %v474
      %v476 = vunpack.c.h.bf16 %v474
      %s477 = scalar_lea.vmem %s200, 228
      %s478 = scalar_lea.vmem %s477, 4294967292
      %v479 = vpack.c.bf16 %v475, %v273
      %480 = vst [vmem:[%s478] sm:$0xff] %v479
      %s481 = scalar_lea.vmem %s178, 244
      %v482 = vld [vmem:[%s481] sm:$0xf]
      %v483 = vunpack.c.l.bf16 %v482
      %v484 = vunpack.c.h.bf16 %v482
      %s485 = scalar_lea.vmem %s200, 244
      %s486 = scalar_lea.vmem %s485, 4294967292
      %v487 = vpack.c.bf16 %v483, %v278
      %488 = vst [vmem:[%s486] sm:$0xff] %v487
      %s489 = scalar_lea.vmem %s178, 260
      %v490 = vld [vmem:[%s489] sm:$0xf]
      %v491 = vunpack.c.l.bf16 %v490
      %v492 = vunpack.c.h.bf16 %v490
      %s493 = scalar_lea.vmem %s200, 260
      %s494 = scalar_lea.vmem %s493, 4294967292
      %v495 = vpack.c.bf16 %v491, %v283
      %496 = vst [vmem:[%s494] sm:$0xff] %v495
      %s497 = scalar_lea.vmem %s178, 276
      %v498 = vld [vmem:[%s497] sm:$0xf]
      %v499 = vunpack.c.l.bf16 %v498
      %v500 = vunpack.c.h.bf16 %v498
      %s501 = scalar_lea.vmem %s200, 276
      %s502 = scalar_lea.vmem %s501, 4294967292
      %v503 = vpack.c.bf16 %v499, %v288
      %504 = vst [vmem:[%s502] sm:$0xff] %v503
      %s505 = scalar_lea.vmem %s178, 292
      %v506 = vld [vmem:[%s505] sm:$0xf]
      %v507 = vunpack.c.l.bf16 %v506
      %v508 = vunpack.c.h.bf16 %v506
      %s509 = scalar_lea.vmem %s200, 292
      %s510 = scalar_lea.vmem %s509, 4294967292
      %v511 = vpack.c.bf16 %v507, %v293
      %512 = vst [vmem:[%s510] sm:$0xff] %v511
      %s513 = scalar_lea.vmem %s178, 308
      %v514 = vld [vmem:[%s513] sm:$0xf]
      %v515 = vunpack.c.l.bf16 %v514
      %v516 = vunpack.c.h.bf16 %v514
      %s517 = scalar_lea.vmem %s200, 308
      %s518 = scalar_lea.vmem %s517, 4294967292
      %v519 = vpack.c.bf16 %v515, %v298
      %520 = vst [vmem:[%s518] sm:$0xff] %v519
      %s521 = scalar_lea.vmem %s178, 324
      %v522 = vld [vmem:[%s521] sm:$0xf]
      %v523 = vunpack.c.l.bf16 %v522
      %v524 = vunpack.c.h.bf16 %v522
      %s525 = scalar_lea.vmem %s200, 324
      %s526 = scalar_lea.vmem %s525, 4294967292
      %v527 = vpack.c.bf16 %v523, %v303
      %528 = vst [vmem:[%s526] sm:$0xff] %v527
      %s529 = scalar_lea.vmem %s178, 340
      %v530 = vld [vmem:[%s529] sm:$0xf]
      %v531 = vunpack.c.l.bf16 %v530
      %v532 = vunpack.c.h.bf16 %v530
      %s533 = scalar_lea.vmem %s200, 340
      %s534 = scalar_lea.vmem %s533, 4294967292
      %v535 = vpack.c.bf16 %v531, %v308
      %536 = vst [vmem:[%s534] sm:$0xff] %v535
      %s537 = scalar_lea.vmem %s178, 356
      %v538 = vld [vmem:[%s537] sm:$0xf]
      %v539 = vunpack.c.l.bf16 %v538
      %v540 = vunpack.c.h.bf16 %v538
      %s541 = scalar_lea.vmem %s200, 356
      %s542 = scalar_lea.vmem %s541, 4294967292
      %v543 = vpack.c.bf16 %v539, %v313
      %544 = vst [vmem:[%s542] sm:$0xff] %v543
      %s545 = scalar_lea.vmem %s178, 372
      %v546 = vld [vmem:[%s545] sm:$0xf]
      %v547 = vunpack.c.l.bf16 %v546
      %v548 = vunpack.c.h.bf16 %v546
      %s549 = scalar_lea.vmem %s200, 372
      %s550 = scalar_lea.vmem %s549, 4294967292
      %v551 = vpack.c.bf16 %v547, %v318
      %552 = vst [vmem:[%s550] sm:$0xff] %v551
      %s553 = scalar_lea.vmem %s178, 388
      %v554 = vld [vmem:[%s553] sm:$0xf]
      %v555 = vunpack.c.l.bf16 %v554
      %v556 = vunpack.c.h.bf16 %v554
      %s557 = scalar_lea.vmem %s200, 388
      %s558 = scalar_lea.vmem %s557, 4294967292
      %v559 = vpack.c.bf16 %v555, %v323
      %560 = vst [vmem:[%s558] sm:$0xff] %v559
      %s561 = scalar_lea.vmem %s178, 404
      %v562 = vld [vmem:[%s561] sm:$0xf]
      %v563 = vunpack.c.l.bf16 %v562
      %v564 = vunpack.c.h.bf16 %v562
      %s565 = scalar_lea.vmem %s200, 404
      %s566 = scalar_lea.vmem %s565, 4294967292
      %v567 = vpack.c.bf16 %v563, %v328
      %568 = vst [vmem:[%s566] sm:$0xff] %v567
      %s569 = scalar_lea.vmem %s178, 420
      %v570 = vld [vmem:[%s569] sm:$0xf]
      %v571 = vunpack.c.l.bf16 %v570
      %v572 = vunpack.c.h.bf16 %v570
      %s573 = scalar_lea.vmem %s200, 420
      %s574 = scalar_lea.vmem %s573, 4294967292
      %v575 = vpack.c.bf16 %v571, %v333
      %576 = vst [vmem:[%s574] sm:$0xff] %v575
      %s577 = scalar_lea.vmem %s178, 436
      %v578 = vld [vmem:[%s577] sm:$0xf]
      %v579 = vunpack.c.l.bf16 %v578
      %v580 = vunpack.c.h.bf16 %v578
      %s581 = scalar_lea.vmem %s200, 436
      %s582 = scalar_lea.vmem %s581, 4294967292
      %v583 = vpack.c.bf16 %v579, %v338
      %584 = vst [vmem:[%s582] sm:$0xff] %v583
      %s585 = scalar_lea.vmem %s178, 452
      %v586 = vld [vmem:[%s585] sm:$0xf]
      %v587 = vunpack.c.l.bf16 %v586
      %v588 = vunpack.c.h.bf16 %v586
      %s589 = scalar_lea.vmem %s200, 452
      %s590 = scalar_lea.vmem %s589, 4294967292
      %v591 = vpack.c.bf16 %v587, %v343
      %592 = vst [vmem:[%s590] sm:$0xff] %v591
      %s593 = scalar_lea.vmem %s178, 468
      %v594 = vld [vmem:[%s593] sm:$0xf]
      %v595 = vunpack.c.l.bf16 %v594
      %v596 = vunpack.c.h.bf16 %v594
      %s597 = scalar_lea.vmem %s200, 468
      %s598 = scalar_lea.vmem %s597, 4294967292
      %v599 = vpack.c.bf16 %v595, %v348
      %600 = vst [vmem:[%s598] sm:$0xff] %v599
      %s601 = scalar_lea.vmem %s178, 484
      %v602 = vld [vmem:[%s601] sm:$0xf]
      %v603 = vunpack.c.l.bf16 %v602
      %v604 = vunpack.c.h.bf16 %v602
      %s605 = scalar_lea.vmem %s200, 484
      %s606 = scalar_lea.vmem %s605, 4294967292
      %v607 = vpack.c.bf16 %v603, %v353
      %608 = vst [vmem:[%s606] sm:$0xff] %v607
      %s609 = scalar_lea.vmem %s178, 500
      %v610 = vld [vmem:[%s609] sm:$0xf]
      %v611 = vunpack.c.l.bf16 %v610
      %v612 = vunpack.c.h.bf16 %v610
      %s613 = scalar_lea.vmem %s200, 500
      %s614 = scalar_lea.vmem %s613, 4294967292
      %v615 = vpack.c.bf16 %v611, %v358
      %616 = vst [vmem:[%s614] sm:$0xff] %v615
      %s617 = scalar_lea.vmem %s178, 8
      %v618 = vld [vmem:[%s617] sm:$0xf]
      %v619 = vunpack.c.l.bf16 %v618
      %v620 = vunpack.c.h.bf16 %v618
      %s621 = scalar_lea.vmem %s200, 8
      %s622 = scalar_lea.vmem %s178, 24
      %v623 = vld [vmem:[%s622] sm:$0xf]
      %v624 = vunpack.c.l.bf16 %v623
      %v625 = vunpack.c.h.bf16 %v623
      %s626 = scalar_lea.vmem %s200, 24
      %s627 = scalar_lea.vmem %s178, 40
      %v628 = vld [vmem:[%s627] sm:$0xf]
      %v629 = vunpack.c.l.bf16 %v628
      %v630 = vunpack.c.h.bf16 %v628
      %s631 = scalar_lea.vmem %s200, 40
      %s632 = scalar_lea.vmem %s178, 56
      %v633 = vld [vmem:[%s632] sm:$0xf]
      %v634 = vunpack.c.l.bf16 %v633
      %v635 = vunpack.c.h.bf16 %v633
      %s636 = scalar_lea.vmem %s200, 56
      %s637 = scalar_lea.vmem %s178, 72
      %v638 = vld [vmem:[%s637] sm:$0xf]
      %v639 = vunpack.c.l.bf16 %v638
      %v640 = vunpack.c.h.bf16 %v638
      %s641 = scalar_lea.vmem %s200, 72
      %s642 = scalar_lea.vmem %s178, 88
      %v643 = vld [vmem:[%s642] sm:$0xf]
      %v644 = vunpack.c.l.bf16 %v643
      %v645 = vunpack.c.h.bf16 %v643
      %s646 = scalar_lea.vmem %s200, 88
      %s647 = scalar_lea.vmem %s178, 104
      %v648 = vld [vmem:[%s647] sm:$0xf]
      %v649 = vunpack.c.l.bf16 %v648
      %v650 = vunpack.c.h.bf16 %v648
      %s651 = scalar_lea.vmem %s200, 104
      %s652 = scalar_lea.vmem %s178, 120
      %v653 = vld [vmem:[%s652] sm:$0xf]
      %v654 = vunpack.c.l.bf16 %v653
      %v655 = vunpack.c.h.bf16 %v653
      %s656 = scalar_lea.vmem %s200, 120
      %s657 = scalar_lea.vmem %s178, 136
      %v658 = vld [vmem:[%s657] sm:$0xf]
      %v659 = vunpack.c.l.bf16 %v658
      %v660 = vunpack.c.h.bf16 %v658
      %s661 = scalar_lea.vmem %s200, 136
      %s662 = scalar_lea.vmem %s178, 152
      %v663 = vld [vmem:[%s662] sm:$0xf]
      %v664 = vunpack.c.l.bf16 %v663
      %v665 = vunpack.c.h.bf16 %v663
      %s666 = scalar_lea.vmem %s200, 152
      %s667 = scalar_lea.vmem %s178, 168
      %v668 = vld [vmem:[%s667] sm:$0xf]
      %v669 = vunpack.c.l.bf16 %v668
      %v670 = vunpack.c.h.bf16 %v668
      %s671 = scalar_lea.vmem %s200, 168
      %s672 = scalar_lea.vmem %s178, 184
      %v673 = vld [vmem:[%s672] sm:$0xf]
      %v674 = vunpack.c.l.bf16 %v673
      %v675 = vunpack.c.h.bf16 %v673
      %s676 = scalar_lea.vmem %s200, 184
      %s677 = scalar_lea.vmem %s178, 200
      %v678 = vld [vmem:[%s677] sm:$0xf]
      %v679 = vunpack.c.l.bf16 %v678
      %v680 = vunpack.c.h.bf16 %v678
      %s681 = scalar_lea.vmem %s200, 200
      %s682 = scalar_lea.vmem %s178, 216
      %v683 = vld [vmem:[%s682] sm:$0xf]
      %v684 = vunpack.c.l.bf16 %v683
      %v685 = vunpack.c.h.bf16 %v683
      %s686 = scalar_lea.vmem %s200, 216
      %s687 = scalar_lea.vmem %s178, 232
      %v688 = vld [vmem:[%s687] sm:$0xf]
      %v689 = vunpack.c.l.bf16 %v688
      %v690 = vunpack.c.h.bf16 %v688
      %s691 = scalar_lea.vmem %s200, 232
      %s692 = scalar_lea.vmem %s178, 248
      %v693 = vld [vmem:[%s692] sm:$0xf]
      %v694 = vunpack.c.l.bf16 %v693
      %v695 = vunpack.c.h.bf16 %v693
      %s696 = scalar_lea.vmem %s200, 248
      %s697 = scalar_lea.vmem %s178, 264
      %v698 = vld [vmem:[%s697] sm:$0xf]
      %v699 = vunpack.c.l.bf16 %v698
      %v700 = vunpack.c.h.bf16 %v698
      %s701 = scalar_lea.vmem %s200, 264
      %s702 = scalar_lea.vmem %s178, 280
      %v703 = vld [vmem:[%s702] sm:$0xf]
      %v704 = vunpack.c.l.bf16 %v703
      %v705 = vunpack.c.h.bf16 %v703
      %s706 = scalar_lea.vmem %s200, 280
      %s707 = scalar_lea.vmem %s178, 296
      %v708 = vld [vmem:[%s707] sm:$0xf]
      %v709 = vunpack.c.l.bf16 %v708
      %v710 = vunpack.c.h.bf16 %v708
      %s711 = scalar_lea.vmem %s200, 296
      %s712 = scalar_lea.vmem %s178, 312
      %v713 = vld [vmem:[%s712] sm:$0xf]
      %v714 = vunpack.c.l.bf16 %v713
      %v715 = vunpack.c.h.bf16 %v713
      %s716 = scalar_lea.vmem %s200, 312
      %s717 = scalar_lea.vmem %s178, 328
      %v718 = vld [vmem:[%s717] sm:$0xf]
      %v719 = vunpack.c.l.bf16 %v718
      %v720 = vunpack.c.h.bf16 %v718
      %s721 = scalar_lea.vmem %s200, 328
      %s722 = scalar_lea.vmem %s178, 344
      %v723 = vld [vmem:[%s722] sm:$0xf]
      %v724 = vunpack.c.l.bf16 %v723
      %v725 = vunpack.c.h.bf16 %v723
      %s726 = scalar_lea.vmem %s200, 344
      %s727 = scalar_lea.vmem %s178, 360
      %v728 = vld [vmem:[%s727] sm:$0xf]
      %v729 = vunpack.c.l.bf16 %v728
      %v730 = vunpack.c.h.bf16 %v728
      %s731 = scalar_lea.vmem %s200, 360
      %s732 = scalar_lea.vmem %s178, 376
      %v733 = vld [vmem:[%s732] sm:$0xf]
      %v734 = vunpack.c.l.bf16 %v733
      %v735 = vunpack.c.h.bf16 %v733
      %s736 = scalar_lea.vmem %s200, 376
      %s737 = scalar_lea.vmem %s178, 392
      %v738 = vld [vmem:[%s737] sm:$0xf]
      %v739 = vunpack.c.l.bf16 %v738
      %v740 = vunpack.c.h.bf16 %v738
      %s741 = scalar_lea.vmem %s200, 392
      %s742 = scalar_lea.vmem %s178, 408
      %v743 = vld [vmem:[%s742] sm:$0xf]
      %v744 = vunpack.c.l.bf16 %v743
      %v745 = vunpack.c.h.bf16 %v743
      %s746 = scalar_lea.vmem %s200, 408
      %s747 = scalar_lea.vmem %s178, 424
      %v748 = vld [vmem:[%s747] sm:$0xf]
      %v749 = vunpack.c.l.bf16 %v748
      %v750 = vunpack.c.h.bf16 %v748
      %s751 = scalar_lea.vmem %s200, 424
      %s752 = scalar_lea.vmem %s178, 440
      %v753 = vld [vmem:[%s752] sm:$0xf]
      %v754 = vunpack.c.l.bf16 %v753
      %v755 = vunpack.c.h.bf16 %v753
      %s756 = scalar_lea.vmem %s200, 440
      %s757 = scalar_lea.vmem %s178, 456
      %v758 = vld [vmem:[%s757] sm:$0xf]
      %v759 = vunpack.c.l.bf16 %v758
      %v760 = vunpack.c.h.bf16 %v758
      %s761 = scalar_lea.vmem %s200, 456
      %s762 = scalar_lea.vmem %s178, 472
      %v763 = vld [vmem:[%s762] sm:$0xf]
      %v764 = vunpack.c.l.bf16 %v763
      %v765 = vunpack.c.h.bf16 %v763
      %s766 = scalar_lea.vmem %s200, 472
      %s767 = scalar_lea.vmem %s178, 488
      %v768 = vld [vmem:[%s767] sm:$0xf]
      %v769 = vunpack.c.l.bf16 %v768
      %v770 = vunpack.c.h.bf16 %v768
      %s771 = scalar_lea.vmem %s200, 488
      %s772 = scalar_lea.vmem %s178, 504
      %v773 = vld [vmem:[%s772] sm:$0xf]
      %v774 = vunpack.c.l.bf16 %v773
      %v775 = vunpack.c.h.bf16 %v773
      %s776 = scalar_lea.vmem %s200, 504
      %s777 = scalar_lea.vmem %s178, 12
      %v778 = vld [vmem:[%s777] sm:$0xf]
      %v779 = vunpack.c.l.bf16 %v778
      %v780 = vunpack.c.h.bf16 %v778
      %s781 = scalar_lea.vmem %s200, 12
      %s782 = scalar_lea.vmem %s781, 4294967292
      %v783 = vpack.c.bf16 %v779, %v619
      %784 = vst [vmem:[%s782] sm:$0xff] %v783
      %s785 = scalar_lea.vmem %s178, 28
      %v786 = vld [vmem:[%s785] sm:$0xf]
      %v787 = vunpack.c.l.bf16 %v786
      %v788 = vunpack.c.h.bf16 %v786
      %s789 = scalar_lea.vmem %s200, 28
      %s790 = scalar_lea.vmem %s789, 4294967292
      %v791 = vpack.c.bf16 %v787, %v624
      %792 = vst [vmem:[%s790] sm:$0xff] %v791
      %s793 = scalar_lea.vmem %s178, 44
      %v794 = vld [vmem:[%s793] sm:$0xf]
      %v795 = vunpack.c.l.bf16 %v794
      %v796 = vunpack.c.h.bf16 %v794
      %s797 = scalar_lea.vmem %s200, 44
      %s798 = scalar_lea.vmem %s797, 4294967292
      %v799 = vpack.c.bf16 %v795, %v629
      %800 = vst [vmem:[%s798] sm:$0xff] %v799
      %s801 = scalar_lea.vmem %s178, 60
      %v802 = vld [vmem:[%s801] sm:$0xf]
      %v803 = vunpack.c.l.bf16 %v802
      %v804 = vunpack.c.h.bf16 %v802
      %s805 = scalar_lea.vmem %s200, 60
      %s806 = scalar_lea.vmem %s805, 4294967292
      %v807 = vpack.c.bf16 %v803, %v634
      %808 = vst [vmem:[%s806] sm:$0xff] %v807
      %s809 = scalar_lea.vmem %s178, 76
      %v810 = vld [vmem:[%s809] sm:$0xf]
      %v811 = vunpack.c.l.bf16 %v810
      %v812 = vunpack.c.h.bf16 %v810
      %s813 = scalar_lea.vmem %s200, 76
      %s814 = scalar_lea.vmem %s813, 4294967292
      %v815 = vpack.c.bf16 %v811, %v639
      %816 = vst [vmem:[%s814] sm:$0xff] %v815
      %s817 = scalar_lea.vmem %s178, 92
      %v818 = vld [vmem:[%s817] sm:$0xf]
      %v819 = vunpack.c.l.bf16 %v818
      %v820 = vunpack.c.h.bf16 %v818
      %s821 = scalar_lea.vmem %s200, 92
      %s822 = scalar_lea.vmem %s821, 4294967292
      %v823 = vpack.c.bf16 %v819, %v644
      %824 = vst [vmem:[%s822] sm:$0xff] %v823
      %s825 = scalar_lea.vmem %s178, 108
      %v826 = vld [vmem:[%s825] sm:$0xf]
      %v827 = vunpack.c.l.bf16 %v826
      %v828 = vunpack.c.h.bf16 %v826
      %s829 = scalar_lea.vmem %s200, 108
      %s830 = scalar_lea.vmem %s829, 4294967292
      %v831 = vpack.c.bf16 %v827, %v649
      %832 = vst [vmem:[%s830] sm:$0xff] %v831
      %s833 = scalar_lea.vmem %s178, 124
      %v834 = vld [vmem:[%s833] sm:$0xf]
      %v835 = vunpack.c.l.bf16 %v834
      %v836 = vunpack.c.h.bf16 %v834
      %s837 = scalar_lea.vmem %s200, 124
      %s838 = scalar_lea.vmem %s837, 4294967292
      %v839 = vpack.c.bf16 %v835, %v654
      %840 = vst [vmem:[%s838] sm:$0xff] %v839
      %s841 = scalar_lea.vmem %s178, 140
      %v842 = vld [vmem:[%s841] sm:$0xf]
      %v843 = vunpack.c.l.bf16 %v842
      %v844 = vunpack.c.h.bf16 %v842
      %s845 = scalar_lea.vmem %s200, 140
      %s846 = scalar_lea.vmem %s845, 4294967292
      %v847 = vpack.c.bf16 %v843, %v659
      %848 = vst [vmem:[%s846] sm:$0xff] %v847
      %s849 = scalar_lea.vmem %s178, 156
      %v850 = vld [vmem:[%s849] sm:$0xf]
      %v851 = vunpack.c.l.bf16 %v850
      %v852 = vunpack.c.h.bf16 %v850
      %s853 = scalar_lea.vmem %s200, 156
      %s854 = scalar_lea.vmem %s853, 4294967292
      %v855 = vpack.c.bf16 %v851, %v664
      %856 = vst [vmem:[%s854] sm:$0xff] %v855
      %s857 = scalar_lea.vmem %s178, 172
      %v858 = vld [vmem:[%s857] sm:$0xf]
      %v859 = vunpack.c.l.bf16 %v858
      %v860 = vunpack.c.h.bf16 %v858
      %s861 = scalar_lea.vmem %s200, 172
      %s862 = scalar_lea.vmem %s861, 4294967292
      %v863 = vpack.c.bf16 %v859, %v669
      %864 = vst [vmem:[%s862] sm:$0xff] %v863
      %s865 = scalar_lea.vmem %s178, 188
      %v866 = vld [vmem:[%s865] sm:$0xf]
      %v867 = vunpack.c.l.bf16 %v866
      %v868 = vunpack.c.h.bf16 %v866
      %s869 = scalar_lea.vmem %s200, 188
      %s870 = scalar_lea.vmem %s869, 4294967292
      %v871 = vpack.c.bf16 %v867, %v674
      %872 = vst [vmem:[%s870] sm:$0xff] %v871
      %s873 = scalar_lea.vmem %s178, 204
      %v874 = vld [vmem:[%s873] sm:$0xf]
      %v875 = vunpack.c.l.bf16 %v874
      %v876 = vunpack.c.h.bf16 %v874
      %s877 = scalar_lea.vmem %s200, 204
      %s878 = scalar_lea.vmem %s877, 4294967292
      %v879 = vpack.c.bf16 %v875, %v679
      %880 = vst [vmem:[%s878] sm:$0xff] %v879
      %s881 = scalar_lea.vmem %s178, 220
      %v882 = vld [vmem:[%s881] sm:$0xf]
      %v883 = vunpack.c.l.bf16 %v882
      %v884 = vunpack.c.h.bf16 %v882
      %s885 = scalar_lea.vmem %s200, 220
      %s886 = scalar_lea.vmem %s885, 4294967292
      %v887 = vpack.c.bf16 %v883, %v684
      %888 = vst [vmem:[%s886] sm:$0xff] %v887
      %s889 = scalar_lea.vmem %s178, 236
      %v890 = vld [vmem:[%s889] sm:$0xf]
      %v891 = vunpack.c.l.bf16 %v890
      %v892 = vunpack.c.h.bf16 %v890
      %s893 = scalar_lea.vmem %s200, 236
      %s894 = scalar_lea.vmem %s893, 4294967292
      %v895 = vpack.c.bf16 %v891, %v689
      %896 = vst [vmem:[%s894] sm:$0xff] %v895
      %s897 = scalar_lea.vmem %s178, 252
      %v898 = vld [vmem:[%s897] sm:$0xf]
      %v899 = vunpack.c.l.bf16 %v898
      %v900 = vunpack.c.h.bf16 %v898
      %s901 = scalar_lea.vmem %s200, 252
      %s902 = scalar_lea.vmem %s901, 4294967292
      %v903 = vpack.c.bf16 %v899, %v694
      %904 = vst [vmem:[%s902] sm:$0xff] %v903
      %s905 = scalar_lea.vmem %s178, 268
      %v906 = vld [vmem:[%s905] sm:$0xf]
      %v907 = vunpack.c.l.bf16 %v906
      %v908 = vunpack.c.h.bf16 %v906
      %s909 = scalar_lea.vmem %s200, 268
      %s910 = scalar_lea.vmem %s909, 4294967292
      %v911 = vpack.c.bf16 %v907, %v699
      %912 = vst [vmem:[%s910] sm:$0xff] %v911
      %s913 = scalar_lea.vmem %s178, 284
      %v914 = vld [vmem:[%s913] sm:$0xf]
      %v915 = vunpack.c.l.bf16 %v914
      %v916 = vunpack.c.h.bf16 %v914
      %s917 = scalar_lea.vmem %s200, 284
      %s918 = scalar_lea.vmem %s917, 4294967292
      %v919 = vpack.c.bf16 %v915, %v704
      %920 = vst [vmem:[%s918] sm:$0xff] %v919
      %s921 = scalar_lea.vmem %s178, 300
      %v922 = vld [vmem:[%s921] sm:$0xf]
      %v923 = vunpack.c.l.bf16 %v922
      %v924 = vunpack.c.h.bf16 %v922
      %s925 = scalar_lea.vmem %s200, 300
      %s926 = scalar_lea.vmem %s925, 4294967292
      %v927 = vpack.c.bf16 %v923, %v709
      %928 = vst [vmem:[%s926] sm:$0xff] %v927
      %s929 = scalar_lea.vmem %s178, 316
      %v930 = vld [vmem:[%s929] sm:$0xf]
      %v931 = vunpack.c.l.bf16 %v930
      %v932 = vunpack.c.h.bf16 %v930
      %s933 = scalar_lea.vmem %s200, 316
      %s934 = scalar_lea.vmem %s933, 4294967292
      %v935 = vpack.c.bf16 %v931, %v714
      %936 = vst [vmem:[%s934] sm:$0xff] %v935
      %s937 = scalar_lea.vmem %s178, 332
      %v938 = vld [vmem:[%s937] sm:$0xf]
      %v939 = vunpack.c.l.bf16 %v938
      %v940 = vunpack.c.h.bf16 %v938
      %s941 = scalar_lea.vmem %s200, 332
      %s942 = scalar_lea.vmem %s941, 4294967292
      %v943 = vpack.c.bf16 %v939, %v719
      %944 = vst [vmem:[%s942] sm:$0xff] %v943
      %s945 = scalar_lea.vmem %s178, 348
      %v946 = vld [vmem:[%s945] sm:$0xf]
      %v947 = vunpack.c.l.bf16 %v946
      %v948 = vunpack.c.h.bf16 %v946
      %s949 = scalar_lea.vmem %s200, 348
      %s950 = scalar_lea.vmem %s949, 4294967292
      %v951 = vpack.c.bf16 %v947, %v724
      %952 = vst [vmem:[%s950] sm:$0xff] %v951
      %s953 = scalar_lea.vmem %s178, 364
      %v954 = vld [vmem:[%s953] sm:$0xf]
      %v955 = vunpack.c.l.bf16 %v954
      %v956 = vunpack.c.h.bf16 %v954
      %s957 = scalar_lea.vmem %s200, 364
      %s958 = scalar_lea.vmem %s957, 4294967292
      %v959 = vpack.c.bf16 %v955, %v729
      %960 = vst [vmem:[%s958] sm:$0xff] %v959
      %s961 = scalar_lea.vmem %s178, 380
      %v962 = vld [vmem:[%s961] sm:$0xf]
      %v963 = vunpack.c.l.bf16 %v962
      %v964 = vunpack.c.h.bf16 %v962
      %s965 = scalar_lea.vmem %s200, 380
      %s966 = scalar_lea.vmem %s965, 4294967292
      %v967 = vpack.c.bf16 %v963, %v734
      %968 = vst [vmem:[%s966] sm:$0xff] %v967
      %s969 = scalar_lea.vmem %s178, 396
      %v970 = vld [vmem:[%s969] sm:$0xf]
      %v971 = vunpack.c.l.bf16 %v970
      %v972 = vunpack.c.h.bf16 %v970
      %s973 = scalar_lea.vmem %s200, 396
      %s974 = scalar_lea.vmem %s973, 4294967292
      %v975 = vpack.c.bf16 %v971, %v739
      %976 = vst [vmem:[%s974] sm:$0xff] %v975
      %s977 = scalar_lea.vmem %s178, 412
      %v978 = vld [vmem:[%s977] sm:$0xf]
      %v979 = vunpack.c.l.bf16 %v978
      %v980 = vunpack.c.h.bf16 %v978
      %s981 = scalar_lea.vmem %s200, 412
      %s982 = scalar_lea.vmem %s981, 4294967292
      %v983 = vpack.c.bf16 %v979, %v744
      %984 = vst [vmem:[%s982] sm:$0xff] %v983
      %s985 = scalar_lea.vmem %s178, 428
      %v986 = vld [vmem:[%s985] sm:$0xf]
      %v987 = vunpack.c.l.bf16 %v986
      %v988 = vunpack.c.h.bf16 %v986
      %s989 = scalar_lea.vmem %s200, 428
      %s990 = scalar_lea.vmem %s989, 4294967292
      %v991 = vpack.c.bf16 %v987, %v749
      %992 = vst [vmem:[%s990] sm:$0xff] %v991
      %s993 = scalar_lea.vmem %s178, 444
      %v994 = vld [vmem:[%s993] sm:$0xf]
      %v995 = vunpack.c.l.bf16 %v994
      %v996 = vunpack.c.h.bf16 %v994
      %s997 = scalar_lea.vmem %s200, 444
      %s998 = scalar_lea.vmem %s997, 4294967292
      %v999 = vpack.c.bf16 %v995, %v754
      %1000 = vst [vmem:[%s998] sm:$0xff] %v999
      %s1001 = scalar_lea.vmem %s178, 460
      %v1002 = vld [vmem:[%s1001] sm:$0xf]
      %v1003 = vunpack.c.l.bf16 %v1002
      %v1004 = vunpack.c.h.bf16 %v1002
      %s1005 = scalar_lea.vmem %s200, 460
      %s1006 = scalar_lea.vmem %s1005, 4294967292
      %v1007 = vpack.c.bf16 %v1003, %v759
      %1008 = vst [vmem:[%s1006] sm:$0xff] %v1007
      %s1009 = scalar_lea.vmem %s178, 476
      %v1010 = vld [vmem:[%s1009] sm:$0xf]
      %v1011 = vunpack.c.l.bf16 %v1010
      %v1012 = vunpack.c.h.bf16 %v1010
      %s1013 = scalar_lea.vmem %s200, 476
      %s1014 = scalar_lea.vmem %s1013, 4294967292
      %v1015 = vpack.c.bf16 %v1011, %v764
      %1016 = vst [vmem:[%s1014] sm:$0xff] %v1015
      %s1017 = scalar_lea.vmem %s178, 492
      %v1018 = vld [vmem:[%s1017] sm:$0xf]
      %v1019 = vunpack.c.l.bf16 %v1018
      %v1020 = vunpack.c.h.bf16 %v1018
      %s1021 = scalar_lea.vmem %s200, 492
      %s1022 = scalar_lea.vmem %s1021, 4294967292
      %v1023 = vpack.c.bf16 %v1019, %v769
      %1024 = vst [vmem:[%s1022] sm:$0xff] %v1023
      %s1025 = scalar_lea.vmem %s178, 508
      %v1026 = vld [vmem:[%s1025] sm:$0xf]
      %v1027 = vunpack.c.l.bf16 %v1026
      %v1028 = vunpack.c.h.bf16 %v1026
      %s1029 = scalar_lea.vmem %s200, 508
      %s1030 = scalar_lea.vmem %s1029, 4294967292
      %v1031 = vpack.c.bf16 %v1027, %v774
      %1032 = vst [vmem:[%s1030] sm:$0xff] %v1031
      %s1033 = smul.u32 32, %s40
      %s1034 = smul.u32 4, %s41
      %p1035 = scmp.lt.s32.totalorder %s38, 2
      %s1036 = scalar_select %p1035, %s38, 2
      %p1037 = scmp.lt.s32.totalorder %s39, 2
      %s1038 = scalar_select %p1037, %s39, 2
      %p1039 = scmp.lt.s32.totalorder %s1033, 63
      %s1040 = scalar_select %p1039, %s1033, 63
      %p1041 = scmp.lt.s32.totalorder %s1034, 3
      %s1042 = scalar_select %p1041, %s1034, 3
      %s1043 = smul.addr %s1040, 4
      %s1044 = sadd.s32 %s1042, %s1043
      %s1045 = smul.addr %s1038, 256
      %s1046 = sadd.s32 %s1044, %s1045
      %s1047 = smul.addr %s1036, 768
      %s1048 = sadd.s32 %s1046, %s1047
      %s1049 = smul.addr %s1048, 4
      %s1050 = scalar_lea.vmem %s1, %s1049
      %s1051 = smul.u32 32, %s40
      %s1052 = smul.u32 4, %s41
    $region20: #{reverse.5} parent=5 // pred_fallthru
      _
    %p1053 = scmp.le.s32.totalorder 10, %s3
    // Predicated region
    $region21: #{reverse.5} parent=5 // pred_check
      %p1054 = pneg %p1053
    $region22: #{reverse.5} parent=5 // pred_check_branch
      %1056 = sbr.rel (%p1054) target = $region24
    $region23: #{reverse.5} parent=5 // pred_region
      %s1057 = ssub.s32 %s3, 10
      %s1058 = smul.u32 32, %s60
      %s1059 = smul.u32 4, %s61
      %p1060 = scmp.lt.s32.totalorder %s58, 2
      %s1061 = scalar_select %p1060, %s58, 2
      %p1062 = scmp.lt.s32.totalorder %s59, 2
      %s1063 = scalar_select %p1062, %s59, 2
      %p1064 = scmp.lt.s32.totalorder %s1058, 63
      %s1065 = scalar_select %p1064, %s1058, 63
      %p1066 = scmp.lt.s32.totalorder %s1059, 3
      %s1067 = scalar_select %p1066, %s1059, 3
      %s1068 = smul.addr %s1065, 4
      %s1069 = sadd.s32 %s1067, %s1068
      %s1070 = smul.addr %s1063, 256
      %s1071 = sadd.s32 %s1069, %s1070
      %s1072 = smul.addr %s1061, 768
      %s1073 = sadd.s32 %s1071, %s1072
      %s1074 = smul.addr %s1073, 4
      %s1075 = scalar_lea.vmem %s1, %s1074
    $region24: #{reverse.5} parent=5 // pred_fallthru
      _
  $region6: #{reverse.5} parent=0 // loop_footer
    %s7 = sadd.s32 1, %s3
  $region7: #{reverse.5} parent=0 // loop_footer_branch
    %2 = sbr.rel target = $region3
  $region8: #{reverse.5} parent=0 // loop_exit
    _

// kernel: encoder_cnn_forward.1
$region0: #{encoder_cnn_forward.1}
  #allocation0 [shape = 'u32[]', space=smem, size = 0x4, offset = 0x4, fixed_abs, tag = 'smem constant byte address 0x4 - core index']
  #allocation1 [shape = 'u32[72,128]{1,0:T(1,128)}', space=vmem, size = 0x9000, scoped, tag = 'internal scratch']
  %s0 = inlined_call_operand.vmem [shape: f32[2,2048], index: 0, kind: input, shape index: {}]
  %s1 = inlined_call_operand.vmem [shape: bf16[2048,256], index: 1, kind: input, shape index: {}]
  %s2 = inlined_call_operand.vmem [shape: f32[1,256], index: 2, kind: input, shape index: {}]
  %s3 = inlined_call_operand.vmem [shape: f32[1,256], index: 3, kind: input, shape index: {}]
  %s4 = inlined_call_operand.hbm [shape: f32[2,256], index: 4, kind: output, shape index: {}]
  %s5 = sld [smem:[#allocation0]]
  $region101: #{encoder_cnn_forward.1} parent=0
    _
  %s7 = ssub.s32 1, %s5
  %s8 = scalar_select 0, %s7, %s5
  $region1: #{encoder_cnn_forward.1} parent=0
    #allocation2 [shape = 'u8[1048576]{0}', space=vmem, size = 0x100000, scoped, tag = 'input window, operand 1']
    #allocation3 [shape = 'u8[2048]{0}', space=vmem, size = 0x800, scoped, tag = 'output window, operand 0']
    #allocation4 [shape = 's32[2]{0}', space=sflag, size = 0x8, scoped, tag = 'scoped memory for encoder_cnn_forward.1']
    %9 = vsyncpa [#allocation4], 0
    %s10 = scalar_lea.sflag [#allocation4], 1
    %11 = vsyncpa %s10, 0
    loop: start=0, step=1, limit=4
    $region2: #{encoder_cnn_forward.1} parent=1 // loop_pre_header
      _
    $region3: #{encoder_cnn_forward.1} parent=1 // loop_header
      %s13 = sphi 0, %s17
      %p14 = scmp.ge.s32.totalorder %s13, 4
      %s21 = sphi 0, %s21
      %s23 = sphi 0, %s21
      %s24 = sphi 0, %s23
      %s38 = sphi 0, %s24
      %s44 = sphi 0, %s46
      %s47 = sphi 0, %s44
      %s48 = sphi 0, %s47
      %s64 = sphi 0, %s48
      %s70 = sphi 0, %s72
      %s73 = sphi 0, %s70
      %s74 = sphi 0, %s73
      %s90 = sphi 0, %s74
      %s96 = sphi 0, %s98
      %s99 = sphi 0, %s96
      %s100 = sphi 0, %s99
      %s116 = sphi 0, %s100
      %s122 = sphi 0, %s124
      %s125 = sphi 0, %s122
      %s126 = sphi 0, %s125
      %s142 = sphi 0, %s126
    $region4: #{encoder_cnn_forward.1} parent=1 // loop_header_branch
      %16 = sbr.rel (%p14) target = $region8
    $region5: #{encoder_cnn_forward.1} parent=1 // loop_body
      %s18 = ssub.s32 %s13, 1
      %s19 = ssub.s32 %s13, 2
      %s20 = sadd.s32 %s13, 1
      %s22 = sadd.s32 %s21, 1
      %p25 = scmp.eq.s32.totalorder %s13, 1
      %p26 = scmp.ne.s32.totalorder %s21, %s23
      %p27 = scmp.eq.s32.totalorder %s13, 0
      %p28 = por %p26, %p27
      %p29 = scmp.ne.s32.totalorder %s21, %s23
      %p30 = scmp.eq.s32.totalorder %s18, 1
      %p31 = por %p29, %p30
      %p32 = scmp.ne.s32.totalorder %s23, %s24
      %p33 = scmp.eq.s32.totalorder %s18, 0
      %p34 = por %p32, %p33
      %p35 = scmp.ne.s32.totalorder %s23, %s24
      %p36 = scmp.eq.s32.totalorder %s19, 1
      %p37 = por %p35, %p36
      %p39 = scmp.ne.s32.totalorder %s24, %s38
      %p40 = scmp.eq.s32.totalorder %s19, 0
      %p41 = por %p39, %p40
      %s42 = ssub.s32 %s13, %s20
      %p43 = scmp.eq.s32.totalorder %s42, 0
      %s45 = sadd.s32 %s44, 1
      %s46 = scalar_select %p43, %s44, %s45
      %p49 = pneg %p43
      %p50 = scmp.eq.s32.totalorder %s13, 1
      %p51 = por %p49, %p50
      %p52 = scmp.ne.s32.totalorder %s44, %s47
      %p53 = scmp.eq.s32.totalorder %s13, 0
      %p54 = por %p52, %p53
      %p55 = scmp.ne.s32.totalorder %s44, %s47
      %p56 = scmp.eq.s32.totalorder %s18, 1
      %p57 = por %p55, %p56
      %p58 = scmp.ne.s32.totalorder %s47, %s48
      %p59 = scmp.eq.s32.totalorder %s18, 0
      %p60 = por %p58, %p59
      %p61 = scmp.ne.s32.totalorder %s47, %s48
      %p62 = scmp.eq.s32.totalorder %s19, 1
      %p63 = por %p61, %p62
      %p65 = scmp.ne.s32.totalorder %s48, %s64
      %p66 = scmp.eq.s32.totalorder %s19, 0
      %p67 = por %p65, %p66
      %s68 = ssub.s32 %s13, %s20
      %p69 = scmp.eq.s32.totalorder %s68, 0
      %s71 = sadd.s32 %s70, 1
      %s72 = scalar_select %p69, %s70, %s71
      %p75 = pneg %p69
      %p76 = scmp.eq.s32.totalorder %s13, 1
      %p77 = por %p75, %p76
      %p78 = scmp.ne.s32.totalorder %s70, %s73
      %p79 = scmp.eq.s32.totalorder %s13, 0
      %p80 = por %p78, %p79
      %p81 = scmp.ne.s32.totalorder %s70, %s73
      %p82 = scmp.eq.s32.totalorder %s18, 1
      %p83 = por %p81, %p82
      %p84 = scmp.ne.s32.totalorder %s73, %s74
      %p85 = scmp.eq.s32.totalorder %s18, 0
      %p86 = por %p84, %p85
      %p87 = scmp.ne.s32.totalorder %s73, %s74
      %p88 = scmp.eq.s32.totalorder %s19, 1
      %p89 = por %p87, %p88
      %p91 = scmp.ne.s32.totalorder %s74, %s90
      %p92 = scmp.eq.s32.totalorder %s19, 0
      %p93 = por %p91, %p92
      %s94 = ssub.s32 %s13, %s20
      %p95 = scmp.eq.s32.totalorder %s94, 0
      %s97 = sadd.s32 %s96, 1
      %s98 = scalar_select %p95, %s96, %s97
      %p101 = pneg %p95
      %p102 = scmp.eq.s32.totalorder %s13, 1
      %p103 = por %p101, %p102
      %p104 = scmp.ne.s32.totalorder %s96, %s99
      %p105 = scmp.eq.s32.totalorder %s13, 0
      %p106 = por %p104, %p105
      %p107 = scmp.ne.s32.totalorder %s96, %s99
      %p108 = scmp.eq.s32.totalorder %s18, 1
      %p109 = por %p107, %p108
      %p110 = scmp.ne.s32.totalorder %s99, %s100
      %p111 = scmp.eq.s32.totalorder %s18, 0
      %p112 = por %p110, %p111
      %p113 = scmp.ne.s32.totalorder %s99, %s100
      %p114 = scmp.eq.s32.totalorder %s19, 1
      %p115 = por %p113, %p114
      %p117 = scmp.ne.s32.totalorder %s100, %s116
      %p118 = scmp.eq.s32.totalorder %s19, 0
      %p119 = por %p117, %p118
      %s120 = ssub.s32 %s13, %s20
      %p121 = scmp.eq.s32.totalorder %s120, 0
      %s123 = sadd.s32 %s122, 1
      %s124 = scalar_select %p121, %s122, %s123
      %p127 = pneg %p121
      %p128 = scmp.eq.s32.totalorder %s13, 1
      %p129 = por %p127, %p128
      %p130 = scmp.ne.s32.totalorder %s122, %s125
      %p131 = scmp.eq.s32.totalorder %s13, 0
      %p132 = por %p130, %p131
      %p133 = scmp.ne.s32.totalorder %s122, %s125
      %p134 = scmp.eq.s32.totalorder %s18, 1
      %p135 = por %p133, %p134
      %p136 = scmp.ne.s32.totalorder %s125, %s126
      %p137 = scmp.eq.s32.totalorder %s18, 0
      %p138 = por %p136, %p137
      %p139 = scmp.ne.s32.totalorder %s125, %s126
      %p140 = scmp.eq.s32.totalorder %s19, 1
      %p141 = por %p139, %p140
      %p143 = scmp.ne.s32.totalorder %s126, %s142
      %p144 = scmp.eq.s32.totalorder %s19, 0
      %p145 = por %p143, %p144
      %p146 = scmp.le.s32.totalorder 1, %s13
      %p147 = scmp.lt.s32.totalorder %s13, 3
      %p148 = pnand %p146, %p147
      %p149 = pneg %p148
      // Predicated region
      $region9: #{encoder_cnn_forward.1} parent=5 // pred_check
        _
      $region10: #{encoder_cnn_forward.1} parent=5 // pred_check_branch
        %151 = sbr.rel (%p148) target = $region12
      $region11: #{encoder_cnn_forward.1} parent=5 // pred_region
        %s152 = ssub.s32 %s13, 1
        // Predicated region
        $region13: #{encoder_cnn_forward.1} parent=11 // pred_check
          %p153 = pneg %p34
        $region14: #{encoder_cnn_forward.1} parent=11 // pred_check_branch
          %155 = sbr.rel (%p153) target = $region16
        $region15: #{encoder_cnn_forward.1} parent=11 // pred_region
          _
        $region16: #{encoder_cnn_forward.1} parent=11 // pred_fallthru
          _
      $region12: #{encoder_cnn_forward.1} parent=5 // pred_fallthru
        _
      %p156 = scmp.lt.s32.totalorder %s13, 2
      // Predicated region
      $region17: #{encoder_cnn_forward.1} parent=5 // pred_check
        %p157 = pneg %p156
      $region18: #{encoder_cnn_forward.1} parent=5 // pred_check_branch
        %159 = sbr.rel (%p157) target = $region20
      $region19: #{encoder_cnn_forward.1} parent=5 // pred_region
        // Predicated region
        $region21: #{encoder_cnn_forward.1} parent=19 // pred_check
          %p160 = pneg %p54
        $region22: #{encoder_cnn_forward.1} parent=19 // pred_check_branch
          %162 = sbr.rel (%p160) target = $region24
        $region23: #{encoder_cnn_forward.1} parent=19 // pred_region
          %s163 = sand.u32 %s44, 1
          %s164 = sand.u32 %s44, 1
          %s165 = smul.addr %s164, 1024
          %s166 = scalar_lea.vmem [#allocation2], %s165
          %s167 = smul.addr %s13, 4
          %s168 = scalar_lea.vmem %s1, %s167
          // Predicated region
          $region25: #{encoder_cnn_forward.1} parent=23 // pred_check
            _
          $region26: #{encoder_cnn_forward.1} parent=23 // pred_check_branch
            %170 = sbr.rel (0) target = $region28
          $region27: #{encoder_cnn_forward.1} parent=23 // pred_region
            // Predicated region
            $region29: #{encoder_cnn_forward.1} parent=27 // pred_check
              _
            $region30: #{encoder_cnn_forward.1} parent=27 // pred_check_branch
              %172 = sbr.rel target = $region32
            $region31: #{encoder_cnn_forward.1} parent=27 // pred_region
              // Predicated region
              $region44: #{encoder_cnn_forward.1} parent=31 // pred_check
                _
              $region45: #{encoder_cnn_forward.1} parent=31 // pred_check_branch
                %698 = sbr.rel target = $region47
              $region46: #{encoder_cnn_forward.1} parent=31 // pred_region
                loop: start=0, step=1, limit=0
                $region48: #{encoder_cnn_forward.1} parent=46 // loop_pre_header
                  _
                $region49: #{encoder_cnn_forward.1} parent=46 // loop_header
                  %s700 = sphi 0, %s704
                  %p701 = scmp.ge.s32.totalorder %s700, 0
                  %s705 = sphi 0, %s1222
                  %s706 = sphi %s168, %s1225
                  %s707 = sphi %s166, %s1226
                $region50: #{encoder_cnn_forward.1} parent=46 // loop_header_branch
                  %703 = sbr.rel (%p701) target = $region54
                $region51: #{encoder_cnn_forward.1} parent=46 // loop_body
                  %v708 = vld [vmem:[%s706] sm:$0xff]
                  %709 = vst [vmem:[%s707] sm:$0xff] %v708
                  %v710 = vld [vmem:[%s706 + $0x8] sm:$0xff]
                  %711 = vst [vmem:[%s707 + $0x4] sm:$0xff] %v710
                  %v712 = vld [vmem:[%s706 + $0x10] sm:$0xff]
                  %713 = vst [vmem:[%s707 + $0x8] sm:$0xff] %v712
                  %v714 = vld [vmem:[%s706 + $0x18] sm:$0xff]
                  %715 = vst [vmem:[%s707 + $0xc] sm:$0xff] %v714
                  %v716 = vld [vmem:[%s706 + $0x20] sm:$0xff]
                  %717 = vst [vmem:[%s707 + $0x10] sm:$0xff] %v716
                  %v718 = vld [vmem:[%s706 + $0x28] sm:$0xff]
                  %719 = vst [vmem:[%s707 + $0x14] sm:$0xff] %v718
                  %v720 = vld [vmem:[%s706 + $0x30] sm:$0xff]
                  %721 = vst [vmem:[%s707 + $0x18] sm:$0xff] %v720
                  %v722 = vld [vmem:[%s706 + $0x38] sm:$0xff]
                  %723 = vst [vmem:[%s707 + $0x1c] sm:$0xff] %v722
                  %v724 = vld [vmem:[%s706 + $0x40] sm:$0xff]
                  %725 = vst [vmem:[%s707 + $0x20] sm:$0xff] %v724
                  %v726 = vld [vmem:[%s706 + $0x48] sm:$0xff]
                  %727 = vst [vmem:[%s707 + $0x24] sm:$0xff] %v726
                  %v728 = vld [vmem:[%s706 + $0x50] sm:$0xff]
                  %729 = vst [vmem:[%s707 + $0x28] sm:$0xff] %v728
                  %v730 = vld [vmem:[%s706 + $0x58] sm:$0xff]
                  %731 = vst [vmem:[%s707 + $0x2c] sm:$0xff] %v730
                  %v732 = vld [vmem:[%s706 + $0x60] sm:$0xff]
                  %733 = vst [vmem:[%s707 + $0x30] sm:$0xff] %v732
                  %v734 = vld [vmem:[%s706 + $0x68] sm:$0xff]
                  %735 = vst [vmem:[%s707 + $0x34] sm:$0xff] %v734
                  %v736 = vld [vmem:[%s706 + $0x70] sm:$0xff]
                  %737 = vst [vmem:[%s707 + $0x38] sm:$0xff] %v736
                  %v738 = vld [vmem:[%s706 + $0x78] sm:$0xff]
                  %739 = vst [vmem:[%s707 + $0x3c] sm:$0xff] %v738
                  %v740 = vld [vmem:[%s706 + $0x80] sm:$0xff]
                  %741 = vst [vmem:[%s707 + $0x40] sm:$0xff] %v740
                  %v742 = vld [vmem:[%s706 + $0x88] sm:$0xff]
                  %743 = vst [vmem:[%s707 + $0x44] sm:$0xff] %v742
                  %v744 = vld [vmem:[%s706 + $0x90] sm:$0xff]
                  %745 = vst [vmem:[%s707 + $0x48] sm:$0xff] %v744
                  %v746 = vld [vmem:[%s706 + $0x98] sm:$0xff]
                  %747 = vst [vmem:[%s707 + $0x4c] sm:$0xff] %v746
                  %v748 = vld [vmem:[%s706 + $0xa0] sm:$0xff]
                  %749 = vst [vmem:[%s707 + $0x50] sm:$0xff] %v748
                  %v750 = vld [vmem:[%s706 + $0xa8] sm:$0xff]
                  %751 = vst [vmem:[%s707 + $0x54] sm:$0xff] %v750
                  %v752 = vld [vmem:[%s706 + $0xb0] sm:$0xff]
                  %753 = vst [vmem:[%s707 + $0x58] sm:$0xff] %v752
                  %v754 = vld [vmem:[%s706 + $0xb8] sm:$0xff]
                  %755 = vst [vmem:[%s707 + $0x5c] sm:$0xff] %v754
                  %v756 = vld [vmem:[%s706 + $0xc0] sm:$0xff]
                  %757 = vst [vmem:[%s707 + $0x60] sm:$0xff] %v756
                  %v758 = vld [vmem:[%s706 + $0xc8] sm:$0xff]
                  %759 = vst [vmem:[%s707 + $0x64] sm:$0xff] %v758
                  %v760 = vld [vmem:[%s706 + $0xd0] sm:$0xff]
                  %761 = vst [vmem:[%s707 + $0x68] sm:$0xff] %v760
                  %v762 = vld [vmem:[%s706 + $0xd8] sm:$0xff]
                  %763 = vst [vmem:[%s707 + $0x6c] sm:$0xff] %v762
                  %v764 = vld [vmem:[%s706 + $0xe0] sm:$0xff]
                  %765 = vst [vmem:[%s707 + $0x70] sm:$0xff] %v764
                  %v766 = vld [vmem:[%s706 + $0xe8] sm:$0xff]
                  %767 = vst [vmem:[%s707 + $0x74] sm:$0xff] %v766
                  %v768 = vld [vmem:[%s706 + $0xf0] sm:$0xff]
                  %769 = vst [vmem:[%s707 + $0x78] sm:$0xff] %v768
                  %v770 = vld [vmem:[%s706 + $0xf8] sm:$0xff]
                  %771 = vst [vmem:[%s707 + $0x7c] sm:$0xff] %v770
                  %v772 = vld [vmem:[%s706 + $0x100] sm:$0xff]
                  %773 = vst [vmem:[%s707 + $0x80] sm:$0xff] %v772
                  %v774 = vld [vmem:[%s706 + $0x108] sm:$0xff]
                  %775 = vst [vmem:[%s707 + $0x84] sm:$0xff] %v774
                  %v776 = vld [vmem:[%s706 + $0x110] sm:$0xff]
                  %777 = vst [vmem:[%s707 + $0x88] sm:$0xff] %v776
                  %v778 = vld [vmem:[%s706 + $0x118] sm:$0xff]
                  %779 = vst [vmem:[%s707 + $0x8c] sm:$0xff] %v778
                  %v780 = vld [vmem:[%s706 + $0x120] sm:$0xff]
                  %781 = vst [vmem:[%s707 + $0x90] sm:$0xff] %v780
                  %v782 = vld [vmem:[%s706 + $0x128] sm:$0xff]
                  %783 = vst [vmem:[%s707 + $0x94] sm:$0xff] %v782
                  %v784 = vld [vmem:[%s706 + $0x130] sm:$0xff]
                  %785 = vst [vmem:[%s707 + $0x98] sm:$0xff] %v784
                  %v786 = vld [vmem:[%s706 + $0x138] sm:$0xff]
                  %787 = vst [vmem:[%s707 + $0x9c] sm:$0xff] %v786
                  %v788 = vld [vmem:[%s706 + $0x140] sm:$0xff]
                  %789 = vst [vmem:[%s707 + $0xa0] sm:$0xff] %v788
                  %v790 = vld [vmem:[%s706 + $0x148] sm:$0xff]
                  %791 = vst [vmem:[%s707 + $0xa4] sm:$0xff] %v790
                  %v792 = vld [vmem:[%s706 + $0x150] sm:$0xff]
                  %793 = vst [vmem:[%s707 + $0xa8] sm:$0xff] %v792
                  %v794 = vld [vmem:[%s706 + $0x158] sm:$0xff]
                  %795 = vst [vmem:[%s707 + $0xac] sm:$0xff] %v794
                  %v796 = vld [vmem:[%s706 + $0x160] sm:$0xff]
                  %797 = vst [vmem:[%s707 + $0xb0] sm:$0xff] %v796
                  %v798 = vld [vmem:[%s706 + $0x168] sm:$0xff]
                  %799 = vst [vmem:[%s707 + $0xb4] sm:$0xff] %v798
                  %v800 = vld [vmem:[%s706 + $0x170] sm:$0xff]
                  %801 = vst [vmem:[%s707 + $0xb8] sm:$0xff] %v800
                  %v802 = vld [vmem:[%s706 + $0x178] sm:$0xff]
                  %803 = vst [vmem:[%s707 + $0xbc] sm:$0xff] %v802
                  %v804 = vld [vmem:[%s706 + $0x180] sm:$0xff]
                  %805 = vst [vmem:[%s707 + $0xc0] sm:$0xff] %v804
                  %v806 = vld [vmem:[%s706 + $0x188] sm:$0xff]
                  %807 = vst [vmem:[%s707 + $0xc4] sm:$0xff] %v806
                  %v808 = vld [vmem:[%s706 + $0x190] sm:$0xff]
                  %809 = vst [vmem:[%s707 + $0xc8] sm:$0xff] %v808
                  %v810 = vld [vmem:[%s706 + $0x198] sm:$0xff]
                  %811 = vst [vmem:[%s707 + $0xcc] sm:$0xff] %v810
                  %v812 = vld [vmem:[%s706 + $0x1a0] sm:$0xff]
                  %813 = vst [vmem:[%s707 + $0xd0] sm:$0xff] %v812
                  %v814 = vld [vmem:[%s706 + $0x1a8] sm:$0xff]
                  %815 = vst [vmem:[%s707 + $0xd4] sm:$0xff] %v814
                  %v816 = vld [vmem:[%s706 + $0x1b0] sm:$0xff]
                  %817 = vst [vmem:[%s707 + $0xd8] sm:$0xff] %v816
                  %v818 = vld [vmem:[%s706 + $0x1b8] sm:$0xff]
                  %819 = vst [vmem:[%s707 + $0xdc] sm:$0xff] %v818
                  %v820 = vld [vmem:[%s706 + $0x1c0] sm:$0xff]
                  %821 = vst [vmem:[%s707 + $0xe0] sm:$0xff] %v820
                  %v822 = vld [vmem:[%s706 + $0x1c8] sm:$0xff]
                  %823 = vst [vmem:[%s707 + $0xe4] sm:$0xff] %v822
                  %v824 = vld [vmem:[%s706 + $0x1d0] sm:$0xff]
                  %825 = vst [vmem:[%s707 + $0xe8] sm:$0xff] %v824
                  %v826 = vld [vmem:[%s706 + $0x1d8] sm:$0xff]
                  %827 = vst [vmem:[%s707 + $0xec] sm:$0xff] %v826
                  %v828 = vld [vmem:[%s706 + $0x1e0] sm:$0xff]
                  %829 = vst [vmem:[%s707 + $0xf0] sm:$0xff] %v828
                  %v830 = vld [vmem:[%s706 + $0x1e8] sm:$0xff]
                  %831 = vst [vmem:[%s707 + $0xf4] sm:$0xff] %v830
                  %v832 = vld [vmem:[%s706 + $0x1f0] sm:$0xff]
                  %833 = vst [vmem:[%s707 + $0xf8] sm:$0xff] %v832
                  %v834 = vld [vmem:[%s706 + $0x1f8] sm:$0xff]
                  %835 = vst [vmem:[%s707 + $0xfc] sm:$0xff] %v834
                  %v836 = vld [vmem:[%s706 + $0x200] sm:$0xff]
                  %837 = vst [vmem:[%s707 + $0x100] sm:$0xff] %v836
                  %v838 = vld [vmem:[%s706 + $0x208] sm:$0xff]
                  %839 = vst [vmem:[%s707 + $0x104] sm:$0xff] %v838
                  %v840 = vld [vmem:[%s706 + $0x210] sm:$0xff]
                  %841 = vst [vmem:[%s707 + $0x108] sm:$0xff] %v840
                  %v842 = vld [vmem:[%s706 + $0x218] sm:$0xff]
                  %843 = vst [vmem:[%s707 + $0x10c] sm:$0xff] %v842
                  %v844 = vld [vmem:[%s706 + $0x220] sm:$0xff]
                  %845 = vst [vmem:[%s707 + $0x110] sm:$0xff] %v844
                  %v846 = vld [vmem:[%s706 + $0x228] sm:$0xff]
                  %847 = vst [vmem:[%s707 + $0x114] sm:$0xff] %v846
                  %v848 = vld [vmem:[%s706 + $0x230] sm:$0xff]
                  %849 = vst [vmem:[%s707 + $0x118] sm:$0xff] %v848
                  %v850 = vld [vmem:[%s706 + $0x238] sm:$0xff]
                  %851 = vst [vmem:[%s707 + $0x11c] sm:$0xff] %v850
                  %v852 = vld [vmem:[%s706 + $0x240] sm:$0xff]
                  %853 = vst [vmem:[%s707 + $0x120] sm:$0xff] %v852
                  %v854 = vld [vmem:[%s706 + $0x248] sm:$0xff]
                  %855 = vst [vmem:[%s707 + $0x124] sm:$0xff] %v854
                  %v856 = vld [vmem:[%s706 + $0x250] sm:$0xff]
                  %857 = vst [vmem:[%s707 + $0x128] sm:$0xff] %v856
                  %v858 = vld [vmem:[%s706 + $0x258] sm:$0xff]
                  %859 = vst [vmem:[%s707 + $0x12c] sm:$0xff] %v858
                  %v860 = vld [vmem:[%s706 + $0x260] sm:$0xff]
                  %861 = vst [vmem:[%s707 + $0x130] sm:$0xff] %v860
                  %v862 = vld [vmem:[%s706 + $0x268] sm:$0xff]
                  %863 = vst [vmem:[%s707 + $0x134] sm:$0xff] %v862
                  %v864 = vld [vmem:[%s706 + $0x270] sm:$0xff]
                  %865 = vst [vmem:[%s707 + $0x138] sm:$0xff] %v864
                  %v866 = vld [vmem:[%s706 + $0x278] sm:$0xff]
                  %867 = vst [vmem:[%s707 + $0x13c] sm:$0xff] %v866
                  %v868 = vld [vmem:[%s706 + $0x280] sm:$0xff]
                  %869 = vst [vmem:[%s707 + $0x140] sm:$0xff] %v868
                  %v870 = vld [vmem:[%s706 + $0x288] sm:$0xff]
                  %871 = vst [vmem:[%s707 + $0x144] sm:$0xff] %v870
                  %v872 = vld [vmem:[%s706 + $0x290] sm:$0xff]
                  %873 = vst [vmem:[%s707 + $0x148] sm:$0xff] %v872
                  %v874 = vld [vmem:[%s706 + $0x298] sm:$0xff]
                  %875 = vst [vmem:[%s707 + $0x14c] sm:$0xff] %v874
                  %v876 = vld [vmem:[%s706 + $0x2a0] sm:$0xff]
                  %877 = vst [vmem:[%s707 + $0x150] sm:$0xff] %v876
                  %v878 = vld [vmem:[%s706 + $0x2a8] sm:$0xff]
                  %879 = vst [vmem:[%s707 + $0x154] sm:$0xff] %v878
                  %v880 = vld [vmem:[%s706 + $0x2b0] sm:$0xff]
                  %881 = vst [vmem:[%s707 + $0x158] sm:$0xff] %v880
                  %v882 = vld [vmem:[%s706 + $0x2b8] sm:$0xff]
                  %883 = vst [vmem:[%s707 + $0x15c] sm:$0xff] %v882
                  %v884 = vld [vmem:[%s706 + $0x2c0] sm:$0xff]
                  %885 = vst [vmem:[%s707 + $0x160] sm:$0xff] %v884
                  %v886 = vld [vmem:[%s706 + $0x2c8] sm:$0xff]
                  %887 = vst [vmem:[%s707 + $0x164] sm:$0xff] %v886
                  %v888 = vld [vmem:[%s706 + $0x2d0] sm:$0xff]
                  %889 = vst [vmem:[%s707 + $0x168] sm:$0xff] %v888
                  %v890 = vld [vmem:[%s706 + $0x2d8] sm:$0xff]
                  %891 = vst [vmem:[%s707 + $0x16c] sm:$0xff] %v890
                  %v892 = vld [vmem:[%s706 + $0x2e0] sm:$0xff]
                  %893 = vst [vmem:[%s707 + $0x170] sm:$0xff] %v892
                  %v894 = vld [vmem:[%s706 + $0x2e8] sm:$0xff]
                  %895 = vst [vmem:[%s707 + $0x174] sm:$0xff] %v894
                  %v896 = vld [vmem:[%s706 + $0x2f0] sm:$0xff]
                  %897 = vst [vmem:[%s707 + $0x178] sm:$0xff] %v896
                  %v898 = vld [vmem:[%s706 + $0x2f8] sm:$0xff]
                  %899 = vst [vmem:[%s707 + $0x17c] sm:$0xff] %v898
                  %v900 = vld [vmem:[%s706 + $0x300] sm:$0xff]
                  %901 = vst [vmem:[%s707 + $0x180] sm:$0xff] %v900
                  %v902 = vld [vmem:[%s706 + $0x308] sm:$0xff]
                  %903 = vst [vmem:[%s707 + $0x184] sm:$0xff] %v902
                  %v904 = vld [vmem:[%s706 + $0x310] sm:$0xff]
                  %905 = vst [vmem:[%s707 + $0x188] sm:$0xff] %v904
                  %v906 = vld [vmem:[%s706 + $0x318] sm:$0xff]
                  %907 = vst [vmem:[%s707 + $0x18c] sm:$0xff] %v906
                  %v908 = vld [vmem:[%s706 + $0x320] sm:$0xff]
                  %909 = vst [vmem:[%s707 + $0x190] sm:$0xff] %v908
                  %v910 = vld [vmem:[%s706 + $0x328] sm:$0xff]
                  %911 = vst [vmem:[%s707 + $0x194] sm:$0xff] %v910
                  %v912 = vld [vmem:[%s706 + $0x330] sm:$0xff]
                  %913 = vst [vmem:[%s707 + $0x198] sm:$0xff] %v912
                  %v914 = vld [vmem:[%s706 + $0x338] sm:$0xff]
                  %915 = vst [vmem:[%s707 + $0x19c] sm:$0xff] %v914
                  %v916 = vld [vmem:[%s706 + $0x340] sm:$0xff]
                  %917 = vst [vmem:[%s707 + $0x1a0] sm:$0xff] %v916
                  %v918 = vld [vmem:[%s706 + $0x348] sm:$0xff]
                  %919 = vst [vmem:[%s707 + $0x1a4] sm:$0xff] %v918
                  %v920 = vld [vmem:[%s706 + $0x350] sm:$0xff]
                  %921 = vst [vmem:[%s707 + $0x1a8] sm:$0xff] %v920
                  %v922 = vld [vmem:[%s706 + $0x358] sm:$0xff]
                  %923 = vst [vmem:[%s707 + $0x1ac] sm:$0xff] %v922
                  %v924 = vld [vmem:[%s706 + $0x360] sm:$0xff]
                  %925 = vst [vmem:[%s707 + $0x1b0] sm:$0xff] %v924
                  %v926 = vld [vmem:[%s706 + $0x368] sm:$0xff]
                  %927 = vst [vmem:[%s707 + $0x1b4] sm:$0xff] %v926
                  %v928 = vld [vmem:[%s706 + $0x370] sm:$0xff]
                  %929 = vst [vmem:[%s707 + $0x1b8] sm:$0xff] %v928
                  %v930 = vld [vmem:[%s706 + $0x378] sm:$0xff]
                  %931 = vst [vmem:[%s707 + $0x1bc] sm:$0xff] %v930
                  %v932 = vld [vmem:[%s706 + $0x380] sm:$0xff]
                  %933 = vst [vmem:[%s707 + $0x1c0] sm:$0xff] %v932
                  %v934 = vld [vmem:[%s706 + $0x388] sm:$0xff]
                  %935 = vst [vmem:[%s707 + $0x1c4] sm:$0xff] %v934
                  %v936 = vld [vmem:[%s706 + $0x390] sm:$0xff]
                  %937 = vst [vmem:[%s707 + $0x1c8] sm:$0xff] %v936
                  %v938 = vld [vmem:[%s706 + $0x398] sm:$0xff]
                  %939 = vst [vmem:[%s707 + $0x1cc] sm:$0xff] %v938
                  %v940 = vld [vmem:[%s706 + $0x3a0] sm:$0xff]
                  %941 = vst [vmem:[%s707 + $0x1d0] sm:$0xff] %v940
                  %v942 = vld [vmem:[%s706 + $0x3a8] sm:$0xff]
                  %943 = vst [vmem:[%s707 + $0x1d4] sm:$0xff] %v942
                  %v944 = vld [vmem:[%s706 + $0x3b0] sm:$0xff]
                  %945 = vst [vmem:[%s707 + $0x1d8] sm:$0xff] %v944
                  %v946 = vld [vmem:[%s706 + $0x3b8] sm:$0xff]
                  %947 = vst [vmem:[%s707 + $0x1dc] sm:$0xff] %v946
                  %v948 = vld [vmem:[%s706 + $0x3c0] sm:$0xff]
                  %949 = vst [vmem:[%s707 + $0x1e0] sm:$0xff] %v948
                  %v950 = vld [vmem:[%s706 + $0x3c8] sm:$0xff]
                  %951 = vst [vmem:[%s707 + $0x1e4] sm:$0xff] %v950
                  %v952 = vld [vmem:[%s706 + $0x3d0] sm:$0xff]
                  %953 = vst [vmem:[%s707 + $0x1e8] sm:$0xff] %v952
                  %v954 = vld [vmem:[%s706 + $0x3d8] sm:$0xff]
                  %955 = vst [vmem:[%s707 + $0x1ec] sm:$0xff] %v954
                  %v956 = vld [vmem:[%s706 + $0x3e0] sm:$0xff]
                  %957 = vst [vmem:[%s707 + $0x1f0] sm:$0xff] %v956
                  %v958 = vld [vmem:[%s706 + $0x3e8] sm:$0xff]
                  %959 = vst [vmem:[%s707 + $0x1f4] sm:$0xff] %v958
                  %v960 = vld [vmem:[%s706 + $0x3f0] sm:$0xff]
                  %961 = vst [vmem:[%s707 + $0x1f8] sm:$0xff] %v960
                  %v962 = vld [vmem:[%s706 + $0x3f8] sm:$0xff]
                  %963 = vst [vmem:[%s707 + $0x1fc] sm:$0xff] %v962
                  %v964 = vld [vmem:[%s706 + $0x400] sm:$0xff]
                  %965 = vst [vmem:[%s707 + $0x200] sm:$0xff] %v964
                  %v966 = vld [vmem:[%s706 + $0x408] sm:$0xff]
                  %967 = vst [vmem:[%s707 + $0x204] sm:$0xff] %v966
                  %v968 = vld [vmem:[%s706 + $0x410] sm:$0xff]
                  %969 = vst [vmem:[%s707 + $0x208] sm:$0xff] %v968
                  %v970 = vld [vmem:[%s706 + $0x418] sm:$0xff]
                  %971 = vst [vmem:[%s707 + $0x20c] sm:$0xff] %v970
                  %v972 = vld [vmem:[%s706 + $0x420] sm:$0xff]
                  %973 = vst [vmem:[%s707 + $0x210] sm:$0xff] %v972
                  %v974 = vld [vmem:[%s706 + $0x428] sm:$0xff]
                  %975 = vst [vmem:[%s707 + $0x214] sm:$0xff] %v974
                  %v976 = vld [vmem:[%s706 + $0x430] sm:$0xff]
                  %977 = vst [vmem:[%s707 + $0x218] sm:$0xff] %v976
                  %v978 = vld [vmem:[%s706 + $0x438] sm:$0xff]
                  %979 = vst [vmem:[%s707 + $0x21c] sm:$0xff] %v978
                  %v980 = vld [vmem:[%s706 + $0x440] sm:$0xff]
                  %981 = vst [vmem:[%s707 + $0x220] sm:$0xff] %v980
                  %v982 = vld [vmem:[%s706 + $0x448] sm:$0xff]
                  %983 = vst [vmem:[%s707 + $0x224] sm:$0xff] %v982
                  %v984 = vld [vmem:[%s706 + $0x450] sm:$0xff]
                  %985 = vst [vmem:[%s707 + $0x228] sm:$0xff] %v984
                  %v986 = vld [vmem:[%s706 + $0x458] sm:$0xff]
                  %987 = vst [vmem:[%s707 + $0x22c] sm:$0xff] %v986
                  %v988 = vld [vmem:[%s706 + $0x460] sm:$0xff]
                  %989 = vst [vmem:[%s707 + $0x230] sm:$0xff] %v988
                  %v990 = vld [vmem:[%s706 + $0x468] sm:$0xff]
                  %991 = vst [vmem:[%s707 + $0x234] sm:$0xff] %v990
                  %v992 = vld [vmem:[%s706 + $0x470] sm:$0xff]
                  %993 = vst [vmem:[%s707 + $0x238] sm:$0xff] %v992
                  %v994 = vld [vmem:[%s706 + $0x478] sm:$0xff]
                  %995 = vst [vmem:[%s707 + $0x23c] sm:$0xff] %v994
                  %v996 = vld [vmem:[%s706 + $0x480] sm:$0xff]
                  %997 = vst [vmem:[%s707 + $0x240] sm:$0xff] %v996
                  %v998 = vld [vmem:[%s706 + $0x488] sm:$0xff]
                  %999 = vst [vmem:[%s707 + $0x244] sm:$0xff] %v998
                  %v1000 = vld [vmem:[%s706 + $0x490] sm:$0xff]
                  %1001 = vst [vmem:[%s707 + $0x248] sm:$0xff] %v1000
                  %v1002 = vld [vmem:[%s706 + $0x498] sm:$0xff]
                  %1003 = vst [vmem:[%s707 + $0x24c] sm:$0xff] %v1002
                  %v1004 = vld [vmem:[%s706 + $0x4a0] sm:$0xff]
                  %1005 = vst [vmem:[%s707 + $0x250] sm:$0xff] %v1004
                  %v1006 = vld [vmem:[%s706 + $0x4a8] sm:$0xff]
                  %1007 = vst [vmem:[%s707 + $0x254] sm:$0xff] %v1006
                  %v1008 = vld [vmem:[%s706 + $0x4b0] sm:$0xff]
                  %1009 = vst [vmem:[%s707 + $0x258] sm:$0xff] %v1008
                  %v1010 = vld [vmem:[%s706 + $0x4b8] sm:$0xff]
                  %1011 = vst [vmem:[%s707 + $0x25c] sm:$0xff] %v1010
                  %v1012 = vld [vmem:[%s706 + $0x4c0] sm:$0xff]
                  %1013 = vst [vmem:[%s707 + $0x260] sm:$0xff] %v1012
                  %v1014 = vld [vmem:[%s706 + $0x4c8] sm:$0xff]
                  %1015 = vst [vmem:[%s707 + $0x264] sm:$0xff] %v1014
                  %v1016 = vld [vmem:[%s706 + $0x4d0] sm:$0xff]
                  %1017 = vst [vmem:[%s707 + $0x268] sm:$0xff] %v1016
                  %v1018 = vld [vmem:[%s706 + $0x4d8] sm:$0xff]
                  %1019 = vst [vmem:[%s707 + $0x26c] sm:$0xff] %v1018
                  %v1020 = vld [vmem:[%s706 + $0x4e0] sm:$0xff]
                  %1021 = vst [vmem:[%s707 + $0x270] sm:$0xff] %v1020
                  %v1022 = vld [vmem:[%s706 + $0x4e8] sm:$0xff]
                  %1023 = vst [vmem:[%s707 + $0x274] sm:$0xff] %v1022
                  %v1024 = vld [vmem:[%s706 + $0x4f0] sm:$0xff]
                  %1025 = vst [vmem:[%s707 + $0x278] sm:$0xff] %v1024
                  %v1026 = vld [vmem:[%s706 + $0x4f8] sm:$0xff]
                  %1027 = vst [vmem:[%s707 + $0x27c] sm:$0xff] %v1026
                  %v1028 = vld [vmem:[%s706 + $0x500] sm:$0xff]
                  %1029 = vst [vmem:[%s707 + $0x280] sm:$0xff] %v1028
                  %v1030 = vld [vmem:[%s706 + $0x508] sm:$0xff]
                  %1031 = vst [vmem:[%s707 + $0x284] sm:$0xff] %v1030
                  %v1032 = vld [vmem:[%s706 + $0x510] sm:$0xff]
                  %1033 = vst [vmem:[%s707 + $0x288] sm:$0xff] %v1032
                  %v1034 = vld [vmem:[%s706 + $0x518] sm:$0xff]
                  %1035 = vst [vmem:[%s707 + $0x28c] sm:$0xff] %v1034
                  %v1036 = vld [vmem:[%s706 + $0x520] sm:$0xff]
                  %1037 = vst [vmem:[%s707 + $0x290] sm:$0xff] %v1036
                  %v1038 = vld [vmem:[%s706 + $0x528] sm:$0xff]
                  %1039 = vst [vmem:[%s707 + $0x294] sm:$0xff] %v1038
                  %v1040 = vld [vmem:[%s706 + $0x530] sm:$0xff]
                  %1041 = vst [vmem:[%s707 + $0x298] sm:$0xff] %v1040
                  %v1042 = vld [vmem:[%s706 + $0x538] sm:$0xff]
                  %1043 = vst [vmem:[%s707 + $0x29c] sm:$0xff] %v1042
                  %v1044 = vld [vmem:[%s706 + $0x540] sm:$0xff]
                  %1045 = vst [vmem:[%s707 + $0x2a0] sm:$0xff] %v1044
                  %v1046 = vld [vmem:[%s706 + $0x548] sm:$0xff]
                  %1047 = vst [vmem:[%s707 + $0x2a4] sm:$0xff] %v1046
                  %v1048 = vld [vmem:[%s706 + $0x550] sm:$0xff]
                  %1049 = vst [vmem:[%s707 + $0x2a8] sm:$0xff] %v1048
                  %v1050 = vld [vmem:[%s706 + $0x558] sm:$0xff]
                  %1051 = vst [vmem:[%s707 + $0x2ac] sm:$0xff] %v1050
                  %v1052 = vld [vmem:[%s706 + $0x560] sm:$0xff]
                  %1053 = vst [vmem:[%s707 + $0x2b0] sm:$0xff] %v1052
                  %v1054 = vld [vmem:[%s706 + $0x568] sm:$0xff]
                  %1055 = vst [vmem:[%s707 + $0x2b4] sm:$0xff] %v1054
                  %v1056 = vld [vmem:[%s706 + $0x570] sm:$0xff]
                  %1057 = vst [vmem:[%s707 + $0x2b8] sm:$0xff] %v1056
                  %v1058 = vld [vmem:[%s706 + $0x578] sm:$0xff]
                  %1059 = vst [vmem:[%s707 + $0x2bc] sm:$0xff] %v1058
                  %v1060 = vld [vmem:[%s706 + $0x580] sm:$0xff]
                  %1061 = vst [vmem:[%s707 + $0x2c0] sm:$0xff] %v1060
                  %v1062 = vld [vmem:[%s706 + $0x588] sm:$0xff]
                  %1063 = vst [vmem:[%s707 + $0x2c4] sm:$0xff] %v1062
                  %v1064 = vld [vmem:[%s706 + $0x590] sm:$0xff]
                  %1065 = vst [vmem:[%s707 + $0x2c8] sm:$0xff] %v1064
                  %v1066 = vld [vmem:[%s706 + $0x598] sm:$0xff]
                  %1067 = vst [vmem:[%s707 + $0x2cc] sm:$0xff] %v1066
                  %v1068 = vld [vmem:[%s706 + $0x5a0] sm:$0xff]
                  %1069 = vst [vmem:[%s707 + $0x2d0] sm:$0xff] %v1068
                  %v1070 = vld [vmem:[%s706 + $0x5a8] sm:$0xff]
                  %1071 = vst [vmem:[%s707 + $0x2d4] sm:$0xff] %v1070
                  %v1072 = vld [vmem:[%s706 + $0x5b0] sm:$0xff]
                  %1073 = vst [vmem:[%s707 + $0x2d8] sm:$0xff] %v1072
                  %v1074 = vld [vmem:[%s706 + $0x5b8] sm:$0xff]
                  %1075 = vst [vmem:[%s707 + $0x2dc] sm:$0xff] %v1074
                  %v1076 = vld [vmem:[%s706 + $0x5c0] sm:$0xff]
                  %1077 = vst [vmem:[%s707 + $0x2e0] sm:$0xff] %v1076
                  %v1078 = vld [vmem:[%s706 + $0x5c8] sm:$0xff]
                  %1079 = vst [vmem:[%s707 + $0x2e4] sm:$0xff] %v1078
                  %v1080 = vld [vmem:[%s706 + $0x5d0] sm:$0xff]
                  %1081 = vst [vmem:[%s707 + $0x2e8] sm:$0xff] %v1080
                  %v1082 = vld [vmem:[%s706 + $0x5d8] sm:$0xff]
                  %1083 = vst [vmem:[%s707 + $0x2ec] sm:$0xff] %v1082
                  %v1084 = vld [vmem:[%s706 + $0x5e0] sm:$0xff]
                  %1085 = vst [vmem:[%s707 + $0x2f0] sm:$0xff] %v1084
                  %v1086 = vld [vmem:[%s706 + $0x5e8] sm:$0xff]
                  %1087 = vst [vmem:[%s707 + $0x2f4] sm:$0xff] %v1086
                  %v1088 = vld [vmem:[%s706 + $0x5f0] sm:$0xff]
                  %1089 = vst [vmem:[%s707 + $0x2f8] sm:$0xff] %v1088
                  %v1090 = vld [vmem:[%s706 + $0x5f8] sm:$0xff]
                  %1091 = vst [vmem:[%s707 + $0x2fc] sm:$0xff] %v1090
                  %v1092 = vld [vmem:[%s706 + $0x600] sm:$0xff]
                  %1093 = vst [vmem:[%s707 + $0x300] sm:$0xff] %v1092
                  %v1094 = vld [vmem:[%s706 + $0x608] sm:$0xff]
                  %1095 = vst [vmem:[%s707 + $0x304] sm:$0xff] %v1094
                  %v1096 = vld [vmem:[%s706 + $0x610] sm:$0xff]
                  %1097 = vst [vmem:[%s707 + $0x308] sm:$0xff] %v1096
                  %v1098 = vld [vmem:[%s706 + $0x618] sm:$0xff]
                  %1099 = vst [vmem:[%s707 + $0x30c] sm:$0xff] %v1098
                  %v1100 = vld [vmem:[%s706 + $0x620] sm:$0xff]
                  %1101 = vst [vmem:[%s707 + $0x310] sm:$0xff] %v1100
                  %v1102 = vld [vmem:[%s706 + $0x628] sm:$0xff]
                  %1103 = vst [vmem:[%s707 + $0x314] sm:$0xff] %v1102
                  %v1104 = vld [vmem:[%s706 + $0x630] sm:$0xff]
                  %1105 = vst [vmem:[%s707 + $0x318] sm:$0xff] %v1104
                  %v1106 = vld [vmem:[%s706 + $0x638] sm:$0xff]
                  %1107 = vst [vmem:[%s707 + $0x31c] sm:$0xff] %v1106
                  %v1108 = vld [vmem:[%s706 + $0x640] sm:$0xff]
                  %1109 = vst [vmem:[%s707 + $0x320] sm:$0xff] %v1108
                  %v1110 = vld [vmem:[%s706 + $0x648] sm:$0xff]
                  %1111 = vst [vmem:[%s707 + $0x324] sm:$0xff] %v1110
                  %v1112 = vld [vmem:[%s706 + $0x650] sm:$0xff]
                  %1113 = vst [vmem:[%s707 + $0x328] sm:$0xff] %v1112
                  %v1114 = vld [vmem:[%s706 + $0x658] sm:$0xff]
                  %1115 = vst [vmem:[%s707 + $0x32c] sm:$0xff] %v1114
                  %v1116 = vld [vmem:[%s706 + $0x660] sm:$0xff]
                  %1117 = vst [vmem:[%s707 + $0x330] sm:$0xff] %v1116
                  %v1118 = vld [vmem:[%s706 + $0x668] sm:$0xff]
                  %1119 = vst [vmem:[%s707 + $0x334] sm:$0xff] %v1118
                  %v1120 = vld [vmem:[%s706 + $0x670] sm:$0xff]
                  %1121 = vst [vmem:[%s707 + $0x338] sm:$0xff] %v1120
                  %v1122 = vld [vmem:[%s706 + $0x678] sm:$0xff]
                  %1123 = vst [vmem:[%s707 + $0x33c] sm:$0xff] %v1122
                  %v1124 = vld [vmem:[%s706 + $0x680] sm:$0xff]
                  %1125 = vst [vmem:[%s707 + $0x340] sm:$0xff] %v1124
                  %v1126 = vld [vmem:[%s706 + $0x688] sm:$0xff]
                  %1127 = vst [vmem:[%s707 + $0x344] sm:$0xff] %v1126
                  %v1128 = vld [vmem:[%s706 + $0x690] sm:$0xff]
                  %1129 = vst [vmem:[%s707 + $0x348] sm:$0xff] %v1128
                  %v1130 = vld [vmem:[%s706 + $0x698] sm:$0xff]
                  %1131 = vst [vmem:[%s707 + $0x34c] sm:$0xff] %v1130
                  %v1132 = vld [vmem:[%s706 + $0x6a0] sm:$0xff]
                  %1133 = vst [vmem:[%s707 + $0x350] sm:$0xff] %v1132
                  %v1134 = vld [vmem:[%s706 + $0x6a8] sm:$0xff]
                  %1135 = vst [vmem:[%s707 + $0x354] sm:$0xff] %v1134
                  %v1136 = vld [vmem:[%s706 + $0x6b0] sm:$0xff]
                  %1137 = vst [vmem:[%s707 + $0x358] sm:$0xff] %v1136
                  %v1138 = vld [vmem:[%s706 + $0x6b8] sm:$0xff]
                  %1139 = vst [vmem:[%s707 + $0x35c] sm:$0xff] %v1138
                  %v1140 = vld [vmem:[%s706 + $0x6c0] sm:$0xff]
                  %1141 = vst [vmem:[%s707 + $0x360] sm:$0xff] %v1140
                  %v1142 = vld [vmem:[%s706 + $0x6c8] sm:$0xff]
                  %1143 = vst [vmem:[%s707 + $0x364] sm:$0xff] %v1142
                  %v1144 = vld [vmem:[%s706 + $0x6d0] sm:$0xff]
                  %1145 = vst [vmem:[%s707 + $0x368] sm:$0xff] %v1144
                  %v1146 = vld [vmem:[%s706 + $0x6d8] sm:$0xff]
                  %1147 = vst [vmem:[%s707 + $0x36c] sm:$0xff] %v1146
                  %v1148 = vld [vmem:[%s706 + $0x6e0] sm:$0xff]
                  %1149 = vst [vmem:[%s707 + $0x370] sm:$0xff] %v1148
                  %v1150 = vld [vmem:[%s706 + $0x6e8] sm:$0xff]
                  %1151 = vst [vmem:[%s707 + $0x374] sm:$0xff] %v1150
                  %v1152 = vld [vmem:[%s706 + $0x6f0] sm:$0xff]
                  %1153 = vst [vmem:[%s707 + $0x378] sm:$0xff] %v1152
                  %v1154 = vld [vmem:[%s706 + $0x6f8] sm:$0xff]
                  %1155 = vst [vmem:[%s707 + $0x37c] sm:$0xff] %v1154
                  %v1156 = vld [vmem:[%s706 + $0x700] sm:$0xff]
                  %1157 = vst [vmem:[%s707 + $0x380] sm:$0xff] %v1156
                  %v1158 = vld [vmem:[%s706 + $0x708] sm:$0xff]
                  %1159 = vst [vmem:[%s707 + $0x384] sm:$0xff] %v1158
                  %v1160 = vld [vmem:[%s706 + $0x710] sm:$0xff]
                  %1161 = vst [vmem:[%s707 + $0x388] sm:$0xff] %v1160
                  %v1162 = vld [vmem:[%s706 + $0x718] sm:$0xff]
                  %1163 = vst [vmem:[%s707 + $0x38c] sm:$0xff] %v1162
                  %v1164 = vld [vmem:[%s706 + $0x720] sm:$0xff]
                  %1165 = vst [vmem:[%s707 + $0x390] sm:$0xff] %v1164
                  %v1166 = vld [vmem:[%s706 + $0x728] sm:$0xff]
                  %1167 = vst [vmem:[%s707 + $0x394] sm:$0xff] %v1166
                  %v1168 = vld [vmem:[%s706 + $0x730] sm:$0xff]
                  %1169 = vst [vmem:[%s707 + $0x398] sm:$0xff] %v1168
                  %v1170 = vld [vmem:[%s706 + $0x738] sm:$0xff]
                  %1171 = vst [vmem:[%s707 + $0x39c] sm:$0xff] %v1170
                  %v1172 = vld [vmem:[%s706 + $0x740] sm:$0xff]
                  %1173 = vst [vmem:[%s707 + $0x3a0] sm:$0xff] %v1172
                  %v1174 = vld [vmem:[%s706 + $0x748] sm:$0xff]
                  %1175 = vst [vmem:[%s707 + $0x3a4] sm:$0xff] %v1174
                  %v1176 = vld [vmem:[%s706 + $0x750] sm:$0xff]
                  %1177 = vst [vmem:[%s707 + $0x3a8] sm:$0xff] %v1176
                  %v1178 = vld [vmem:[%s706 + $0x758] sm:$0xff]
                  %1179 = vst [vmem:[%s707 + $0x3ac] sm:$0xff] %v1178
                  %v1180 = vld [vmem:[%s706 + $0x760] sm:$0xff]
                  %1181 = vst [vmem:[%s707 + $0x3b0] sm:$0xff] %v1180
                  %v1182 = vld [vmem:[%s706 + $0x768] sm:$0xff]
                  %1183 = vst [vmem:[%s707 + $0x3b4] sm:$0xff] %v1182
                  %v1184 = vld [vmem:[%s706 + $0x770] sm:$0xff]
                  %1185 = vst [vmem:[%s707 + $0x3b8] sm:$0xff] %v1184
                  %v1186 = vld [vmem:[%s706 + $0x778] sm:$0xff]
                  %1187 = vst [vmem:[%s707 + $0x3bc] sm:$0xff] %v1186
                  %v1188 = vld [vmem:[%s706 + $0x780] sm:$0xff]
                  %1189 = vst [vmem:[%s707 + $0x3c0] sm:$0xff] %v1188
                  %v1190 = vld [vmem:[%s706 + $0x788] sm:$0xff]
                  %1191 = vst [vmem:[%s707 + $0x3c4] sm:$0xff] %v1190
                  %v1192 = vld [vmem:[%s706 + $0x790] sm:$0xff]
                  %1193 = vst [vmem:[%s707 + $0x3c8] sm:$0xff] %v1192
                  %v1194 = vld [vmem:[%s706 + $0x798] sm:$0xff]
                  %1195 = vst [vmem:[%s707 + $0x3cc] sm:$0xff] %v1194
                  %v1196 = vld [vmem:[%s706 + $0x7a0] sm:$0xff]
                  %1197 = vst [vmem:[%s707 + $0x3d0] sm:$0xff] %v1196
                  %v1198 = vld [vmem:[%s706 + $0x7a8] sm:$0xff]
                  %1199 = vst [vmem:[%s707 + $0x3d4] sm:$0xff] %v1198
                  %v1200 = vld [vmem:[%s706 + $0x7b0] sm:$0xff]
                  %1201 = vst [vmem:[%s707 + $0x3d8] sm:$0xff] %v1200
                  %v1202 = vld [vmem:[%s706 + $0x7b8] sm:$0xff]
                  %1203 = vst [vmem:[%s707 + $0x3dc] sm:$0xff] %v1202
                  %v1204 = vld [vmem:[%s706 + $0x7c0] sm:$0xff]
                  %1205 = vst [vmem:[%s707 + $0x3e0] sm:$0xff] %v1204
                  %v1206 = vld [vmem:[%s706 + $0x7c8] sm:$0xff]
                  %1207 = vst [vmem:[%s707 + $0x3e4] sm:$0xff] %v1206
                  %v1208 = vld [vmem:[%s706 + $0x7d0] sm:$0xff]
                  %1209 = vst [vmem:[%s707 + $0x3e8] sm:$0xff] %v1208
                  %v1210 = vld [vmem:[%s706 + $0x7d8] sm:$0xff]
                  %1211 = vst [vmem:[%s707 + $0x3ec] sm:$0xff] %v1210
                  %v1212 = vld [vmem:[%s706 + $0x7e0] sm:$0xff]
                  %1213 = vst [vmem:[%s707 + $0x3f0] sm:$0xff] %v1212
                  %v1214 = vld [vmem:[%s706 + $0x7e8] sm:$0xff]
                  %1215 = vst [vmem:[%s707 + $0x3f4] sm:$0xff] %v1214
                  %v1216 = vld [vmem:[%s706 + $0x7f0] sm:$0xff]
                  %1217 = vst [vmem:[%s707 + $0x3f8] sm:$0xff] %v1216
                  %v1218 = vld [vmem:[%s706 + $0x7f8] sm:$0xff]
                  %1219 = vst [vmem:[%s707 + $0x3fc] sm:$0xff] %v1218
                  %s1220 = sadd.s32 1, %s705
                  %p1221 = scmp.ge.s32.totalorder %s1220, 0
                  %s1222 = scalar_select %p1221, 0, %s1220
                  %s1223 = smul.u32 %s1222, 8
                  %s1224 = smul.u32 %s1222, 8
                  %s1225 = scalar_lea.vmem %s168, %s1223
                  %s1226 = scalar_lea.vmem %s166, %s1224 [#allocation2]
                $region52: #{encoder_cnn_forward.1} parent=46 // loop_footer
                  %s704 = sadd.s32 1, %s700
                $region53: #{encoder_cnn_forward.1} parent=46 // loop_footer_branch
                  %699 = sbr.rel target = $region49
                $region54: #{encoder_cnn_forward.1} parent=46 // loop_exit
                  _
              $region47: #{encoder_cnn_forward.1} parent=31 // pred_fallthru
                _
              // Predicated region
              $region55: #{encoder_cnn_forward.1} parent=31 // pred_check
                _
              $region56: #{encoder_cnn_forward.1} parent=31 // pred_check_branch
                %1228 = sbr.rel (0) target = $region58
              $region57: #{encoder_cnn_forward.1} parent=31 // pred_region
                loop: start=0, step=1, limit=0
                $region59: #{encoder_cnn_forward.1} parent=57 // loop_pre_header
                  _
                $region60: #{encoder_cnn_forward.1} parent=57 // loop_header
                  %s1230 = sphi 0, %s1234
                  %p1231 = scmp.ge.s32.totalorder %s1230, 0
                  %s1235 = sphi 0, %s1752
                  %s1236 = sphi %s168, %s1755
                  %s1237 = sphi %s166, %s1756
                $region61: #{encoder_cnn_forward.1} parent=57 // loop_header_branch
                  %1233 = sbr.rel (%p1231) target = $region65
                $region62: #{encoder_cnn_forward.1} parent=57 // loop_body
                  %v1238 = vld [vmem:[%s1236] sm:$0xff]
                  %1239 = vst [vmem:[%s1237] sm:$0xff] %v1238
                  %v1240 = vld [vmem:[%s1236 + $0x8] sm:$0xff]
                  %1241 = vst [vmem:[%s1237 + $0x4] sm:$0xff] %v1240
                  %v1242 = vld [vmem:[%s1236 + $0x10] sm:$0xff]
                  %1243 = vst [vmem:[%s1237 + $0x8] sm:$0xff] %v1242
                  %v1244 = vld [vmem:[%s1236 + $0x18] sm:$0xff]
                  %1245 = vst [vmem:[%s1237 + $0xc] sm:$0xff] %v1244
                  %v1246 = vld [vmem:[%s1236 + $0x20] sm:$0xff]
                  %1247 = vst [vmem:[%s1237 + $0x10] sm:$0xff] %v1246
                  %v1248 = vld [vmem:[%s1236 + $0x28] sm:$0xff]
                  %1249 = vst [vmem:[%s1237 + $0x14] sm:$0xff] %v1248
                  %v1250 = vld [vmem:[%s1236 + $0x30] sm:$0xff]
                  %1251 = vst [vmem:[%s1237 + $0x18] sm:$0xff] %v1250
                  %v1252 = vld [vmem:[%s1236 + $0x38] sm:$0xff]
                  %1253 = vst [vmem:[%s1237 + $0x1c] sm:$0xff] %v1252
                  %v1254 = vld [vmem:[%s1236 + $0x40] sm:$0xff]
                  %1255 = vst [vmem:[%s1237 + $0x20] sm:$0xff] %v1254
                  %v1256 = vld [vmem:[%s1236 + $0x48] sm:$0xff]
                  %1257 = vst [vmem:[%s1237 + $0x24] sm:$0xff] %v1256
                  %v1258 = vld [vmem:[%s1236 + $0x50] sm:$0xff]
                  %1259 = vst [vmem:[%s1237 + $0x28] sm:$0xff] %v1258
                  %v1260 = vld [vmem:[%s1236 + $0x58] sm:$0xff]
                  %1261 = vst [vmem:[%s1237 + $0x2c] sm:$0xff] %v1260
                  %v1262 = vld [vmem:[%s1236 + $0x60] sm:$0xff]
                  %1263 = vst [vmem:[%s1237 + $0x30] sm:$0xff] %v1262
                  %v1264 = vld [vmem:[%s1236 + $0x68] sm:$0xff]
                  %1265 = vst [vmem:[%s1237 + $0x34] sm:$0xff] %v1264
                  %v1266 = vld [vmem:[%s1236 + $0x70] sm:$0xff]
                  %1267 = vst [vmem:[%s1237 + $0x38] sm:$0xff] %v1266
                  %v1268 = vld [vmem:[%s1236 + $0x78] sm:$0xff]
                  %1269 = vst [vmem:[%s1237 + $0x3c] sm:$0xff] %v1268
                  %v1270 = vld [vmem:[%s1236 + $0x80] sm:$0xff]
                  %1271 = vst [vmem:[%s1237 + $0x40] sm:$0xff] %v1270
                  %v1272 = vld [vmem:[%s1236 + $0x88] sm:$0xff]
                  %1273 = vst [vmem:[%s1237 + $0x44] sm:$0xff] %v1272
                  %v1274 = vld [vmem:[%s1236 + $0x90] sm:$0xff]
                  %1275 = vst [vmem:[%s1237 + $0x48] sm:$0xff] %v1274
                  %v1276 = vld [vmem:[%s1236 + $0x98] sm:$0xff]
                  %1277 = vst [vmem:[%s1237 + $0x4c] sm:$0xff] %v1276
                  %v1278 = vld [vmem:[%s1236 + $0xa0] sm:$0xff]
                  %1279 = vst [vmem:[%s1237 + $0x50] sm:$0xff] %v1278
                  %v1280 = vld [vmem:[%s1236 + $0xa8] sm:$0xff]
                  %1281 = vst [vmem:[%s1237 + $0x54] sm:$0xff] %v1280
                  %v1282 = vld [vmem:[%s1236 + $0xb0] sm:$0xff]
                  %1283 = vst [vmem:[%s1237 + $0x58] sm:$0xff] %v1282
                  %v1284 = vld [vmem:[%s1236 + $0xb8] sm:$0xff]
                  %1285 = vst [vmem:[%s1237 + $0x5c] sm:$0xff] %v1284
                  %v1286 = vld [vmem:[%s1236 + $0xc0] sm:$0xff]
                  %1287 = vst [vmem:[%s1237 + $0x60] sm:$0xff] %v1286
                  %v1288 = vld [vmem:[%s1236 + $0xc8] sm:$0xff]
                  %1289 = vst [vmem:[%s1237 + $0x64] sm:$0xff] %v1288
                  %v1290 = vld [vmem:[%s1236 + $0xd0] sm:$0xff]
                  %1291 = vst [vmem:[%s1237 + $0x68] sm:$0xff] %v1290
                  %v1292 = vld [vmem:[%s1236 + $0xd8] sm:$0xff]
                  %1293 = vst [vmem:[%s1237 + $0x6c] sm:$0xff] %v1292
                  %v1294 = vld [vmem:[%s1236 + $0xe0] sm:$0xff]
                  %1295 = vst [vmem:[%s1237 + $0x70] sm:$0xff] %v1294
                  %v1296 = vld [vmem:[%s1236 + $0xe8] sm:$0xff]
                  %1297 = vst [vmem:[%s1237 + $0x74] sm:$0xff] %v1296
                  %v1298 = vld [vmem:[%s1236 + $0xf0] sm:$0xff]
                  %1299 = vst [vmem:[%s1237 + $0x78] sm:$0xff] %v1298
                  %v1300 = vld [vmem:[%s1236 + $0xf8] sm:$0xff]
                  %1301 = vst [vmem:[%s1237 + $0x7c] sm:$0xff] %v1300
                  %v1302 = vld [vmem:[%s1236 + $0x100] sm:$0xff]
                  %1303 = vst [vmem:[%s1237 + $0x80] sm:$0xff] %v1302
                  %v1304 = vld [vmem:[%s1236 + $0x108] sm:$0xff]
                  %1305 = vst [vmem:[%s1237 + $0x84] sm:$0xff] %v1304
                  %v1306 = vld [vmem:[%s1236 + $0x110] sm:$0xff]
                  %1307 = vst [vmem:[%s1237 + $0x88] sm:$0xff] %v1306
                  %v1308 = vld [vmem:[%s1236 + $0x118] sm:$0xff]
                  %1309 = vst [vmem:[%s1237 + $0x8c] sm:$0xff] %v1308
                  %v1310 = vld [vmem:[%s1236 + $0x120] sm:$0xff]
                  %1311 = vst [vmem:[%s1237 + $0x90] sm:$0xff] %v1310
                  %v1312 = vld [vmem:[%s1236 + $0x128] sm:$0xff]
                  %1313 = vst [vmem:[%s1237 + $0x94] sm:$0xff] %v1312
                  %v1314 = vld [vmem:[%s1236 + $0x130] sm:$0xff]
                  %1315 = vst [vmem:[%s1237 + $0x98] sm:$0xff] %v1314
                  %v1316 = vld [vmem:[%s1236 + $0x138] sm:$0xff]
                  %1317 = vst [vmem:[%s1237 + $0x9c] sm:$0xff] %v1316
                  %v1318 = vld [vmem:[%s1236 + $0x140] sm:$0xff]
                  %1319 = vst [vmem:[%s1237 + $0xa0] sm:$0xff] %v1318
                  %v1320 = vld [vmem:[%s1236 + $0x148] sm:$0xff]
                  %1321 = vst [vmem:[%s1237 + $0xa4] sm:$0xff] %v1320
                  %v1322 = vld [vmem:[%s1236 + $0x150] sm:$0xff]
                  %1323 = vst [vmem:[%s1237 + $0xa8] sm:$0xff] %v1322
                  %v1324 = vld [vmem:[%s1236 + $0x158] sm:$0xff]
                  %1325 = vst [vmem:[%s1237 + $0xac] sm:$0xff] %v1324
                  %v1326 = vld [vmem:[%s1236 + $0x160] sm:$0xff]
                  %1327 = vst [vmem:[%s1237 + $0xb0] sm:$0xff] %v1326
                  %v1328 = vld [vmem:[%s1236 + $0x168] sm:$0xff]
                  %1329 = vst [vmem:[%s1237 + $0xb4] sm:$0xff] %v1328
                  %v1330 = vld [vmem:[%s1236 + $0x170] sm:$0xff]
                  %1331 = vst [vmem:[%s1237 + $0xb8] sm:$0xff] %v1330
                  %v1332 = vld [vmem:[%s1236 + $0x178] sm:$0xff]
                  %1333 = vst [vmem:[%s1237 + $0xbc] sm:$0xff] %v1332
                  %v1334 = vld [vmem:[%s1236 + $0x180] sm:$0xff]
                  %1335 = vst [vmem:[%s1237 + $0xc0] sm:$0xff] %v1334
                  %v1336 = vld [vmem:[%s1236 + $0x188] sm:$0xff]
                  %1337 = vst [vmem:[%s1237 + $0xc4] sm:$0xff] %v1336
                  %v1338 = vld [vmem:[%s1236 + $0x190] sm:$0xff]
                  %1339 = vst [vmem:[%s1237 + $0xc8] sm:$0xff] %v1338
                  %v1340 = vld [vmem:[%s1236 + $0x198] sm:$0xff]
                  %1341 = vst [vmem:[%s1237 + $0xcc] sm:$0xff] %v1340
                  %v1342 = vld [vmem:[%s1236 + $0x1a0] sm:$0xff]
                  %1343 = vst [vmem:[%s1237 + $0xd0] sm:$0xff] %v1342
                  %v1344 = vld [vmem:[%s1236 + $0x1a8] sm:$0xff]
                  %1345 = vst [vmem:[%s1237 + $0xd4] sm:$0xff] %v1344
                  %v1346 = vld [vmem:[%s1236 + $0x1b0] sm:$0xff]
                  %1347 = vst [vmem:[%s1237 + $0xd8] sm:$0xff] %v1346
                  %v1348 = vld [vmem:[%s1236 + $0x1b8] sm:$0xff]
                  %1349 = vst [vmem:[%s1237 + $0xdc] sm:$0xff] %v1348
                  %v1350 = vld [vmem:[%s1236 + $0x1c0] sm:$0xff]
                  %1351 = vst [vmem:[%s1237 + $0xe0] sm:$0xff] %v1350
                  %v1352 = vld [vmem:[%s1236 + $0x1c8] sm:$0xff]
                  %1353 = vst [vmem:[%s1237 + $0xe4] sm:$0xff] %v1352
                  %v1354 = vld [vmem:[%s1236 + $0x1d0] sm:$0xff]
                  %1355 = vst [vmem:[%s1237 + $0xe8] sm:$0xff] %v1354
                  %v1356 = vld [vmem:[%s1236 + $0x1d8] sm:$0xff]
                  %1357 = vst [vmem:[%s1237 + $0xec] sm:$0xff] %v1356
                  %v1358 = vld [vmem:[%s1236 + $0x1e0] sm:$0xff]
                  %1359 = vst [vmem:[%s1237 + $0xf0] sm:$0xff] %v1358
                  %v1360 = vld [vmem:[%s1236 + $0x1e8] sm:$0xff]
                  %1361 = vst [vmem:[%s1237 + $0xf4] sm:$0xff] %v1360
                  %v1362 = vld [vmem:[%s1236 + $0x1f0] sm:$0xff]
                  %1363 = vst [vmem:[%s1237 + $0xf8] sm:$0xff] %v1362
                  %v1364 = vld [vmem:[%s1236 + $0x1f8] sm:$0xff]
                  %1365 = vst [vmem:[%s1237 + $0xfc] sm:$0xff] %v1364
                  %v1366 = vld [vmem:[%s1236 + $0x200] sm:$0xff]
                  %1367 = vst [vmem:[%s1237 + $0x100] sm:$0xff] %v1366
                  %v1368 = vld [vmem:[%s1236 + $0x208] sm:$0xff]
                  %1369 = vst [vmem:[%s1237 + $0x104] sm:$0xff] %v1368
                  %v1370 = vld [vmem:[%s1236 + $0x210] sm:$0xff]
                  %1371 = vst [vmem:[%s1237 + $0x108] sm:$0xff] %v1370
                  %v1372 = vld [vmem:[%s1236 + $0x218] sm:$0xff]
                  %1373 = vst [vmem:[%s1237 + $0x10c] sm:$0xff] %v1372
                  %v1374 = vld [vmem:[%s1236 + $0x220] sm:$0xff]
                  %1375 = vst [vmem:[%s1237 + $0x110] sm:$0xff] %v1374
                  %v1376 = vld [vmem:[%s1236 + $0x228] sm:$0xff]
                  %1377 = vst [vmem:[%s1237 + $0x114] sm:$0xff] %v1376
                  %v1378 = vld [vmem:[%s1236 + $0x230] sm:$0xff]
                  %1379 = vst [vmem:[%s1237 + $0x118] sm:$0xff] %v1378
                  %v1380 = vld [vmem:[%s1236 + $0x238] sm:$0xff]
                  %1381 = vst [vmem:[%s1237 + $0x11c] sm:$0xff] %v1380
                  %v1382 = vld [vmem:[%s1236 + $0x240] sm:$0xff]
                  %1383 = vst [vmem:[%s1237 + $0x120] sm:$0xff] %v1382
                  %v1384 = vld [vmem:[%s1236 + $0x248] sm:$0xff]
                  %1385 = vst [vmem:[%s1237 + $0x124] sm:$0xff] %v1384
                  %v1386 = vld [vmem:[%s1236 + $0x250] sm:$0xff]
                  %1387 = vst [vmem:[%s1237 + $0x128] sm:$0xff] %v1386
                  %v1388 = vld [vmem:[%s1236 + $0x258] sm:$0xff]
                  %1389 = vst [vmem:[%s1237 + $0x12c] sm:$0xff] %v1388
                  %v1390 = vld [vmem:[%s1236 + $0x260] sm:$0xff]
                  %1391 = vst [vmem:[%s1237 + $0x130] sm:$0xff] %v1390
                  %v1392 = vld [vmem:[%s1236 + $0x268] sm:$0xff]
                  %1393 = vst [vmem:[%s1237 + $0x134] sm:$0xff] %v1392
                  %v1394 = vld [vmem:[%s1236 + $0x270] sm:$0xff]
                  %1395 = vst [vmem:[%s1237 + $0x138] sm:$0xff] %v1394
                  %v1396 = vld [vmem:[%s1236 + $0x278] sm:$0xff]
                  %1397 = vst [vmem:[%s1237 + $0x13c] sm:$0xff] %v1396
                  %v1398 = vld [vmem:[%s1236 + $0x280] sm:$0xff]
                  %1399 = vst [vmem:[%s1237 + $0x140] sm:$0xff] %v1398
                  %v1400 = vld [vmem:[%s1236 + $0x288] sm:$0xff]
                  %1401 = vst [vmem:[%s1237 + $0x144] sm:$0xff] %v1400
                  %v1402 = vld [vmem:[%s1236 + $0x290] sm:$0xff]
                  %1403 = vst [vmem:[%s1237 + $0x148] sm:$0xff] %v1402
                  %v1404 = vld [vmem:[%s1236 + $0x298] sm:$0xff]
                  %1405 = vst [vmem:[%s1237 + $0x14c] sm:$0xff] %v1404
                  %v1406 = vld [vmem:[%s1236 + $0x2a0] sm:$0xff]
                  %1407 = vst [vmem:[%s1237 + $0x150] sm:$0xff] %v1406
                  %v1408 = vld [vmem:[%s1236 + $0x2a8] sm:$0xff]
                  %1409 = vst [vmem:[%s1237 + $0x154] sm:$0xff] %v1408
                  %v1410 = vld [vmem:[%s1236 + $0x2b0] sm:$0xff]
                  %1411 = vst [vmem:[%s1237 + $0x158] sm:$0xff] %v1410
                  %v1412 = vld [vmem:[%s1236 + $0x2b8] sm:$0xff]
                  %1413 = vst [vmem:[%s1237 + $0x15c] sm:$0xff] %v1412
                  %v1414 = vld [vmem:[%s1236 + $0x2c0] sm:$0xff]
                  %1415 = vst [vmem:[%s1237 + $0x160] sm:$0xff] %v1414
                  %v1416 = vld [vmem:[%s1236 + $0x2c8] sm:$0xff]
                  %1417 = vst [vmem:[%s1237 + $0x164] sm:$0xff] %v1416
                  %v1418 = vld [vmem:[%s1236 + $0x2d0] sm:$0xff]
                  %1419 = vst [vmem:[%s1237 + $0x168] sm:$0xff] %v1418
                  %v1420 = vld [vmem:[%s1236 + $0x2d8] sm:$0xff]
                  %1421 = vst [vmem:[%s1237 + $0x16c] sm:$0xff] %v1420
                  %v1422 = vld [vmem:[%s1236 + $0x2e0] sm:$0xff]
                  %1423 = vst [vmem:[%s1237 + $0x170] sm:$0xff] %v1422
                  %v1424 = vld [vmem:[%s1236 + $0x2e8] sm:$0xff]
                  %1425 = vst [vmem:[%s1237 + $0x174] sm:$0xff] %v1424
                  %v1426 = vld [vmem:[%s1236 + $0x2f0] sm:$0xff]
                  %1427 = vst [vmem:[%s1237 + $0x178] sm:$0xff] %v1426
                  %v1428 = vld [vmem:[%s1236 + $0x2f8] sm:$0xff]
                  %1429 = vst [vmem:[%s1237 + $0x17c] sm:$0xff] %v1428
                  %v1430 = vld [vmem:[%s1236 + $0x300] sm:$0xff]
                  %1431 = vst [vmem:[%s1237 + $0x180] sm:$0xff] %v1430
                  %v1432 = vld [vmem:[%s1236 + $0x308] sm:$0xff]
                  %1433 = vst [vmem:[%s1237 + $0x184] sm:$0xff] %v1432
                  %v1434 = vld [vmem:[%s1236 + $0x310] sm:$0xff]
                  %1435 = vst [vmem:[%s1237 + $0x188] sm:$0xff] %v1434
                  %v1436 = vld [vmem:[%s1236 + $0x318] sm:$0xff]
                  %1437 = vst [vmem:[%s1237 + $0x18c] sm:$0xff] %v1436
                  %v1438 = vld [vmem:[%s1236 + $0x320] sm:$0xff]
                  %1439 = vst [vmem:[%s1237 + $0x190] sm:$0xff] %v1438
                  %v1440 = vld [vmem:[%s1236 + $0x328] sm:$0xff]
                  %1441 = vst [vmem:[%s1237 + $0x194] sm:$0xff] %v1440
                  %v1442 = vld [vmem:[%s1236 + $0x330] sm:$0xff]
                  %1443 = vst [vmem:[%s1237 + $0x198] sm:$0xff] %v1442
                  %v1444 = vld [vmem:[%s1236 + $0x338] sm:$0xff]
                  %1445 = vst [vmem:[%s1237 + $0x19c] sm:$0xff] %v1444
                  %v1446 = vld [vmem:[%s1236 + $0x340] sm:$0xff]
                  %1447 = vst [vmem:[%s1237 + $0x1a0] sm:$0xff] %v1446
                  %v1448 = vld [vmem:[%s1236 + $0x348] sm:$0xff]
                  %1449 = vst [vmem:[%s1237 + $0x1a4] sm:$0xff] %v1448
                  %v1450 = vld [vmem:[%s1236 + $0x350] sm:$0xff]
                  %1451 = vst [vmem:[%s1237 + $0x1a8] sm:$0xff] %v1450
                  %v1452 = vld [vmem:[%s1236 + $0x358] sm:$0xff]
                  %1453 = vst [vmem:[%s1237 + $0x1ac] sm:$0xff] %v1452
                  %v1454 = vld [vmem:[%s1236 + $0x360] sm:$0xff]
                  %1455 = vst [vmem:[%s1237 + $0x1b0] sm:$0xff] %v1454
                  %v1456 = vld [vmem:[%s1236 + $0x368] sm:$0xff]
                  %1457 = vst [vmem:[%s1237 + $0x1b4] sm:$0xff] %v1456
                  %v1458 = vld [vmem:[%s1236 + $0x370] sm:$0xff]
                  %1459 = vst [vmem:[%s1237 + $0x1b8] sm:$0xff] %v1458
                  %v1460 = vld [vmem:[%s1236 + $0x378] sm:$0xff]
                  %1461 = vst [vmem:[%s1237 + $0x1bc] sm:$0xff] %v1460
                  %v1462 = vld [vmem:[%s1236 + $0x380] sm:$0xff]
                  %1463 = vst [vmem:[%s1237 + $0x1c0] sm:$0xff] %v1462
                  %v1464 = vld [vmem:[%s1236 + $0x388] sm:$0xff]
                  %1465 = vst [vmem:[%s1237 + $0x1c4] sm:$0xff] %v1464
                  %v1466 = vld [vmem:[%s1236 + $0x390] sm:$0xff]
                  %1467 = vst [vmem:[%s1237 + $0x1c8] sm:$0xff] %v1466
                  %v1468 = vld [vmem:[%s1236 + $0x398] sm:$0xff]
                  %1469 = vst [vmem:[%s1237 + $0x1cc] sm:$0xff] %v1468
                  %v1470 = vld [vmem:[%s1236 + $0x3a0] sm:$0xff]
                  %1471 = vst [vmem:[%s1237 + $0x1d0] sm:$0xff] %v1470
                  %v1472 = vld [vmem:[%s1236 + $0x3a8] sm:$0xff]
                  %1473 = vst [vmem:[%s1237 + $0x1d4] sm:$0xff] %v1472
                  %v1474 = vld [vmem:[%s1236 + $0x3b0] sm:$0xff]
                  %1475 = vst [vmem:[%s1237 + $0x1d8] sm:$0xff] %v1474
                  %v1476 = vld [vmem:[%s1236 + $0x3b8] sm:$0xff]
                  %1477 = vst [vmem:[%s1237 + $0x1dc] sm:$0xff] %v1476
                  %v1478 = vld [vmem:[%s1236 + $0x3c0] sm:$0xff]
                  %1479 = vst [vmem:[%s1237 + $0x1e0] sm:$0xff] %v1478
                  %v1480 = vld [vmem:[%s1236 + $0x3c8] sm:$0xff]
                  %1481 = vst [vmem:[%s1237 + $0x1e4] sm:$0xff] %v1480
                  %v1482 = vld [vmem:[%s1236 + $0x3d0] sm:$0xff]
                  %1483 = vst [vmem:[%s1237 + $0x1e8] sm:$0xff] %v1482
                  %v1484 = vld [vmem:[%s1236 + $0x3d8] sm:$0xff]
                  %1485 = vst [vmem:[%s1237 + $0x1ec] sm:$0xff] %v1484
                  %v1486 = vld [vmem:[%s1236 + $0x3e0] sm:$0xff]
                  %1487 = vst [vmem:[%s1237 + $0x1f0] sm:$0xff] %v1486
                  %v1488 = vld [vmem:[%s1236 + $0x3e8] sm:$0xff]
                  %1489 = vst [vmem:[%s1237 + $0x1f4] sm:$0xff] %v1488
                  %v1490 = vld [vmem:[%s1236 + $0x3f0] sm:$0xff]
                  %1491 = vst [vmem:[%s1237 + $0x1f8] sm:$0xff] %v1490
                  %v1492 = vld [vmem:[%s1236 + $0x3f8] sm:$0xff]
                  %1493 = vst [vmem:[%s1237 + $0x1fc] sm:$0xff] %v1492
                  %v1494 = vld [vmem:[%s1236 + $0x400] sm:$0xff]
                  %1495 = vst [vmem:[%s1237 + $0x200] sm:$0xff] %v1494
                  %v1496 = vld [vmem:[%s1236 + $0x408] sm:$0xff]
                  %1497 = vst [vmem:[%s1237 + $0x204] sm:$0xff] %v1496
                  %v1498 = vld [vmem:[%s1236 + $0x410] sm:$0xff]
                  %1499 = vst [vmem:[%s1237 + $0x208] sm:$0xff] %v1498
                  %v1500 = vld [vmem:[%s1236 + $0x418] sm:$0xff]
                  %1501 = vst [vmem:[%s1237 + $0x20c] sm:$0xff] %v1500
                  %v1502 = vld [vmem:[%s1236 + $0x420] sm:$0xff]
                  %1503 = vst [vmem:[%s1237 + $0x210] sm:$0xff] %v1502
                  %v1504 = vld [vmem:[%s1236 + $0x428] sm:$0xff]
                  %1505 = vst [vmem:[%s1237 + $0x214] sm:$0xff] %v1504
                  %v1506 = vld [vmem:[%s1236 + $0x430] sm:$0xff]
                  %1507 = vst [vmem:[%s1237 + $0x218] sm:$0xff] %v1506
                  %v1508 = vld [vmem:[%s1236 + $0x438] sm:$0xff]
                  %1509 = vst [vmem:[%s1237 + $0x21c] sm:$0xff] %v1508
                  %v1510 = vld [vmem:[%s1236 + $0x440] sm:$0xff]
                  %1511 = vst [vmem:[%s1237 + $0x220] sm:$0xff] %v1510
                  %v1512 = vld [vmem:[%s1236 + $0x448] sm:$0xff]
                  %1513 = vst [vmem:[%s1237 + $0x224] sm:$0xff] %v1512
                  %v1514 = vld [vmem:[%s1236 + $0x450] sm:$0xff]
                  %1515 = vst [vmem:[%s1237 + $0x228] sm:$0xff] %v1514
                  %v1516 = vld [vmem:[%s1236 + $0x458] sm:$0xff]
                  %1517 = vst [vmem:[%s1237 + $0x22c] sm:$0xff] %v1516
                  %v1518 = vld [vmem:[%s1236 + $0x460] sm:$0xff]
                  %1519 = vst [vmem:[%s1237 + $0x230] sm:$0xff] %v1518
                  %v1520 = vld [vmem:[%s1236 + $0x468] sm:$0xff]
                  %1521 = vst [vmem:[%s1237 + $0x234] sm:$0xff] %v1520
                  %v1522 = vld [vmem:[%s1236 + $0x470] sm:$0xff]
                  %1523 = vst [vmem:[%s1237 + $0x238] sm:$0xff] %v1522
                  %v1524 = vld [vmem:[%s1236 + $0x478] sm:$0xff]
                  %1525 = vst [vmem:[%s1237 + $0x23c] sm:$0xff] %v1524
                  %v1526 = vld [vmem:[%s1236 + $0x480] sm:$0xff]
                  %1527 = vst [vmem:[%s1237 + $0x240] sm:$0xff] %v1526
                  %v1528 = vld [vmem:[%s1236 + $0x488] sm:$0xff]
                  %1529 = vst [vmem:[%s1237 + $0x244] sm:$0xff] %v1528
                  %v1530 = vld [vmem:[%s1236 + $0x490] sm:$0xff]
                  %1531 = vst [vmem:[%s1237 + $0x248] sm:$0xff] %v1530
                  %v1532 = vld [vmem:[%s1236 + $0x498] sm:$0xff]
                  %1533 = vst [vmem:[%s1237 + $0x24c] sm:$0xff] %v1532
                  %v1534 = vld [vmem:[%s1236 + $0x4a0] sm:$0xff]
                  %1535 = vst [vmem:[%s1237 + $0x250] sm:$0xff] %v1534
                  %v1536 = vld [vmem:[%s1236 + $0x4a8] sm:$0xff]
                  %1537 = vst [vmem:[%s1237 + $0x254] sm:$0xff] %v1536
                  %v1538 = vld [vmem:[%s1236 + $0x4b0] sm:$0xff]
                  %1539 = vst [vmem:[%s1237 + $0x258] sm:$0xff] %v1538
                  %v1540 = vld [vmem:[%s1236 + $0x4b8] sm:$0xff]
                  %1541 = vst [vmem:[%s1237 + $0x25c] sm:$0xff] %v1540
                  %v1542 = vld [vmem:[%s1236 + $0x4c0] sm:$0xff]
                  %1543 = vst [vmem:[%s1237 + $0x260] sm:$0xff] %v1542
                  %v1544 = vld [vmem:[%s1236 + $0x4c8] sm:$0xff]
                  %1545 = vst [vmem:[%s1237 + $0x264] sm:$0xff] %v1544
                  %v1546 = vld [vmem:[%s1236 + $0x4d0] sm:$0xff]
                  %1547 = vst [vmem:[%s1237 + $0x268] sm:$0xff] %v1546
                  %v1548 = vld [vmem:[%s1236 + $0x4d8] sm:$0xff]
                  %1549 = vst [vmem:[%s1237 + $0x26c] sm:$0xff] %v1548
                  %v1550 = vld [vmem:[%s1236 + $0x4e0] sm:$0xff]
                  %1551 = vst [vmem:[%s1237 + $0x270] sm:$0xff] %v1550
                  %v1552 = vld [vmem:[%s1236 + $0x4e8] sm:$0xff]
                  %1553 = vst [vmem:[%s1237 + $0x274] sm:$0xff] %v1552
                  %v1554 = vld [vmem:[%s1236 + $0x4f0] sm:$0xff]
                  %1555 = vst [vmem:[%s1237 + $0x278] sm:$0xff] %v1554
                  %v1556 = vld [vmem:[%s1236 + $0x4f8] sm:$0xff]
                  %1557 = vst [vmem:[%s1237 + $0x27c] sm:$0xff] %v1556
                  %v1558 = vld [vmem:[%s1236 + $0x500] sm:$0xff]
                  %1559 = vst [vmem:[%s1237 + $0x280] sm:$0xff] %v1558
                  %v1560 = vld [vmem:[%s1236 + $0x508] sm:$0xff]
                  %1561 = vst [vmem:[%s1237 + $0x284] sm:$0xff] %v1560
                  %v1562 = vld [vmem:[%s1236 + $0x510] sm:$0xff]
                  %1563 = vst [vmem:[%s1237 + $0x288] sm:$0xff] %v1562
                  %v1564 = vld [vmem:[%s1236 + $0x518] sm:$0xff]
                  %1565 = vst [vmem:[%s1237 + $0x28c] sm:$0xff] %v1564
                  %v1566 = vld [vmem:[%s1236 + $0x520] sm:$0xff]
                  %1567 = vst [vmem:[%s1237 + $0x290] sm:$0xff] %v1566
                  %v1568 = vld [vmem:[%s1236 + $0x528] sm:$0xff]
                  %1569 = vst [vmem:[%s1237 + $0x294] sm:$0xff] %v1568
                  %v1570 = vld [vmem:[%s1236 + $0x530] sm:$0xff]
                  %1571 = vst [vmem:[%s1237 + $0x298] sm:$0xff] %v1570
                  %v1572 = vld [vmem:[%s1236 + $0x538] sm:$0xff]
                  %1573 = vst [vmem:[%s1237 + $0x29c] sm:$0xff] %v1572
                  %v1574 = vld [vmem:[%s1236 + $0x540] sm:$0xff]
                  %1575 = vst [vmem:[%s1237 + $0x2a0] sm:$0xff] %v1574
                  %v1576 = vld [vmem:[%s1236 + $0x548] sm:$0xff]
                  %1577 = vst [vmem:[%s1237 + $0x2a4] sm:$0xff] %v1576
                  %v1578 = vld [vmem:[%s1236 + $0x550] sm:$0xff]
                  %1579 = vst [vmem:[%s1237 + $0x2a8] sm:$0xff] %v1578
                  %v1580 = vld [vmem:[%s1236 + $0x558] sm:$0xff]
                  %1581 = vst [vmem:[%s1237 + $0x2ac] sm:$0xff] %v1580
                  %v1582 = vld [vmem:[%s1236 + $0x560] sm:$0xff]
                  %1583 = vst [vmem:[%s1237 + $0x2b0] sm:$0xff] %v1582
                  %v1584 = vld [vmem:[%s1236 + $0x568] sm:$0xff]
                  %1585 = vst [vmem:[%s1237 + $0x2b4] sm:$0xff] %v1584
                  %v1586 = vld [vmem:[%s1236 + $0x570] sm:$0xff]
                  %1587 = vst [vmem:[%s1237 + $0x2b8] sm:$0xff] %v1586
                  %v1588 = vld [vmem:[%s1236 + $0x578] sm:$0xff]
                  %1589 = vst [vmem:[%s1237 + $0x2bc] sm:$0xff] %v1588
                  %v1590 = vld [vmem:[%s1236 + $0x580] sm:$0xff]
                  %1591 = vst [vmem:[%s1237 + $0x2c0] sm:$0xff] %v1590
                  %v1592 = vld [vmem:[%s1236 + $0x588] sm:$0xff]
                  %1593 = vst [vmem:[%s1237 + $0x2c4] sm:$0xff] %v1592
                  %v1594 = vld [vmem:[%s1236 + $0x590] sm:$0xff]
                  %1595 = vst [vmem:[%s1237 + $0x2c8] sm:$0xff] %v1594
                  %v1596 = vld [vmem:[%s1236 + $0x598] sm:$0xff]
                  %1597 = vst [vmem:[%s1237 + $0x2cc] sm:$0xff] %v1596
                  %v1598 = vld [vmem:[%s1236 + $0x5a0] sm:$0xff]
                  %1599 = vst [vmem:[%s1237 + $0x2d0] sm:$0xff] %v1598
                  %v1600 = vld [vmem:[%s1236 + $0x5a8] sm:$0xff]
                  %1601 = vst [vmem:[%s1237 + $0x2d4] sm:$0xff] %v1600
                  %v1602 = vld [vmem:[%s1236 + $0x5b0] sm:$0xff]
                  %1603 = vst [vmem:[%s1237 + $0x2d8] sm:$0xff] %v1602
                  %v1604 = vld [vmem:[%s1236 + $0x5b8] sm:$0xff]
                  %1605 = vst [vmem:[%s1237 + $0x2dc] sm:$0xff] %v1604
                  %v1606 = vld [vmem:[%s1236 + $0x5c0] sm:$0xff]
                  %1607 = vst [vmem:[%s1237 + $0x2e0] sm:$0xff] %v1606
                  %v1608 = vld [vmem:[%s1236 + $0x5c8] sm:$0xff]
                  %1609 = vst [vmem:[%s1237 + $0x2e4] sm:$0xff] %v1608
                  %v1610 = vld [vmem:[%s1236 + $0x5d0] sm:$0xff]
                  %1611 = vst [vmem:[%s1237 + $0x2e8] sm:$0xff] %v1610
                  %v1612 = vld [vmem:[%s1236 + $0x5d8] sm:$0xff]
                  %1613 = vst [vmem:[%s1237 + $0x2ec] sm:$0xff] %v1612
                  %v1614 = vld [vmem:[%s1236 + $0x5e0] sm:$0xff]
                  %1615 = vst [vmem:[%s1237 + $0x2f0] sm:$0xff] %v1614
                  %v1616 = vld [vmem:[%s1236 + $0x5e8] sm:$0xff]
                  %1617 = vst [vmem:[%s1237 + $0x2f4] sm:$0xff] %v1616
                  %v1618 = vld [vmem:[%s1236 + $0x5f0] sm:$0xff]
                  %1619 = vst [vmem:[%s1237 + $0x2f8] sm:$0xff] %v1618
                  %v1620 = vld [vmem:[%s1236 + $0x5f8] sm:$0xff]
                  %1621 = vst [vmem:[%s1237 + $0x2fc] sm:$0xff] %v1620
                  %v1622 = vld [vmem:[%s1236 + $0x600] sm:$0xff]
                  %1623 = vst [vmem:[%s1237 + $0x300] sm:$0xff] %v1622
                  %v1624 = vld [vmem:[%s1236 + $0x608] sm:$0xff]
                  %1625 = vst [vmem:[%s1237 + $0x304] sm:$0xff] %v1624
                  %v1626 = vld [vmem:[%s1236 + $0x610] sm:$0xff]
                  %1627 = vst [vmem:[%s1237 + $0x308] sm:$0xff] %v1626
                  %v1628 = vld [vmem:[%s1236 + $0x618] sm:$0xff]
                  %1629 = vst [vmem:[%s1237 + $0x30c] sm:$0xff] %v1628
                  %v1630 = vld [vmem:[%s1236 + $0x620] sm:$0xff]
                  %1631 = vst [vmem:[%s1237 + $0x310] sm:$0xff] %v1630
                  %v1632 = vld [vmem:[%s1236 + $0x628] sm:$0xff]
                  %1633 = vst [vmem:[%s1237 + $0x314] sm:$0xff] %v1632
                  %v1634 = vld [vmem:[%s1236 + $0x630] sm:$0xff]
                  %1635 = vst [vmem:[%s1237 + $0x318] sm:$0xff] %v1634
                  %v1636 = vld [vmem:[%s1236 + $0x638] sm:$0xff]
                  %1637 = vst [vmem:[%s1237 + $0x31c] sm:$0xff] %v1636
                  %v1638 = vld [vmem:[%s1236 + $0x640] sm:$0xff]
                  %1639 = vst [vmem:[%s1237 + $0x320] sm:$0xff] %v1638
                  %v1640 = vld [vmem:[%s1236 + $0x648] sm:$0xff]
                  %1641 = vst [vmem:[%s1237 + $0x324] sm:$0xff] %v1640
                  %v1642 = vld [vmem:[%s1236 + $0x650] sm:$0xff]
                  %1643 = vst [vmem:[%s1237 + $0x328] sm:$0xff] %v1642
                  %v1644 = vld [vmem:[%s1236 + $0x658] sm:$0xff]
                  %1645 = vst [vmem:[%s1237 + $0x32c] sm:$0xff] %v1644
                  %v1646 = vld [vmem:[%s1236 + $0x660] sm:$0xff]
                  %1647 = vst [vmem:[%s1237 + $0x330] sm:$0xff] %v1646
                  %v1648 = vld [vmem:[%s1236 + $0x668] sm:$0xff]
                  %1649 = vst [vmem:[%s1237 + $0x334] sm:$0xff] %v1648
                  %v1650 = vld [vmem:[%s1236 + $0x670] sm:$0xff]
                  %1651 = vst [vmem:[%s1237 + $0x338] sm:$0xff] %v1650
                  %v1652 = vld [vmem:[%s1236 + $0x678] sm:$0xff]
                  %1653 = vst [vmem:[%s1237 + $0x33c] sm:$0xff] %v1652
                  %v1654 = vld [vmem:[%s1236 + $0x680] sm:$0xff]
                  %1655 = vst [vmem:[%s1237 + $0x340] sm:$0xff] %v1654
                  %v1656 = vld [vmem:[%s1236 + $0x688] sm:$0xff]
                  %1657 = vst [vmem:[%s1237 + $0x344] sm:$0xff] %v1656
                  %v1658 = vld [vmem:[%s1236 + $0x690] sm:$0xff]
                  %1659 = vst [vmem:[%s1237 + $0x348] sm:$0xff] %v1658
                  %v1660 = vld [vmem:[%s1236 + $0x698] sm:$0xff]
                  %1661 = vst [vmem:[%s1237 + $0x34c] sm:$0xff] %v1660
                  %v1662 = vld [vmem:[%s1236 + $0x6a0] sm:$0xff]
                  %1663 = vst [vmem:[%s1237 + $0x350] sm:$0xff] %v1662
                  %v1664 = vld [vmem:[%s1236 + $0x6a8] sm:$0xff]
                  %1665 = vst [vmem:[%s1237 + $0x354] sm:$0xff] %v1664
                  %v1666 = vld [vmem:[%s1236 + $0x6b0] sm:$0xff]
                  %1667 = vst [vmem:[%s1237 + $0x358] sm:$0xff] %v1666
                  %v1668 = vld [vmem:[%s1236 + $0x6b8] sm:$0xff]
                  %1669 = vst [vmem:[%s1237 + $0x35c] sm:$0xff] %v1668
                  %v1670 = vld [vmem:[%s1236 + $0x6c0] sm:$0xff]
                  %1671 = vst [vmem:[%s1237 + $0x360] sm:$0xff] %v1670
                  %v1672 = vld [vmem:[%s1236 + $0x6c8] sm:$0xff]
                  %1673 = vst [vmem:[%s1237 + $0x364] sm:$0xff] %v1672
                  %v1674 = vld [vmem:[%s1236 + $0x6d0] sm:$0xff]
                  %1675 = vst [vmem:[%s1237 + $0x368] sm:$0xff] %v1674
                  %v1676 = vld [vmem:[%s1236 + $0x6d8] sm:$0xff]
                  %1677 = vst [vmem:[%s1237 + $0x36c] sm:$0xff] %v1676
                  %v1678 = vld [vmem:[%s1236 + $0x6e0] sm:$0xff]
                  %1679 = vst [vmem:[%s1237 + $0x370] sm:$0xff] %v1678
                  %v1680 = vld [vmem:[%s1236 + $0x6e8] sm:$0xff]
                  %1681 = vst [vmem:[%s1237 + $0x374] sm:$0xff] %v1680
                  %v1682 = vld [vmem:[%s1236 + $0x6f0] sm:$0xff]
                  %1683 = vst [vmem:[%s1237 + $0x378] sm:$0xff] %v1682
                  %v1684 = vld [vmem:[%s1236 + $0x6f8] sm:$0xff]
                  %1685 = vst [vmem:[%s1237 + $0x37c] sm:$0xff] %v1684
                  %v1686 = vld [vmem:[%s1236 + $0x700] sm:$0xff]
                  %1687 = vst [vmem:[%s1237 + $0x380] sm:$0xff] %v1686
                  %v1688 = vld [vmem:[%s1236 + $0x708] sm:$0xff]
                  %1689 = vst [vmem:[%s1237 + $0x384] sm:$0xff] %v1688
                  %v1690 = vld [vmem:[%s1236 + $0x710] sm:$0xff]
                  %1691 = vst [vmem:[%s1237 + $0x388] sm:$0xff] %v1690
                  %v1692 = vld [vmem:[%s1236 + $0x718] sm:$0xff]
                  %1693 = vst [vmem:[%s1237 + $0x38c] sm:$0xff] %v1692
                  %v1694 = vld [vmem:[%s1236 + $0x720] sm:$0xff]
                  %1695 = vst [vmem:[%s1237 + $0x390] sm:$0xff] %v1694
                  %v1696 = vld [vmem:[%s1236 + $0x728] sm:$0xff]
                  %1697 = vst [vmem:[%s1237 + $0x394] sm:$0xff] %v1696
                  %v1698 = vld [vmem:[%s1236 + $0x730] sm:$0xff]
                  %1699 = vst [vmem:[%s1237 + $0x398] sm:$0xff] %v1698
                  %v1700 = vld [vmem:[%s1236 + $0x738] sm:$0xff]
                  %1701 = vst [vmem:[%s1237 + $0x39c] sm:$0xff] %v1700
                  %v1702 = vld [vmem:[%s1236 + $0x740] sm:$0xff]
                  %1703 = vst [vmem:[%s1237 + $0x3a0] sm:$0xff] %v1702
                  %v1704 = vld [vmem:[%s1236 + $0x748] sm:$0xff]
                  %1705 = vst [vmem:[%s1237 + $0x3a4] sm:$0xff] %v1704
                  %v1706 = vld [vmem:[%s1236 + $0x750] sm:$0xff]
                  %1707 = vst [vmem:[%s1237 + $0x3a8] sm:$0xff] %v1706
                  %v1708 = vld [vmem:[%s1236 + $0x758] sm:$0xff]
                  %1709 = vst [vmem:[%s1237 + $0x3ac] sm:$0xff] %v1708
                  %v1710 = vld [vmem:[%s1236 + $0x760] sm:$0xff]
                  %1711 = vst [vmem:[%s1237 + $0x3b0] sm:$0xff] %v1710
                  %v1712 = vld [vmem:[%s1236 + $0x768] sm:$0xff]
                  %1713 = vst [vmem:[%s1237 + $0x3b4] sm:$0xff] %v1712
                  %v1714 = vld [vmem:[%s1236 + $0x770] sm:$0xff]
                  %1715 = vst [vmem:[%s1237 + $0x3b8] sm:$0xff] %v1714
                  %v1716 = vld [vmem:[%s1236 + $0x778] sm:$0xff]
                  %1717 = vst [vmem:[%s1237 + $0x3bc] sm:$0xff] %v1716
                  %v1718 = vld [vmem:[%s1236 + $0x780] sm:$0xff]
                  %1719 = vst [vmem:[%s1237 + $0x3c0] sm:$0xff] %v1718
                  %v1720 = vld [vmem:[%s1236 + $0x788] sm:$0xff]
                  %1721 = vst [vmem:[%s1237 + $0x3c4] sm:$0xff] %v1720
                  %v1722 = vld [vmem:[%s1236 + $0x790] sm:$0xff]
                  %1723 = vst [vmem:[%s1237 + $0x3c8] sm:$0xff] %v1722
                  %v1724 = vld [vmem:[%s1236 + $0x798] sm:$0xff]
                  %1725 = vst [vmem:[%s1237 + $0x3cc] sm:$0xff] %v1724
                  %v1726 = vld [vmem:[%s1236 + $0x7a0] sm:$0xff]
                  %1727 = vst [vmem:[%s1237 + $0x3d0] sm:$0xff] %v1726
                  %v1728 = vld [vmem:[%s1236 + $0x7a8] sm:$0xff]
                  %1729 = vst [vmem:[%s1237 + $0x3d4] sm:$0xff] %v1728
                  %v1730 = vld [vmem:[%s1236 + $0x7b0] sm:$0xff]
                  %1731 = vst [vmem:[%s1237 + $0x3d8] sm:$0xff] %v1730
                  %v1732 = vld [vmem:[%s1236 + $0x7b8] sm:$0xff]
                  %1733 = vst [vmem:[%s1237 + $0x3dc] sm:$0xff] %v1732
                  %v1734 = vld [vmem:[%s1236 + $0x7c0] sm:$0xff]
                  %1735 = vst [vmem:[%s1237 + $0x3e0] sm:$0xff] %v1734
                  %v1736 = vld [vmem:[%s1236 + $0x7c8] sm:$0xff]
                  %1737 = vst [vmem:[%s1237 + $0x3e4] sm:$0xff] %v1736
                  %v1738 = vld [vmem:[%s1236 + $0x7d0] sm:$0xff]
                  %1739 = vst [vmem:[%s1237 + $0x3e8] sm:$0xff] %v1738
                  %v1740 = vld [vmem:[%s1236 + $0x7d8] sm:$0xff]
                  %1741 = vst [vmem:[%s1237 + $0x3ec] sm:$0xff] %v1740
                  %v1742 = vld [vmem:[%s1236 + $0x7e0] sm:$0xff]
                  %1743 = vst [vmem:[%s1237 + $0x3f0] sm:$0xff] %v1742
                  %v1744 = vld [vmem:[%s1236 + $0x7e8] sm:$0xff]
                  %1745 = vst [vmem:[%s1237 + $0x3f4] sm:$0xff] %v1744
                  %v1746 = vld [vmem:[%s1236 + $0x7f0] sm:$0xff]
                  %1747 = vst [vmem:[%s1237 + $0x3f8] sm:$0xff] %v1746
                  %v1748 = vld [vmem:[%s1236 + $0x7f8] sm:$0xff]
                  %1749 = vst [vmem:[%s1237 + $0x3fc] sm:$0xff] %v1748
                  %s1750 = sadd.s32 1, %s1235
                  %p1751 = scmp.ge.s32.totalorder %s1750, 0
                  %s1752 = scalar_select %p1751, 0, %s1750
                  %s1753 = smul.u32 %s1752, 8
                  %s1754 = smul.u32 %s1752, 8
                  %s1755 = scalar_lea.vmem %s168, %s1753
                  %s1756 = scalar_lea.vmem %s166, %s1754 [#allocation2]
                $region63: #{encoder_cnn_forward.1} parent=57 // loop_footer
                  %s1234 = sadd.s32 1, %s1230
                $region64: #{encoder_cnn_forward.1} parent=57 // loop_footer_branch
                  %1229 = sbr.rel target = $region60
                $region65: #{encoder_cnn_forward.1} parent=57 // loop_exit
                  _
                %s1758 = ssub.s32 16, 1
                loop: start=0, step=1, limit=1
                $region66: #{encoder_cnn_forward.1} parent=57 // loop_pre_header
                  _
                $region67: #{encoder_cnn_forward.1} parent=57 // loop_header
                  %s1760 = sphi 0, %s1764
                  %p1761 = scmp.ge.s32.totalorder %s1760, 1
                  %s1765 = sphi %s168, %s168
                  %s1766 = sphi %s166, %s166
                $region68: #{encoder_cnn_forward.1} parent=57 // loop_header_branch
                  %1763 = sbr.rel (%p1761) target = $region72
                $region69: #{encoder_cnn_forward.1} parent=57 // loop_body
                  %v1767 = vld [vmem:[%s1765] sm:%s1758]
                  %1768 = vst [vmem:[%s1766] sm:%s1758] %v1767
                  %v1769 = vld [vmem:[%s1765 + $0x8] sm:%s1758]
                  %1770 = vst [vmem:[%s1766 + $0x4] sm:%s1758] %v1769
                  %v1771 = vld [vmem:[%s1765 + $0x10] sm:%s1758]
                  %1772 = vst [vmem:[%s1766 + $0x8] sm:%s1758] %v1771
                  %v1773 = vld [vmem:[%s1765 + $0x18] sm:%s1758]
                  %1774 = vst [vmem:[%s1766 + $0xc] sm:%s1758] %v1773
                  %v1775 = vld [vmem:[%s1765 + $0x20] sm:%s1758]
                  %1776 = vst [vmem:[%s1766 + $0x10] sm:%s1758] %v1775
                  %v1777 = vld [vmem:[%s1765 + $0x28] sm:%s1758]
                  %1778 = vst [vmem:[%s1766 + $0x14] sm:%s1758] %v1777
                  %v1779 = vld [vmem:[%s1765 + $0x30] sm:%s1758]
                  %1780 = vst [vmem:[%s1766 + $0x18] sm:%s1758] %v1779
                  %v1781 = vld [vmem:[%s1765 + $0x38] sm:%s1758]
                  %1782 = vst [vmem:[%s1766 + $0x1c] sm:%s1758] %v1781
                  %v1783 = vld [vmem:[%s1765 + $0x40] sm:%s1758]
                  %1784 = vst [vmem:[%s1766 + $0x20] sm:%s1758] %v1783
                  %v1785 = vld [vmem:[%s1765 + $0x48] sm:%s1758]
                  %1786 = vst [vmem:[%s1766 + $0x24] sm:%s1758] %v1785
                  %v1787 = vld [vmem:[%s1765 + $0x50] sm:%s1758]
                  %1788 = vst [vmem:[%s1766 + $0x28] sm:%s1758] %v1787
                  %v1789 = vld [vmem:[%s1765 + $0x58] sm:%s1758]
                  %1790 = vst [vmem:[%s1766 + $0x2c] sm:%s1758] %v1789
                  %v1791 = vld [vmem:[%s1765 + $0x60] sm:%s1758]
                  %1792 = vst [vmem:[%s1766 + $0x30] sm:%s1758] %v1791
                  %v1793 = vld [vmem:[%s1765 + $0x68] sm:%s1758]
                  %1794 = vst [vmem:[%s1766 + $0x34] sm:%s1758] %v1793
                  %v1795 = vld [vmem:[%s1765 + $0x70] sm:%s1758]
                  %1796 = vst [vmem:[%s1766 + $0x38] sm:%s1758] %v1795
                  %v1797 = vld [vmem:[%s1765 + $0x78] sm:%s1758]
                  %1798 = vst [vmem:[%s1766 + $0x3c] sm:%s1758] %v1797
                  %v1799 = vld [vmem:[%s1765 + $0x80] sm:%s1758]
                  %1800 = vst [vmem:[%s1766 + $0x40] sm:%s1758] %v1799
                  %v1801 = vld [vmem:[%s1765 + $0x88] sm:%s1758]
                  %1802 = vst [vmem:[%s1766 + $0x44] sm:%s1758] %v1801
                  %v1803 = vld [vmem:[%s1765 + $0x90] sm:%s1758]
                  %1804 = vst [vmem:[%s1766 + $0x48] sm:%s1758] %v1803
                  %v1805 = vld [vmem:[%s1765 + $0x98] sm:%s1758]
                  %1806 = vst [vmem:[%s1766 + $0x4c] sm:%s1758] %v1805
                  %v1807 = vld [vmem:[%s1765 + $0xa0] sm:%s1758]
                  %1808 = vst [vmem:[%s1766 + $0x50] sm:%s1758] %v1807
                  %v1809 = vld [vmem:[%s1765 + $0xa8] sm:%s1758]
                  %1810 = vst [vmem:[%s1766 + $0x54] sm:%s1758] %v1809
                  %v1811 = vld [vmem:[%s1765 + $0xb0] sm:%s1758]
                  %1812 = vst [vmem:[%s1766 + $0x58] sm:%s1758] %v1811
                  %v1813 = vld [vmem:[%s1765 + $0xb8] sm:%s1758]
                  %1814 = vst [vmem:[%s1766 + $0x5c] sm:%s1758] %v1813
                  %v1815 = vld [vmem:[%s1765 + $0xc0] sm:%s1758]
                  %1816 = vst [vmem:[%s1766 + $0x60] sm:%s1758] %v1815
                  %v1817 = vld [vmem:[%s1765 + $0xc8] sm:%s1758]
                  %1818 = vst [vmem:[%s1766 + $0x64] sm:%s1758] %v1817
                  %v1819 = vld [vmem:[%s1765 + $0xd0] sm:%s1758]
                  %1820 = vst [vmem:[%s1766 + $0x68] sm:%s1758] %v1819
                  %v1821 = vld [vmem:[%s1765 + $0xd8] sm:%s1758]
                  %1822 = vst [vmem:[%s1766 + $0x6c] sm:%s1758] %v1821
                  %v1823 = vld [vmem:[%s1765 + $0xe0] sm:%s1758]
                  %1824 = vst [vmem:[%s1766 + $0x70] sm:%s1758] %v1823
                  %v1825 = vld [vmem:[%s1765 + $0xe8] sm:%s1758]
                  %1826 = vst [vmem:[%s1766 + $0x74] sm:%s1758] %v1825
                  %v1827 = vld [vmem:[%s1765 + $0xf0] sm:%s1758]
                  %1828 = vst [vmem:[%s1766 + $0x78] sm:%s1758] %v1827
                  %v1829 = vld [vmem:[%s1765 + $0xf8] sm:%s1758]
                  %1830 = vst [vmem:[%s1766 + $0x7c] sm:%s1758] %v1829
                  %v1831 = vld [vmem:[%s1765 + $0x100] sm:%s1758]
                  %1832 = vst [vmem:[%s1766 + $0x80] sm:%s1758] %v1831
                  %v1833 = vld [vmem:[%s1765 + $0x108] sm:%s1758]
                  %1834 = vst [vmem:[%s1766 + $0x84] sm:%s1758] %v1833
                  %v1835 = vld [vmem:[%s1765 + $0x110] sm:%s1758]
                  %1836 = vst [vmem:[%s1766 + $0x88] sm:%s1758] %v1835
                  %v1837 = vld [vmem:[%s1765 + $0x118] sm:%s1758]
                  %1838 = vst [vmem:[%s1766 + $0x8c] sm:%s1758] %v1837
                  %v1839 = vld [vmem:[%s1765 + $0x120] sm:%s1758]
                  %1840 = vst [vmem:[%s1766 + $0x90] sm:%s1758] %v1839
                  %v1841 = vld [vmem:[%s1765 + $0x128] sm:%s1758]
                  %1842 = vst [vmem:[%s1766 + $0x94] sm:%s1758] %v1841
                  %v1843 = vld [vmem:[%s1765 + $0x130] sm:%s1758]
                  %1844 = vst [vmem:[%s1766 + $0x98] sm:%s1758] %v1843
                  %v1845 = vld [vmem:[%s1765 + $0x138] sm:%s1758]
                  %1846 = vst [vmem:[%s1766 + $0x9c] sm:%s1758] %v1845
                  %v1847 = vld [vmem:[%s1765 + $0x140] sm:%s1758]
                  %1848 = vst [vmem:[%s1766 + $0xa0] sm:%s1758] %v1847
                  %v1849 = vld [vmem:[%s1765 + $0x148] sm:%s1758]
                  %1850 = vst [vmem:[%s1766 + $0xa4] sm:%s1758] %v1849
                  %v1851 = vld [vmem:[%s1765 + $0x150] sm:%s1758]
                  %1852 = vst [vmem:[%s1766 + $0xa8] sm:%s1758] %v1851
                  %v1853 = vld [vmem:[%s1765 + $0x158] sm:%s1758]
                  %1854 = vst [vmem:[%s1766 + $0xac] sm:%s1758] %v1853
                  %v1855 = vld [vmem:[%s1765 + $0x160] sm:%s1758]
                  %1856 = vst [vmem:[%s1766 + $0xb0] sm:%s1758] %v1855
                  %v1857 = vld [vmem:[%s1765 + $0x168] sm:%s1758]
                  %1858 = vst [vmem:[%s1766 + $0xb4] sm:%s1758] %v1857
                  %v1859 = vld [vmem:[%s1765 + $0x170] sm:%s1758]
                  %1860 = vst [vmem:[%s1766 + $0xb8] sm:%s1758] %v1859
                  %v1861 = vld [vmem:[%s1765 + $0x178] sm:%s1758]
                  %1862 = vst [vmem:[%s1766 + $0xbc] sm:%s1758] %v1861
                  %v1863 = vld [vmem:[%s1765 + $0x180] sm:%s1758]
                  %1864 = vst [vmem:[%s1766 + $0xc0] sm:%s1758] %v1863
                  %v1865 = vld [vmem:[%s1765 + $0x188] sm:%s1758]
                  %1866 = vst [vmem:[%s1766 + $0xc4] sm:%s1758] %v1865
                  %v1867 = vld [vmem:[%s1765 + $0x190] sm:%s1758]
                  %1868 = vst [vmem:[%s1766 + $0xc8] sm:%s1758] %v1867
                  %v1869 = vld [vmem:[%s1765 + $0x198] sm:%s1758]
                  %1870 = vst [vmem:[%s1766 + $0xcc] sm:%s1758] %v1869
                  %v1871 = vld [vmem:[%s1765 + $0x1a0] sm:%s1758]
                  %1872 = vst [vmem:[%s1766 + $0xd0] sm:%s1758] %v1871
                  %v1873 = vld [vmem:[%s1765 + $0x1a8] sm:%s1758]
                  %1874 = vst [vmem:[%s1766 + $0xd4] sm:%s1758] %v1873
                  %v1875 = vld [vmem:[%s1765 + $0x1b0] sm:%s1758]
                  %1876 = vst [vmem:[%s1766 + $0xd8] sm:%s1758] %v1875
                  %v1877 = vld [vmem:[%s1765 + $0x1b8] sm:%s1758]
                  %1878 = vst [vmem:[%s1766 + $0xdc] sm:%s1758] %v1877
                  %v1879 = vld [vmem:[%s1765 + $0x1c0] sm:%s1758]
                  %1880 = vst [vmem:[%s1766 + $0xe0] sm:%s1758] %v1879
                  %v1881 = vld [vmem:[%s1765 + $0x1c8] sm:%s1758]
                  %1882 = vst [vmem:[%s1766 + $0xe4] sm:%s1758] %v1881
                  %v1883 = vld [vmem:[%s1765 + $0x1d0] sm:%s1758]
                  %1884 = vst [vmem:[%s1766 + $0xe8] sm:%s1758] %v1883
                  %v1885 = vld [vmem:[%s1765 + $0x1d8] sm:%s1758]
                  %1886 = vst [vmem:[%s1766 + $0xec] sm:%s1758] %v1885
                  %v1887 = vld [vmem:[%s1765 + $0x1e0] sm:%s1758]
                  %1888 = vst [vmem:[%s1766 + $0xf0] sm:%s1758] %v1887
                  %v1889 = vld [vmem:[%s1765 + $0x1e8] sm:%s1758]
                  %1890 = vst [vmem:[%s1766 + $0xf4] sm:%s1758] %v1889
                  %v1891 = vld [vmem:[%s1765 + $0x1f0] sm:%s1758]
                  %1892 = vst [vmem:[%s1766 + $0xf8] sm:%s1758] %v1891
                  %v1893 = vld [vmem:[%s1765 + $0x1f8] sm:%s1758]
                  %1894 = vst [vmem:[%s1766 + $0xfc] sm:%s1758] %v1893
                  %v1895 = vld [vmem:[%s1765 + $0x200] sm:%s1758]
                  %1896 = vst [vmem:[%s1766 + $0x100] sm:%s1758] %v1895
                  %v1897 = vld [vmem:[%s1765 + $0x208] sm:%s1758]
                  %1898 = vst [vmem:[%s1766 + $0x104] sm:%s1758] %v1897
                  %v1899 = vld [vmem:[%s1765 + $0x210] sm:%s1758]
                  %1900 = vst [vmem:[%s1766 + $0x108] sm:%s1758] %v1899
                  %v1901 = vld [vmem:[%s1765 + $0x218] sm:%s1758]
                  %1902 = vst [vmem:[%s1766 + $0x10c] sm:%s1758] %v1901
                  %v1903 = vld [vmem:[%s1765 + $0x220] sm:%s1758]
                  %1904 = vst [vmem:[%s1766 + $0x110] sm:%s1758] %v1903
                  %v1905 = vld [vmem:[%s1765 + $0x228] sm:%s1758]
                  %1906 = vst [vmem:[%s1766 + $0x114] sm:%s1758] %v1905
                  %v1907 = vld [vmem:[%s1765 + $0x230] sm:%s1758]
                  %1908 = vst [vmem:[%s1766 + $0x118] sm:%s1758] %v1907
                  %v1909 = vld [vmem:[%s1765 + $0x238] sm:%s1758]
                  %1910 = vst [vmem:[%s1766 + $0x11c] sm:%s1758] %v1909
                  %v1911 = vld [vmem:[%s1765 + $0x240] sm:%s1758]
                  %1912 = vst [vmem:[%s1766 + $0x120] sm:%s1758] %v1911
                  %v1913 = vld [vmem:[%s1765 + $0x248] sm:%s1758]
                  %1914 = vst [vmem:[%s1766 + $0x124] sm:%s1758] %v1913
                  %v1915 = vld [vmem:[%s1765 + $0x250] sm:%s1758]
                  %1916 = vst [vmem:[%s1766 + $0x128] sm:%s1758] %v1915
                  %v1917 = vld [vmem:[%s1765 + $0x258] sm:%s1758]
                  %1918 = vst [vmem:[%s1766 + $0x12c] sm:%s1758] %v1917
                  %v1919 = vld [vmem:[%s1765 + $0x260] sm:%s1758]
                  %1920 = vst [vmem:[%s1766 + $0x130] sm:%s1758] %v1919
                  %v1921 = vld [vmem:[%s1765 + $0x268] sm:%s1758]
                  %1922 = vst [vmem:[%s1766 + $0x134] sm:%s1758] %v1921
                  %v1923 = vld [vmem:[%s1765 + $0x270] sm:%s1758]
                  %1924 = vst [vmem:[%s1766 + $0x138] sm:%s1758] %v1923
                  %v1925 = vld [vmem:[%s1765 + $0x278] sm:%s1758]
                  %1926 = vst [vmem:[%s1766 + $0x13c] sm:%s1758] %v1925
                  %v1927 = vld [vmem:[%s1765 + $0x280] sm:%s1758]
                  %1928 = vst [vmem:[%s1766 + $0x140] sm:%s1758] %v1927
                  %v1929 = vld [vmem:[%s1765 + $0x288] sm:%s1758]
                  %1930 = vst [vmem:[%s1766 + $0x144] sm:%s1758] %v1929
                  %v1931 = vld [vmem:[%s1765 + $0x290] sm:%s1758]
                  %1932 = vst [vmem:[%s1766 + $0x148] sm:%s1758] %v1931
                  %v1933 = vld [vmem:[%s1765 + $0x298] sm:%s1758]
                  %1934 = vst [vmem:[%s1766 + $0x14c] sm:%s1758] %v1933
                  %v1935 = vld [vmem:[%s1765 + $0x2a0] sm:%s1758]
                  %1936 = vst [vmem:[%s1766 + $0x150] sm:%s1758] %v1935
                  %v1937 = vld [vmem:[%s1765 + $0x2a8] sm:%s1758]
                  %1938 = vst [vmem:[%s1766 + $0x154] sm:%s1758] %v1937
                  %v1939 = vld [vmem:[%s1765 + $0x2b0] sm:%s1758]
                  %1940 = vst [vmem:[%s1766 + $0x158] sm:%s1758] %v1939
                  %v1941 = vld [vmem:[%s1765 + $0x2b8] sm:%s1758]
                  %1942 = vst [vmem:[%s1766 + $0x15c] sm:%s1758] %v1941
                  %v1943 = vld [vmem:[%s1765 + $0x2c0] sm:%s1758]
                  %1944 = vst [vmem:[%s1766 + $0x160] sm:%s1758] %v1943
                  %v1945 = vld [vmem:[%s1765 + $0x2c8] sm:%s1758]
                  %1946 = vst [vmem:[%s1766 + $0x164] sm:%s1758] %v1945
                  %v1947 = vld [vmem:[%s1765 + $0x2d0] sm:%s1758]
                  %1948 = vst [vmem:[%s1766 + $0x168] sm:%s1758] %v1947
                  %v1949 = vld [vmem:[%s1765 + $0x2d8] sm:%s1758]
                  %1950 = vst [vmem:[%s1766 + $0x16c] sm:%s1758] %v1949
                  %v1951 = vld [vmem:[%s1765 + $0x2e0] sm:%s1758]
                  %1952 = vst [vmem:[%s1766 + $0x170] sm:%s1758] %v1951
                  %v1953 = vld [vmem:[%s1765 + $0x2e8] sm:%s1758]
                  %1954 = vst [vmem:[%s1766 + $0x174] sm:%s1758] %v1953
                  %v1955 = vld [vmem:[%s1765 + $0x2f0] sm:%s1758]
                  %1956 = vst [vmem:[%s1766 + $0x178] sm:%s1758] %v1955
                  %v1957 = vld [vmem:[%s1765 + $0x2f8] sm:%s1758]
                  %1958 = vst [vmem:[%s1766 + $0x17c] sm:%s1758] %v1957
                  %v1959 = vld [vmem:[%s1765 + $0x300] sm:%s1758]
                  %1960 = vst [vmem:[%s1766 + $0x180] sm:%s1758] %v1959
                  %v1961 = vld [vmem:[%s1765 + $0x308] sm:%s1758]
                  %1962 = vst [vmem:[%s1766 + $0x184] sm:%s1758] %v1961
                  %v1963 = vld [vmem:[%s1765 + $0x310] sm:%s1758]
                  %1964 = vst [vmem:[%s1766 + $0x188] sm:%s1758] %v1963
                  %v1965 = vld [vmem:[%s1765 + $0x318] sm:%s1758]
                  %1966 = vst [vmem:[%s1766 + $0x18c] sm:%s1758] %v1965
                  %v1967 = vld [vmem:[%s1765 + $0x320] sm:%s1758]
                  %1968 = vst [vmem:[%s1766 + $0x190] sm:%s1758] %v1967
                  %v1969 = vld [vmem:[%s1765 + $0x328] sm:%s1758]
                  %1970 = vst [vmem:[%s1766 + $0x194] sm:%s1758] %v1969
                  %v1971 = vld [vmem:[%s1765 + $0x330] sm:%s1758]
                  %1972 = vst [vmem:[%s1766 + $0x198] sm:%s1758] %v1971
                  %v1973 = vld [vmem:[%s1765 + $0x338] sm:%s1758]
                  %1974 = vst [vmem:[%s1766 + $0x19c] sm:%s1758] %v1973
                  %v1975 = vld [vmem:[%s1765 + $0x340] sm:%s1758]
                  %1976 = vst [vmem:[%s1766 + $0x1a0] sm:%s1758] %v1975
                  %v1977 = vld [vmem:[%s1765 + $0x348] sm:%s1758]
                  %1978 = vst [vmem:[%s1766 + $0x1a4] sm:%s1758] %v1977
                  %v1979 = vld [vmem:[%s1765 + $0x350] sm:%s1758]
                  %1980 = vst [vmem:[%s1766 + $0x1a8] sm:%s1758] %v1979
                  %v1981 = vld [vmem:[%s1765 + $0x358] sm:%s1758]
                  %1982 = vst [vmem:[%s1766 + $0x1ac] sm:%s1758] %v1981
                  %v1983 = vld [vmem:[%s1765 + $0x360] sm:%s1758]
                  %1984 = vst [vmem:[%s1766 + $0x1b0] sm:%s1758] %v1983
                  %v1985 = vld [vmem:[%s1765 + $0x368] sm:%s1758]
                  %1986 = vst [vmem:[%s1766 + $0x1b4] sm:%s1758] %v1985
                  %v1987 = vld [vmem:[%s1765 + $0x370] sm:%s1758]
                  %1988 = vst [vmem:[%s1766 + $0x1b8] sm:%s1758] %v1987
                  %v1989 = vld [vmem:[%s1765 + $0x378] sm:%s1758]
                  %1990 = vst [vmem:[%s1766 + $0x1bc] sm:%s1758] %v1989
                  %v1991 = vld [vmem:[%s1765 + $0x380] sm:%s1758]
                  %1992 = vst [vmem:[%s1766 + $0x1c0] sm:%s1758] %v1991
                  %v1993 = vld [vmem:[%s1765 + $0x388] sm:%s1758]
                  %1994 = vst [vmem:[%s1766 + $0x1c4] sm:%s1758] %v1993
                  %v1995 = vld [vmem:[%s1765 + $0x390] sm:%s1758]
                  %1996 = vst [vmem:[%s1766 + $0x1c8] sm:%s1758] %v1995
                  %v1997 = vld [vmem:[%s1765 + $0x398] sm:%s1758]
                  %1998 = vst [vmem:[%s1766 + $0x1cc] sm:%s1758] %v1997
                  %v1999 = vld [vmem:[%s1765 + $0x3a0] sm:%s1758]
                  %2000 = vst [vmem:[%s1766 + $0x1d0] sm:%s1758] %v1999
                  %v2001 = vld [vmem:[%s1765 + $0x3a8] sm:%s1758]
                  %2002 = vst [vmem:[%s1766 + $0x1d4] sm:%s1758] %v2001
                  %v2003 = vld [vmem:[%s1765 + $0x3b0] sm:%s1758]
                  %2004 = vst [vmem:[%s1766 + $0x1d8] sm:%s1758] %v2003
                  %v2005 = vld [vmem:[%s1765 + $0x3b8] sm:%s1758]
                  %2006 = vst [vmem:[%s1766 + $0x1dc] sm:%s1758] %v2005
                  %v2007 = vld [vmem:[%s1765 + $0x3c0] sm:%s1758]
                  %2008 = vst [vmem:[%s1766 + $0x1e0] sm:%s1758] %v2007
                  %v2009 = vld [vmem:[%s1765 + $0x3c8] sm:%s1758]
                  %2010 = vst [vmem:[%s1766 + $0x1e4] sm:%s1758] %v2009
                  %v2011 = vld [vmem:[%s1765 + $0x3d0] sm:%s1758]
                  %2012 = vst [vmem:[%s1766 + $0x1e8] sm:%s1758] %v2011
                  %v2013 = vld [vmem:[%s1765 + $0x3d8] sm:%s1758]
                  %2014 = vst [vmem:[%s1766 + $0x1ec] sm:%s1758] %v2013
                  %v2015 = vld [vmem:[%s1765 + $0x3e0] sm:%s1758]
                  %2016 = vst [vmem:[%s1766 + $0x1f0] sm:%s1758] %v2015
                  %v2017 = vld [vmem:[%s1765 + $0x3e8] sm:%s1758]
                  %2018 = vst [vmem:[%s1766 + $0x1f4] sm:%s1758] %v2017
                  %v2019 = vld [vmem:[%s1765 + $0x3f0] sm:%s1758]
                  %2020 = vst [vmem:[%s1766 + $0x1f8] sm:%s1758] %v2019
                  %v2021 = vld [vmem:[%s1765 + $0x3f8] sm:%s1758]
                  %2022 = vst [vmem:[%s1766 + $0x1fc] sm:%s1758] %v2021
                  %v2023 = vld [vmem:[%s1765 + $0x400] sm:%s1758]
                  %2024 = vst [vmem:[%s1766 + $0x200] sm:%s1758] %v2023
                  %v2025 = vld [vmem:[%s1765 + $0x408] sm:%s1758]
                  %2026 = vst [vmem:[%s1766 + $0x204] sm:%s1758] %v2025
                  %v2027 = vld [vmem:[%s1765 + $0x410] sm:%s1758]
                  %2028 = vst [vmem:[%s1766 + $0x208] sm:%s1758] %v2027
                  %v2029 = vld [vmem:[%s1765 + $0x418] sm:%s1758]
                  %2030 = vst [vmem:[%s1766 + $0x20c] sm:%s1758] %v2029
                  %v2031 = vld [vmem:[%s1765 + $0x420] sm:%s1758]
                  %2032 = vst [vmem:[%s1766 + $0x210] sm:%s1758] %v2031
                  %v2033 = vld [vmem:[%s1765 + $0x428] sm:%s1758]
                  %2034 = vst [vmem:[%s1766 + $0x214] sm:%s1758] %v2033
                  %v2035 = vld [vmem:[%s1765 + $0x430] sm:%s1758]
                  %2036 = vst [vmem:[%s1766 + $0x218] sm:%s1758] %v2035
                  %v2037 = vld [vmem:[%s1765 + $0x438] sm:%s1758]
                  %2038 = vst [vmem:[%s1766 + $0x21c] sm:%s1758] %v2037
                  %v2039 = vld [vmem:[%s1765 + $0x440] sm:%s1758]
                  %2040 = vst [vmem:[%s1766 + $0x220] sm:%s1758] %v2039
                  %v2041 = vld [vmem:[%s1765 + $0x448] sm:%s1758]
                  %2042 = vst [vmem:[%s1766 + $0x224] sm:%s1758] %v2041
                  %v2043 = vld [vmem:[%s1765 + $0x450] sm:%s1758]
                  %2044 = vst [vmem:[%s1766 + $0x228] sm:%s1758] %v2043
                  %v2045 = vld [vmem:[%s1765 + $0x458] sm:%s1758]
                  %2046 = vst [vmem:[%s1766 + $0x22c] sm:%s1758] %v2045
                  %v2047 = vld [vmem:[%s1765 + $0x460] sm:%s1758]
                  %2048 = vst [vmem:[%s1766 + $0x230] sm:%s1758] %v2047
                  %v2049 = vld [vmem:[%s1765 + $0x468] sm:%s1758]
                  %2050 = vst [vmem:[%s1766 + $0x234] sm:%s1758] %v2049
                  %v2051 = vld [vmem:[%s1765 + $0x470] sm:%s1758]
                  %2052 = vst [vmem:[%s1766 + $0x238] sm:%s1758] %v2051
                  %v2053 = vld [vmem:[%s1765 + $0x478] sm:%s1758]
                  %2054 = vst [vmem:[%s1766 + $0x23c] sm:%s1758] %v2053
                  %v2055 = vld [vmem:[%s1765 + $0x480] sm:%s1758]
                  %2056 = vst [vmem:[%s1766 + $0x240] sm:%s1758] %v2055
                  %v2057 = vld [vmem:[%s1765 + $0x488] sm:%s1758]
                  %2058 = vst [vmem:[%s1766 + $0x244] sm:%s1758] %v2057
                  %v2059 = vld [vmem:[%s1765 + $0x490] sm:%s1758]
                  %2060 = vst [vmem:[%s1766 + $0x248] sm:%s1758] %v2059
                  %v2061 = vld [vmem:[%s1765 + $0x498] sm:%s1758]
                  %2062 = vst [vmem:[%s1766 + $0x24c] sm:%s1758] %v2061
                  %v2063 = vld [vmem:[%s1765 + $0x4a0] sm:%s1758]
                  %2064 = vst [vmem:[%s1766 + $0x250] sm:%s1758] %v2063
                  %v2065 = vld [vmem:[%s1765 + $0x4a8] sm:%s1758]
                  %2066 = vst [vmem:[%s1766 + $0x254] sm:%s1758] %v2065
                  %v2067 = vld [vmem:[%s1765 + $0x4b0] sm:%s1758]
                  %2068 = vst [vmem:[%s1766 + $0x258] sm:%s1758] %v2067
                  %v2069 = vld [vmem:[%s1765 + $0x4b8] sm:%s1758]
                  %2070 = vst [vmem:[%s1766 + $0x25c] sm:%s1758] %v2069
                  %v2071 = vld [vmem:[%s1765 + $0x4c0] sm:%s1758]
                  %2072 = vst [vmem:[%s1766 + $0x260] sm:%s1758] %v2071
                  %v2073 = vld [vmem:[%s1765 + $0x4c8] sm:%s1758]
                  %2074 = vst [vmem:[%s1766 + $0x264] sm:%s1758] %v2073
                  %v2075 = vld [vmem:[%s1765 + $0x4d0] sm:%s1758]
                  %2076 = vst [vmem:[%s1766 + $0x268] sm:%s1758] %v2075
                  %v2077 = vld [vmem:[%s1765 + $0x4d8] sm:%s1758]
                  %2078 = vst [vmem:[%s1766 + $0x26c] sm:%s1758] %v2077
                  %v2079 = vld [vmem:[%s1765 + $0x4e0] sm:%s1758]
                  %2080 = vst [vmem:[%s1766 + $0x270] sm:%s1758] %v2079
                  %v2081 = vld [vmem:[%s1765 + $0x4e8] sm:%s1758]
                  %2082 = vst [vmem:[%s1766 + $0x274] sm:%s1758] %v2081
                  %v2083 = vld [vmem:[%s1765 + $0x4f0] sm:%s1758]
                  %2084 = vst [vmem:[%s1766 + $0x278] sm:%s1758] %v2083
                  %v2085 = vld [vmem:[%s1765 + $0x4f8] sm:%s1758]
                  %2086 = vst [vmem:[%s1766 + $0x27c] sm:%s1758] %v2085
                  %v2087 = vld [vmem:[%s1765 + $0x500] sm:%s1758]
                  %2088 = vst [vmem:[%s1766 + $0x280] sm:%s1758] %v2087
                  %v2089 = vld [vmem:[%s1765 + $0x508] sm:%s1758]
                  %2090 = vst [vmem:[%s1766 + $0x284] sm:%s1758] %v2089
                  %v2091 = vld [vmem:[%s1765 + $0x510] sm:%s1758]
                  %2092 = vst [vmem:[%s1766 + $0x288] sm:%s1758] %v2091
                  %v2093 = vld [vmem:[%s1765 + $0x518] sm:%s1758]
                  %2094 = vst [vmem:[%s1766 + $0x28c] sm:%s1758] %v2093
                  %v2095 = vld [vmem:[%s1765 + $0x520] sm:%s1758]
                  %2096 = vst [vmem:[%s1766 + $0x290] sm:%s1758] %v2095
                  %v2097 = vld [vmem:[%s1765 + $0x528] sm:%s1758]
                  %2098 = vst [vmem:[%s1766 + $0x294] sm:%s1758] %v2097
                  %v2099 = vld [vmem:[%s1765 + $0x530] sm:%s1758]
                  %2100 = vst [vmem:[%s1766 + $0x298] sm:%s1758] %v2099
                  %v2101 = vld [vmem:[%s1765 + $0x538] sm:%s1758]
                  %2102 = vst [vmem:[%s1766 + $0x29c] sm:%s1758] %v2101
                  %v2103 = vld [vmem:[%s1765 + $0x540] sm:%s1758]
                  %2104 = vst [vmem:[%s1766 + $0x2a0] sm:%s1758] %v2103
                  %v2105 = vld [vmem:[%s1765 + $0x548] sm:%s1758]
                  %2106 = vst [vmem:[%s1766 + $0x2a4] sm:%s1758] %v2105
                  %v2107 = vld [vmem:[%s1765 + $0x550] sm:%s1758]
                  %2108 = vst [vmem:[%s1766 + $0x2a8] sm:%s1758] %v2107
                  %v2109 = vld [vmem:[%s1765 + $0x558] sm:%s1758]
                  %2110 = vst [vmem:[%s1766 + $0x2ac] sm:%s1758] %v2109
                  %v2111 = vld [vmem:[%s1765 + $0x560] sm:%s1758]
                  %2112 = vst [vmem:[%s1766 + $0x2b0] sm:%s1758] %v2111
                  %v2113 = vld [vmem:[%s1765 + $0x568] sm:%s1758]
                  %2114 = vst [vmem:[%s1766 + $0x2b4] sm:%s1758] %v2113
                  %v2115 = vld [vmem:[%s1765 + $0x570] sm:%s1758]
                  %2116 = vst [vmem:[%s1766 + $0x2b8] sm:%s1758] %v2115
                  %v2117 = vld [vmem:[%s1765 + $0x578] sm:%s1758]
                  %2118 = vst [vmem:[%s1766 + $0x2bc] sm:%s1758] %v2117
                  %v2119 = vld [vmem:[%s1765 + $0x580] sm:%s1758]
                  %2120 = vst [vmem:[%s1766 + $0x2c0] sm:%s1758] %v2119
                  %v2121 = vld [vmem:[%s1765 + $0x588] sm:%s1758]
                  %2122 = vst [vmem:[%s1766 + $0x2c4] sm:%s1758] %v2121
                  %v2123 = vld [vmem:[%s1765 + $0x590] sm:%s1758]
                  %2124 = vst [vmem:[%s1766 + $0x2c8] sm:%s1758] %v2123
                  %v2125 = vld [vmem:[%s1765 + $0x598] sm:%s1758]
                  %2126 = vst [vmem:[%s1766 + $0x2cc] sm:%s1758] %v2125
                  %v2127 = vld [vmem:[%s1765 + $0x5a0] sm:%s1758]
                  %2128 = vst [vmem:[%s1766 + $0x2d0] sm:%s1758] %v2127
                  %v2129 = vld [vmem:[%s1765 + $0x5a8] sm:%s1758]
                  %2130 = vst [vmem:[%s1766 + $0x2d4] sm:%s1758] %v2129
                  %v2131 = vld [vmem:[%s1765 + $0x5b0] sm:%s1758]
                  %2132 = vst [vmem:[%s1766 + $0x2d8] sm:%s1758] %v2131
                  %v2133 = vld [vmem:[%s1765 + $0x5b8] sm:%s1758]
                  %2134 = vst [vmem:[%s1766 + $0x2dc] sm:%s1758] %v2133
                  %v2135 = vld [vmem:[%s1765 + $0x5c0] sm:%s1758]
                  %2136 = vst [vmem:[%s1766 + $0x2e0] sm:%s1758] %v2135
                  %v2137 = vld [vmem:[%s1765 + $0x5c8] sm:%s1758]
                  %2138 = vst [vmem:[%s1766 + $0x2e4] sm:%s1758] %v2137
                  %v2139 = vld [vmem:[%s1765 + $0x5d0] sm:%s1758]
                  %2140 = vst [vmem:[%s1766 + $0x2e8] sm:%s1758] %v2139
                  %v2141 = vld [vmem:[%s1765 + $0x5d8] sm:%s1758]
                  %2142 = vst [vmem:[%s1766 + $0x2ec] sm:%s1758] %v2141
                  %v2143 = vld [vmem:[%s1765 + $0x5e0] sm:%s1758]
                  %2144 = vst [vmem:[%s1766 + $0x2f0] sm:%s1758] %v2143
                  %v2145 = vld [vmem:[%s1765 + $0x5e8] sm:%s1758]
                  %2146 = vst [vmem:[%s1766 + $0x2f4] sm:%s1758] %v2145
                  %v2147 = vld [vmem:[%s1765 + $0x5f0] sm:%s1758]
                  %2148 = vst [vmem:[%s1766 + $0x2f8] sm:%s1758] %v2147
                  %v2149 = vld [vmem:[%s1765 + $0x5f8] sm:%s1758]
                  %2150 = vst [vmem:[%s1766 + $0x2fc] sm:%s1758] %v2149
                  %v2151 = vld [vmem:[%s1765 + $0x600] sm:%s1758]
                  %2152 = vst [vmem:[%s1766 + $0x300] sm:%s1758] %v2151
                  %v2153 = vld [vmem:[%s1765 + $0x608] sm:%s1758]
                  %2154 = vst [vmem:[%s1766 + $0x304] sm:%s1758] %v2153
                  %v2155 = vld [vmem:[%s1765 + $0x610] sm:%s1758]
                  %2156 = vst [vmem:[%s1766 + $0x308] sm:%s1758] %v2155
                  %v2157 = vld [vmem:[%s1765 + $0x618] sm:%s1758]
                  %2158 = vst [vmem:[%s1766 + $0x30c] sm:%s1758] %v2157
                  %v2159 = vld [vmem:[%s1765 + $0x620] sm:%s1758]
                  %2160 = vst [vmem:[%s1766 + $0x310] sm:%s1758] %v2159
                  %v2161 = vld [vmem:[%s1765 + $0x628] sm:%s1758]
                  %2162 = vst [vmem:[%s1766 + $0x314] sm:%s1758] %v2161
                  %v2163 = vld [vmem:[%s1765 + $0x630] sm:%s1758]
                  %2164 = vst [vmem:[%s1766 + $0x318] sm:%s1758] %v2163
                  %v2165 = vld [vmem:[%s1765 + $0x638] sm:%s1758]
                  %2166 = vst [vmem:[%s1766 + $0x31c] sm:%s1758] %v2165
                  %v2167 = vld [vmem:[%s1765 + $0x640] sm:%s1758]
                  %2168 = vst [vmem:[%s1766 + $0x320] sm:%s1758] %v2167
                  %v2169 = vld [vmem:[%s1765 + $0x648] sm:%s1758]
                  %2170 = vst [vmem:[%s1766 + $0x324] sm:%s1758] %v2169
                  %v2171 = vld [vmem:[%s1765 + $0x650] sm:%s1758]
                  %2172 = vst [vmem:[%s1766 + $0x328] sm:%s1758] %v2171
                  %v2173 = vld [vmem:[%s1765 + $0x658] sm:%s1758]
                  %2174 = vst [vmem:[%s1766 + $0x32c] sm:%s1758] %v2173
                  %v2175 = vld [vmem:[%s1765 + $0x660] sm:%s1758]
                  %2176 = vst [vmem:[%s1766 + $0x330] sm:%s1758] %v2175
                  %v2177 = vld [vmem:[%s1765 + $0x668] sm:%s1758]
                  %2178 = vst [vmem:[%s1766 + $0x334] sm:%s1758] %v2177
                  %v2179 = vld [vmem:[%s1765 + $0x670] sm:%s1758]
                  %2180 = vst [vmem:[%s1766 + $0x338] sm:%s1758] %v2179
                  %v2181 = vld [vmem:[%s1765 + $0x678] sm:%s1758]
                  %2182 = vst [vmem:[%s1766 + $0x33c] sm:%s1758] %v2181
                  %v2183 = vld [vmem:[%s1765 + $0x680] sm:%s1758]
                  %2184 = vst [vmem:[%s1766 + $0x340] sm:%s1758] %v2183
                  %v2185 = vld [vmem:[%s1765 + $0x688] sm:%s1758]
                  %2186 = vst [vmem:[%s1766 + $0x344] sm:%s1758] %v2185
                  %v2187 = vld [vmem:[%s1765 + $0x690] sm:%s1758]
                  %2188 = vst [vmem:[%s1766 + $0x348] sm:%s1758] %v2187
                  %v2189 = vld [vmem:[%s1765 + $0x698] sm:%s1758]
                  %2190 = vst [vmem:[%s1766 + $0x34c] sm:%s1758] %v2189
                  %v2191 = vld [vmem:[%s1765 + $0x6a0] sm:%s1758]
                  %2192 = vst [vmem:[%s1766 + $0x350] sm:%s1758] %v2191
                  %v2193 = vld [vmem:[%s1765 + $0x6a8] sm:%s1758]
                  %2194 = vst [vmem:[%s1766 + $0x354] sm:%s1758] %v2193
                  %v2195 = vld [vmem:[%s1765 + $0x6b0] sm:%s1758]
                  %2196 = vst [vmem:[%s1766 + $0x358] sm:%s1758] %v2195
                  %v2197 = vld [vmem:[%s1765 + $0x6b8] sm:%s1758]
                  %2198 = vst [vmem:[%s1766 + $0x35c] sm:%s1758] %v2197
                  %v2199 = vld [vmem:[%s1765 + $0x6c0] sm:%s1758]
                  %2200 = vst [vmem:[%s1766 + $0x360] sm:%s1758] %v2199
                  %v2201 = vld [vmem:[%s1765 + $0x6c8] sm:%s1758]
                  %2202 = vst [vmem:[%s1766 + $0x364] sm:%s1758] %v2201
                  %v2203 = vld [vmem:[%s1765 + $0x6d0] sm:%s1758]
                  %2204 = vst [vmem:[%s1766 + $0x368] sm:%s1758] %v2203
                  %v2205 = vld [vmem:[%s1765 + $0x6d8] sm:%s1758]
                  %2206 = vst [vmem:[%s1766 + $0x36c] sm:%s1758] %v2205
                  %v2207 = vld [vmem:[%s1765 + $0x6e0] sm:%s1758]
                  %2208 = vst [vmem:[%s1766 + $0x370] sm:%s1758] %v2207
                  %v2209 = vld [vmem:[%s1765 + $0x6e8] sm:%s1758]
                  %2210 = vst [vmem:[%s1766 + $0x374] sm:%s1758] %v2209
                  %v2211 = vld [vmem:[%s1765 + $0x6f0] sm:%s1758]
                  %2212 = vst [vmem:[%s1766 + $0x378] sm:%s1758] %v2211
                  %v2213 = vld [vmem:[%s1765 + $0x6f8] sm:%s1758]
                  %2214 = vst [vmem:[%s1766 + $0x37c] sm:%s1758] %v2213
                  %v2215 = vld [vmem:[%s1765 + $0x700] sm:%s1758]
                  %2216 = vst [vmem:[%s1766 + $0x380] sm:%s1758] %v2215
                  %v2217 = vld [vmem:[%s1765 + $0x708] sm:%s1758]
                  %2218 = vst [vmem:[%s1766 + $0x384] sm:%s1758] %v2217
                  %v2219 = vld [vmem:[%s1765 + $0x710] sm:%s1758]
                  %2220 = vst [vmem:[%s1766 + $0x388] sm:%s1758] %v2219
                  %v2221 = vld [vmem:[%s1765 + $0x718] sm:%s1758]
                  %2222 = vst [vmem:[%s1766 + $0x38c] sm:%s1758] %v2221
                  %v2223 = vld [vmem:[%s1765 + $0x720] sm:%s1758]
                  %2224 = vst [vmem:[%s1766 + $0x390] sm:%s1758] %v2223
                  %v2225 = vld [vmem:[%s1765 + $0x728] sm:%s1758]
                  %2226 = vst [vmem:[%s1766 + $0x394] sm:%s1758] %v2225
                  %v2227 = vld [vmem:[%s1765 + $0x730] sm:%s1758]
                  %2228 = vst [vmem:[%s1766 + $0x398] sm:%s1758] %v2227
                  %v2229 = vld [vmem:[%s1765 + $0x738] sm:%s1758]
                  %2230 = vst [vmem:[%s1766 + $0x39c] sm:%s1758] %v2229
                  %v2231 = vld [vmem:[%s1765 + $0x740] sm:%s1758]
                  %2232 = vst [vmem:[%s1766 + $0x3a0] sm:%s1758] %v2231
                  %v2233 = vld [vmem:[%s1765 + $0x748] sm:%s1758]
                  %2234 = vst [vmem:[%s1766 + $0x3a4] sm:%s1758] %v2233
                  %v2235 = vld [vmem:[%s1765 + $0x750] sm:%s1758]
                  %2236 = vst [vmem:[%s1766 + $0x3a8] sm:%s1758] %v2235
                  %v2237 = vld [vmem:[%s1765 + $0x758] sm:%s1758]
                  %2238 = vst [vmem:[%s1766 + $0x3ac] sm:%s1758] %v2237
                  %v2239 = vld [vmem:[%s1765 + $0x760] sm:%s1758]
                  %2240 = vst [vmem:[%s1766 + $0x3b0] sm:%s1758] %v2239
                  %v2241 = vld [vmem:[%s1765 + $0x768] sm:%s1758]
                  %2242 = vst [vmem:[%s1766 + $0x3b4] sm:%s1758] %v2241
                  %v2243 = vld [vmem:[%s1765 + $0x770] sm:%s1758]
                  %2244 = vst [vmem:[%s1766 + $0x3b8] sm:%s1758] %v2243
                  %v2245 = vld [vmem:[%s1765 + $0x778] sm:%s1758]
                  %2246 = vst [vmem:[%s1766 + $0x3bc] sm:%s1758] %v2245
                  %v2247 = vld [vmem:[%s1765 + $0x780] sm:%s1758]
                  %2248 = vst [vmem:[%s1766 + $0x3c0] sm:%s1758] %v2247
                  %v2249 = vld [vmem:[%s1765 + $0x788] sm:%s1758]
                  %2250 = vst [vmem:[%s1766 + $0x3c4] sm:%s1758] %v2249
                  %v2251 = vld [vmem:[%s1765 + $0x790] sm:%s1758]
                  %2252 = vst [vmem:[%s1766 + $0x3c8] sm:%s1758] %v2251
                  %v2253 = vld [vmem:[%s1765 + $0x798] sm:%s1758]
                  %2254 = vst [vmem:[%s1766 + $0x3cc] sm:%s1758] %v2253
                  %v2255 = vld [vmem:[%s1765 + $0x7a0] sm:%s1758]
                  %2256 = vst [vmem:[%s1766 + $0x3d0] sm:%s1758] %v2255
                  %v2257 = vld [vmem:[%s1765 + $0x7a8] sm:%s1758]
                  %2258 = vst [vmem:[%s1766 + $0x3d4] sm:%s1758] %v2257
                  %v2259 = vld [vmem:[%s1765 + $0x7b0] sm:%s1758]
                  %2260 = vst [vmem:[%s1766 + $0x3d8] sm:%s1758] %v2259
                  %v2261 = vld [vmem:[%s1765 + $0x7b8] sm:%s1758]
                  %2262 = vst [vmem:[%s1766 + $0x3dc] sm:%s1758] %v2261
                  %v2263 = vld [vmem:[%s1765 + $0x7c0] sm:%s1758]
                  %2264 = vst [vmem:[%s1766 + $0x3e0] sm:%s1758] %v2263
                  %v2265 = vld [vmem:[%s1765 + $0x7c8] sm:%s1758]
                  %2266 = vst [vmem:[%s1766 + $0x3e4] sm:%s1758] %v2265
                  %v2267 = vld [vmem:[%s1765 + $0x7d0] sm:%s1758]
                  %2268 = vst [vmem:[%s1766 + $0x3e8] sm:%s1758] %v2267
                  %v2269 = vld [vmem:[%s1765 + $0x7d8] sm:%s1758]
                  %2270 = vst [vmem:[%s1766 + $0x3ec] sm:%s1758] %v2269
                  %v2271 = vld [vmem:[%s1765 + $0x7e0] sm:%s1758]
                  %2272 = vst [vmem:[%s1766 + $0x3f0] sm:%s1758] %v2271
                  %v2273 = vld [vmem:[%s1765 + $0x7e8] sm:%s1758]
                  %2274 = vst [vmem:[%s1766 + $0x3f4] sm:%s1758] %v2273
                  %v2275 = vld [vmem:[%s1765 + $0x7f0] sm:%s1758]
                  %2276 = vst [vmem:[%s1766 + $0x3f8] sm:%s1758] %v2275
                  %v2277 = vld [vmem:[%s1765 + $0x7f8] sm:%s1758]
                  %2278 = vst [vmem:[%s1766 + $0x3fc] sm:%s1758] %v2277
                $region70: #{encoder_cnn_forward.1} parent=57 // loop_footer
                  %s1764 = sadd.s32 1, %s1760
                $region71: #{encoder_cnn_forward.1} parent=57 // loop_footer_branch
                  %1759 = sbr.rel target = $region67
                $region72: #{encoder_cnn_forward.1} parent=57 // loop_exit
                  _
              $region58: #{encoder_cnn_forward.1} parent=31 // pred_fallthru
                _
            $region32: #{encoder_cnn_forward.1} parent=27 // pred_fallthru
              _
            // Predicated region
            $region33: #{encoder_cnn_forward.1} parent=27 // pred_check
              _
            $region34: #{encoder_cnn_forward.1} parent=27 // pred_check_branch
              %174 = sbr.rel (0) target = $region36
            $region35: #{encoder_cnn_forward.1} parent=27 // pred_region
              %s176 = ssub.s32 16, 1
              loop: start=0, step=1, limit=1
              $region37: #{encoder_cnn_forward.1} parent=35 // loop_pre_header
                _
              $region38: #{encoder_cnn_forward.1} parent=35 // loop_header
                %s178 = sphi 0, %s182
                %p179 = scmp.ge.s32.totalorder %s178, 1
                %s183 = sphi %s168, %s168
                %s184 = sphi %s166, %s166
              $region39: #{encoder_cnn_forward.1} parent=35 // loop_header_branch
                %181 = sbr.rel (%p179) target = $region43
              $region40: #{encoder_cnn_forward.1} parent=35 // loop_body
                %v185 = vld [vmem:[%s183] sm:%s176]
                %186 = vst [vmem:[%s184] sm:%s176] %v185
                %v187 = vld [vmem:[%s183 + $0x8] sm:%s176]
                %188 = vst [vmem:[%s184 + $0x4] sm:%s176] %v187
                %v189 = vld [vmem:[%s183 + $0x10] sm:%s176]
                %190 = vst [vmem:[%s184 + $0x8] sm:%s176] %v189
                %v191 = vld [vmem:[%s183 + $0x18] sm:%s176]
                %192 = vst [vmem:[%s184 + $0xc] sm:%s176] %v191
                %v193 = vld [vmem:[%s183 + $0x20] sm:%s176]
                %194 = vst [vmem:[%s184 + $0x10] sm:%s176] %v193
                %v195 = vld [vmem:[%s183 + $0x28] sm:%s176]
                %196 = vst [vmem:[%s184 + $0x14] sm:%s176] %v195
                %v197 = vld [vmem:[%s183 + $0x30] sm:%s176]
                %198 = vst [vmem:[%s184 + $0x18] sm:%s176] %v197
                %v199 = vld [vmem:[%s183 + $0x38] sm:%s176]
                %200 = vst [vmem:[%s184 + $0x1c] sm:%s176] %v199
                %v201 = vld [vmem:[%s183 + $0x40] sm:%s176]
                %202 = vst [vmem:[%s184 + $0x20] sm:%s176] %v201
                %v203 = vld [vmem:[%s183 + $0x48] sm:%s176]
                %204 = vst [vmem:[%s184 + $0x24] sm:%s176] %v203
                %v205 = vld [vmem:[%s183 + $0x50] sm:%s176]
                %206 = vst [vmem:[%s184 + $0x28] sm:%s176] %v205
                %v207 = vld [vmem:[%s183 + $0x58] sm:%s176]
                %208 = vst [vmem:[%s184 + $0x2c] sm:%s176] %v207
                %v209 = vld [vmem:[%s183 + $0x60] sm:%s176]
                %210 = vst [vmem:[%s184 + $0x30] sm:%s176] %v209
                %v211 = vld [vmem:[%s183 + $0x68] sm:%s176]
                %212 = vst [vmem:[%s184 + $0x34] sm:%s176] %v211
                %v213 = vld [vmem:[%s183 + $0x70] sm:%s176]
                %214 = vst [vmem:[%s184 + $0x38] sm:%s176] %v213
                %v215 = vld [vmem:[%s183 + $0x78] sm:%s176]
                %216 = vst [vmem:[%s184 + $0x3c] sm:%s176] %v215
                %v217 = vld [vmem:[%s183 + $0x80] sm:%s176]
                %218 = vst [vmem:[%s184 + $0x40] sm:%s176] %v217
                %v219 = vld [vmem:[%s183 + $0x88] sm:%s176]
                %220 = vst [vmem:[%s184 + $0x44] sm:%s176] %v219
                %v221 = vld [vmem:[%s183 + $0x90] sm:%s176]
                %222 = vst [vmem:[%s184 + $0x48] sm:%s176] %v221
                %v223 = vld [vmem:[%s183 + $0x98] sm:%s176]
                %224 = vst [vmem:[%s184 + $0x4c] sm:%s176] %v223
                %v225 = vld [vmem:[%s183 + $0xa0] sm:%s176]
                %226 = vst [vmem:[%s184 + $0x50] sm:%s176] %v225
                %v227 = vld [vmem:[%s183 + $0xa8] sm:%s176]
                %228 = vst [vmem:[%s184 + $0x54] sm:%s176] %v227
                %v229 = vld [vmem:[%s183 + $0xb0] sm:%s176]
                %230 = vst [vmem:[%s184 + $0x58] sm:%s176] %v229
                %v231 = vld [vmem:[%s183 + $0xb8] sm:%s176]
                %232 = vst [vmem:[%s184 + $0x5c] sm:%s176] %v231
                %v233 = vld [vmem:[%s183 + $0xc0] sm:%s176]
                %234 = vst [vmem:[%s184 + $0x60] sm:%s176] %v233
                %v235 = vld [vmem:[%s183 + $0xc8] sm:%s176]
                %236 = vst [vmem:[%s184 + $0x64] sm:%s176] %v235
                %v237 = vld [vmem:[%s183 + $0xd0] sm:%s176]
                %238 = vst [vmem:[%s184 + $0x68] sm:%s176] %v237
                %v239 = vld [vmem:[%s183 + $0xd8] sm:%s176]
                %240 = vst [vmem:[%s184 + $0x6c] sm:%s176] %v239
                %v241 = vld [vmem:[%s183 + $0xe0] sm:%s176]
                %242 = vst [vmem:[%s184 + $0x70] sm:%s176] %v241
                %v243 = vld [vmem:[%s183 + $0xe8] sm:%s176]
                %244 = vst [vmem:[%s184 + $0x74] sm:%s176] %v243
                %v245 = vld [vmem:[%s183 + $0xf0] sm:%s176]
                %246 = vst [vmem:[%s184 + $0x78] sm:%s176] %v245
                %v247 = vld [vmem:[%s183 + $0xf8] sm:%s176]
                %248 = vst [vmem:[%s184 + $0x7c] sm:%s176] %v247
                %v249 = vld [vmem:[%s183 + $0x100] sm:%s176]
                %250 = vst [vmem:[%s184 + $0x80] sm:%s176] %v249
                %v251 = vld [vmem:[%s183 + $0x108] sm:%s176]
                %252 = vst [vmem:[%s184 + $0x84] sm:%s176] %v251
                %v253 = vld [vmem:[%s183 + $0x110] sm:%s176]
                %254 = vst [vmem:[%s184 + $0x88] sm:%s176] %v253
                %v255 = vld [vmem:[%s183 + $0x118] sm:%s176]
                %256 = vst [vmem:[%s184 + $0x8c] sm:%s176] %v255
                %v257 = vld [vmem:[%s183 + $0x120] sm:%s176]
                %258 = vst [vmem:[%s184 + $0x90] sm:%s176] %v257
                %v259 = vld [vmem:[%s183 + $0x128] sm:%s176]
                %260 = vst [vmem:[%s184 + $0x94] sm:%s176] %v259
                %v261 = vld [vmem:[%s183 + $0x130] sm:%s176]
                %262 = vst [vmem:[%s184 + $0x98] sm:%s176] %v261
                %v263 = vld [vmem:[%s183 + $0x138] sm:%s176]
                %264 = vst [vmem:[%s184 + $0x9c] sm:%s176] %v263
                %v265 = vld [vmem:[%s183 + $0x140] sm:%s176]
                %266 = vst [vmem:[%s184 + $0xa0] sm:%s176] %v265
                %v267 = vld [vmem:[%s183 + $0x148] sm:%s176]
                %268 = vst [vmem:[%s184 + $0xa4] sm:%s176] %v267
                %v269 = vld [vmem:[%s183 + $0x150] sm:%s176]
                %270 = vst [vmem:[%s184 + $0xa8] sm:%s176] %v269
                %v271 = vld [vmem:[%s183 + $0x158] sm:%s176]
                %272 = vst [vmem:[%s184 + $0xac] sm:%s176] %v271
                %v273 = vld [vmem:[%s183 + $0x160] sm:%s176]
                %274 = vst [vmem:[%s184 + $0xb0] sm:%s176] %v273
                %v275 = vld [vmem:[%s183 + $0x168] sm:%s176]
                %276 = vst [vmem:[%s184 + $0xb4] sm:%s176] %v275
                %v277 = vld [vmem:[%s183 + $0x170] sm:%s176]
                %278 = vst [vmem:[%s184 + $0xb8] sm:%s176] %v277
                %v279 = vld [vmem:[%s183 + $0x178] sm:%s176]
                %280 = vst [vmem:[%s184 + $0xbc] sm:%s176] %v279
                %v281 = vld [vmem:[%s183 + $0x180] sm:%s176]
                %282 = vst [vmem:[%s184 + $0xc0] sm:%s176] %v281
                %v283 = vld [vmem:[%s183 + $0x188] sm:%s176]
                %284 = vst [vmem:[%s184 + $0xc4] sm:%s176] %v283
                %v285 = vld [vmem:[%s183 + $0x190] sm:%s176]
                %286 = vst [vmem:[%s184 + $0xc8] sm:%s176] %v285
                %v287 = vld [vmem:[%s183 + $0x198] sm:%s176]
                %288 = vst [vmem:[%s184 + $0xcc] sm:%s176] %v287
                %v289 = vld [vmem:[%s183 + $0x1a0] sm:%s176]
                %290 = vst [vmem:[%s184 + $0xd0] sm:%s176] %v289
                %v291 = vld [vmem:[%s183 + $0x1a8] sm:%s176]
                %292 = vst [vmem:[%s184 + $0xd4] sm:%s176] %v291
                %v293 = vld [vmem:[%s183 + $0x1b0] sm:%s176]
                %294 = vst [vmem:[%s184 + $0xd8] sm:%s176] %v293
                %v295 = vld [vmem:[%s183 + $0x1b8] sm:%s176]
                %296 = vst [vmem:[%s184 + $0xdc] sm:%s176] %v295
                %v297 = vld [vmem:[%s183 + $0x1c0] sm:%s176]
                %298 = vst [vmem:[%s184 + $0xe0] sm:%s176] %v297
                %v299 = vld [vmem:[%s183 + $0x1c8] sm:%s176]
                %300 = vst [vmem:[%s184 + $0xe4] sm:%s176] %v299
                %v301 = vld [vmem:[%s183 + $0x1d0] sm:%s176]
                %302 = vst [vmem:[%s184 + $0xe8] sm:%s176] %v301
                %v303 = vld [vmem:[%s183 + $0x1d8] sm:%s176]
                %304 = vst [vmem:[%s184 + $0xec] sm:%s176] %v303
                %v305 = vld [vmem:[%s183 + $0x1e0] sm:%s176]
                %306 = vst [vmem:[%s184 + $0xf0] sm:%s176] %v305
                %v307 = vld [vmem:[%s183 + $0x1e8] sm:%s176]
                %308 = vst [vmem:[%s184 + $0xf4] sm:%s176] %v307
                %v309 = vld [vmem:[%s183 + $0x1f0] sm:%s176]
                %310 = vst [vmem:[%s184 + $0xf8] sm:%s176] %v309
                %v311 = vld [vmem:[%s183 + $0x1f8] sm:%s176]
                %312 = vst [vmem:[%s184 + $0xfc] sm:%s176] %v311
                %v313 = vld [vmem:[%s183 + $0x200] sm:%s176]
                %314 = vst [vmem:[%s184 + $0x100] sm:%s176] %v313
                %v315 = vld [vmem:[%s183 + $0x208] sm:%s176]
                %316 = vst [vmem:[%s184 + $0x104] sm:%s176] %v315
                %v317 = vld [vmem:[%s183 + $0x210] sm:%s176]
                %318 = vst [vmem:[%s184 + $0x108] sm:%s176] %v317
                %v319 = vld [vmem:[%s183 + $0x218] sm:%s176]
                %320 = vst [vmem:[%s184 + $0x10c] sm:%s176] %v319
                %v321 = vld [vmem:[%s183 + $0x220] sm:%s176]
                %322 = vst [vmem:[%s184 + $0x110] sm:%s176] %v321
                %v323 = vld [vmem:[%s183 + $0x228] sm:%s176]
                %324 = vst [vmem:[%s184 + $0x114] sm:%s176] %v323
                %v325 = vld [vmem:[%s183 + $0x230] sm:%s176]
                %326 = vst [vmem:[%s184 + $0x118] sm:%s176] %v325
                %v327 = vld [vmem:[%s183 + $0x238] sm:%s176]
                %328 = vst [vmem:[%s184 + $0x11c] sm:%s176] %v327
                %v329 = vld [vmem:[%s183 + $0x240] sm:%s176]
                %330 = vst [vmem:[%s184 + $0x120] sm:%s176] %v329
                %v331 = vld [vmem:[%s183 + $0x248] sm:%s176]
                %332 = vst [vmem:[%s184 + $0x124] sm:%s176] %v331
                %v333 = vld [vmem:[%s183 + $0x250] sm:%s176]
                %334 = vst [vmem:[%s184 + $0x128] sm:%s176] %v333
                %v335 = vld [vmem:[%s183 + $0x258] sm:%s176]
                %336 = vst [vmem:[%s184 + $0x12c] sm:%s176] %v335
                %v337 = vld [vmem:[%s183 + $0x260] sm:%s176]
                %338 = vst [vmem:[%s184 + $0x130] sm:%s176] %v337
                %v339 = vld [vmem:[%s183 + $0x268] sm:%s176]
                %340 = vst [vmem:[%s184 + $0x134] sm:%s176] %v339
                %v341 = vld [vmem:[%s183 + $0x270] sm:%s176]
                %342 = vst [vmem:[%s184 + $0x138] sm:%s176] %v341
                %v343 = vld [vmem:[%s183 + $0x278] sm:%s176]
                %344 = vst [vmem:[%s184 + $0x13c] sm:%s176] %v343
                %v345 = vld [vmem:[%s183 + $0x280] sm:%s176]
                %346 = vst [vmem:[%s184 + $0x140] sm:%s176] %v345
                %v347 = vld [vmem:[%s183 + $0x288] sm:%s176]
                %348 = vst [vmem:[%s184 + $0x144] sm:%s176] %v347
                %v349 = vld [vmem:[%s183 + $0x290] sm:%s176]
                %350 = vst [vmem:[%s184 + $0x148] sm:%s176] %v349
                %v351 = vld [vmem:[%s183 + $0x298] sm:%s176]
                %352 = vst [vmem:[%s184 + $0x14c] sm:%s176] %v351
                %v353 = vld [vmem:[%s183 + $0x2a0] sm:%s176]
                %354 = vst [vmem:[%s184 + $0x150] sm:%s176] %v353
                %v355 = vld [vmem:[%s183 + $0x2a8] sm:%s176]
                %356 = vst [vmem:[%s184 + $0x154] sm:%s176] %v355
                %v357 = vld [vmem:[%s183 + $0x2b0] sm:%s176]
                %358 = vst [vmem:[%s184 + $0x158] sm:%s176] %v357
                %v359 = vld [vmem:[%s183 + $0x2b8] sm:%s176]
                %360 = vst [vmem:[%s184 + $0x15c] sm:%s176] %v359
                %v361 = vld [vmem:[%s183 + $0x2c0] sm:%s176]
                %362 = vst [vmem:[%s184 + $0x160] sm:%s176] %v361
                %v363 = vld [vmem:[%s183 + $0x2c8] sm:%s176]
                %364 = vst [vmem:[%s184 + $0x164] sm:%s176] %v363
                %v365 = vld [vmem:[%s183 + $0x2d0] sm:%s176]
                %366 = vst [vmem:[%s184 + $0x168] sm:%s176] %v365
                %v367 = vld [vmem:[%s183 + $0x2d8] sm:%s176]
                %368 = vst [vmem:[%s184 + $0x16c] sm:%s176] %v367
                %v369 = vld [vmem:[%s183 + $0x2e0] sm:%s176]
                %370 = vst [vmem:[%s184 + $0x170] sm:%s176] %v369
                %v371 = vld [vmem:[%s183 + $0x2e8] sm:%s176]
                %372 = vst [vmem:[%s184 + $0x174] sm:%s176] %v371
                %v373 = vld [vmem:[%s183 + $0x2f0] sm:%s176]
                %374 = vst [vmem:[%s184 + $0x178] sm:%s176] %v373
                %v375 = vld [vmem:[%s183 + $0x2f8] sm:%s176]
                %376 = vst [vmem:[%s184 + $0x17c] sm:%s176] %v375
                %v377 = vld [vmem:[%s183 + $0x300] sm:%s176]
                %378 = vst [vmem:[%s184 + $0x180] sm:%s176] %v377
                %v379 = vld [vmem:[%s183 + $0x308] sm:%s176]
                %380 = vst [vmem:[%s184 + $0x184] sm:%s176] %v379
                %v381 = vld [vmem:[%s183 + $0x310] sm:%s176]
                %382 = vst [vmem:[%s184 + $0x188] sm:%s176] %v381
                %v383 = vld [vmem:[%s183 + $0x318] sm:%s176]
                %384 = vst [vmem:[%s184 + $0x18c] sm:%s176] %v383
                %v385 = vld [vmem:[%s183 + $0x320] sm:%s176]
                %386 = vst [vmem:[%s184 + $0x190] sm:%s176] %v385
                %v387 = vld [vmem:[%s183 + $0x328] sm:%s176]
                %388 = vst [vmem:[%s184 + $0x194] sm:%s176] %v387
                %v389 = vld [vmem:[%s183 + $0x330] sm:%s176]
                %390 = vst [vmem:[%s184 + $0x198] sm:%s176] %v389
                %v391 = vld [vmem:[%s183 + $0x338] sm:%s176]
                %392 = vst [vmem:[%s184 + $0x19c] sm:%s176] %v391
                %v393 = vld [vmem:[%s183 + $0x340] sm:%s176]
                %394 = vst [vmem:[%s184 + $0x1a0] sm:%s176] %v393
                %v395 = vld [vmem:[%s183 + $0x348] sm:%s176]
                %396 = vst [vmem:[%s184 + $0x1a4] sm:%s176] %v395
                %v397 = vld [vmem:[%s183 + $0x350] sm:%s176]
                %398 = vst [vmem:[%s184 + $0x1a8] sm:%s176] %v397
                %v399 = vld [vmem:[%s183 + $0x358] sm:%s176]
                %400 = vst [vmem:[%s184 + $0x1ac] sm:%s176] %v399
                %v401 = vld [vmem:[%s183 + $0x360] sm:%s176]
                %402 = vst [vmem:[%s184 + $0x1b0] sm:%s176] %v401
                %v403 = vld [vmem:[%s183 + $0x368] sm:%s176]
                %404 = vst [vmem:[%s184 + $0x1b4] sm:%s176] %v403
                %v405 = vld [vmem:[%s183 + $0x370] sm:%s176]
                %406 = vst [vmem:[%s184 + $0x1b8] sm:%s176] %v405
                %v407 = vld [vmem:[%s183 + $0x378] sm:%s176]
                %408 = vst [vmem:[%s184 + $0x1bc] sm:%s176] %v407
                %v409 = vld [vmem:[%s183 + $0x380] sm:%s176]
                %410 = vst [vmem:[%s184 + $0x1c0] sm:%s176] %v409
                %v411 = vld [vmem:[%s183 + $0x388] sm:%s176]
                %412 = vst [vmem:[%s184 + $0x1c4] sm:%s176] %v411
                %v413 = vld [vmem:[%s183 + $0x390] sm:%s176]
                %414 = vst [vmem:[%s184 + $0x1c8] sm:%s176] %v413
                %v415 = vld [vmem:[%s183 + $0x398] sm:%s176]
                %416 = vst [vmem:[%s184 + $0x1cc] sm:%s176] %v415
                %v417 = vld [vmem:[%s183 + $0x3a0] sm:%s176]
                %418 = vst [vmem:[%s184 + $0x1d0] sm:%s176] %v417
                %v419 = vld [vmem:[%s183 + $0x3a8] sm:%s176]
                %420 = vst [vmem:[%s184 + $0x1d4] sm:%s176] %v419
                %v421 = vld [vmem:[%s183 + $0x3b0] sm:%s176]
                %422 = vst [vmem:[%s184 + $0x1d8] sm:%s176] %v421
                %v423 = vld [vmem:[%s183 + $0x3b8] sm:%s176]
                %424 = vst [vmem:[%s184 + $0x1dc] sm:%s176] %v423
                %v425 = vld [vmem:[%s183 + $0x3c0] sm:%s176]
                %426 = vst [vmem:[%s184 + $0x1e0] sm:%s176] %v425
                %v427 = vld [vmem:[%s183 + $0x3c8] sm:%s176]
                %428 = vst [vmem:[%s184 + $0x1e4] sm:%s176] %v427
                %v429 = vld [vmem:[%s183 + $0x3d0] sm:%s176]
                %430 = vst [vmem:[%s184 + $0x1e8] sm:%s176] %v429
                %v431 = vld [vmem:[%s183 + $0x3d8] sm:%s176]
                %432 = vst [vmem:[%s184 + $0x1ec] sm:%s176] %v431
                %v433 = vld [vmem:[%s183 + $0x3e0] sm:%s176]
                %434 = vst [vmem:[%s184 + $0x1f0] sm:%s176] %v433
                %v435 = vld [vmem:[%s183 + $0x3e8] sm:%s176]
                %436 = vst [vmem:[%s184 + $0x1f4] sm:%s176] %v435
                %v437 = vld [vmem:[%s183 + $0x3f0] sm:%s176]
                %438 = vst [vmem:[%s184 + $0x1f8] sm:%s176] %v437
                %v439 = vld [vmem:[%s183 + $0x3f8] sm:%s176]
                %440 = vst [vmem:[%s184 + $0x1fc] sm:%s176] %v439
                %v441 = vld [vmem:[%s183 + $0x400] sm:%s176]
                %442 = vst [vmem:[%s184 + $0x200] sm:%s176] %v441
                %v443 = vld [vmem:[%s183 + $0x408] sm:%s176]
                %444 = vst [vmem:[%s184 + $0x204] sm:%s176] %v443
                %v445 = vld [vmem:[%s183 + $0x410] sm:%s176]
                %446 = vst [vmem:[%s184 + $0x208] sm:%s176] %v445
                %v447 = vld [vmem:[%s183 + $0x418] sm:%s176]
                %448 = vst [vmem:[%s184 + $0x20c] sm:%s176] %v447
                %v449 = vld [vmem:[%s183 + $0x420] sm:%s176]
                %450 = vst [vmem:[%s184 + $0x210] sm:%s176] %v449
                %v451 = vld [vmem:[%s183 + $0x428] sm:%s176]
                %452 = vst [vmem:[%s184 + $0x214] sm:%s176] %v451
                %v453 = vld [vmem:[%s183 + $0x430] sm:%s176]
                %454 = vst [vmem:[%s184 + $0x218] sm:%s176] %v453
                %v455 = vld [vmem:[%s183 + $0x438] sm:%s176]
                %456 = vst [vmem:[%s184 + $0x21c] sm:%s176] %v455
                %v457 = vld [vmem:[%s183 + $0x440] sm:%s176]
                %458 = vst [vmem:[%s184 + $0x220] sm:%s176] %v457
                %v459 = vld [vmem:[%s183 + $0x448] sm:%s176]
                %460 = vst [vmem:[%s184 + $0x224] sm:%s176] %v459
                %v461 = vld [vmem:[%s183 + $0x450] sm:%s176]
                %462 = vst [vmem:[%s184 + $0x228] sm:%s176] %v461
                %v463 = vld [vmem:[%s183 + $0x458] sm:%s176]
                %464 = vst [vmem:[%s184 + $0x22c] sm:%s176] %v463
                %v465 = vld [vmem:[%s183 + $0x460] sm:%s176]
                %466 = vst [vmem:[%s184 + $0x230] sm:%s176] %v465
                %v467 = vld [vmem:[%s183 + $0x468] sm:%s176]
                %468 = vst [vmem:[%s184 + $0x234] sm:%s176] %v467
                %v469 = vld [vmem:[%s183 + $0x470] sm:%s176]
                %470 = vst [vmem:[%s184 + $0x238] sm:%s176] %v469
                %v471 = vld [vmem:[%s183 + $0x478] sm:%s176]
                %472 = vst [vmem:[%s184 + $0x23c] sm:%s176] %v471
                %v473 = vld [vmem:[%s183 + $0x480] sm:%s176]
                %474 = vst [vmem:[%s184 + $0x240] sm:%s176] %v473
                %v475 = vld [vmem:[%s183 + $0x488] sm:%s176]
                %476 = vst [vmem:[%s184 + $0x244] sm:%s176] %v475
                %v477 = vld [vmem:[%s183 + $0x490] sm:%s176]
                %478 = vst [vmem:[%s184 + $0x248] sm:%s176] %v477
                %v479 = vld [vmem:[%s183 + $0x498] sm:%s176]
                %480 = vst [vmem:[%s184 + $0x24c] sm:%s176] %v479
                %v481 = vld [vmem:[%s183 + $0x4a0] sm:%s176]
                %482 = vst [vmem:[%s184 + $0x250] sm:%s176] %v481
                %v483 = vld [vmem:[%s183 + $0x4a8] sm:%s176]
                %484 = vst [vmem:[%s184 + $0x254] sm:%s176] %v483
                %v485 = vld [vmem:[%s183 + $0x4b0] sm:%s176]
                %486 = vst [vmem:[%s184 + $0x258] sm:%s176] %v485
                %v487 = vld [vmem:[%s183 + $0x4b8] sm:%s176]
                %488 = vst [vmem:[%s184 + $0x25c] sm:%s176] %v487
                %v489 = vld [vmem:[%s183 + $0x4c0] sm:%s176]
                %490 = vst [vmem:[%s184 + $0x260] sm:%s176] %v489
                %v491 = vld [vmem:[%s183 + $0x4c8] sm:%s176]
                %492 = vst [vmem:[%s184 + $0x264] sm:%s176] %v491
                %v493 = vld [vmem:[%s183 + $0x4d0] sm:%s176]
                %494 = vst [vmem:[%s184 + $0x268] sm:%s176] %v493
                %v495 = vld [vmem:[%s183 + $0x4d8] sm:%s176]
                %496 = vst [vmem:[%s184 + $0x26c] sm:%s176] %v495
                %v497 = vld [vmem:[%s183 + $0x4e0] sm:%s176]
                %498 = vst [vmem:[%s184 + $0x270] sm:%s176] %v497
                %v499 = vld [vmem:[%s183 + $0x4e8] sm:%s176]
                %500 = vst [vmem:[%s184 + $0x274] sm:%s176] %v499
                %v501 = vld [vmem:[%s183 + $0x4f0] sm:%s176]
                %502 = vst [vmem:[%s184 + $0x278] sm:%s176] %v501
                %v503 = vld [vmem:[%s183 + $0x4f8] sm:%s176]
                %504 = vst [vmem:[%s184 + $0x27c] sm:%s176] %v503
                %v505 = vld [vmem:[%s183 + $0x500] sm:%s176]
                %506 = vst [vmem:[%s184 + $0x280] sm:%s176] %v505
                %v507 = vld [vmem:[%s183 + $0x508] sm:%s176]
                %508 = vst [vmem:[%s184 + $0x284] sm:%s176] %v507
                %v509 = vld [vmem:[%s183 + $0x510] sm:%s176]
                %510 = vst [vmem:[%s184 + $0x288] sm:%s176] %v509
                %v511 = vld [vmem:[%s183 + $0x518] sm:%s176]
                %512 = vst [vmem:[%s184 + $0x28c] sm:%s176] %v511
                %v513 = vld [vmem:[%s183 + $0x520] sm:%s176]
                %514 = vst [vmem:[%s184 + $0x290] sm:%s176] %v513
                %v515 = vld [vmem:[%s183 + $0x528] sm:%s176]
                %516 = vst [vmem:[%s184 + $0x294] sm:%s176] %v515
                %v517 = vld [vmem:[%s183 + $0x530] sm:%s176]
                %518 = vst [vmem:[%s184 + $0x298] sm:%s176] %v517
                %v519 = vld [vmem:[%s183 + $0x538] sm:%s176]
                %520 = vst [vmem:[%s184 + $0x29c] sm:%s176] %v519
                %v521 = vld [vmem:[%s183 + $0x540] sm:%s176]
                %522 = vst [vmem:[%s184 + $0x2a0] sm:%s176] %v521
                %v523 = vld [vmem:[%s183 + $0x548] sm:%s176]
                %524 = vst [vmem:[%s184 + $0x2a4] sm:%s176] %v523
                %v525 = vld [vmem:[%s183 + $0x550] sm:%s176]
                %526 = vst [vmem:[%s184 + $0x2a8] sm:%s176] %v525
                %v527 = vld [vmem:[%s183 + $0x558] sm:%s176]
                %528 = vst [vmem:[%s184 + $0x2ac] sm:%s176] %v527
                %v529 = vld [vmem:[%s183 + $0x560] sm:%s176]
                %530 = vst [vmem:[%s184 + $0x2b0] sm:%s176] %v529
                %v531 = vld [vmem:[%s183 + $0x568] sm:%s176]
                %532 = vst [vmem:[%s184 + $0x2b4] sm:%s176] %v531
                %v533 = vld [vmem:[%s183 + $0x570] sm:%s176]
                %534 = vst [vmem:[%s184 + $0x2b8] sm:%s176] %v533
                %v535 = vld [vmem:[%s183 + $0x578] sm:%s176]
                %536 = vst [vmem:[%s184 + $0x2bc] sm:%s176] %v535
                %v537 = vld [vmem:[%s183 + $0x580] sm:%s176]
                %538 = vst [vmem:[%s184 + $0x2c0] sm:%s176] %v537
                %v539 = vld [vmem:[%s183 + $0x588] sm:%s176]
                %540 = vst [vmem:[%s184 + $0x2c4] sm:%s176] %v539
                %v541 = vld [vmem:[%s183 + $0x590] sm:%s176]
                %542 = vst [vmem:[%s184 + $0x2c8] sm:%s176] %v541
                %v543 = vld [vmem:[%s183 + $0x598] sm:%s176]
                %544 = vst [vmem:[%s184 + $0x2cc] sm:%s176] %v543
                %v545 = vld [vmem:[%s183 + $0x5a0] sm:%s176]
                %546 = vst [vmem:[%s184 + $0x2d0] sm:%s176] %v545
                %v547 = vld [vmem:[%s183 + $0x5a8] sm:%s176]
                %548 = vst [vmem:[%s184 + $0x2d4] sm:%s176] %v547
                %v549 = vld [vmem:[%s183 + $0x5b0] sm:%s176]
                %550 = vst [vmem:[%s184 + $0x2d8] sm:%s176] %v549
                %v551 = vld [vmem:[%s183 + $0x5b8] sm:%s176]
                %552 = vst [vmem:[%s184 + $0x2dc] sm:%s176] %v551
                %v553 = vld [vmem:[%s183 + $0x5c0] sm:%s176]
                %554 = vst [vmem:[%s184 + $0x2e0] sm:%s176] %v553
                %v555 = vld [vmem:[%s183 + $0x5c8] sm:%s176]
                %556 = vst [vmem:[%s184 + $0x2e4] sm:%s176] %v555
                %v557 = vld [vmem:[%s183 + $0x5d0] sm:%s176]
                %558 = vst [vmem:[%s184 + $0x2e8] sm:%s176] %v557
                %v559 = vld [vmem:[%s183 + $0x5d8] sm:%s176]
                %560 = vst [vmem:[%s184 + $0x2ec] sm:%s176] %v559
                %v561 = vld [vmem:[%s183 + $0x5e0] sm:%s176]
                %562 = vst [vmem:[%s184 + $0x2f0] sm:%s176] %v561
                %v563 = vld [vmem:[%s183 + $0x5e8] sm:%s176]
                %564 = vst [vmem:[%s184 + $0x2f4] sm:%s176] %v563
                %v565 = vld [vmem:[%s183 + $0x5f0] sm:%s176]
                %566 = vst [vmem:[%s184 + $0x2f8] sm:%s176] %v565
                %v567 = vld [vmem:[%s183 + $0x5f8] sm:%s176]
                %568 = vst [vmem:[%s184 + $0x2fc] sm:%s176] %v567
                %v569 = vld [vmem:[%s183 + $0x600] sm:%s176]
                %570 = vst [vmem:[%s184 + $0x300] sm:%s176] %v569
                %v571 = vld [vmem:[%s183 + $0x608] sm:%s176]
                %572 = vst [vmem:[%s184 + $0x304] sm:%s176] %v571
                %v573 = vld [vmem:[%s183 + $0x610] sm:%s176]
                %574 = vst [vmem:[%s184 + $0x308] sm:%s176] %v573
                %v575 = vld [vmem:[%s183 + $0x618] sm:%s176]
                %576 = vst [vmem:[%s184 + $0x30c] sm:%s176] %v575
                %v577 = vld [vmem:[%s183 + $0x620] sm:%s176]
                %578 = vst [vmem:[%s184 + $0x310] sm:%s176] %v577
                %v579 = vld [vmem:[%s183 + $0x628] sm:%s176]
                %580 = vst [vmem:[%s184 + $0x314] sm:%s176] %v579
                %v581 = vld [vmem:[%s183 + $0x630] sm:%s176]
                %582 = vst [vmem:[%s184 + $0x318] sm:%s176] %v581
                %v583 = vld [vmem:[%s183 + $0x638] sm:%s176]
                %584 = vst [vmem:[%s184 + $0x31c] sm:%s176] %v583
                %v585 = vld [vmem:[%s183 + $0x640] sm:%s176]
                %586 = vst [vmem:[%s184 + $0x320] sm:%s176] %v585
                %v587 = vld [vmem:[%s183 + $0x648] sm:%s176]
                %588 = vst [vmem:[%s184 + $0x324] sm:%s176] %v587
                %v589 = vld [vmem:[%s183 + $0x650] sm:%s176]
                %590 = vst [vmem:[%s184 + $0x328] sm:%s176] %v589
                %v591 = vld [vmem:[%s183 + $0x658] sm:%s176]
                %592 = vst [vmem:[%s184 + $0x32c] sm:%s176] %v591
                %v593 = vld [vmem:[%s183 + $0x660] sm:%s176]
                %594 = vst [vmem:[%s184 + $0x330] sm:%s176] %v593
                %v595 = vld [vmem:[%s183 + $0x668] sm:%s176]
                %596 = vst [vmem:[%s184 + $0x334] sm:%s176] %v595
                %v597 = vld [vmem:[%s183 + $0x670] sm:%s176]
                %598 = vst [vmem:[%s184 + $0x338] sm:%s176] %v597
                %v599 = vld [vmem:[%s183 + $0x678] sm:%s176]
                %600 = vst [vmem:[%s184 + $0x33c] sm:%s176] %v599
                %v601 = vld [vmem:[%s183 + $0x680] sm:%s176]
                %602 = vst [vmem:[%s184 + $0x340] sm:%s176] %v601
                %v603 = vld [vmem:[%s183 + $0x688] sm:%s176]
                %604 = vst [vmem:[%s184 + $0x344] sm:%s176] %v603
                %v605 = vld [vmem:[%s183 + $0x690] sm:%s176]
                %606 = vst [vmem:[%s184 + $0x348] sm:%s176] %v605
                %v607 = vld [vmem:[%s183 + $0x698] sm:%s176]
                %608 = vst [vmem:[%s184 + $0x34c] sm:%s176] %v607
                %v609 = vld [vmem:[%s183 + $0x6a0] sm:%s176]
                %610 = vst [vmem:[%s184 + $0x350] sm:%s176] %v609
                %v611 = vld [vmem:[%s183 + $0x6a8] sm:%s176]
                %612 = vst [vmem:[%s184 + $0x354] sm:%s176] %v611
                %v613 = vld [vmem:[%s183 + $0x6b0] sm:%s176]
                %614 = vst [vmem:[%s184 + $0x358] sm:%s176] %v613
                %v615 = vld [vmem:[%s183 + $0x6b8] sm:%s176]
                %616 = vst [vmem:[%s184 + $0x35c] sm:%s176] %v615
                %v617 = vld [vmem:[%s183 + $0x6c0] sm:%s176]
                %618 = vst [vmem:[%s184 + $0x360] sm:%s176] %v617
                %v619 = vld [vmem:[%s183 + $0x6c8] sm:%s176]
                %620 = vst [vmem:[%s184 + $0x364] sm:%s176] %v619
                %v621 = vld [vmem:[%s183 + $0x6d0] sm:%s176]
                %622 = vst [vmem:[%s184 + $0x368] sm:%s176] %v621
                %v623 = vld [vmem:[%s183 + $0x6d8] sm:%s176]
                %624 = vst [vmem:[%s184 + $0x36c] sm:%s176] %v623
                %v625 = vld [vmem:[%s183 + $0x6e0] sm:%s176]
                %626 = vst [vmem:[%s184 + $0x370] sm:%s176] %v625
                %v627 = vld [vmem:[%s183 + $0x6e8] sm:%s176]
                %628 = vst [vmem:[%s184 + $0x374] sm:%s176] %v627
                %v629 = vld [vmem:[%s183 + $0x6f0] sm:%s176]
                %630 = vst [vmem:[%s184 + $0x378] sm:%s176] %v629
                %v631 = vld [vmem:[%s183 + $0x6f8] sm:%s176]
                %632 = vst [vmem:[%s184 + $0x37c] sm:%s176] %v631
                %v633 = vld [vmem:[%s183 + $0x700] sm:%s176]
                %634 = vst [vmem:[%s184 + $0x380] sm:%s176] %v633
                %v635 = vld [vmem:[%s183 + $0x708] sm:%s176]
                %636 = vst [vmem:[%s184 + $0x384] sm:%s176] %v635
                %v637 = vld [vmem:[%s183 + $0x710] sm:%s176]
                %638 = vst [vmem:[%s184 + $0x388] sm:%s176] %v637
                %v639 = vld [vmem:[%s183 + $0x718] sm:%s176]
                %640 = vst [vmem:[%s184 + $0x38c] sm:%s176] %v639
                %v641 = vld [vmem:[%s183 + $0x720] sm:%s176]
                %642 = vst [vmem:[%s184 + $0x390] sm:%s176] %v641
                %v643 = vld [vmem:[%s183 + $0x728] sm:%s176]
                %644 = vst [vmem:[%s184 + $0x394] sm:%s176] %v643
                %v645 = vld [vmem:[%s183 + $0x730] sm:%s176]
                %646 = vst [vmem:[%s184 + $0x398] sm:%s176] %v645
                %v647 = vld [vmem:[%s183 + $0x738] sm:%s176]
                %648 = vst [vmem:[%s184 + $0x39c] sm:%s176] %v647
                %v649 = vld [vmem:[%s183 + $0x740] sm:%s176]
                %650 = vst [vmem:[%s184 + $0x3a0] sm:%s176] %v649
                %v651 = vld [vmem:[%s183 + $0x748] sm:%s176]
                %652 = vst [vmem:[%s184 + $0x3a4] sm:%s176] %v651
                %v653 = vld [vmem:[%s183 + $0x750] sm:%s176]
                %654 = vst [vmem:[%s184 + $0x3a8] sm:%s176] %v653
                %v655 = vld [vmem:[%s183 + $0x758] sm:%s176]
                %656 = vst [vmem:[%s184 + $0x3ac] sm:%s176] %v655
                %v657 = vld [vmem:[%s183 + $0x760] sm:%s176]
                %658 = vst [vmem:[%s184 + $0x3b0] sm:%s176] %v657
                %v659 = vld [vmem:[%s183 + $0x768] sm:%s176]
                %660 = vst [vmem:[%s184 + $0x3b4] sm:%s176] %v659
                %v661 = vld [vmem:[%s183 + $0x770] sm:%s176]
                %662 = vst [vmem:[%s184 + $0x3b8] sm:%s176] %v661
                %v663 = vld [vmem:[%s183 + $0x778] sm:%s176]
                %664 = vst [vmem:[%s184 + $0x3bc] sm:%s176] %v663
                %v665 = vld [vmem:[%s183 + $0x780] sm:%s176]
                %666 = vst [vmem:[%s184 + $0x3c0] sm:%s176] %v665
                %v667 = vld [vmem:[%s183 + $0x788] sm:%s176]
                %668 = vst [vmem:[%s184 + $0x3c4] sm:%s176] %v667
                %v669 = vld [vmem:[%s183 + $0x790] sm:%s176]
                %670 = vst [vmem:[%s184 + $0x3c8] sm:%s176] %v669
                %v671 = vld [vmem:[%s183 + $0x798] sm:%s176]
                %672 = vst [vmem:[%s184 + $0x3cc] sm:%s176] %v671
                %v673 = vld [vmem:[%s183 + $0x7a0] sm:%s176]
                %674 = vst [vmem:[%s184 + $0x3d0] sm:%s176] %v673
                %v675 = vld [vmem:[%s183 + $0x7a8] sm:%s176]
                %676 = vst [vmem:[%s184 + $0x3d4] sm:%s176] %v675
                %v677 = vld [vmem:[%s183 + $0x7b0] sm:%s176]
                %678 = vst [vmem:[%s184 + $0x3d8] sm:%s176] %v677
                %v679 = vld [vmem:[%s183 + $0x7b8] sm:%s176]
                %680 = vst [vmem:[%s184 + $0x3dc] sm:%s176] %v679
                %v681 = vld [vmem:[%s183 + $0x7c0] sm:%s176]
                %682 = vst [vmem:[%s184 + $0x3e0] sm:%s176] %v681
                %v683 = vld [vmem:[%s183 + $0x7c8] sm:%s176]
                %684 = vst [vmem:[%s184 + $0x3e4] sm:%s176] %v683
                %v685 = vld [vmem:[%s183 + $0x7d0] sm:%s176]
                %686 = vst [vmem:[%s184 + $0x3e8] sm:%s176] %v685
                %v687 = vld [vmem:[%s183 + $0x7d8] sm:%s176]
                %688 = vst [vmem:[%s184 + $0x3ec] sm:%s176] %v687
                %v689 = vld [vmem:[%s183 + $0x7e0] sm:%s176]
                %690 = vst [vmem:[%s184 + $0x3f0] sm:%s176] %v689
                %v691 = vld [vmem:[%s183 + $0x7e8] sm:%s176]
                %692 = vst [vmem:[%s184 + $0x3f4] sm:%s176] %v691
                %v693 = vld [vmem:[%s183 + $0x7f0] sm:%s176]
                %694 = vst [vmem:[%s184 + $0x3f8] sm:%s176] %v693
                %v695 = vld [vmem:[%s183 + $0x7f8] sm:%s176]
                %696 = vst [vmem:[%s184 + $0x3fc] sm:%s176] %v695
              $region41: #{encoder_cnn_forward.1} parent=35 // loop_footer
                %s182 = sadd.s32 1, %s178
              $region42: #{encoder_cnn_forward.1} parent=35 // loop_footer_branch
                %177 = sbr.rel target = $region38
              $region43: #{encoder_cnn_forward.1} parent=35 // loop_exit
                _
            $region36: #{encoder_cnn_forward.1} parent=27 // pred_fallthru
              _
          $region28: #{encoder_cnn_forward.1} parent=23 // pred_fallthru
            _
          %2279 = vnop
        $region24: #{encoder_cnn_forward.1} parent=19 // pred_fallthru
          _
        // Predicated region
        $region73: #{encoder_cnn_forward.1} parent=19 // pred_check
          %p2280 = pneg %p80
        $region74: #{encoder_cnn_forward.1} parent=19 // pred_check_branch
          %2282 = sbr.rel (%p2280) target = $region76
        $region75: #{encoder_cnn_forward.1} parent=19 // pred_region
          %p2283 = scmp.lt.s32.totalorder %s13, 1
          %s2284 = scalar_select %p2283, %s13, 1
          %s2285 = scalar_lea.vmem %s2, %s2284
        $region76: #{encoder_cnn_forward.1} parent=19 // pred_fallthru
          _
        // Predicated region
        $region77: #{encoder_cnn_forward.1} parent=19 // pred_check
          %p2286 = pneg %p106
        $region78: #{encoder_cnn_forward.1} parent=19 // pred_check_branch
          %2288 = sbr.rel (%p2286) target = $region80
        $region79: #{encoder_cnn_forward.1} parent=19 // pred_region
          %p2289 = scmp.lt.s32.totalorder %s13, 1
          %s2290 = scalar_select %p2289, %s13, 1
          %s2291 = scalar_lea.vmem %s3, %s2290
        $region80: #{encoder_cnn_forward.1} parent=19 // pred_fallthru
          _
      $region20: #{encoder_cnn_forward.1} parent=5 // pred_fallthru
        _
      %p2292 = scmp.le.s32.totalorder 1, %s13
      %p2293 = scmp.lt.s32.totalorder %s13, 3
      %p2294 = pnand %p2292, %p2293
      %p2295 = pneg %p2294
      // Predicated region
      $region81: #{encoder_cnn_forward.1} parent=5 // pred_check
        _
      $region82: #{encoder_cnn_forward.1} parent=5 // pred_check_branch
        %2297 = sbr.rel (%p2294) target = $region84
      $region83: #{encoder_cnn_forward.1} parent=5 // pred_region
        %s2298 = ssub.s32 %s13, 1
        %s2299 = sand.u32 %s47, 1
        %s2300 = sand.u32 %s47, 1
        %s2301 = smul.addr %s2300, 1024
        %s2302 = scalar_lea.vmem [#allocation2], %s2301
        // Predicated region
        $region85: #{encoder_cnn_forward.1} parent=83 // pred_check
          %p2303 = pneg %p60
        $region86: #{encoder_cnn_forward.1} parent=83 // pred_check_branch
          %2305 = sbr.rel (%p2303) target = $region88
        $region87: #{encoder_cnn_forward.1} parent=83 // pred_region
          _
        $region88: #{encoder_cnn_forward.1} parent=83 // pred_fallthru
          _
        %p2306 = pneg %p34
        %p2307 = pneg %p31
        %s2308 = sand.u32 %s47, 1
        %s2309 = sand.u32 %s47, 1
        %s2310 = smul.addr %s2309, 1024
        %s2311 = scalar_lea.vmem [#allocation2], %s2310
        %p2312 = pneg %p60
        %p2313 = pneg %p57
        %p2314 = scmp.lt.s32.totalorder %s18, 1
        %s2315 = scalar_select %p2314, %s18, 1
        %s2316 = scalar_lea.vmem %s2, %s2315
        %p2317 = pneg %p86
        %p2318 = pneg %p83
        %p2319 = scmp.lt.s32.totalorder %s18, 1
        %s2320 = scalar_select %p2319, %s18, 1
        %s2321 = scalar_lea.vmem %s3, %s2320
        %p2322 = pneg %p112
        %p2323 = pneg %p109
        %p2324 = pneg %p138
        %p2325 = pneg %p135
        %s2326 = sand.u32 %s125, 1
        %s2327 = scalar_lea.sflag [#allocation4], %s2326
        %s2328 = sand.u32 %s125, 1
        %s2329 = smul.addr %s2328, 2
        %s2330 = scalar_lea.vmem [#allocation3], %s2329
        %p2331 = scmp.lt.s32.totalorder %s18, 1
        %s2332 = scalar_select %p2331, %s18, 1
        %s2333 = scalar_lea.vmem %s2, %s2332
        %p2334 = scmp.lt.s32.totalorder %s18, 1
        %s2335 = scalar_select %p2334, %s18, 1
        %s2336 = scalar_lea.vmem %s3, %s2335
        %v2337 = vld [vmem:[%s0] sm:$0xff]
        %v2338 = vld [vmem:[%s0 + $0x8] sm:$0xff]
        %v2339 = vld [vmem:[%s0 + $0x10] sm:$0xff]
        %v2340 = vld [vmem:[%s0 + $0x18] sm:$0xff]
        %2345 = vst [vmem:[#allocation1] ss:$4 sm:$0xff] %v2337
        %s2346 = scalar_lea.vmem [#allocation1], 32
        %2347 = vst [vmem:[%s2346] ss:$4 sm:$0xff] %v2338
        %v2348 = vld.sshfl [vmem:[#allocation1] sm:$0xff pattern:$0x73625140]
        %v2349 = vld.sshfl [vmem:[#allocation1 + $0x8] sm:$0xff pattern:$0x73625140]
        %v2350 = vld.sshfl [vmem:[#allocation1 + $0x10] sm:$0xff pattern:$0x73625140]
        %v2351 = vld.sshfl [vmem:[#allocation1 + $0x18] sm:$0xff pattern:$0x73625140]
        %v2352 = vld.sshfl [vmem:[#allocation1 + $0x20] sm:$0xff pattern:$0x73625140]
        %v2353 = vld.sshfl [vmem:[#allocation1 + $0x28] sm:$0xff pattern:$0x73625140]
        %v2354 = vld.sshfl [vmem:[#allocation1 + $0x30] sm:$0xff pattern:$0x73625140]
        %v2355 = vld.sshfl [vmem:[#allocation1 + $0x38] sm:$0xff pattern:$0x73625140]
        %2356 = vst [vmem:[#allocation1] ss:$4 sm:$0xff] %v2339
        %2357 = vst [vmem:[%s2346] ss:$4 sm:$0xff] %v2340
        %v2358 = vld.sshfl [vmem:[#allocation1] sm:$0xff pattern:$0x73625140]
        %v2359 = vld.sshfl [vmem:[#allocation1 + $0x8] sm:$0xff pattern:$0x73625140]
        %v2360 = vld.sshfl [vmem:[#allocation1 + $0x10] sm:$0xff pattern:$0x73625140]
        %v2361 = vld.sshfl [vmem:[#allocation1 + $0x18] sm:$0xff pattern:$0x73625140]
        %v2362 = vld.sshfl [vmem:[#allocation1 + $0x20] sm:$0xff pattern:$0x73625140]
        %v2363 = vld.sshfl [vmem:[#allocation1 + $0x28] sm:$0xff pattern:$0x73625140]
        %v2364 = vld.sshfl [vmem:[#allocation1 + $0x30] sm:$0xff pattern:$0x73625140]
        %v2365 = vld.sshfl [vmem:[#allocation1 + $0x38] sm:$0xff pattern:$0x73625140]
        %v2382 = vpack.c.bf16 %v2348, %v2348
        %v2383 = vpack.c.bf16 %v2349, %v2349
        %v2384 = vpack.c.bf16 %v2350, %v2350
        %v2385 = vpack.c.bf16 %v2351, %v2351
        %v2386 = vpack.c.bf16 %v2352, %v2352
        %v2387 = vpack.c.bf16 %v2353, %v2353
        %v2388 = vpack.c.bf16 %v2354, %v2354
        %v2389 = vpack.c.bf16 %v2355, %v2355
        %v2390 = vpack.c.bf16 %v2358, %v2358
        %v2391 = vpack.c.bf16 %v2359, %v2359
        %v2392 = vpack.c.bf16 %v2360, %v2360
        %v2393 = vpack.c.bf16 %v2361, %v2361
        %v2394 = vpack.c.bf16 %v2362, %v2362
        %v2395 = vpack.c.bf16 %v2363, %v2363
        %v2396 = vpack.c.bf16 %v2364, %v2364
        %v2397 = vpack.c.bf16 %v2365, %v2365
        %v2398 = vld [vmem:[%s2302] sm:$0xf]
        %v2399 = vld [vmem:[%s2302 + $0x4] sm:$0xf]
        %v2400 = vld [vmem:[%s2302 + $0x8] sm:$0xf]
        %v2401 = vld [vmem:[%s2302 + $0xc] sm:$0xf]
        %v2402 = vld [vmem:[%s2302 + $0x10] sm:$0xf]
        %v2403 = vld [vmem:[%s2302 + $0x14] sm:$0xf]
        %v2404 = vld [vmem:[%s2302 + $0x18] sm:$0xf]
        %v2405 = vld [vmem:[%s2302 + $0x1c] sm:$0xf]
        %v2406 = vld [vmem:[%s2302 + $0x20] sm:$0xf]
        %v2407 = vld [vmem:[%s2302 + $0x24] sm:$0xf]
        %v2408 = vld [vmem:[%s2302 + $0x28] sm:$0xf]
        %v2409 = vld [vmem:[%s2302 + $0x2c] sm:$0xf]
        %v2410 = vld [vmem:[%s2302 + $0x30] sm:$0xf]
        %v2411 = vld [vmem:[%s2302 + $0x34] sm:$0xf]
        %v2412 = vld [vmem:[%s2302 + $0x38] sm:$0xf]
        %v2413 = vld [vmem:[%s2302 + $0x3c] sm:$0xf]
        %v2414 = vld [vmem:[%s2302 + $0x40] sm:$0xf]
        %v2415 = vld [vmem:[%s2302 + $0x44] sm:$0xf]
        %v2416 = vld [vmem:[%s2302 + $0x48] sm:$0xf]
        %v2417 = vld [vmem:[%s2302 + $0x4c] sm:$0xf]
        %v2418 = vld [vmem:[%s2302 + $0x50] sm:$0xf]
        %v2419 = vld [vmem:[%s2302 + $0x54] sm:$0xf]
        %v2420 = vld [vmem:[%s2302 + $0x58] sm:$0xf]
        %v2421 = vld [vmem:[%s2302 + $0x5c] sm:$0xf]
        %v2422 = vld [vmem:[%s2302 + $0x60] sm:$0xf]
        %v2423 = vld [vmem:[%s2302 + $0x64] sm:$0xf]
        %v2424 = vld [vmem:[%s2302 + $0x68] sm:$0xf]
        %v2425 = vld [vmem:[%s2302 + $0x6c] sm:$0xf]
        %v2426 = vld [vmem:[%s2302 + $0x70] sm:$0xf]
        %v2427 = vld [vmem:[%s2302 + $0x74] sm:$0xf]
        %v2428 = vld [vmem:[%s2302 + $0x78] sm:$0xf]
        %v2429 = vld [vmem:[%s2302 + $0x7c] sm:$0xf]
        %v2430 = vld [vmem:[%s2302 + $0x80] sm:$0xf]
        %v2431 = vld [vmem:[%s2302 + $0x84] sm:$0xf]
        %v2432 = vld [vmem:[%s2302 + $0x88] sm:$0xf]
        %v2433 = vld [vmem:[%s2302 + $0x8c] sm:$0xf]
        %v2434 = vld [vmem:[%s2302 + $0x90] sm:$0xf]
        %v2435 = vld [vmem:[%s2302 + $0x94] sm:$0xf]
        %v2436 = vld [vmem:[%s2302 + $0x98] sm:$0xf]
        %v2437 = vld [vmem:[%s2302 + $0x9c] sm:$0xf]
        %v2438 = vld [vmem:[%s2302 + $0xa0] sm:$0xf]
        %v2439 = vld [vmem:[%s2302 + $0xa4] sm:$0xf]
        %v2440 = vld [vmem:[%s2302 + $0xa8] sm:$0xf]
        %v2441 = vld [vmem:[%s2302 + $0xac] sm:$0xf]
        %v2442 = vld [vmem:[%s2302 + $0xb0] sm:$0xf]
        %v2443 = vld [vmem:[%s2302 + $0xb4] sm:$0xf]
        %v2444 = vld [vmem:[%s2302 + $0xb8] sm:$0xf]
        %v2445 = vld [vmem:[%s2302 + $0xbc] sm:$0xf]
        %v2446 = vld [vmem:[%s2302 + $0xc0] sm:$0xf]
        %v2447 = vld [vmem:[%s2302 + $0xc4] sm:$0xf]
        %v2448 = vld [vmem:[%s2302 + $0xc8] sm:$0xf]
        %v2449 = vld [vmem:[%s2302 + $0xcc] sm:$0xf]
        %v2450 = vld [vmem:[%s2302 + $0xd0] sm:$0xf]
        %v2451 = vld [vmem:[%s2302 + $0xd4] sm:$0xf]
        %v2452 = vld [vmem:[%s2302 + $0xd8] sm:$0xf]
        %v2453 = vld [vmem:[%s2302 + $0xdc] sm:$0xf]
        %v2454 = vld [vmem:[%s2302 + $0xe0] sm:$0xf]
        %v2455 = vld [vmem:[%s2302 + $0xe4] sm:$0xf]
        %v2456 = vld [vmem:[%s2302 + $0xe8] sm:$0xf]
        %v2457 = vld [vmem:[%s2302 + $0xec] sm:$0xf]
        %v2458 = vld [vmem:[%s2302 + $0xf0] sm:$0xf]
        %v2459 = vld [vmem:[%s2302 + $0xf4] sm:$0xf]
        %v2460 = vld [vmem:[%s2302 + $0xf8] sm:$0xf]
        %v2461 = vld [vmem:[%s2302 + $0xfc] sm:$0xf]
        %v2462 = vld [vmem:[%s2302 + $0x100] sm:$0xf]
        %v2463 = vld [vmem:[%s2302 + $0x104] sm:$0xf]
        %v2464 = vld [vmem:[%s2302 + $0x108] sm:$0xf]
        %v2465 = vld [vmem:[%s2302 + $0x10c] sm:$0xf]
        %v2466 = vld [vmem:[%s2302 + $0x110] sm:$0xf]
        %v2467 = vld [vmem:[%s2302 + $0x114] sm:$0xf]
        %v2468 = vld [vmem:[%s2302 + $0x118] sm:$0xf]
        %v2469 = vld [vmem:[%s2302 + $0x11c] sm:$0xf]
        %v2470 = vld [vmem:[%s2302 + $0x120] sm:$0xf]
        %v2471 = vld [vmem:[%s2302 + $0x124] sm:$0xf]
        %v2472 = vld [vmem:[%s2302 + $0x128] sm:$0xf]
        %v2473 = vld [vmem:[%s2302 + $0x12c] sm:$0xf]
        %v2474 = vld [vmem:[%s2302 + $0x130] sm:$0xf]
        %v2475 = vld [vmem:[%s2302 + $0x134] sm:$0xf]
        %v2476 = vld [vmem:[%s2302 + $0x138] sm:$0xf]
        %v2477 = vld [vmem:[%s2302 + $0x13c] sm:$0xf]
        %v2478 = vld [vmem:[%s2302 + $0x140] sm:$0xf]
        %v2479 = vld [vmem:[%s2302 + $0x144] sm:$0xf]
        %v2480 = vld [vmem:[%s2302 + $0x148] sm:$0xf]
        %v2481 = vld [vmem:[%s2302 + $0x14c] sm:$0xf]
        %v2482 = vld [vmem:[%s2302 + $0x150] sm:$0xf]
        %v2483 = vld [vmem:[%s2302 + $0x154] sm:$0xf]
        %v2484 = vld [vmem:[%s2302 + $0x158] sm:$0xf]
        %v2485 = vld [vmem:[%s2302 + $0x15c] sm:$0xf]
        %v2486 = vld [vmem:[%s2302 + $0x160] sm:$0xf]
        %v2487 = vld [vmem:[%s2302 + $0x164] sm:$0xf]
        %v2488 = vld [vmem:[%s2302 + $0x168] sm:$0xf]
        %v2489 = vld [vmem:[%s2302 + $0x16c] sm:$0xf]
        %v2490 = vld [vmem:[%s2302 + $0x170] sm:$0xf]
        %v2491 = vld [vmem:[%s2302 + $0x174] sm:$0xf]
        %v2492 = vld [vmem:[%s2302 + $0x178] sm:$0xf]
        %v2493 = vld [vmem:[%s2302 + $0x17c] sm:$0xf]
        %v2494 = vld [vmem:[%s2302 + $0x180] sm:$0xf]
        %v2495 = vld [vmem:[%s2302 + $0x184] sm:$0xf]
        %v2496 = vld [vmem:[%s2302 + $0x188] sm:$0xf]
        %v2497 = vld [vmem:[%s2302 + $0x18c] sm:$0xf]
        %v2498 = vld [vmem:[%s2302 + $0x190] sm:$0xf]
        %v2499 = vld [vmem:[%s2302 + $0x194] sm:$0xf]
        %v2500 = vld [vmem:[%s2302 + $0x198] sm:$0xf]
        %v2501 = vld [vmem:[%s2302 + $0x19c] sm:$0xf]
        %v2502 = vld [vmem:[%s2302 + $0x1a0] sm:$0xf]
        %v2503 = vld [vmem:[%s2302 + $0x1a4] sm:$0xf]
        %v2504 = vld [vmem:[%s2302 + $0x1a8] sm:$0xf]
        %v2505 = vld [vmem:[%s2302 + $0x1ac] sm:$0xf]
        %v2506 = vld [vmem:[%s2302 + $0x1b0] sm:$0xf]
        %v2507 = vld [vmem:[%s2302 + $0x1b4] sm:$0xf]
        %v2508 = vld [vmem:[%s2302 + $0x1b8] sm:$0xf]
        %v2509 = vld [vmem:[%s2302 + $0x1bc] sm:$0xf]
        %v2510 = vld [vmem:[%s2302 + $0x1c0] sm:$0xf]
        %v2511 = vld [vmem:[%s2302 + $0x1c4] sm:$0xf]
        %v2512 = vld [vmem:[%s2302 + $0x1c8] sm:$0xf]
        %v2513 = vld [vmem:[%s2302 + $0x1cc] sm:$0xf]
        %v2514 = vld [vmem:[%s2302 + $0x1d0] sm:$0xf]
        %v2515 = vld [vmem:[%s2302 + $0x1d4] sm:$0xf]
        %v2516 = vld [vmem:[%s2302 + $0x1d8] sm:$0xf]
        %v2517 = vld [vmem:[%s2302 + $0x1dc] sm:$0xf]
        %v2518 = vld [vmem:[%s2302 + $0x1e0] sm:$0xf]
        %v2519 = vld [vmem:[%s2302 + $0x1e4] sm:$0xf]
        %v2520 = vld [vmem:[%s2302 + $0x1e8] sm:$0xf]
        %v2521 = vld [vmem:[%s2302 + $0x1ec] sm:$0xf]
        %v2522 = vld [vmem:[%s2302 + $0x1f0] sm:$0xf]
        %v2523 = vld [vmem:[%s2302 + $0x1f4] sm:$0xf]
        %v2524 = vld [vmem:[%s2302 + $0x1f8] sm:$0xf]
        %v2525 = vld [vmem:[%s2302 + $0x1fc] sm:$0xf]
        %v2526 = vld [vmem:[%s2302 + $0x200] sm:$0xf]
        %v2527 = vld [vmem:[%s2302 + $0x204] sm:$0xf]
        %v2528 = vld [vmem:[%s2302 + $0x208] sm:$0xf]
        %v2529 = vld [vmem:[%s2302 + $0x20c] sm:$0xf]
        %v2530 = vld [vmem:[%s2302 + $0x210] sm:$0xf]
        %v2531 = vld [vmem:[%s2302 + $0x214] sm:$0xf]
        %v2532 = vld [vmem:[%s2302 + $0x218] sm:$0xf]
        %v2533 = vld [vmem:[%s2302 + $0x21c] sm:$0xf]
        %v2534 = vld [vmem:[%s2302 + $0x220] sm:$0xf]
        %v2535 = vld [vmem:[%s2302 + $0x224] sm:$0xf]
        %v2536 = vld [vmem:[%s2302 + $0x228] sm:$0xf]
        %v2537 = vld [vmem:[%s2302 + $0x22c] sm:$0xf]
        %v2538 = vld [vmem:[%s2302 + $0x230] sm:$0xf]
        %v2539 = vld [vmem:[%s2302 + $0x234] sm:$0xf]
        %v2540 = vld [vmem:[%s2302 + $0x238] sm:$0xf]
        %v2541 = vld [vmem:[%s2302 + $0x23c] sm:$0xf]
        %v2542 = vld [vmem:[%s2302 + $0x240] sm:$0xf]
        %v2543 = vld [vmem:[%s2302 + $0x244] sm:$0xf]
        %v2544 = vld [vmem:[%s2302 + $0x248] sm:$0xf]
        %v2545 = vld [vmem:[%s2302 + $0x24c] sm:$0xf]
        %v2546 = vld [vmem:[%s2302 + $0x250] sm:$0xf]
        %v2547 = vld [vmem:[%s2302 + $0x254] sm:$0xf]
        %v2548 = vld [vmem:[%s2302 + $0x258] sm:$0xf]
        %v2549 = vld [vmem:[%s2302 + $0x25c] sm:$0xf]
        %v2550 = vld [vmem:[%s2302 + $0x260] sm:$0xf]
        %v2551 = vld [vmem:[%s2302 + $0x264] sm:$0xf]
        %v2552 = vld [vmem:[%s2302 + $0x268] sm:$0xf]
        %v2553 = vld [vmem:[%s2302 + $0x26c] sm:$0xf]
        %v2554 = vld [vmem:[%s2302 + $0x270] sm:$0xf]
        %v2555 = vld [vmem:[%s2302 + $0x274] sm:$0xf]
        %v2556 = vld [vmem:[%s2302 + $0x278] sm:$0xf]
        %v2557 = vld [vmem:[%s2302 + $0x27c] sm:$0xf]
        %v2558 = vld [vmem:[%s2302 + $0x280] sm:$0xf]
        %v2559 = vld [vmem:[%s2302 + $0x284] sm:$0xf]
        %v2560 = vld [vmem:[%s2302 + $0x288] sm:$0xf]
        %v2561 = vld [vmem:[%s2302 + $0x28c] sm:$0xf]
        %v2562 = vld [vmem:[%s2302 + $0x290] sm:$0xf]
        %v2563 = vld [vmem:[%s2302 + $0x294] sm:$0xf]
        %v2564 = vld [vmem:[%s2302 + $0x298] sm:$0xf]
        %v2565 = vld [vmem:[%s2302 + $0x29c] sm:$0xf]
        %v2566 = vld [vmem:[%s2302 + $0x2a0] sm:$0xf]
        %v2567 = vld [vmem:[%s2302 + $0x2a4] sm:$0xf]
        %v2568 = vld [vmem:[%s2302 + $0x2a8] sm:$0xf]
        %v2569 = vld [vmem:[%s2302 + $0x2ac] sm:$0xf]
        %v2570 = vld [vmem:[%s2302 + $0x2b0] sm:$0xf]
        %v2571 = vld [vmem:[%s2302 + $0x2b4] sm:$0xf]
        %v2572 = vld [vmem:[%s2302 + $0x2b8] sm:$0xf]
        %v2573 = vld [vmem:[%s2302 + $0x2bc] sm:$0xf]
        %v2574 = vld [vmem:[%s2302 + $0x2c0] sm:$0xf]
        %v2575 = vld [vmem:[%s2302 + $0x2c4] sm:$0xf]
        %v2576 = vld [vmem:[%s2302 + $0x2c8] sm:$0xf]
        %v2577 = vld [vmem:[%s2302 + $0x2cc] sm:$0xf]
        %v2578 = vld [vmem:[%s2302 + $0x2d0] sm:$0xf]
        %v2579 = vld [vmem:[%s2302 + $0x2d4] sm:$0xf]
        %v2580 = vld [vmem:[%s2302 + $0x2d8] sm:$0xf]
        %v2581 = vld [vmem:[%s2302 + $0x2dc] sm:$0xf]
        %v2582 = vld [vmem:[%s2302 + $0x2e0] sm:$0xf]
        %v2583 = vld [vmem:[%s2302 + $0x2e4] sm:$0xf]
        %v2584 = vld [vmem:[%s2302 + $0x2e8] sm:$0xf]
        %v2585 = vld [vmem:[%s2302 + $0x2ec] sm:$0xf]
        %v2586 = vld [vmem:[%s2302 + $0x2f0] sm:$0xf]
        %v2587 = vld [vmem:[%s2302 + $0x2f4] sm:$0xf]
        %v2588 = vld [vmem:[%s2302 + $0x2f8] sm:$0xf]
        %v2589 = vld [vmem:[%s2302 + $0x2fc] sm:$0xf]
        %v2590 = vld [vmem:[%s2302 + $0x300] sm:$0xf]
        %v2591 = vld [vmem:[%s2302 + $0x304] sm:$0xf]
        %v2592 = vld [vmem:[%s2302 + $0x308] sm:$0xf]
        %v2593 = vld [vmem:[%s2302 + $0x30c] sm:$0xf]
        %v2594 = vld [vmem:[%s2302 + $0x310] sm:$0xf]
        %v2595 = vld [vmem:[%s2302 + $0x314] sm:$0xf]
        %v2596 = vld [vmem:[%s2302 + $0x318] sm:$0xf]
        %v2597 = vld [vmem:[%s2302 + $0x31c] sm:$0xf]
        %v2598 = vld [vmem:[%s2302 + $0x320] sm:$0xf]
        %v2599 = vld [vmem:[%s2302 + $0x324] sm:$0xf]
        %v2600 = vld [vmem:[%s2302 + $0x328] sm:$0xf]
        %v2601 = vld [vmem:[%s2302 + $0x32c] sm:$0xf]
        %v2602 = vld [vmem:[%s2302 + $0x330] sm:$0xf]
        %v2603 = vld [vmem:[%s2302 + $0x334] sm:$0xf]
        %v2604 = vld [vmem:[%s2302 + $0x338] sm:$0xf]
        %v2605 = vld [vmem:[%s2302 + $0x33c] sm:$0xf]
        %v2606 = vld [vmem:[%s2302 + $0x340] sm:$0xf]
        %v2607 = vld [vmem:[%s2302 + $0x344] sm:$0xf]
        %v2608 = vld [vmem:[%s2302 + $0x348] sm:$0xf]
        %v2609 = vld [vmem:[%s2302 + $0x34c] sm:$0xf]
        %v2610 = vld [vmem:[%s2302 + $0x350] sm:$0xf]
        %v2611 = vld [vmem:[%s2302 + $0x354] sm:$0xf]
        %v2612 = vld [vmem:[%s2302 + $0x358] sm:$0xf]
        %v2613 = vld [vmem:[%s2302 + $0x35c] sm:$0xf]
        %v2614 = vld [vmem:[%s2302 + $0x360] sm:$0xf]
        %v2615 = vld [vmem:[%s2302 + $0x364] sm:$0xf]
        %v2616 = vld [vmem:[%s2302 + $0x368] sm:$0xf]
        %v2617 = vld [vmem:[%s2302 + $0x36c] sm:$0xf]
        %v2618 = vld [vmem:[%s2302 + $0x370] sm:$0xf]
        %v2619 = vld [vmem:[%s2302 + $0x374] sm:$0xf]
        %v2620 = vld [vmem:[%s2302 + $0x378] sm:$0xf]
        %v2621 = vld [vmem:[%s2302 + $0x37c] sm:$0xf]
        %v2622 = vld [vmem:[%s2302 + $0x380] sm:$0xf]
        %v2623 = vld [vmem:[%s2302 + $0x384] sm:$0xf]
        %v2624 = vld [vmem:[%s2302 + $0x388] sm:$0xf]
        %v2625 = vld [vmem:[%s2302 + $0x38c] sm:$0xf]
        %v2626 = vld [vmem:[%s2302 + $0x390] sm:$0xf]
        %v2627 = vld [vmem:[%s2302 + $0x394] sm:$0xf]
        %v2628 = vld [vmem:[%s2302 + $0x398] sm:$0xf]
        %v2629 = vld [vmem:[%s2302 + $0x39c] sm:$0xf]
        %v2630 = vld [vmem:[%s2302 + $0x3a0] sm:$0xf]
        %v2631 = vld [vmem:[%s2302 + $0x3a4] sm:$0xf]
        %v2632 = vld [vmem:[%s2302 + $0x3a8] sm:$0xf]
        %v2633 = vld [vmem:[%s2302 + $0x3ac] sm:$0xf]
        %v2634 = vld [vmem:[%s2302 + $0x3b0] sm:$0xf]
        %v2635 = vld [vmem:[%s2302 + $0x3b4] sm:$0xf]
        %v2636 = vld [vmem:[%s2302 + $0x3b8] sm:$0xf]
        %v2637 = vld [vmem:[%s2302 + $0x3bc] sm:$0xf]
        %v2638 = vld [vmem:[%s2302 + $0x3c0] sm:$0xf]
        %v2639 = vld [vmem:[%s2302 + $0x3c4] sm:$0xf]
        %v2640 = vld [vmem:[%s2302 + $0x3c8] sm:$0xf]
        %v2641 = vld [vmem:[%s2302 + $0x3cc] sm:$0xf]
        %v2642 = vld [vmem:[%s2302 + $0x3d0] sm:$0xf]
        %v2643 = vld [vmem:[%s2302 + $0x3d4] sm:$0xf]
        %v2644 = vld [vmem:[%s2302 + $0x3d8] sm:$0xf]
        %v2645 = vld [vmem:[%s2302 + $0x3dc] sm:$0xf]
        %v2646 = vld [vmem:[%s2302 + $0x3e0] sm:$0xf]
        %v2647 = vld [vmem:[%s2302 + $0x3e4] sm:$0xf]
        %v2648 = vld [vmem:[%s2302 + $0x3e8] sm:$0xf]
        %v2649 = vld [vmem:[%s2302 + $0x3ec] sm:$0xf]
        %v2650 = vld [vmem:[%s2302 + $0x3f0] sm:$0xf]
        %v2651 = vld [vmem:[%s2302 + $0x3f4] sm:$0xf]
        %v2652 = vld [vmem:[%s2302 + $0x3f8] sm:$0xf]
        %v2653 = vld [vmem:[%s2302 + $0x3fc] sm:$0xf]
        %v2910 = vunpack.c.l.b16 %v2398
        %v2911 = vunpack.c.l.b16 %v2399
        %v2912 = vunpack.c.l.b16 %v2400
        %v2913 = vunpack.c.l.b16 %v2401
        %v2914 = vunpack.c.l.b16 %v2402
        %v2915 = vunpack.c.l.b16 %v2403
        %v2916 = vunpack.c.l.b16 %v2404
        %v2917 = vunpack.c.l.b16 %v2405
        %v2918 = vunpack.c.l.b16 %v2406
        %v2919 = vunpack.c.l.b16 %v2407
        %v2920 = vunpack.c.l.b16 %v2408
        %v2921 = vunpack.c.l.b16 %v2409
        %v2922 = vunpack.c.l.b16 %v2410
        %v2923 = vunpack.c.l.b16 %v2411
        %v2924 = vunpack.c.l.b16 %v2412
        %v2925 = vunpack.c.l.b16 %v2413
        %v2926 = vunpack.c.l.b16 %v2414
        %v2927 = vunpack.c.l.b16 %v2415
        %v2928 = vunpack.c.l.b16 %v2416
        %v2929 = vunpack.c.l.b16 %v2417
        %v2930 = vunpack.c.l.b16 %v2418
        %v2931 = vunpack.c.l.b16 %v2419
        %v2932 = vunpack.c.l.b16 %v2420
        %v2933 = vunpack.c.l.b16 %v2421
        %v2934 = vunpack.c.l.b16 %v2422
        %v2935 = vunpack.c.l.b16 %v2423
        %v2936 = vunpack.c.l.b16 %v2424
        %v2937 = vunpack.c.l.b16 %v2425
        %v2938 = vunpack.c.l.b16 %v2426
        %v2939 = vunpack.c.l.b16 %v2427
        %v2940 = vunpack.c.l.b16 %v2428
        %v2941 = vunpack.c.l.b16 %v2429
        %v2942 = vunpack.c.l.b16 %v2430
        %v2943 = vunpack.c.l.b16 %v2431
        %v2944 = vunpack.c.l.b16 %v2432
        %v2945 = vunpack.c.l.b16 %v2433
        %v2946 = vunpack.c.l.b16 %v2434
        %v2947 = vunpack.c.l.b16 %v2435
        %v2948 = vunpack.c.l.b16 %v2436
        %v2949 = vunpack.c.l.b16 %v2437
        %v2950 = vunpack.c.l.b16 %v2438
        %v2951 = vunpack.c.l.b16 %v2439
        %v2952 = vunpack.c.l.b16 %v2440
        %v2953 = vunpack.c.l.b16 %v2441
        %v2954 = vunpack.c.l.b16 %v2442
        %v2955 = vunpack.c.l.b16 %v2443
        %v2956 = vunpack.c.l.b16 %v2444
        %v2957 = vunpack.c.l.b16 %v2445
        %v2958 = vunpack.c.l.b16 %v2446
        %v2959 = vunpack.c.l.b16 %v2447
        %v2960 = vunpack.c.l.b16 %v2448
        %v2961 = vunpack.c.l.b16 %v2449
        %v2962 = vunpack.c.l.b16 %v2450
        %v2963 = vunpack.c.l.b16 %v2451
        %v2964 = vunpack.c.l.b16 %v2452
        %v2965 = vunpack.c.l.b16 %v2453
        %v2966 = vunpack.c.l.b16 %v2454
        %v2967 = vunpack.c.l.b16 %v2455
        %v2968 = vunpack.c.l.b16 %v2456
        %v2969 = vunpack.c.l.b16 %v2457
        %v2970 = vunpack.c.l.b16 %v2458
        %v2971 = vunpack.c.l.b16 %v2459
        %v2972 = vunpack.c.l.b16 %v2460
        %v2973 = vunpack.c.l.b16 %v2461
        %v2974 = vunpack.c.l.b16 %v2462
        %v2975 = vunpack.c.l.b16 %v2463
        %v2976 = vunpack.c.l.b16 %v2464
        %v2977 = vunpack.c.l.b16 %v2465
        %v2978 = vunpack.c.l.b16 %v2466
        %v2979 = vunpack.c.l.b16 %v2467
        %v2980 = vunpack.c.l.b16 %v2468
        %v2981 = vunpack.c.l.b16 %v2469
        %v2982 = vunpack.c.l.b16 %v2470
        %v2983 = vunpack.c.l.b16 %v2471
        %v2984 = vunpack.c.l.b16 %v2472
        %v2985 = vunpack.c.l.b16 %v2473
        %v2986 = vunpack.c.l.b16 %v2474
        %v2987 = vunpack.c.l.b16 %v2475
        %v2988 = vunpack.c.l.b16 %v2476
        %v2989 = vunpack.c.l.b16 %v2477
        %v2990 = vunpack.c.l.b16 %v2478
        %v2991 = vunpack.c.l.b16 %v2479
        %v2992 = vunpack.c.l.b16 %v2480
        %v2993 = vunpack.c.l.b16 %v2481
        %v2994 = vunpack.c.l.b16 %v2482
        %v2995 = vunpack.c.l.b16 %v2483
        %v2996 = vunpack.c.l.b16 %v2484
        %v2997 = vunpack.c.l.b16 %v2485
        %v2998 = vunpack.c.l.b16 %v2486
        %v2999 = vunpack.c.l.b16 %v2487
        %v3000 = vunpack.c.l.b16 %v2488
        %v3001 = vunpack.c.l.b16 %v2489
        %v3002 = vunpack.c.l.b16 %v2490
        %v3003 = vunpack.c.l.b16 %v2491
        %v3004 = vunpack.c.l.b16 %v2492
        %v3005 = vunpack.c.l.b16 %v2493
        %v3006 = vunpack.c.l.b16 %v2494
        %v3007 = vunpack.c.l.b16 %v2495
        %v3008 = vunpack.c.l.b16 %v2496
        %v3009 = vunpack.c.l.b16 %v2497
        %v3010 = vunpack.c.l.b16 %v2498
        %v3011 = vunpack.c.l.b16 %v2499
        %v3012 = vunpack.c.l.b16 %v2500
        %v3013 = vunpack.c.l.b16 %v2501
        %v3014 = vunpack.c.l.b16 %v2502
        %v3015 = vunpack.c.l.b16 %v2503
        %v3016 = vunpack.c.l.b16 %v2504
        %v3017 = vunpack.c.l.b16 %v2505
        %v3018 = vunpack.c.l.b16 %v2506
        %v3019 = vunpack.c.l.b16 %v2507
        %v3020 = vunpack.c.l.b16 %v2508
        %v3021 = vunpack.c.l.b16 %v2509
        %v3022 = vunpack.c.l.b16 %v2510
        %v3023 = vunpack.c.l.b16 %v2511
        %v3024 = vunpack.c.l.b16 %v2512
        %v3025 = vunpack.c.l.b16 %v2513
        %v3026 = vunpack.c.l.b16 %v2514
        %v3027 = vunpack.c.l.b16 %v2515
        %v3028 = vunpack.c.l.b16 %v2516
        %v3029 = vunpack.c.l.b16 %v2517
        %v3030 = vunpack.c.l.b16 %v2518
        %v3031 = vunpack.c.l.b16 %v2519
        %v3032 = vunpack.c.l.b16 %v2520
        %v3033 = vunpack.c.l.b16 %v2521
        %v3034 = vunpack.c.l.b16 %v2522
        %v3035 = vunpack.c.l.b16 %v2523
        %v3036 = vunpack.c.l.b16 %v2524
        %v3037 = vunpack.c.l.b16 %v2525
        %v3038 = vunpack.c.l.b16 %v2526
        %v3039 = vunpack.c.l.b16 %v2527
        %v3040 = vunpack.c.l.b16 %v2528
        %v3041 = vunpack.c.l.b16 %v2529
        %v3042 = vunpack.c.l.b16 %v2530
        %v3043 = vunpack.c.l.b16 %v2531
        %v3044 = vunpack.c.l.b16 %v2532
        %v3045 = vunpack.c.l.b16 %v2533
        %v3046 = vunpack.c.l.b16 %v2534
        %v3047 = vunpack.c.l.b16 %v2535
        %v3048 = vunpack.c.l.b16 %v2536
        %v3049 = vunpack.c.l.b16 %v2537
        %v3050 = vunpack.c.l.b16 %v2538
        %v3051 = vunpack.c.l.b16 %v2539
        %v3052 = vunpack.c.l.b16 %v2540
        %v3053 = vunpack.c.l.b16 %v2541
        %v3054 = vunpack.c.l.b16 %v2542
        %v3055 = vunpack.c.l.b16 %v2543
        %v3056 = vunpack.c.l.b16 %v2544
        %v3057 = vunpack.c.l.b16 %v2545
        %v3058 = vunpack.c.l.b16 %v2546
        %v3059 = vunpack.c.l.b16 %v2547
        %v3060 = vunpack.c.l.b16 %v2548
        %v3061 = vunpack.c.l.b16 %v2549
        %v3062 = vunpack.c.l.b16 %v2550
        %v3063 = vunpack.c.l.b16 %v2551
        %v3064 = vunpack.c.l.b16 %v2552
        %v3065 = vunpack.c.l.b16 %v2553
        %v3066 = vunpack.c.l.b16 %v2554
        %v3067 = vunpack.c.l.b16 %v2555
        %v3068 = vunpack.c.l.b16 %v2556
        %v3069 = vunpack.c.l.b16 %v2557
        %v3070 = vunpack.c.l.b16 %v2558
        %v3071 = vunpack.c.l.b16 %v2559
        %v3072 = vunpack.c.l.b16 %v2560
        %v3073 = vunpack.c.l.b16 %v2561
        %v3074 = vunpack.c.l.b16 %v2562
        %v3075 = vunpack.c.l.b16 %v2563
        %v3076 = vunpack.c.l.b16 %v2564
        %v3077 = vunpack.c.l.b16 %v2565
        %v3078 = vunpack.c.l.b16 %v2566
        %v3079 = vunpack.c.l.b16 %v2567
        %v3080 = vunpack.c.l.b16 %v2568
        %v3081 = vunpack.c.l.b16 %v2569
        %v3082 = vunpack.c.l.b16 %v2570
        %v3083 = vunpack.c.l.b16 %v2571
        %v3084 = vunpack.c.l.b16 %v2572
        %v3085 = vunpack.c.l.b16 %v2573
        %v3086 = vunpack.c.l.b16 %v2574
        %v3087 = vunpack.c.l.b16 %v2575
        %v3088 = vunpack.c.l.b16 %v2576
        %v3089 = vunpack.c.l.b16 %v2577
        %v3090 = vunpack.c.l.b16 %v2578
        %v3091 = vunpack.c.l.b16 %v2579
        %v3092 = vunpack.c.l.b16 %v2580
        %v3093 = vunpack.c.l.b16 %v2581
        %v3094 = vunpack.c.l.b16 %v2582
        %v3095 = vunpack.c.l.b16 %v2583
        %v3096 = vunpack.c.l.b16 %v2584
        %v3097 = vunpack.c.l.b16 %v2585
        %v3098 = vunpack.c.l.b16 %v2586
        %v3099 = vunpack.c.l.b16 %v2587
        %v3100 = vunpack.c.l.b16 %v2588
        %v3101 = vunpack.c.l.b16 %v2589
        %v3102 = vunpack.c.l.b16 %v2590
        %v3103 = vunpack.c.l.b16 %v2591
        %v3104 = vunpack.c.l.b16 %v2592
        %v3105 = vunpack.c.l.b16 %v2593
        %v3106 = vunpack.c.l.b16 %v2594
        %v3107 = vunpack.c.l.b16 %v2595
        %v3108 = vunpack.c.l.b16 %v2596
        %v3109 = vunpack.c.l.b16 %v2597
        %v3110 = vunpack.c.l.b16 %v2598
        %v3111 = vunpack.c.l.b16 %v2599
        %v3112 = vunpack.c.l.b16 %v2600
        %v3113 = vunpack.c.l.b16 %v2601
        %v3114 = vunpack.c.l.b16 %v2602
        %v3115 = vunpack.c.l.b16 %v2603
        %v3116 = vunpack.c.l.b16 %v2604
        %v3117 = vunpack.c.l.b16 %v2605
        %v3118 = vunpack.c.l.b16 %v2606
        %v3119 = vunpack.c.l.b16 %v2607
        %v3120 = vunpack.c.l.b16 %v2608
        %v3121 = vunpack.c.l.b16 %v2609
        %v3122 = vunpack.c.l.b16 %v2610
        %v3123 = vunpack.c.l.b16 %v2611
        %v3124 = vunpack.c.l.b16 %v2612
        %v3125 = vunpack.c.l.b16 %v2613
        %v3126 = vunpack.c.l.b16 %v2614
        %v3127 = vunpack.c.l.b16 %v2615
        %v3128 = vunpack.c.l.b16 %v2616
        %v3129 = vunpack.c.l.b16 %v2617
        %v3130 = vunpack.c.l.b16 %v2618
        %v3131 = vunpack.c.l.b16 %v2619
        %v3132 = vunpack.c.l.b16 %v2620
        %v3133 = vunpack.c.l.b16 %v2621
        %v3134 = vunpack.c.l.b16 %v2622
        %v3135 = vunpack.c.l.b16 %v2623
        %v3136 = vunpack.c.l.b16 %v2624
        %v3137 = vunpack.c.l.b16 %v2625
        %v3138 = vunpack.c.l.b16 %v2626
        %v3139 = vunpack.c.l.b16 %v2627
        %v3140 = vunpack.c.l.b16 %v2628
        %v3141 = vunpack.c.l.b16 %v2629
        %v3142 = vunpack.c.l.b16 %v2630
        %v3143 = vunpack.c.l.b16 %v2631
        %v3144 = vunpack.c.l.b16 %v2632
        %v3145 = vunpack.c.l.b16 %v2633
        %v3146 = vunpack.c.l.b16 %v2634
        %v3147 = vunpack.c.l.b16 %v2635
        %v3148 = vunpack.c.l.b16 %v2636
        %v3149 = vunpack.c.l.b16 %v2637
        %v3150 = vunpack.c.l.b16 %v2638
        %v3151 = vunpack.c.l.b16 %v2639
        %v3152 = vunpack.c.l.b16 %v2640
        %v3153 = vunpack.c.l.b16 %v2641
        %v3154 = vunpack.c.l.b16 %v2642
        %v3155 = vunpack.c.l.b16 %v2643
        %v3156 = vunpack.c.l.b16 %v2644
        %v3157 = vunpack.c.l.b16 %v2645
        %v3158 = vunpack.c.l.b16 %v2646
        %v3159 = vunpack.c.l.b16 %v2647
        %v3160 = vunpack.c.l.b16 %v2648
        %v3161 = vunpack.c.l.b16 %v2649
        %v3162 = vunpack.c.l.b16 %v2650
        %v3163 = vunpack.c.l.b16 %v2651
        %v3164 = vunpack.c.l.b16 %v2652
        %v3165 = vunpack.c.l.b16 %v2653
        %v3166 = vpack.c.b16 %v2911, %v2910
        %v3167 = vpack.c.b16 %v2913, %v2912
        %v3168 = vpack.c.b16 %v2915, %v2914
        %v3169 = vpack.c.b16 %v2917, %v2916
        %v3170 = vpack.c.b16 %v2919, %v2918
        %v3171 = vpack.c.b16 %v2921, %v2920
        %v3172 = vpack.c.b16 %v2923, %v2922
        %v3173 = vpack.c.b16 %v2925, %v2924
        %v3174 = vpack.c.b16 %v2927, %v2926
        %v3175 = vpack.c.b16 %v2929, %v2928
        %v3176 = vpack.c.b16 %v2931, %v2930
        %v3177 = vpack.c.b16 %v2933, %v2932
        %v3178 = vpack.c.b16 %v2935, %v2934
        %v3179 = vpack.c.b16 %v2937, %v2936
        %v3180 = vpack.c.b16 %v2939, %v2938
        %v3181 = vpack.c.b16 %v2941, %v2940
        %v3182 = vpack.c.b16 %v2943, %v2942
        %v3183 = vpack.c.b16 %v2945, %v2944
        %v3184 = vpack.c.b16 %v2947, %v2946
        %v3185 = vpack.c.b16 %v2949, %v2948
        %v3186 = vpack.c.b16 %v2951, %v2950
        %v3187 = vpack.c.b16 %v2953, %v2952
        %v3188 = vpack.c.b16 %v2955, %v2954
        %v3189 = vpack.c.b16 %v2957, %v2956
        %v3190 = vpack.c.b16 %v2959, %v2958
        %v3191 = vpack.c.b16 %v2961, %v2960
        %v3192 = vpack.c.b16 %v2963, %v2962
        %v3193 = vpack.c.b16 %v2965, %v2964
        %v3194 = vpack.c.b16 %v2967, %v2966
        %v3195 = vpack.c.b16 %v2969, %v2968
        %v3196 = vpack.c.b16 %v2971, %v2970
        %v3197 = vpack.c.b16 %v2973, %v2972
        %v3198 = vpack.c.b16 %v2975, %v2974
        %v3199 = vpack.c.b16 %v2977, %v2976
        %v3200 = vpack.c.b16 %v2979, %v2978
        %v3201 = vpack.c.b16 %v2981, %v2980
        %v3202 = vpack.c.b16 %v2983, %v2982
        %v3203 = vpack.c.b16 %v2985, %v2984
        %v3204 = vpack.c.b16 %v2987, %v2986
        %v3205 = vpack.c.b16 %v2989, %v2988
        %v3206 = vpack.c.b16 %v2991, %v2990
        %v3207 = vpack.c.b16 %v2993, %v2992
        %v3208 = vpack.c.b16 %v2995, %v2994
        %v3209 = vpack.c.b16 %v2997, %v2996
        %v3210 = vpack.c.b16 %v2999, %v2998
        %v3211 = vpack.c.b16 %v3001, %v3000
        %v3212 = vpack.c.b16 %v3003, %v3002
        %v3213 = vpack.c.b16 %v3005, %v3004
        %v3214 = vpack.c.b16 %v3007, %v3006
        %v3215 = vpack.c.b16 %v3009, %v3008
        %v3216 = vpack.c.b16 %v3011, %v3010
        %v3217 = vpack.c.b16 %v3013, %v3012
        %v3218 = vpack.c.b16 %v3015, %v3014
        %v3219 = vpack.c.b16 %v3017, %v3016
        %v3220 = vpack.c.b16 %v3019, %v3018
        %v3221 = vpack.c.b16 %v3021, %v3020
        %v3222 = vpack.c.b16 %v3023, %v3022
        %v3223 = vpack.c.b16 %v3025, %v3024
        %v3224 = vpack.c.b16 %v3027, %v3026
        %v3225 = vpack.c.b16 %v3029, %v3028
        %v3226 = vpack.c.b16 %v3031, %v3030
        %v3227 = vpack.c.b16 %v3033, %v3032
        %v3228 = vpack.c.b16 %v3035, %v3034
        %v3229 = vpack.c.b16 %v3037, %v3036
        %v3230 = vpack.c.b16 %v3039, %v3038
        %v3231 = vpack.c.b16 %v3041, %v3040
        %v3232 = vpack.c.b16 %v3043, %v3042
        %v3233 = vpack.c.b16 %v3045, %v3044
        %v3234 = vpack.c.b16 %v3047, %v3046
        %v3235 = vpack.c.b16 %v3049, %v3048
        %v3236 = vpack.c.b16 %v3051, %v3050
        %v3237 = vpack.c.b16 %v3053, %v3052
        %v3238 = vpack.c.b16 %v3055, %v3054
        %v3239 = vpack.c.b16 %v3057, %v3056
        %v3240 = vpack.c.b16 %v3059, %v3058
        %v3241 = vpack.c.b16 %v3061, %v3060
        %v3242 = vpack.c.b16 %v3063, %v3062
        %v3243 = vpack.c.b16 %v3065, %v3064
        %v3244 = vpack.c.b16 %v3067, %v3066
        %v3245 = vpack.c.b16 %v3069, %v3068
        %v3246 = vpack.c.b16 %v3071, %v3070
        %v3247 = vpack.c.b16 %v3073, %v3072
        %v3248 = vpack.c.b16 %v3075, %v3074
        %v3249 = vpack.c.b16 %v3077, %v3076
        %v3250 = vpack.c.b16 %v3079, %v3078
        %v3251 = vpack.c.b16 %v3081, %v3080
        %v3252 = vpack.c.b16 %v3083, %v3082
        %v3253 = vpack.c.b16 %v3085, %v3084
        %v3254 = vpack.c.b16 %v3087, %v3086
        %v3255 = vpack.c.b16 %v3089, %v3088
        %v3256 = vpack.c.b16 %v3091, %v3090
        %v3257 = vpack.c.b16 %v3093, %v3092
        %v3258 = vpack.c.b16 %v3095, %v3094
        %v3259 = vpack.c.b16 %v3097, %v3096
        %v3260 = vpack.c.b16 %v3099, %v3098
        %v3261 = vpack.c.b16 %v3101, %v3100
        %v3262 = vpack.c.b16 %v3103, %v3102
        %v3263 = vpack.c.b16 %v3105, %v3104
        %v3264 = vpack.c.b16 %v3107, %v3106
        %v3265 = vpack.c.b16 %v3109, %v3108
        %v3266 = vpack.c.b16 %v3111, %v3110
        %v3267 = vpack.c.b16 %v3113, %v3112
        %v3268 = vpack.c.b16 %v3115, %v3114
        %v3269 = vpack.c.b16 %v3117, %v3116
        %v3270 = vpack.c.b16 %v3119, %v3118
        %v3271 = vpack.c.b16 %v3121, %v3120
        %v3272 = vpack.c.b16 %v3123, %v3122
        %v3273 = vpack.c.b16 %v3125, %v3124
        %v3274 = vpack.c.b16 %v3127, %v3126
        %v3275 = vpack.c.b16 %v3129, %v3128
        %v3276 = vpack.c.b16 %v3131, %v3130
        %v3277 = vpack.c.b16 %v3133, %v3132
        %v3278 = vpack.c.b16 %v3135, %v3134
        %v3279 = vpack.c.b16 %v3137, %v3136
        %v3280 = vpack.c.b16 %v3139, %v3138
        %v3281 = vpack.c.b16 %v3141, %v3140
        %v3282 = vpack.c.b16 %v3143, %v3142
        %v3283 = vpack.c.b16 %v3145, %v3144
        %v3284 = vpack.c.b16 %v3147, %v3146
        %v3285 = vpack.c.b16 %v3149, %v3148
        %v3286 = vpack.c.b16 %v3151, %v3150
        %v3287 = vpack.c.b16 %v3153, %v3152
        %v3288 = vpack.c.b16 %v3155, %v3154
        %v3289 = vpack.c.b16 %v3157, %v3156
        %v3290 = vpack.c.b16 %v3159, %v3158
        %v3291 = vpack.c.b16 %v3161, %v3160
        %v3292 = vpack.c.b16 %v3163, %v3162
        %v3293 = vpack.c.b16 %v3165, %v3164
        %3422 = vmatpush.bf16.msra.mxu0 %v3173
        %3423 = vmatpush.bf16.msra.mxu0 %v3172
        %3424 = vmatpush.bf16.msra.mxu0 %v3171
        %3425 = vmatpush.bf16.msra.mxu0 %v3170
        %3426 = vmatpush.bf16.msra.mxu0 %v3169
        %3427 = vmatpush.bf16.msra.mxu0 %v3168
        %3428 = vmatpush.bf16.msra.mxu0 %v3167
        %3429 = vmatpush.bf16.msra.mxu0 %v3166
        %3430 = vmatmul.bf16.gmra.mxu0 %v2382
        %v3431 = vpop.f32.mrf.mxu0
        %v3432 = vadd.f32 0.0, %v3431
        %v3433 = vpop.f32.mrf.mxu0
        %3434 = vdwg.mxu0
        %3435 = vmatpush.bf16.msra.mxu0 %v3181
        %3436 = vmatpush.bf16.msra.mxu0 %v3180
        %3437 = vmatpush.bf16.msra.mxu0 %v3179
        %3438 = vmatpush.bf16.msra.mxu0 %v3178
        %3439 = vmatpush.bf16.msra.mxu0 %v3177
        %3440 = vmatpush.bf16.msra.mxu0 %v3176
        %3441 = vmatpush.bf16.msra.mxu0 %v3175
        %3442 = vmatpush.bf16.msra.mxu0 %v3174
        %3443 = vmatmul.bf16.gmra.mxu0 %v2383
        %v3444 = vpop.f32.mrf.mxu0
        %v3445 = vadd.f32 %v3432, %v3444
        %v3446 = vpop.f32.mrf.mxu0
        %3447 = vdwg.mxu0
        %3448 = vmatpush.bf16.msra.mxu0 %v3189
        %3449 = vmatpush.bf16.msra.mxu0 %v3188
        %3450 = vmatpush.bf16.msra.mxu0 %v3187
        %3451 = vmatpush.bf16.msra.mxu0 %v3186
        %3452 = vmatpush.bf16.msra.mxu0 %v3185
        %3453 = vmatpush.bf16.msra.mxu0 %v3184
        %3454 = vmatpush.bf16.msra.mxu0 %v3183
        %3455 = vmatpush.bf16.msra.mxu0 %v3182
        %3456 = vmatmul.bf16.gmra.mxu0 %v2384
        %v3457 = vpop.f32.mrf.mxu0
        %v3458 = vadd.f32 %v3445, %v3457
        %v3459 = vpop.f32.mrf.mxu0
        %3460 = vdwg.mxu0
        %3461 = vmatpush.bf16.msra.mxu0 %v3197
        %3462 = vmatpush.bf16.msra.mxu0 %v3196
        %3463 = vmatpush.bf16.msra.mxu0 %v3195
        %3464 = vmatpush.bf16.msra.mxu0 %v3194
        %3465 = vmatpush.bf16.msra.mxu0 %v3193
        %3466 = vmatpush.bf16.msra.mxu0 %v3192
        %3467 = vmatpush.bf16.msra.mxu0 %v3191
        %3468 = vmatpush.bf16.msra.mxu0 %v3190
        %3469 = vmatmul.bf16.gmra.mxu0 %v2385
        %v3470 = vpop.f32.mrf.mxu0
        %v3471 = vadd.f32 %v3458, %v3470
        %v3472 = vpop.f32.mrf.mxu0
        %3473 = vdwg.mxu0
        %3474 = vmatpush.bf16.msra.mxu0 %v3205
        %3475 = vmatpush.bf16.msra.mxu0 %v3204
        %3476 = vmatpush.bf16.msra.mxu0 %v3203
        %3477 = vmatpush.bf16.msra.mxu0 %v3202
        %3478 = vmatpush.bf16.msra.mxu0 %v3201
        %3479 = vmatpush.bf16.msra.mxu0 %v3200
        %3480 = vmatpush.bf16.msra.mxu0 %v3199
        %3481 = vmatpush.bf16.msra.mxu0 %v3198
        %3482 = vmatmul.bf16.gmra.mxu0 %v2386
        %v3483 = vpop.f32.mrf.mxu0
        %v3484 = vadd.f32 %v3471, %v3483
        %v3485 = vpop.f32.mrf.mxu0
        %3486 = vdwg.mxu0
        %3487 = vmatpush.bf16.msra.mxu0 %v3213
        %3488 = vmatpush.bf16.msra.mxu0 %v3212
        %3489 = vmatpush.bf16.msra.mxu0 %v3211
        %3490 = vmatpush.bf16.msra.mxu0 %v3210
        %3491 = vmatpush.bf16.msra.mxu0 %v3209
        %3492 = vmatpush.bf16.msra.mxu0 %v3208
        %3493 = vmatpush.bf16.msra.mxu0 %v3207
        %3494 = vmatpush.bf16.msra.mxu0 %v3206
        %3495 = vmatmul.bf16.gmra.mxu0 %v2387
        %v3496 = vpop.f32.mrf.mxu0
        %v3497 = vadd.f32 %v3484, %v3496
        %v3498 = vpop.f32.mrf.mxu0
        %3499 = vdwg.mxu0
        %3500 = vmatpush.bf16.msra.mxu0 %v3221
        %3501 = vmatpush.bf16.msra.mxu0 %v3220
        %3502 = vmatpush.bf16.msra.mxu0 %v3219
        %3503 = vmatpush.bf16.msra.mxu0 %v3218
        %3504 = vmatpush.bf16.msra.mxu0 %v3217
        %3505 = vmatpush.bf16.msra.mxu0 %v3216
        %3506 = vmatpush.bf16.msra.mxu0 %v3215
        %3507 = vmatpush.bf16.msra.mxu0 %v3214
        %3508 = vmatmul.bf16.gmra.mxu0 %v2388
        %v3509 = vpop.f32.mrf.mxu0
        %v3510 = vadd.f32 %v3497, %v3509
        %v3511 = vpop.f32.mrf.mxu0
        %3512 = vdwg.mxu0
        %3513 = vmatpush.bf16.msra.mxu0 %v3229
        %3514 = vmatpush.bf16.msra.mxu0 %v3228
        %3515 = vmatpush.bf16.msra.mxu0 %v3227
        %3516 = vmatpush.bf16.msra.mxu0 %v3226
        %3517 = vmatpush.bf16.msra.mxu0 %v3225
        %3518 = vmatpush.bf16.msra.mxu0 %v3224
        %3519 = vmatpush.bf16.msra.mxu0 %v3223
        %3520 = vmatpush.bf16.msra.mxu0 %v3222
        %3521 = vmatmul.bf16.gmra.mxu0 %v2389
        %v3522 = vpop.f32.mrf.mxu0
        %v3523 = vadd.f32 %v3510, %v3522
        %v3524 = vpop.f32.mrf.mxu0
        %3525 = vdwg.mxu0
        %3526 = vmatpush.bf16.msra.mxu0 %v3237
        %3527 = vmatpush.bf16.msra.mxu0 %v3236
        %3528 = vmatpush.bf16.msra.mxu0 %v3235
        %3529 = vmatpush.bf16.msra.mxu0 %v3234
        %3530 = vmatpush.bf16.msra.mxu0 %v3233
        %3531 = vmatpush.bf16.msra.mxu0 %v3232
        %3532 = vmatpush.bf16.msra.mxu0 %v3231
        %3533 = vmatpush.bf16.msra.mxu0 %v3230
        %3534 = vmatmul.bf16.gmra.mxu0 %v2390
        %v3535 = vpop.f32.mrf.mxu0
        %v3536 = vadd.f32 %v3523, %v3535
        %v3537 = vpop.f32.mrf.mxu0
        %3538 = vdwg.mxu0
        %3539 = vmatpush.bf16.msra.mxu0 %v3245
        %3540 = vmatpush.bf16.msra.mxu0 %v3244
        %3541 = vmatpush.bf16.msra.mxu0 %v3243
        %3542 = vmatpush.bf16.msra.mxu0 %v3242
        %3543 = vmatpush.bf16.msra.mxu0 %v3241
        %3544 = vmatpush.bf16.msra.mxu0 %v3240
        %3545 = vmatpush.bf16.msra.mxu0 %v3239
        %3546 = vmatpush.bf16.msra.mxu0 %v3238
        %3547 = vmatmul.bf16.gmra.mxu0 %v2391
        %v3548 = vpop.f32.mrf.mxu0
        %v3549 = vadd.f32 %v3536, %v3548
        %v3550 = vpop.f32.mrf.mxu0
        %3551 = vdwg.mxu0
        %3552 = vmatpush.bf16.msra.mxu0 %v3253
        %3553 = vmatpush.bf16.msra.mxu0 %v3252
        %3554 = vmatpush.bf16.msra.mxu0 %v3251
        %3555 = vmatpush.bf16.msra.mxu0 %v3250
        %3556 = vmatpush.bf16.msra.mxu0 %v3249
        %3557 = vmatpush.bf16.msra.mxu0 %v3248
        %3558 = vmatpush.bf16.msra.mxu0 %v3247
        %3559 = vmatpush.bf16.msra.mxu0 %v3246
        %3560 = vmatmul.bf16.gmra.mxu0 %v2392
        %v3561 = vpop.f32.mrf.mxu0
        %v3562 = vadd.f32 %v3549, %v3561
        %v3563 = vpop.f32.mrf.mxu0
        %3564 = vdwg.mxu0
        %3565 = vmatpush.bf16.msra.mxu0 %v3261
        %3566 = vmatpush.bf16.msra.mxu0 %v3260
        %3567 = vmatpush.bf16.msra.mxu0 %v3259
        %3568 = vmatpush.bf16.msra.mxu0 %v3258
        %3569 = vmatpush.bf16.msra.mxu0 %v3257
        %3570 = vmatpush.bf16.msra.mxu0 %v3256
        %3571 = vmatpush.bf16.msra.mxu0 %v3255
        %3572 = vmatpush.bf16.msra.mxu0 %v3254
        %3573 = vmatmul.bf16.gmra.mxu0 %v2393
        %v3574 = vpop.f32.mrf.mxu0
        %v3575 = vadd.f32 %v3562, %v3574
        %v3576 = vpop.f32.mrf.mxu0
        %3577 = vdwg.mxu0
        %3578 = vmatpush.bf16.msra.mxu0 %v3269
        %3579 = vmatpush.bf16.msra.mxu0 %v3268
        %3580 = vmatpush.bf16.msra.mxu0 %v3267
        %3581 = vmatpush.bf16.msra.mxu0 %v3266
        %3582 = vmatpush.bf16.msra.mxu0 %v3265
        %3583 = vmatpush.bf16.msra.mxu0 %v3264
        %3584 = vmatpush.bf16.msra.mxu0 %v3263
        %3585 = vmatpush.bf16.msra.mxu0 %v3262
        %3586 = vmatmul.bf16.gmra.mxu0 %v2394
        %v3587 = vpop.f32.mrf.mxu0
        %v3588 = vadd.f32 %v3575, %v3587
        %v3589 = vpop.f32.mrf.mxu0
        %3590 = vdwg.mxu0
        %3591 = vmatpush.bf16.msra.mxu0 %v3277
        %3592 = vmatpush.bf16.msra.mxu0 %v3276
        %3593 = vmatpush.bf16.msra.mxu0 %v3275
        %3594 = vmatpush.bf16.msra.mxu0 %v3274
        %3595 = vmatpush.bf16.msra.mxu0 %v3273
        %3596 = vmatpush.bf16.msra.mxu0 %v3272
        %3597 = vmatpush.bf16.msra.mxu0 %v3271
        %3598 = vmatpush.bf16.msra.mxu0 %v3270
        %3599 = vmatmul.bf16.gmra.mxu0 %v2395
        %v3600 = vpop.f32.mrf.mxu0
        %v3601 = vadd.f32 %v3588, %v3600
        %v3602 = vpop.f32.mrf.mxu0
        %3603 = vdwg.mxu0
        %3604 = vmatpush.bf16.msra.mxu0 %v3285
        %3605 = vmatpush.bf16.msra.mxu0 %v3284
        %3606 = vmatpush.bf16.msra.mxu0 %v3283
        %3607 = vmatpush.bf16.msra.mxu0 %v3282
        %3608 = vmatpush.bf16.msra.mxu0 %v3281
        %3609 = vmatpush.bf16.msra.mxu0 %v3280
        %3610 = vmatpush.bf16.msra.mxu0 %v3279
        %3611 = vmatpush.bf16.msra.mxu0 %v3278
        %3612 = vmatmul.bf16.gmra.mxu0 %v2396
        %v3613 = vpop.f32.mrf.mxu0
        %v3614 = vadd.f32 %v3601, %v3613
        %v3615 = vpop.f32.mrf.mxu0
        %3616 = vdwg.mxu0
        %3617 = vmatpush.bf16.msra.mxu0 %v3293
        %3618 = vmatpush.bf16.msra.mxu0 %v3292
        %3619 = vmatpush.bf16.msra.mxu0 %v3291
        %3620 = vmatpush.bf16.msra.mxu0 %v3290
        %3621 = vmatpush.bf16.msra.mxu0 %v3289
        %3622 = vmatpush.bf16.msra.mxu0 %v3288
        %3623 = vmatpush.bf16.msra.mxu0 %v3287
        %3624 = vmatpush.bf16.msra.mxu0 %v3286
        %3625 = vmatmul.bf16.gmra.mxu0 %v2397
        %v3626 = vpop.f32.mrf.mxu0
        %v3627 = vadd.f32 %v3614, %v3626
        %v3628 = vpop.f32.mrf.mxu0
        %3629 = vdwg.mxu0
        %vm3630 = vcmask 1041408
        %v3631 = vsel %vm3630, %v3627, 0.0
        %v3632 = vrot.slane %v3631, 4
        %v3633 = vadd.f32 %v3631, %v3632
        %v3634 = vrot.slane %v3633, 2
        %v3635 = vadd.f32 %v3633, %v3634
        %v3636 = vrot.slane %v3635, 1
        %v3637 = vadd.f32 %v3635, %v3636
        %v3638 = vrcp.pop 2.0
        %v3639 = vmul.f32 2.0, %v3638
        %v3640 = vsub.f32 1.0, %v3639
        %v3641 = vmul.f32 %v3638, %v3640
        %v3642 = vadd.f32 %v3638, %v3641
        %vm3643 = vweird.f32 %v3638
        %v3644 = vsel %vm3643, %v3638, %v3642
        %v3645 = vmul.f32 %v3637, %v3644
        %v3646 = vsub.f32 %v3627, %v3645
        %v3647 = vmul.f32 %v3646, %v3646
        %v3648 = vsel %vm3630, %v3647, 0.0
        %v3649 = vrot.slane %v3648, 4
        %v3650 = vadd.f32 %v3648, %v3649
        %v3651 = vrot.slane %v3650, 2
        %v3652 = vadd.f32 %v3650, %v3651
        %v3653 = vrot.slane %v3652, 1
        %v3654 = vadd.f32 %v3652, %v3653
        %v3655 = vmul.f32 %v3654, %v3644
        %v3656 = vadd.f32 %v3655, 1e-05
        %v3657 = vrsqrt.pop %v3656
        %v3658 = vmul.f32 %v3657, %v3656
        %v3659 = vmul.f32 %v3658, %v3657
        %v3660 = vmul.f32 0.5, %v3659
        %v3661 = vsub.f32 1.5, %v3660
        %v3662 = vmul.f32 %v3657, %v3661
        %vm3663 = vweird.f32 %v3656
        %vm3664 = vweird.f32 %v3657
        %vm3665 = vmor %vm3663, %vm3664
        %v3666 = vsel %vm3665, %v3657, %v3662
        %v3667 = vmul.f32 %v3646, %v3666
        %v3668 = vld [vmem:[%s2333] sm:$0x1]
        %v3670 = vperm.slane %v3668, 0
        %v3672 = vmul.f32 %v3667, %v3670
        %v3673 = vld [vmem:[%s2336] sm:$0x1]
        %v3675 = vperm.slane %v3673, 0
        %v3677 = vadd.f32 %v3672, %v3675
        %3678 = vst [vmem:[%s2330] sm:$0x3] %v3677
        %s3679 = sand.u32 %s125, 1
        %s3680 = scalar_lea.sflag [#allocation4], %s3679
        %s3681 = sand.u32 %s125, 1
        %s3682 = smul.addr %s3681, 2
        %s3683 = scalar_lea.vmem [#allocation3], %s3682
        // Predicated region
        $region89: #{encoder_cnn_forward.1} parent=83 // pred_check
          %p3684 = pneg %p135
        $region90: #{encoder_cnn_forward.1} parent=83 // pred_check_branch
          %3686 = sbr.rel (%p3684) target = $region92
        $region91: #{encoder_cnn_forward.1} parent=83 // pred_region
          %3688 = vsyncadd %s3680, 0
          %s3689 = smul.addr %s18, 2
          %s3690 = scalar_lea.hbm %s4, %s3689
          %s3692 = sshll.u32 %s3683, 4
          %s3693 = int_to_ptr.vmem [resolvable:$true] %s3692
          %s3694 = sshll.u32 %s3690, 4
          %s3695 = int_to_ptr.hbm [resolvable:$true] %s3694
          %3697 = dma.vmem_to_hbm [thread:$0]  %s3693, 32, %s3695, %s3680
        $region92: #{encoder_cnn_forward.1} parent=83 // pred_fallthru
          _
      $region84: #{encoder_cnn_forward.1} parent=5 // pred_fallthru
        _
      %p3698 = scmp.le.s32.totalorder 2, %s13
      // Predicated region
      $region93: #{encoder_cnn_forward.1} parent=5 // pred_check
        %p3699 = pneg %p3698
      $region94: #{encoder_cnn_forward.1} parent=5 // pred_check_branch
        %3701 = sbr.rel (%p3699) target = $region96
      $region95: #{encoder_cnn_forward.1} parent=5 // pred_region
        %s3702 = ssub.s32 %s13, 2
        // Predicated region
        $region97: #{encoder_cnn_forward.1} parent=95 // pred_check
          %p3703 = pneg %p141
        $region98: #{encoder_cnn_forward.1} parent=95 // pred_check_branch
          %3705 = sbr.rel (%p3703) target = $region100
        $region99: #{encoder_cnn_forward.1} parent=95 // pred_region
          %s3706 = sand.u32 %s126, 1
          %s3707 = scalar_lea.sflag [#allocation4], %s3706
          %s3708 = sand.u32 %s126, 1
          %s3709 = smul.addr %s3708, 2
          %s3710 = scalar_lea.vmem [#allocation3], %s3709
          %3712 = dma.done %s3707, 32
        $region100: #{encoder_cnn_forward.1} parent=95 // pred_fallthru
          _
      $region96: #{encoder_cnn_forward.1} parent=5 // pred_fallthru
        _
    $region6: #{encoder_cnn_forward.1} parent=1 // loop_footer
      %s17 = sadd.s32 1, %s13
    $region7: #{encoder_cnn_forward.1} parent=1 // loop_footer_branch
      %12 = sbr.rel target = $region3
    $region8: #{encoder_cnn_forward.1} parent=1 // loop_exit
      _
    %3713 = vsyncpa [#allocation4], 1
    %s3714 = scalar_lea.sflag [#allocation4], 1
    %3715 = vsyncpa %s3714, 1

</llo_original>
